<compile_context>
chip_gen: v7x
topology: tpu7x:2x2x1
jax: 0.10.0
libtpu: 0.0.40
codegen_flags: <defaults>
</compile_context>

<pallas_src>
import functools

import numpy as np
import jax
import jax.numpy as jnp
from jax.experimental import pallas as pl
from jax.experimental.pallas import tpu as pltpu


# -----------------------------------------------------------------------------
# Tiling helpers (lane axis is always a multiple of 128; >= 2 grid steps total).
# -----------------------------------------------------------------------------
def _round_up(x, m):
    return ((x + m - 1) // m) * m


def _tile_cap():
    """Per-chip lane-tile cap: larger where VMEM allows (v5e/v6e), smaller on v7x."""
    try:
        cap = pltpu.get_tpu_info().vmem_capacity_bytes
    except Exception:
        cap = 64 << 20
    return 1024 if cap >= (100 << 20) else 512


def _choose_tile(Mp, cap):
    tm = min(cap, Mp)
    while Mp % tm:
        tm -= 128
    return tm


def _cparams(n_axes):
    return pltpu.CompilerParams(dimension_semantics=("parallel",) * n_axes)


# -----------------------------------------------------------------------------
# Kernel A:  c1_ = conv1( cat(x, x*attn) )   and   xw = x*attn  (bf16, reused later)
# -----------------------------------------------------------------------------
def _fusion_a_kernel(x_ref, attn_ref, wa_ref, wb_ref, b_ref, c1_ref, xw_ref):
    x = x_ref[0]                                      # (C, tm) f32
    xw = x * attn_ref[0]                              # (C, tm) f32
    xw_bf = xw.astype(jnp.bfloat16)
    acc = jnp.dot(wa_ref[...], x.astype(jnp.bfloat16),
                  preferred_element_type=jnp.float32)
    acc = acc + jnp.dot(wb_ref[...], xw_bf, preferred_element_type=jnp.float32)
    acc = acc + b_ref[...]
    c1_ref[0] = acc.astype(c1_ref.dtype)
    xw_ref[0] = xw_bf


def fusion_a(x_flat, attn_flat, prep, tm):
    N, C, Mp = x_flat.shape
    f = prep["conv1_wa"].shape[0]
    g = Mp // tm
    tile3 = lambda n, j: (n, 0, j)
    bcast3 = lambda n, j: (0, 0, j)
    const = lambda n, j: (0, 0)
    return pl.pallas_call(
        _fusion_a_kernel,
        out_shape=(jax.ShapeDtypeStruct((N, f, Mp), jnp.bfloat16),
                   jax.ShapeDtypeStruct((N, C, Mp), jnp.bfloat16)),
        grid=(N, g),
        in_specs=[
            pl.BlockSpec((1, C, tm), tile3),
            pl.BlockSpec((1, 1, tm), bcast3),
            pl.BlockSpec((f, C), const),
            pl.BlockSpec((f, C), const),
            pl.BlockSpec((f, 1), const),
        ],
        out_specs=(pl.BlockSpec((1, f, tm), tile3),
                   pl.BlockSpec((1, C, tm), tile3)),
        compiler_params=_cparams(2),
    )(x_flat, attn_flat, prep["conv1_wa"], prep["conv1_wb"], prep["conv1_b"])


# -----------------------------------------------------------------------------
# Kernel LR: the whole low-resolution ESA branch in one kernel.
# Activations live as (f*H, W) per batch; convs / pool / resize are expressed as
#   out = sum_dj  L_dj @ X @ R_dj     (L: channel-mix + H-tap, R: W-tap / selection)
# with all L/R matrices precomputed on the host.
# -----------------------------------------------------------------------------
def _lowres_kernel(c1_ref, L2_ref, B2_ref, b2_ref, Lp_ref, Bp_ref,
                   Lcv_ref, Bs_ref, bcv_ref, Lup_ref, RwT_ref, o_ref):
    x = c1_ref[0].astype(jnp.float32)                       # (f*H, W)

    # conv2: 3x3, stride 2, valid  ->  (f*H2, W2)
    u = None
    for dj in range(3):
        xb = jnp.dot(x, B2_ref[dj], preferred_element_type=jnp.float32)
        t = jnp.dot(L2_ref[dj], xb, preferred_element_type=jnp.float32)
        u = t if u is None else u + t
    u = u + b2_ref[...]

    # max-pool 7x7 stride 3 (separable gather-max, no masked per-element stores)
    wmax = None
    for dj in range(7):
        gsel = jnp.dot(u, Bp_ref[dj], preferred_element_type=jnp.float32)
        wmax = gsel if wmax is None else jnp.maximum(wmax, gsel)
    v = None
    for di in range(7):
        gsel = jnp.dot(Lp_ref[di], wmax, preferred_element_type=jnp.float32)
        v = gsel if v is None else jnp.maximum(v, gsel)      # (f*Ho, Wo)

    # conv_max(+relu), conv3(+relu), conv3_   (3x3, pad 1, stride 1)
    def conv3x3_s1(t, idx, relu):
        a = None
        for dj in range(3):
            tb = jnp.dot(t, Bs_ref[dj], preferred_element_type=jnp.float32)
            z = jnp.dot(Lcv_ref[idx * 3 + dj], tb, preferred_element_type=jnp.float32)
            a = z if a is None else a + z
        a = a + bcv_ref[idx]
        return jnp.maximum(a, 0.0) if relu else a

    t = conv3x3_s1(v, 0, True)
    t = conv3x3_s1(t, 1, True)
    t = conv3x3_s1(t, 2, False)

    # bilinear (align_corners=False) upsample back to (f*H, W)
    up = jnp.dot(t, RwT_ref[...], preferred_element_type=jnp.float32)
    up = jnp.dot(Lup_ref[...], up, preferred_element_type=jnp.float32)
    o_ref[0] = up.astype(o_ref.dtype)


def lowres_branch(c1_rect, prep):
    N, FH, W = c1_rect.shape

    def full(arr):
        shp = arr.shape
        return pl.BlockSpec(shp, lambda n, _r=len(shp): (0,) * _r)

    return pl.pallas_call(
        _lowres_kernel,
        out_shape=jax.ShapeDtypeStruct((N, FH, W), jnp.float32),
        grid=(N,),
        in_specs=[
            pl.BlockSpec((1, FH, W), lambda n: (n, 0, 0)),
            full(prep["lr_L2"]), full(prep["lr_B2"]), full(prep["lr_b2"]),
            full(prep["lr_Lp"]), full(prep["lr_Bp"]),
            full(prep["lr_Lcv"]), full(prep["lr_Bs"]), full(prep["lr_bcv"]),
            full(prep["lr_Lup"]), full(prep["lr_RwT"]),
        ],
        out_specs=pl.BlockSpec((1, FH, W), lambda n: (n, 0, 0)),
        compiler_params=_cparams(1),
    )(c1_rect, prep["lr_L2"], prep["lr_B2"], prep["lr_b2"], prep["lr_Lp"],
      prep["lr_Bp"], prep["lr_Lcv"], prep["lr_Bs"], prep["lr_bcv"],
      prep["lr_Lup"], prep["lr_RwT"])


# -----------------------------------------------------------------------------
# Kernel B: cf = conv_f(c1_);  m = sigmoid(conv4(c3_up + cf));
#           out = conv1x1( cat(x, x*attn) * m )
# conv4 is one merged (2C, f) matmul + one sigmoid, then a free sublane slice.
# -----------------------------------------------------------------------------
def _fusion_b_kernel(c3_ref, c1_ref, x_ref, xw_ref,
                     wf_ref, bf_ref, w4_ref, b4_ref,
                     va_ref, vb_ref, bv_ref, o_ref, *, C):
    cf = jnp.dot(wf_ref[...], c1_ref[0], preferred_element_type=jnp.float32)
    cf = cf + bf_ref[...]
    s = (c3_ref[0] + cf).astype(jnp.bfloat16)                 # (f, tm)
    m = jax.nn.sigmoid(
        jnp.dot(w4_ref[...], s, preferred_element_type=jnp.float32) + b4_ref[...])
    x = x_ref[0]                                              # (C, tm) f32
    xw = xw_ref[0].astype(jnp.float32)                        # (C, tm)
    g_top = (x * m[:C]).astype(jnp.bfloat16)
    g_bot = (xw * m[C:]).astype(jnp.bfloat16)
    out = jnp.dot(va_ref[...], g_top, preferred_element_type=jnp.float32)
    out = out + jnp.dot(vb_ref[...], g_bot, preferred_element_type=jnp.float32)
    out = out + bv_ref[...]
    o_ref[0] = out.astype(o_ref.dtype)


def fusion_b(c3_flat, c1_flat, x_flat, xw_flat, prep, tm):
    N, C, Mp = x_flat.shape
    f = c3_flat.shape[1]
    g = Mp // tm
    tile3 = lambda n, j: (n, 0, j)
    const = lambda n, j: (0, 0)
    return pl.pallas_call(
        functools.partial(_fusion_b_kernel, C=C),
        out_shape=jax.ShapeDtypeStruct((N, C, Mp), jnp.float32),
        grid=(N, g),
        in_specs=[
            pl.BlockSpec((1, f, tm), tile3),           # c3_up
            pl.BlockSpec((1, f, tm), tile3),           # c1_
            pl.BlockSpec((1, C, tm), tile3),           # x
            pl.BlockSpec((1, C, tm), tile3),           # x*attn (bf16, from kernel A)
            pl.BlockSpec((f, f), const),               # Wf
            pl.BlockSpec((f, 1), const),               # bf
            pl.BlockSpec((2 * C, f), const),           # W4 (merged)
            pl.BlockSpec((2 * C, 1), const),           # b4
            pl.BlockSpec((C, C), const),               # V left
            pl.BlockSpec((C, C), const),               # V right
            pl.BlockSpec((C, 1), const),               # bv
        ],
        out_specs=pl.BlockSpec((1, C, tm), tile3),
        compiler_params=_cparams(2),
    )(c3_flat, c1_flat, x_flat, xw_flat,
      prep["convf_w"], prep["convf_b"], prep["conv4_w"], prep["conv4_b"],
      prep["conv1x1_wa"], prep["conv1x1_wb"], prep["conv1x1_b"])


# -----------------------------------------------------------------------------
# Host-side operator-matrix construction (one time, NumPy).
# -----------------------------------------------------------------------------
def _bilinear_matrix_np(in_size, out_size):
    """PyTorch F.interpolate(mode='bilinear', align_corners=False) as (out, in)."""
    i = np.arange(out_size, dtype=np.float64)
    scale = in_size / out_size
    src = np.clip((i + 0.5) * scale - 0.5, 0.0, None)
    i0 = np.minimum(np.floor(src).astype(np.int64), in_size - 1)
    i1 = np.minimum(i0 + 1, in_size - 1)
    lam = src - i0
    R = np.zeros((out_size, in_size), np.float32)
    R[np.arange(out_size), i0] += (1.0 - lam).astype(np.float32)
    R[np.arange(out_size), i1] += lam.astype(np.float32)
    return R


def _col_select(dj, w_in, w_out, stride, pad):
    """(w_in, w_out): output column c reads input column stride*c + dj - pad."""
    B = np.zeros((w_in, w_out), np.float32)
    for c in range(w_out):
        s = stride * c + dj - pad
        if 0 <= s < w_in:
            B[s, c] = 1.0
    return B


def _row_select(di, h_in, h_out, stride, pad):
    A = np.zeros((h_out, h_in), np.float32)
    for r in range(h_out):
        s = stride * r + di - pad
        if 0 <= s < h_in:
            A[r, s] = 1.0
    return A


def _conv_left(w, dj, h_in, h_out, stride, pad):
    """Channel-mix + H-taps (summed over di) operator: (f_out*h_out, f_in*h_in)."""
    L = np.zeros((w.shape[0] * h_out, w.shape[1] * h_in), np.float32)
    for di in range(w.shape[2]):
        A = _row_select(di, h_in, h_out, stride, pad)
        L += np.kron(w[:, :, di, dj], A)
    return L


# -----------------------------------------------------------------------------
# Parameters: PyTorch-style init + one-time kernel-layout preparation.
# -----------------------------------------------------------------------------
def make_attention_weights(width):
    # Synthetic deterministic stand-in for
    # S360.weights.theta_confidence(S360.grid.create_spherical_grid(width)).
    # TODO(synk): exact S360 spherical-grid/confidence formula not reproduced verbatim.
    H = width // 2
    v = (jnp.arange(H, dtype=jnp.float32) + 0.5) / H
    theta = (v - 0.5) * jnp.pi
    conf = 1.0 - jnp.abs(theta) / (jnp.pi / 2.0)
    return jnp.broadcast_to(conf[None, None, :, None], (1, 1, H, width)).astype(jnp.float32)


def init_params(key, in_channels):
    n_feats = in_channels * 2
    f = n_feats // 4

    def init_conv(k, cout, cin, ksz):
        wk, bk = jax.random.split(k)
        fan_in = cin * ksz * ksz
        w = jax.random.normal(wk, (cout, cin, ksz, ksz), jnp.float32) / np.sqrt(fan_in)
        b = jax.random.normal(bk, (cout,), jnp.float32) * 0.01
        return w, b

    keys = jax.random.split(key, 8)
    p = {}
    p["conv1_w"],   p["conv1_b"]   = init_conv(keys[0], f, n_feats, 1)
    p["convf_w"],   p["convf_b"]   = init_conv(keys[1], f, f, 1)
    p["convmax_w"], p["convmax_b"] = init_conv(keys[2], f, f, 3)
    p["conv2_w"],   p["conv2_b"]   = init_conv(keys[3], f, f, 3)
    p["conv3_w"],   p["conv3_b"]   = init_conv(keys[4], f, f, 3)
    p["conv3__w"],  p["conv3__b"]  = init_conv(keys[5], f, f, 3)
    p["conv4_w"],   p["conv4_b"]   = init_conv(keys[6], n_feats, f, 1)
    p["conv1x1_w"], p["conv1x1_b"] = init_conv(keys[7], in_channels, n_feats, 1)
    return p


def prepare_params(p, in_channels, H, W):
    """One-time layout prep: bf16 matmul weights + low-res-branch operator matrices."""
    C = in_channels
    f = (2 * C) // 4
    bf16 = jnp.bfloat16

    def npw(a):
        return np.asarray(jax.device_get(a), np.float32)

    def col(b):
        return jnp.asarray(npw(b).reshape(-1, 1))

    prep = {}

    # ---- Kernel A: conv1 over cat(x, x*attn), split into two (f, C) halves
    w1 = npw(p["conv1_w"])[:, :, 0, 0]                              # (f, 2C)
    prep["conv1_wa"] = jnp.asarray(w1[:, :C]).astype(bf16)
    prep["conv1_wb"] = jnp.asarray(w1[:, C:]).astype(bf16)
    prep["conv1_b"] = col(p["conv1_b"])

    # ---- Kernel LR: operator matrices
    H2, W2 = (H - 3) // 2 + 1, (W - 3) // 2 + 1                     # conv2 s2 valid
    Ho, Wo = (H2 - 7) // 3 + 1, (W2 - 7) // 3 + 1                   # maxpool 7/3
    assert Ho >= 1 and Wo >= 1, "input too small for the 7x7/s3 pool"

    w2 = npw(p["conv2_w"])
    L2 = np.stack([_conv_left(w2, dj, H, H2, 2, 0) for dj in range(3)])
    B2 = np.stack([_col_select(dj, W, W2, 2, 0) for dj in range(3)])
    b2 = np.repeat(npw(p["conv2_b"]), H2).reshape(-1, 1)

    eye_f = np.eye(f, dtype=np.float32)
    Lp = np.stack([np.kron(eye_f, _row_select(di, H2, Ho, 3, 0)) for di in range(7)])
    Bp = np.stack([_col_select(dj, W2, Wo, 3, 0) for dj in range(7)])

    Lcv, bcv = [], []
    for name in ("convmax", "conv3", "conv3_"):
        wq = npw(p[name + "_w"])
        for dj in range(3):
            Lcv.append(_conv_left(wq, dj, Ho, Ho, 1, 1))
        bcv.append(np.repeat(npw(p[name + "_b"]), Ho).reshape(-1, 1))
    Lcv = np.stack(Lcv)                                             # (9, f*Ho, f*Ho)
    bcv = np.stack(bcv)                                             # (3, f*Ho, 1)
    Bs = np.stack([_col_select(dj, Wo, Wo, 1, 1) for dj in range(3)])

    Lup = np.kron(eye_f, _bilinear_matrix_np(Ho, H))                # (f*H, f*Ho)
    RwT = _bilinear_matrix_np(Wo, W).T                              # (Wo, W)

    for k, v in (("lr_L2", L2), ("lr_B2", B2), ("lr_b2", b2), ("lr_Lp", Lp),
                 ("lr_Bp", Bp), ("lr_Lcv", Lcv), ("lr_Bs", Bs), ("lr_bcv", bcv),
                 ("lr_Lup", Lup), ("lr_RwT", RwT)):
        prep[k] = jnp.asarray(v)

    # ---- Kernel B
    prep["convf_w"] = jnp.asarray(npw(p["convf_w"])[:, :, 0, 0]).astype(bf16)
    prep["convf_b"] = col(p["convf_b"])
    prep["conv4_w"] = jnp.asarray(npw(p["conv4_w"])[:, :, 0, 0]).astype(bf16)   # (2C, f)
    prep["conv4_b"] = col(p["conv4_b"])
    v1 = npw(p["conv1x1_w"])[:, :, 0, 0]                            # (C, 2C)
    prep["conv1x1_wa"] = jnp.asarray(v1[:, :C]).astype(bf16)
    prep["conv1x1_wb"] = jnp.asarray(v1[:, C:]).astype(bf16)
    prep["conv1x1_b"] = col(p["conv1x1_b"])
    return prep


# -----------------------------------------------------------------------------
# Forward (matches Weight_upsample.forward semantics).
# -----------------------------------------------------------------------------
def weight_upsample_forward(x, prep, attn):
    N, C, H, W = x.shape
    f = prep["conv1_wa"].shape[0]
    M = H * W
    Mp = _round_up(M, 128)
    tm = _choose_tile(Mp, _tile_cap())
    assert Mp % tm == 0

    x_flat = x.reshape(N, C, M)
    attn_flat = attn.reshape(1, 1, M).astype(x.dtype)
    if Mp != M:
        pad = ((0, 0), (0, 0), (0, Mp - M))
        x_flat = jnp.pad(x_flat, pad)
        attn_flat = jnp.pad(attn_flat, pad)

    # Kernel A: conv1(cat(x, x*attn)); also emits xw = x*attn (bf16).
    c1_flat, xw_flat = fusion_a(x_flat, attn_flat, prep, tm)

    # Kernel LR: fused conv2 -> maxpool -> conv_max -> conv3 -> conv3_ -> bilinear.
    c1_rect = c1_flat[:, :, :M].reshape(N, f * H, W)
    c3up_rect = lowres_branch(c1_rect, prep)                        # (N, f*H, W) f32
    c3up_flat = c3up_rect.reshape(N, f, M)
    if Mp != M:
        c3up_flat = jnp.pad(c3up_flat, ((0, 0), (0, 0), (0, Mp - M)))

    # Kernel B: conv_f + add + conv4 + sigmoid + gating + conv1x1.
    out_flat = fusion_b(c3up_flat, c1_flat, x_flat, xw_flat, prep, tm)
    return out_flat[:, :, :M].reshape(N, C, H, W)


# -----------------------------------------------------------------------------
# Pure-JAX f32 reference (lax conv / reduce_window) for a correctness sanity check.
# -----------------------------------------------------------------------------
def _conv2d_ref(x, w, b, stride=1, pad=0):
    out = jax.lax.conv_general_dilated(
        x, w, window_strides=(stride, stride),
        padding=((pad, pad), (pad, pad)),
        dimension_numbers=("NCHW", "OIHW", "NCHW"),
        precision=jax.lax.Precision.HIGHEST)
    return out + b.reshape(1, -1, 1, 1)


def _maxpool_ref(x, k, s):
    return jax.lax.reduce_window(x, -jnp.inf, jax.lax.max,
                                 (1, 1, k, k), (1, 1, s, s), "VALID")


def _bilinear_ref(x, out_h, out_w):
    _, _, h, w = x.shape
    Rh = jnp.asarray(_bilinear_matrix_np(h, out_h))
    Rw = jnp.asarray(_bilinear_matrix_np(w, out_w))
    return jnp.einsum("Hh,nchw,Ww->ncHW", Rh, x, Rw,
                      precision=jax.lax.Precision.HIGHEST)


def reference_forward(x, p, attn):
    y = x * attn
    fusion = jnp.concatenate([x, y], axis=1)
    c1_ = _conv2d_ref(fusion, p["conv1_w"], p["conv1_b"])
    c1 = _conv2d_ref(c1_, p["conv2_w"], p["conv2_b"], stride=2, pad=0)
    v_max = _maxpool_ref(c1, 7, 3)
    v_range = jax.nn.relu(_conv2d_ref(v_max, p["convmax_w"], p["convmax_b"], pad=1))
    c3 = jax.nn.relu(_conv2d_ref(v_range, p["conv3_w"], p["conv3_b"], pad=1))
    c3 = _conv2d_ref(c3, p["conv3__w"], p["conv3__b"], pad=1)
    c3 = _bilinear_ref(c3, x.shape[2], x.shape[3])
    cf = _conv2d_ref(c1_, p["convf_w"], p["convf_b"])
    c4 = _conv2d_ref(c3 + cf, p["conv4_w"], p["conv4_b"])
    m = jax.nn.sigmoid(c4)
    return _conv2d_ref(fusion * m, p["conv1x1_w"], p["conv1x1_b"])


# -----------------------------------------------------------------------------
if __name__ == "__main__":
    in_channels = 8
    width = 32
    batch = 2
    H, W = width // 2, width                        # equirectangular grid

    key = jax.random.PRNGKey(0)
    pkey, xkey = jax.random.split(key)
    params = init_params(pkey, in_channels)
    prep = prepare_params(params, in_channels, H, W)
    attn_w = make_attention_weights(width)
    x = jax.random.normal(xkey, (batch, in_channels, H, W), jnp.float32)

    fwd = jax.jit(weight_upsample_forward)
    out = jax.block_until_ready(fwd(x, prep, attn_w))
    assert out.shape == (batch, in_channels, H, W), out.shape
    assert bool(jnp.all(jnp.isfinite(out)))

    # Sanity check against the f32 pure-JAX reference (bf16 MXU operands drift a bit).
    ref = jax.jit(reference_forward)(x, params, attn_w)
    err = float(jnp.max(jnp.abs(out - ref)) / (jnp.max(jnp.abs(ref)) + 1e-6))
    assert err < 5e-2, f"mismatch vs reference: rel-to-max err {err:.4f}"
    print("KERNEL_OK")
</pallas_src>

<mosaic_0001>
module attributes {stable_mosaic.version = 11 : i64} {
  func.func @_fusion_a_kernel(%arg0: i32, %arg1: i32, %arg2: memref<1x8x512xf32, #tpu.memory_space<vmem>>, %arg3: memref<1x1x512xf32, #tpu.memory_space<vmem>>, %arg4: memref<4x8xbf16, #tpu.memory_space<vmem>>, %arg5: memref<4x8xbf16, #tpu.memory_space<vmem>>, %arg6: memref<4x1xf32, #tpu.memory_space<vmem>>, %arg7: memref<1x4x512xbf16, #tpu.memory_space<vmem>>, %arg8: memref<1x8x512xbf16, #tpu.memory_space<vmem>>) attributes {dimension_semantics = [#tpu.dimension_semantics<parallel>, #tpu.dimension_semantics<parallel>], iteration_bounds = array<i64: 2, 1>, scalar_prefetch = 0 : i64, scratch_operands = 0 : i64, tpu.core_type = #tpu.core_type<tc>, window_params = [{transform_indices = @transform_0, window_bounds = array<i64: 1, 8, 512>}, {transform_indices = @transform_1, window_bounds = array<i64: 1, 1, 512>}, {pipeline_mode = #tpu.pipeline_mode<synchronous>, transform_indices = @transform_2, window_bounds = array<i64: 4, 8>}, {pipeline_mode = #tpu.pipeline_mode<synchronous>, transform_indices = @transform_3, window_bounds = array<i64: 4, 8>}, {pipeline_mode = #tpu.pipeline_mode<synchronous>, transform_indices = @transform_4, window_bounds = array<i64: 4, 1>}, {transform_indices = @transform_5, window_bounds = array<i64: 1, 4, 512>}, {transform_indices = @transform_6, window_bounds = array<i64: 1, 8, 512>}]} {
    %c0 = arith.constant 0 : index
    %c0_0 = arith.constant 0 : index
    %c0_1 = arith.constant 0 : index
    %0 = vector.load %arg2[%c0, %c0_0, %c0_1] : memref<1x8x512xf32, #tpu.memory_space<vmem>>, vector<1x8x512xf32>
    %1 = vector.shape_cast %0 : vector<1x8x512xf32> to vector<8x512xf32>
    %c0_2 = arith.constant 0 : index
    %c0_3 = arith.constant 0 : index
    %c0_4 = arith.constant 0 : index
    %2 = vector.load %arg3[%c0_2, %c0_3, %c0_4] : memref<1x1x512xf32, #tpu.memory_space<vmem>>, vector<1x1x512xf32>
    %3 = vector.shape_cast %2 : vector<1x1x512xf32> to vector<1x512xf32>
    %4 = vector.broadcast %3 : vector<1x512xf32> to vector<8x512xf32>
    %5 = arith.mulf %1, %4 : vector<8x512xf32>
    %6 = arith.truncf %5 : vector<8x512xf32> to vector<8x512xbf16>
    %c0_5 = arith.constant 0 : index
    %c0_6 = arith.constant 0 : index
    %7 = vector.load %arg4[%c0_5, %c0_6] : memref<4x8xbf16, #tpu.memory_space<vmem>>, vector<4x8xbf16>
    %8 = arith.truncf %1 : vector<8x512xf32> to vector<8x512xbf16>
    %cst = arith.constant dense<0.000000e+00> : vector<4x512xf32>
    %9 = tpu.matmul %7, %8, %cst {dimension_numbers = #tpu.dot_dimension_numbers<[1], [0], [0], [1], [0, 0, 1, 1], [], []>} : vector<4x8xbf16>, vector<8x512xbf16>, vector<4x512xf32> -> vector<4x512xf32>
    %c0_7 = arith.constant 0 : index
    %c0_8 = arith.constant 0 : index
    %10 = vector.load %arg5[%c0_7, %c0_8] : memref<4x8xbf16, #tpu.memory_space<vmem>>, vector<4x8xbf16>
    %cst_9 = arith.constant dense<0.000000e+00> : vector<4x512xf32>
    %11 = tpu.matmul %10, %6, %cst_9 {dimension_numbers = #tpu.dot_dimension_numbers<[1], [0], [0], [1], [0, 0, 1, 1], [], []>} : vector<4x8xbf16>, vector<8x512xbf16>, vector<4x512xf32> -> vector<4x512xf32>
    %12 = arith.addf %9, %11 : vector<4x512xf32>
    %c0_10 = arith.constant 0 : index
    %c0_11 = arith.constant 0 : index
    %13 = vector.load %arg6[%c0_10, %c0_11] : memref<4x1xf32, #tpu.memory_space<vmem>>, vector<4x1xf32>
    %14 = vector.broadcast %13 : vector<4x1xf32> to vector<4x512xf32>
    %15 = arith.addf %12, %14 : vector<4x512xf32>
    %16 = arith.truncf %15 : vector<4x512xf32> to vector<4x512xbf16>
    %c0_12 = arith.constant 0 : index
    %c0_13 = arith.constant 0 : index
    %c0_14 = arith.constant 0 : index
    %17 = vector.load %arg7[%c0_12, %c0_13, %c0_14] : memref<1x4x512xbf16, #tpu.memory_space<vmem>>, vector<1x4x512xbf16>
    %18 = vector.shape_cast %17 : vector<1x4x512xbf16> to vector<4x512xbf16>
    %19 = vector.shape_cast %16 : vector<4x512xbf16> to vector<1x4x512xbf16>
    tpu.vector_store %arg7[%c0_12, %c0_13, %c0_14], %19 {strides = array<i32>} : memref<1x4x512xbf16, #tpu.memory_space<vmem>>, vector<1x4x512xbf16>,
    %c0_15 = arith.constant 0 : index
    %c0_16 = arith.constant 0 : index
    %c0_17 = arith.constant 0 : index
    %20 = vector.load %arg8[%c0_15, %c0_16, %c0_17] : memref<1x8x512xbf16, #tpu.memory_space<vmem>>, vector<1x8x512xbf16>
    %21 = vector.shape_cast %20 : vector<1x8x512xbf16> to vector<8x512xbf16>
    %22 = vector.shape_cast %6 : vector<8x512xbf16> to vector<1x8x512xbf16>
    tpu.vector_store %arg8[%c0_15, %c0_16, %c0_17], %22 {strides = array<i32>} : memref<1x8x512xbf16, #tpu.memory_space<vmem>>, vector<1x8x512xbf16>,
    return
  }
  func.func @transform_0(%arg0: i32, %arg1: i32) -> (i32, i32, i32) {
    %c0_i32 = arith.constant 0 : i32
    %c0_i32_0 = arith.constant 0 : i32
    return %arg0, %c0_i32, %arg1 : i32, i32, i32
  }
  func.func @transform_1(%arg0: i32, %arg1: i32) -> (i32, i32, i32) {
    %c0_i32 = arith.constant 0 : i32
    %c0_i32_0 = arith.constant 0 : i32
    %c0_i32_1 = arith.constant 0 : i32
    return %c0_i32, %c0_i32_0, %arg1 : i32, i32, i32
  }
  func.func @transform_2(%arg0: i32, %arg1: i32) -> (i32, i32) {
    %c0_i32 = arith.constant 0 : i32
    %c0_i32_0 = arith.constant 0 : i32
    %c0_i32_1 = arith.constant 0 : i32
    return %c0_i32, %c0_i32_0 : i32, i32
  }
  func.func @transform_3(%arg0: i32, %arg1: i32) -> (i32, i32) {
    %c0_i32 = arith.constant 0 : i32
    %c0_i32_0 = arith.constant 0 : i32
    %c0_i32_1 = arith.constant 0 : i32
    return %c0_i32, %c0_i32_0 : i32, i32
  }
  func.func @transform_4(%arg0: i32, %arg1: i32) -> (i32, i32) {
    %c0_i32 = arith.constant 0 : i32
    %c0_i32_0 = arith.constant 0 : i32
    %c0_i32_1 = arith.constant 0 : i32
    return %c0_i32, %c0_i32_0 : i32, i32
  }
  func.func @transform_5(%arg0: i32, %arg1: i32) -> (i32, i32, i32) {
    %c0_i32 = arith.constant 0 : i32
    %c0_i32_0 = arith.constant 0 : i32
    return %arg0, %c0_i32, %arg1 : i32, i32, i32
  }
  func.func @transform_6(%arg0: i32, %arg1: i32) -> (i32, i32, i32) {
    %c0_i32 = arith.constant 0 : i32
    %c0_i32_0 = arith.constant 0 : i32
    return %arg0, %c0_i32, %arg1 : i32, i32, i32
  }
}

module attributes {stable_mosaic.version = 11 : i64} {
  func.func @_lowres_kernel(%arg0: i32, %arg1: memref<1x64x32xbf16, #tpu.memory_space<vmem>>, %arg2: memref<3x28x64xf32, #tpu.memory_space<vmem>>, %arg3: memref<3x32x15xf32, #tpu.memory_space<vmem>>, %arg4: memref<28x1xf32, #tpu.memory_space<vmem>>, %arg5: memref<7x4x28xf32, #tpu.memory_space<vmem>>, %arg6: memref<7x15x3xf32, #tpu.memory_space<vmem>>, %arg7: memref<9x4x4xf32, #tpu.memory_space<vmem>>, %arg8: memref<3x3x3xf32, #tpu.memory_space<vmem>>, %arg9: memref<3x4x1xf32, #tpu.memory_space<vmem>>, %arg10: memref<64x4xf32, #tpu.memory_space<vmem>>, %arg11: memref<3x32xf32, #tpu.memory_space<vmem>>, %arg12: memref<1x64x32xf32, #tpu.memory_space<vmem>>) attributes {dimension_semantics = [#tpu.dimension_semantics<parallel>], iteration_bounds = array<i64: 2>, scalar_prefetch = 0 : i64, scratch_operands = 0 : i64, tpu.core_type = #tpu.core_type<tc>, window_params = [{transform_indices = @transform_0, window_bounds = array<i64: 1, 64, 32>}, {pipeline_mode = #tpu.pipeline_mode<synchronous>, transform_indices = @transform_1, window_bounds = array<i64: 3, 28, 64>}, {pipeline_mode = #tpu.pipeline_mode<synchronous>, transform_indices = @transform_2, window_bounds = array<i64: 3, 32, 15>}, {pipeline_mode = #tpu.pipeline_mode<synchronous>, transform_indices = @transform_3, window_bounds = array<i64: 28, 1>}, {pipeline_mode = #tpu.pipeline_mode<synchronous>, transform_indices = @transform_4, window_bounds = array<i64: 7, 4, 28>}, {pipeline_mode = #tpu.pipeline_mode<synchronous>, transform_indices = @transform_5, window_bounds = array<i64: 7, 15, 3>}, {pipeline_mode = #tpu.pipeline_mode<synchronous>, transform_indices = @transform_6, window_bounds = array<i64: 9, 4, 4>}, {pipeline_mode = #tpu.pipeline_mode<synchronous>, transform_indices = @transform_7, window_bounds = array<i64: 3, 3, 3>}, {pipeline_mode = #tpu.pipeline_mode<synchronous>, transform_indices = @transform_8, window_bounds = array<i64: 3, 4, 1>}, {pipeline_mode = #tpu.pipeline_mode<synchronous>, transform_indices = @transform_9, window_bounds = array<i64: 64, 4>}, {pipeline_mode = #tpu.pipeline_mode<synchronous>, transform_indices = @transform_10, window_bounds = array<i64: 3, 32>}, {transform_indices = @transform_11, window_bounds = array<i64: 1, 64, 32>}]} {
    %c0 = arith.constant 0 : index
    %c0_0 = arith.constant 0 : index
    %c0_1 = arith.constant 0 : index
    %0 = vector.load %arg1[%c0, %c0_0, %c0_1] : memref<1x64x32xbf16, #tpu.memory_space<vmem>>, vector<1x64x32xbf16>
    %1 = vector.shape_cast %0 : vector<1x64x32xbf16> to vector<64x32xbf16>
    %2 = arith.extf %1 : vector<64x32xbf16> to vector<64x32xf32>
    %c0_2 = arith.constant 0 : index
    %c0_3 = arith.constant 0 : index
    %c0_4 = arith.constant 0 : index
    %3 = vector.load %arg3[%c0_2, %c0_3, %c0_4] : memref<3x32x15xf32, #tpu.memory_space<vmem>>, vector<1x32x15xf32>
    %4 = vector.shape_cast %3 : vector<1x32x15xf32> to vector<32x15xf32>
    %cst = arith.constant dense<0.000000e+00> : vector<64x15xf32>
    %5 = tpu.matmul %2, %4, %cst {dimension_numbers = #tpu.dot_dimension_numbers<[1], [0], [0], [1], [0, 0, 1, 1], [], []>} : vector<64x32xf32>, vector<32x15xf32>, vector<64x15xf32> -> vector<64x15xf32>
    %c0_5 = arith.constant 0 : index
    %c0_6 = arith.constant 0 : index
    %c0_7 = arith.constant 0 : index
    %6 = vector.load %arg2[%c0_5, %c0_6, %c0_7] : memref<3x28x64xf32, #tpu.memory_space<vmem>>, vector<1x28x64xf32>
    %7 = vector.shape_cast %6 : vector<1x28x64xf32> to vector<28x64xf32>
    %cst_8 = arith.constant dense<0.000000e+00> : vector<28x15xf32>
    %8 = tpu.matmul %7, %5, %cst_8 {dimension_numbers = #tpu.dot_dimension_numbers<[1], [0], [0], [1], [0, 0, 1, 1], [], []>} : vector<28x64xf32>, vector<64x15xf32>, vector<28x15xf32> -> vector<28x15xf32>
    %c1 = arith.constant 1 : index
    %c0_9 = arith.constant 0 : index
    %c0_10 = arith.constant 0 : index
    %9 = vector.load %arg3[%c1, %c0_9, %c0_10] : memref<3x32x15xf32, #tpu.memory_space<vmem>>, vector<1x32x15xf32>
    %10 = vector.shape_cast %9 : vector<1x32x15xf32> to vector<32x15xf32>
    %cst_11 = arith.constant dense<0.000000e+00> : vector<64x15xf32>
    %11 = tpu.matmul %2, %10, %cst_11 {dimension_numbers = #tpu.dot_dimension_numbers<[1], [0], [0], [1], [0, 0, 1, 1], [], []>} : vector<64x32xf32>, vector<32x15xf32>, vector<64x15xf32> -> vector<64x15xf32>
    %c1_12 = arith.constant 1 : index
    %c0_13 = arith.constant 0 : index
    %c0_14 = arith.constant 0 : index
    %12 = vector.load %arg2[%c1_12, %c0_13, %c0_14] : memref<3x28x64xf32, #tpu.memory_space<vmem>>, vector<1x28x64xf32>
    %13 = vector.shape_cast %12 : vector<1x28x64xf32> to vector<28x64xf32>
    %cst_15 = arith.constant dense<0.000000e+00> : vector<28x15xf32>
    %14 = tpu.matmul %13, %11, %cst_15 {dimension_numbers = #tpu.dot_dimension_numbers<[1], [0], [0], [1], [0, 0, 1, 1], [], []>} : vector<28x64xf32>, vector<64x15xf32>, vector<28x15xf32> -> vector<28x15xf32>
    %15 = arith.addf %8, %14 : vector<28x15xf32>
    %c2 = arith.constant 2 : index
    %c0_16 = arith.constant 0 : index
    %c0_17 = arith.constant 0 : index
    %16 = vector.load %arg3[%c2, %c0_16, %c0_17] : memref<3x32x15xf32, #tpu.memory_space<vmem>>, vector<1x32x15xf32>
    %17 = vector.shape_cast %16 : vector<1x32x15xf32> to vector<32x15xf32>
    %cst_18 = arith.constant dense<0.000000e+00> : vector<64x15xf32>
    %18 = tpu.matmul %2, %17, %cst_18 {dimension_numbers = #tpu.dot_dimension_numbers<[1], [0], [0], [1], [0, 0, 1, 1], [], []>} : vector<64x32xf32>, vector<32x15xf32>, vector<64x15xf32> -> vector<64x15xf32>
    %c2_19 = arith.constant 2 : index
    %c0_20 = arith.constant 0 : index
    %c0_21 = arith.constant 0 : index
    %19 = vector.load %arg2[%c2_19, %c0_20, %c0_21] : memref<3x28x64xf32, #tpu.memory_space<vmem>>, vector<1x28x64xf32>
    %20 = vector.shape_cast %19 : vector<1x28x64xf32> to vector<28x64xf32>
    %cst_22 = arith.constant dense<0.000000e+00> : vector<28x15xf32>
    %21 = tpu.matmul %20, %18, %cst_22 {dimension_numbers = #tpu.dot_dimension_numbers<[1], [0], [0], [1], [0, 0, 1, 1], [], []>} : vector<28x64xf32>, vector<64x15xf32>, vector<28x15xf32> -> vector<28x15xf32>
    %22 = arith.addf %15, %21 : vector<28x15xf32>
    %c0_23 = arith.constant 0 : index
    %c0_24 = arith.constant 0 : index
    %23 = vector.load %arg4[%c0_23, %c0_24] : memref<28x1xf32, #tpu.memory_space<vmem>>, vector<28x1xf32>
    %24 = vector.broadcast %23 : vector<28x1xf32> to vector<28x15xf32>
    %25 = arith.addf %22, %24 : vector<28x15xf32>
    %c0_25 = arith.constant 0 : index
    %c0_26 = arith.constant 0 : index
    %c0_27 = arith.constant 0 : index
    %26 = vector.load %arg6[%c0_25, %c0_26, %c0_27] : memref<7x15x3xf32, #tpu.memory_space<vmem>>, vector<1x15x3xf32>
    %27 = vector.shape_cast %26 : vector<1x15x3xf32> to vector<15x3xf32>
    %cst_28 = arith.constant dense<0.000000e+00> : vector<28x3xf32>
    %28 = tpu.matmul %25, %27, %cst_28 {dimension_numbers = #tpu.dot_dimension_numbers<[1], [0], [0], [1], [0, 0, 1, 1], [], []>} : vector<28x15xf32>, vector<15x3xf32>, vector<28x3xf32> -> vector<28x3xf32>
    %c1_29 = arith.constant 1 : index
    %c0_30 = arith.constant 0 : index
    %c0_31 = arith.constant 0 : index
    %29 = vector.load %arg6[%c1_29, %c0_30, %c0_31] : memref<7x15x3xf32, #tpu.memory_space<vmem>>, vector<1x15x3xf32>
    %30 = vector.shape_cast %29 : vector<1x15x3xf32> to vector<15x3xf32>
    %cst_32 = arith.constant dense<0.000000e+00> : vector<28x3xf32>
    %31 = tpu.matmul %25, %30, %cst_32 {dimension_numbers = #tpu.dot_dimension_numbers<[1], [0], [0], [1], [0, 0, 1, 1], [], []>} : vector<28x15xf32>, vector<15x3xf32>, vector<28x3xf32> -> vector<28x3xf32>
    %32 = arith.maximumf %28, %31 : vector<28x3xf32>
    %c2_33 = arith.constant 2 : index
    %c0_34 = arith.constant 0 : index
    %c0_35 = arith.constant 0 : index
    %33 = vector.load %arg6[%c2_33, %c0_34, %c0_35] : memref<7x15x3xf32, #tpu.memory_space<vmem>>, vector<1x15x3xf32>
    %34 = vector.shape_cast %33 : vector<1x15x3xf32> to vector<15x3xf32>
    %cst_36 = arith.constant dense<0.000000e+00> : vector<28x3xf32>
    %35 = tpu.matmul %25, %34, %cst_36 {dimension_numbers = #tpu.dot_dimension_numbers<[1], [0], [0], [1], [0, 0, 1, 1], [], []>} : vector<28x15xf32>, vector<15x3xf32>, vector<28x3xf32> -> vector<28x3xf32>
    %36 = arith.maximumf %32, %35 : vector<28x3xf32>
    %c3 = arith.constant 3 : index
    %c0_37 = arith.constant 0 : index
    %c0_38 = arith.constant 0 : index
    %37 = vector.load %arg6[%c3, %c0_37, %c0_38] : memref<7x15x3xf32, #tpu.memory_space<vmem>>, vector<1x15x3xf32>
    %38 = vector.shape_cast %37 : vector<1x15x3xf32> to vector<15x3xf32>
    %cst_39 = arith.constant dense<0.000000e+00> : vector<28x3xf32>
    %39 = tpu.matmul %25, %38, %cst_39 {dimension_numbers = #tpu.dot_dimension_numbers<[1], [0], [0], [1], [0, 0, 1, 1], [], []>} : vector<28x15xf32>, vector<15x3xf32>, vector<28x3xf32> -> vector<28x3xf32>
    %40 = arith.maximumf %36, %39 : vector<28x3xf32>
    %c4 = arith.constant 4 : index
    %c0_40 = arith.constant 0 : index
    %c0_41 = arith.constant 0 : index
    %41 = vector.load %arg6[%c4, %c0_40, %c0_41] : memref<7x15x3xf32, #tpu.memory_space<vmem>>, vector<1x15x3xf32>
    %42 = vector.shape_cast %41 : vector<1x15x3xf32> to vector<15x3xf32>
    %cst_42 = arith.constant dense<0.000000e+00> : vector<28x3xf32>
    %43 = tpu.matmul %25, %42, %cst_42 {dimension_numbers = #tpu.dot_dimension_numbers<[1], [0], [0], [1], [0, 0, 1, 1], [], []>} : vector<28x15xf32>, vector<15x3xf32>, vector<28x3xf32> -> vector<28x3xf32>
    %44 = arith.maximumf %40, %43 : vector<28x3xf32>
    %c5 = arith.constant 5 : index
    %c0_43 = arith.constant 0 : index
    %c0_44 = arith.constant 0 : index
    %45 = vector.load %arg6[%c5, %c0_43, %c0_44] : memref<7x15x3xf32, #tpu.memory_space<vmem>>, vector<1x15x3xf32>
    %46 = vector.shape_cast %45 : vector<1x15x3xf32> to vector<15x3xf32>
    %cst_45 = arith.constant dense<0.000000e+00> : vector<28x3xf32>
    %47 = tpu.matmul %25, %46, %cst_45 {dimension_numbers = #tpu.dot_dimension_numbers<[1], [0], [0], [1], [0, 0, 1, 1], [], []>} : vector<28x15xf32>, vector<15x3xf32>, vector<28x3xf32> -> vector<28x3xf32>
    %48 = arith.maximumf %44, %47 : vector<28x3xf32>
    %c6 = arith.constant 6 : index
    %c0_46 = arith.constant 0 : index
    %c0_47 = arith.constant 0 : index
    %49 = vector.load %arg6[%c6, %c0_46, %c0_47] : memref<7x15x3xf32, #tpu.memory_space<vmem>>, vector<1x15x3xf32>
    %50 = vector.shape_cast %49 : vector<1x15x3xf32> to vector<15x3xf32>
    %cst_48 = arith.constant dense<0.000000e+00> : vector<28x3xf32>
    %51 = tpu.matmul %25, %50, %cst_48 {dimension_numbers = #tpu.dot_dimension_numbers<[1], [0], [0], [1], [0, 0, 1, 1], [], []>} : vector<28x15xf32>, vector<15x3xf32>, vector<28x3xf32> -> vector<28x3xf32>
    %52 = arith.maximumf %48, %51 : vector<28x3xf32>
    %c0_49 = arith.constant 0 : index
    %c0_50 = arith.constant 0 : index
    %c0_51 = arith.constant 0 : index
    %53 = vector.load %arg5[%c0_49, %c0_50, %c0_51] : memref<7x4x28xf32, #tpu.memory_space<vmem>>, vector<1x4x28xf32>
    %54 = vector.shape_cast %53 : vector<1x4x28xf32> to vector<4x28xf32>
    %cst_52 = arith.constant dense<0.000000e+00> : vector<4x3xf32>
    %55 = tpu.matmul %54, %52, %cst_52 {dimension_numbers = #tpu.dot_dimension_numbers<[1], [0], [0], [1], [0, 0, 1, 1], [], []>} : vector<4x28xf32>, vector<28x3xf32>, vector<4x3xf32> -> vector<4x3xf32>
    %c1_53 = arith.constant 1 : index
    %c0_54 = arith.constant 0 : index
    %c0_55 = arith.constant 0 : index
    %56 = vector.load %arg5[%c1_53, %c0_54, %c0_55] : memref<7x4x28xf32, #tpu.memory_space<vmem>>, vector<1x4x28xf32>
    %57 = vector.shape_cast %56 : vector<1x4x28xf32> to vector<4x28xf32>
    %cst_56 = arith.constant dense<0.000000e+00> : vector<4x3xf32>
    %58 = tpu.matmul %57, %52, %cst_56 {dimension_numbers = #tpu.dot_dimension_numbers<[1], [0], [0], [1], [0, 0, 1, 1], [], []>} : vector<4x28xf32>, vector<28x3xf32>, vector<4x3xf32> -> vector<4x3xf32>
    %59 = arith.maximumf %55, %58 : vector<4x3xf32>
    %c2_57 = arith.constant 2 : index
    %c0_58 = arith.constant 0 : index
    %c0_59 = arith.constant 0 : index
    %60 = vector.load %arg5[%c2_57, %c0_58, %c0_59] : memref<7x4x28xf32, #tpu.memory_space<vmem>>, vector<1x4x28xf32>
    %61 = vector.shape_cast %60 : vector<1x4x28xf32> to vector<4x28xf32>
    %cst_60 = arith.constant dense<0.000000e+00> : vector<4x3xf32>
    %62 = tpu.matmul %61, %52, %cst_60 {dimension_numbers = #tpu.dot_dimension_numbers<[1], [0], [0], [1], [0, 0, 1, 1], [], []>} : vector<4x28xf32>, vector<28x3xf32>, vector<4x3xf32> -> vector<4x3xf32>
    %63 = arith.maximumf %59, %62 : vector<4x3xf32>
    %c3_61 = arith.constant 3 : index
    %c0_62 = arith.constant 0 : index
    %c0_63 = arith.constant 0 : index
    %64 = vector.load %arg5[%c3_61, %c0_62, %c0_63] : memref<7x4x28xf32, #tpu.memory_space<vmem>>, vector<1x4x28xf32>
    %65 = vector.shape_cast %64 : vector<1x4x28xf32> to vector<4x28xf32>
    %cst_64 = arith.constant dense<0.000000e+00> : vector<4x3xf32>
    %66 = tpu.matmul %65, %52, %cst_64 {dimension_numbers = #tpu.dot_dimension_numbers<[1], [0], [0], [1], [0, 0, 1, 1], [], []>} : vector<4x28xf32>, vector<28x3xf32>, vector<4x3xf32> -> vector<4x3xf32>
    %67 = arith.maximumf %63, %66 : vector<4x3xf32>
    %c4_65 = arith.constant 4 : index
    %c0_66 = arith.constant 0 : index
    %c0_67 = arith.constant 0 : index
    %68 = vector.load %arg5[%c4_65, %c0_66, %c0_67] : memref<7x4x28xf32, #tpu.memory_space<vmem>>, vector<1x4x28xf32>
    %69 = vector.shape_cast %68 : vector<1x4x28xf32> to vector<4x28xf32>
    %cst_68 = arith.constant dense<0.000000e+00> : vector<4x3xf32>
    %70 = tpu.matmul %69, %52, %cst_68 {dimension_numbers = #tpu.dot_dimension_numbers<[1], [0], [0], [1], [0, 0, 1, 1], [], []>} : vector<4x28xf32>, vector<28x3xf32>, vector<4x3xf32> -> vector<4x3xf32>
    %71 = arith.maximumf %67, %70 : vector<4x3xf32>
    %c5_69 = arith.constant 5 : index
    %c0_70 = arith.constant 0 : index
    %c0_71 = arith.constant 0 : index
    %72 = vector.load %arg5[%c5_69, %c0_70, %c0_71] : memref<7x4x28xf32, #tpu.memory_space<vmem>>, vector<1x4x28xf32>
    %73 = vector.shape_cast %72 : vector<1x4x28xf32> to vector<4x28xf32>
    %cst_72 = arith.constant dense<0.000000e+00> : vector<4x3xf32>
    %74 = tpu.matmul %73, %52, %cst_72 {dimension_numbers = #tpu.dot_dimension_numbers<[1], [0], [0], [1], [0, 0, 1, 1], [], []>} : vector<4x28xf32>, vector<28x3xf32>, vector<4x3xf32> -> vector<4x3xf32>
    %75 = arith.maximumf %71, %74 : vector<4x3xf32>
    %c6_73 = arith.constant 6 : index
    %c0_74 = arith.constant 0 : index
    %c0_75 = arith.constant 0 : index
    %76 = vector.load %arg5[%c6_73, %c0_74, %c0_75] : memref<7x4x28xf32, #tpu.memory_space<vmem>>, vector<1x4x28xf32>
    %77 = vector.shape_cast %76 : vector<1x4x28xf32> to vector<4x28xf32>
    %cst_76 = arith.constant dense<0.000000e+00> : vector<4x3xf32>
    %78 = tpu.matmul %77, %52, %cst_76 {dimension_numbers = #tpu.dot_dimension_numbers<[1], [0], [0], [1], [0, 0, 1, 1], [], []>} : vector<4x28xf32>, vector<28x3xf32>, vector<4x3xf32> -> vector<4x3xf32>
    %79 = arith.maximumf %75, %78 : vector<4x3xf32>
    %c0_77 = arith.constant 0 : index
    %c0_78 = arith.constant 0 : index
    %c0_79 = arith.constant 0 : index
    %80 = vector.load %arg8[%c0_77, %c0_78, %c0_79] : memref<3x3x3xf32, #tpu.memory_space<vmem>>, vector<1x3x3xf32>
    %81 = vector.shape_cast %80 : vector<1x3x3xf32> to vector<3x3xf32>
    %cst_80 = arith.constant dense<0.000000e+00> : vector<4x3xf32>
    %82 = tpu.matmul %79, %81, %cst_80 {dimension_numbers = #tpu.dot_dimension_numbers<[1], [0], [0], [1], [0, 0, 1, 1], [], []>} : vector<4x3xf32>, vector<3x3xf32>, vector<4x3xf32> -> vector<4x3xf32>
    %c0_81 = arith.constant 0 : index
    %c0_82 = arith.constant 0 : index
    %c0_83 = arith.constant 0 : index
    %83 = vector.load %arg7[%c0_81, %c0_82, %c0_83] : memref<9x4x4xf32, #tpu.memory_space<vmem>>, vector<1x4x4xf32>
    %84 = vector.shape_cast %83 : vector<1x4x4xf32> to vector<4x4xf32>
    %cst_84 = arith.constant dense<0.000000e+00> : vector<4x3xf32>
    %85 = tpu.matmul %84, %82, %cst_84 {dimension_numbers = #tpu.dot_dimension_numbers<[1], [0], [0], [1], [0, 0, 1, 1], [], []>} : vector<4x4xf32>, vector<4x3xf32>, vector<4x3xf32> -> vector<4x3xf32>
    %c1_85 = arith.constant 1 : index
    %c0_86 = arith.constant 0 : index
    %c0_87 = arith.constant 0 : index
    %86 = vector.load %arg8[%c1_85, %c0_86, %c0_87] : memref<3x3x3xf32, #tpu.memory_space<vmem>>, vector<1x3x3xf32>
    %87 = vector.shape_cast %86 : vector<1x3x3xf32> to vector<3x3xf32>
    %cst_88 = arith.constant dense<0.000000e+00> : vector<4x3xf32>
    %88 = tpu.matmul %79, %87, %cst_88 {dimension_numbers = #tpu.dot_dimension_numbers<[1], [0], [0], [1], [0, 0, 1, 1], [], []>} : vector<4x3xf32>, vector<3x3xf32>, vector<4x3xf32> -> vector<4x3xf32>
    %c1_89 = arith.constant 1 : index
    %c0_90 = arith.constant 0 : index
    %c0_91 = arith.constant 0 : index
    %89 = vector.load %arg7[%c1_89, %c0_90, %c0_91] : memref<9x4x4xf32, #tpu.memory_space<vmem>>, vector<1x4x4xf32>
    %90 = vector.shape_cast %89 : vector<1x4x4xf32> to vector<4x4xf32>
    %cst_92 = arith.constant dense<0.000000e+00> : vector<4x3xf32>
    %91 = tpu.matmul %90, %88, %cst_92 {dimension_numbers = #tpu.dot_dimension_numbers<[1], [0], [0], [1], [0, 0, 1, 1], [], []>} : vector<4x4xf32>, vector<4x3xf32>, vector<4x3xf32> -> vector<4x3xf32>
    %92 = arith.addf %85, %91 : vector<4x3xf32>
    %c2_93 = arith.constant 2 : index
    %c0_94 = arith.constant 0 : index
    %c0_95 = arith.constant 0 : index
    %93 = vector.load %arg8[%c2_93, %c0_94, %c0_95] : memref<3x3x3xf32, #tpu.memory_space<vmem>>, vector<1x3x3xf32>
    %94 = vector.shape_cast %93 : vector<1x3x3xf32> to vector<3x3xf32>
    %cst_96 = arith.constant dense<0.000000e+00> : vector<4x3xf32>
    %95 = tpu.matmul %79, %94, %cst_96 {dimension_numbers = #tpu.dot_dimension_numbers<[1], [0], [0], [1], [0, 0, 1, 1], [], []>} : vector<4x3xf32>, vector<3x3xf32>, vector<4x3xf32> -> vector<4x3xf32>
    %c2_97 = arith.constant 2 : index
    %c0_98 = arith.constant 0 : index
    %c0_99 = arith.constant 0 : index
    %96 = vector.load %arg7[%c2_97, %c0_98, %c0_99] : memref<9x4x4xf32, #tpu.memory_space<vmem>>, vector<1x4x4xf32>
    %97 = vector.shape_cast %96 : vector<1x4x4xf32> to vector<4x4xf32>
    %cst_100 = arith.constant dense<0.000000e+00> : vector<4x3xf32>
    %98 = tpu.matmul %97, %95, %cst_100 {dimension_numbers = #tpu.dot_dimension_numbers<[1], [0], [0], [1], [0, 0, 1, 1], [], []>} : vector<4x4xf32>, vector<4x3xf32>, vector<4x3xf32> -> vector<4x3xf32>
    %99 = arith.addf %92, %98 : vector<4x3xf32>
    %c0_101 = arith.constant 0 : index
    %c0_102 = arith.constant 0 : index
    %c0_103 = arith.constant 0 : index
    %100 = vector.load %arg9[%c0_101, %c0_102, %c0_103] : memref<3x4x1xf32, #tpu.memory_space<vmem>>, vector<1x4x1xf32>
    %101 = vector.shape_cast %100 : vector<1x4x1xf32> to vector<4x1xf32>
    %102 = vector.broadcast %101 : vector<4x1xf32> to vector<4x3xf32>
    %103 = arith.addf %99, %102 : vector<4x3xf32>
    %cst_104 = arith.constant 0.000000e+00 : f32
    %104 = vector.broadcast %cst_104 : f32 to vector<4x3xf32>
    %105 = arith.maximumf %103, %104 : vector<4x3xf32>
    %c0_105 = arith.constant 0 : index
    %c0_106 = arith.constant 0 : index
    %c0_107 = arith.constant 0 : index
    %106 = vector.load %arg8[%c0_105, %c0_106, %c0_107] : memref<3x3x3xf32, #tpu.memory_space<vmem>>, vector<1x3x3xf32>
    %107 = vector.shape_cast %106 : vector<1x3x3xf32> to vector<3x3xf32>
    %cst_108 = arith.constant dense<0.000000e+00> : vector<4x3xf32>
    %108 = tpu.matmul %105, %107, %cst_108 {dimension_numbers = #tpu.dot_dimension_numbers<[1], [0], [0], [1], [0, 0, 1, 1], [], []>} : vector<4x3xf32>, vector<3x3xf32>, vector<4x3xf32> -> vector<4x3xf32>
    %c3_109 = arith.constant 3 : index
    %c0_110 = arith.constant 0 : index
    %c0_111 = arith.constant 0 : index
    %109 = vector.load %arg7[%c3_109, %c0_110, %c0_111] : memref<9x4x4xf32, #tpu.memory_space<vmem>>, vector<1x4x4xf32>
    %110 = vector.shape_cast %109 : vector<1x4x4xf32> to vector<4x4xf32>
    %cst_112 = arith.constant dense<0.000000e+00> : vector<4x3xf32>
    %111 = tpu.matmul %110, %108, %cst_112 {dimension_numbers = #tpu.dot_dimension_numbers<[1], [0], [0], [1], [0, 0, 1, 1], [], []>} : vector<4x4xf32>, vector<4x3xf32>, vector<4x3xf32> -> vector<4x3xf32>
    %c1_113 = arith.constant 1 : index
    %c0_114 = arith.constant 0 : index
    %c0_115 = arith.constant 0 : index
    %112 = vector.load %arg8[%c1_113, %c0_114, %c0_115] : memref<3x3x3xf32, #tpu.memory_space<vmem>>, vector<1x3x3xf32>
    %113 = vector.shape_cast %112 : vector<1x3x3xf32> to vector<3x3xf32>
    %cst_116 = arith.constant dense<0.000000e+00> : vector<4x3xf32>
    %114 = tpu.matmul %105, %113, %cst_116 {dimension_numbers = #tpu.dot_dimension_numbers<[1], [0], [0], [1], [0, 0, 1, 1], [], []>} : vector<4x3xf32>, vector<3x3xf32>, vector<4x3xf32> -> vector<4x3xf32>
    %c4_117 = arith.constant 4 : index
    %c0_118 = arith.constant 0 : index
    %c0_119 = arith.constant 0 : index
    %115 = vector.load %arg7[%c4_117, %c0_118, %c0_119] : memref<9x4x4xf32, #tpu.memory_space<vmem>>, vector<1x4x4xf32>
    %116 = vector.shape_cast %115 : vector<1x4x4xf32> to vector<4x4xf32>
    %cst_120 = arith.constant dense<0.000000e+00> : vector<4x3xf32>
    %117 = tpu.matmul %116, %114, %cst_120 {dimension_numbers = #tpu.dot_dimension_numbers<[1], [0], [0], [1], [0, 0, 1, 1], [], []>} : vector<4x4xf32>, vector<4x3xf32>, vector<4x3xf32> -> vector<4x3xf32>
    %118 = arith.addf %111, %117 : vector<4x3xf32>
    %c2_121 = arith.constant 2 : index
    %c0_122 = arith.constant 0 : index
    %c0_123 = arith.constant 0 : index
    %119 = vector.load %arg8[%c2_121, %c0_122, %c0_123] : memref<3x3x3xf32, #tpu.memory_space<vmem>>, vector<1x3x3xf32>
    %120 = vector.shape_cast %119 : vector<1x3x3xf32> to vector<3x3xf32>
    %cst_124 = arith.constant dense<0.000000e+00> : vector<4x3xf32>
    %121 = tpu.matmul %105, %120, %cst_124 {dimension_numbers = #tpu.dot_dimension_numbers<[1], [0], [0], [1], [0, 0, 1, 1], [], []>} : vector<4x3xf32>, vector<3x3xf32>, vector<4x3xf32> -> vector<4x3xf32>
    %c5_125 = arith.constant 5 : index
    %c0_126 = arith.constant 0 : index
    %c0_127 = arith.constant 0 : index
    %122 = vector.load %arg7[%c5_125, %c0_126, %c0_127] : memref<9x4x4xf32, #tpu.memory_space<vmem>>, vector<1x4x4xf32>
    %123 = vector.shape_cast %122 : vector<1x4x4xf32> to vector<4x4xf32>
    %cst_128 = arith.constant dense<0.000000e+00> : vector<4x3xf32>
    %124 = tpu.matmul %123, %121, %cst_128 {dimension_numbers = #tpu.dot_dimension_numbers<[1], [0], [0], [1], [0, 0, 1, 1], [], []>} : vector<4x4xf32>, vector<4x3xf32>, vector<4x3xf32> -> vector<4x3xf32>
    %125 = arith.addf %118, %124 : vector<4x3xf32>
    %c1_129 = arith.constant 1 : index
    %c0_130 = arith.constant 0 : index
    %c0_131 = arith.constant 0 : index
    %126 = vector.load %arg9[%c1_129, %c0_130, %c0_131] : memref<3x4x1xf32, #tpu.memory_space<vmem>>, vector<1x4x1xf32>
    %127 = vector.shape_cast %126 : vector<1x4x1xf32> to vector<4x1xf32>
    %128 = vector.broadcast %127 : vector<4x1xf32> to vector<4x3xf32>
    %129 = arith.addf %125, %128 : vector<4x3xf32>
    %cst_132 = arith.constant 0.000000e+00 : f32
    %130 = vector.broadcast %cst_132 : f32 to vector<4x3xf32>
    %131 = arith.maximumf %129, %130 : vector<4x3xf32>
    %c0_133 = arith.constant 0 : index
    %c0_134 = arith.constant 0 : index
    %c0_135 = arith.constant 0 : index
    %132 = vector.load %arg8[%c0_133, %c0_134, %c0_135] : memref<3x3x3xf32, #tpu.memory_space<vmem>>, vector<1x3x3xf32>
    %133 = vector.shape_cast %132 : vector<1x3x3xf32> to vector<3x3xf32>
    %cst_136 = arith.constant dense<0.000000e+00> : vector<4x3xf32>
    %134 = tpu.matmul %131, %133, %cst_136 {dimension_numbers = #tpu.dot_dimension_numbers<[1], [0], [0], [1], [0, 0, 1, 1], [], []>} : vector<4x3xf32>, vector<3x3xf32>, vector<4x3xf32> -> vector<4x3xf32>
    %c6_137 = arith.constant 6 : index
    %c0_138 = arith.constant 0 : index
    %c0_139 = arith.constant 0 : index
    %135 = vector.load %arg7[%c6_137, %c0_138, %c0_139] : memref<9x4x4xf32, #tpu.memory_space<vmem>>, vector<1x4x4xf32>
    %136 = vector.shape_cast %135 : vector<1x4x4xf32> to vector<4x4xf32>
    %cst_140 = arith.constant dense<0.000000e+00> : vector<4x3xf32>
    %137 = tpu.matmul %136, %134, %cst_140 {dimension_numbers = #tpu.dot_dimension_numbers<[1], [0], [0], [1], [0, 0, 1, 1], [], []>} : vector<4x4xf32>, vector<4x3xf32>, vector<4x3xf32> -> vector<4x3xf32>
    %c1_141 = arith.constant 1 : index
    %c0_142 = arith.constant 0 : index
    %c0_143 = arith.constant 0 : index
    %138 = vector.load %arg8[%c1_141, %c0_142, %c0_143] : memref<3x3x3xf32, #tpu.memory_space<vmem>>, vector<1x3x3xf32>
    %139 = vector.shape_cast %138 : vector<1x3x3xf32> to vector<3x3xf32>
    %cst_144 = arith.constant dense<0.000000e+00> : vector<4x3xf32>
    %140 = tpu.matmul %131, %139, %cst_144 {dimension_numbers = #tpu.dot_dimension_numbers<[1], [0], [0], [1], [0, 0, 1, 1], [], []>} : vector<4x3xf32>, vector<3x3xf32>, vector<4x3xf32> -> vector<4x3xf32>
    %c7 = arith.constant 7 : index
    %c0_145 = arith.constant 0 : index
    %c0_146 = arith.constant 0 : index
    %141 = vector.load %arg7[%c7, %c0_145, %c0_146] : memref<9x4x4xf32, #tpu.memory_space<vmem>>, vector<1x4x4xf32>
    %142 = vector.shape_cast %141 : vector<1x4x4xf32> to vector<4x4xf32>
    %cst_147 = arith.constant dense<0.000000e+00> : vector<4x3xf32>
    %143 = tpu.matmul %142, %140, %cst_147 {dimension_numbers = #tpu.dot_dimension_numbers<[1], [0], [0], [1], [0, 0, 1, 1], [], []>} : vector<4x4xf32>, vector<4x3xf32>, vector<4x3xf32> -> vector<4x3xf32>
    %144 = arith.addf %137, %143 : vector<4x3xf32>
    %c2_148 = arith.constant 2 : index
    %c0_149 = arith.constant 0 : index
    %c0_150 = arith.constant 0 : index
    %145 = vector.load %arg8[%c2_148, %c0_149, %c0_150] : memref<3x3x3xf32, #tpu.memory_space<vmem>>, vector<1x3x3xf32>
    %146 = vector.shape_cast %145 : vector<1x3x3xf32> to vector<3x3xf32>
    %cst_151 = arith.constant dense<0.000000e+00> : vector<4x3xf32>
    %147 = tpu.matmul %131, %146, %cst_151 {dimension_numbers = #tpu.dot_dimension_numbers<[1], [0], [0], [1], [0, 0, 1, 1], [], []>} : vector<4x3xf32>, vector<3x3xf32>, vector<4x3xf32> -> vector<4x3xf32>
    %c8 = arith.constant 8 : index
    %c0_152 = arith.constant 0 : index
    %c0_153 = arith.constant 0 : index
    %148 = vector.load %arg7[%c8, %c0_152, %c0_153] : memref<9x4x4xf32, #tpu.memory_space<vmem>>, vector<1x4x4xf32>
    %149 = vector.shape_cast %148 : vector<1x4x4xf32> to vector<4x4xf32>
    %cst_154 = arith.constant dense<0.000000e+00> : vector<4x3xf32>
    %150 = tpu.matmul %149, %147, %cst_154 {dimension_numbers = #tpu.dot_dimension_numbers<[1], [0], [0], [1], [0, 0, 1, 1], [], []>} : vector<4x4xf32>, vector<4x3xf32>, vector<4x3xf32> -> vector<4x3xf32>
    %151 = arith.addf %144, %150 : vector<4x3xf32>
    %c2_155 = arith.constant 2 : index
    %c0_156 = arith.constant 0 : index
    %c0_157 = arith.constant 0 : index
    %152 = vector.load %arg9[%c2_155, %c0_156, %c0_157] : memref<3x4x1xf32, #tpu.memory_space<vmem>>, vector<1x4x1xf32>
    %153 = vector.shape_cast %152 : vector<1x4x1xf32> to vector<4x1xf32>
    %154 = vector.broadcast %153 : vector<4x1xf32> to vector<4x3xf32>
    %155 = arith.addf %151, %154 : vector<4x3xf32>
    %c0_158 = arith.constant 0 : index
    %c0_159 = arith.constant 0 : index
    %156 = vector.load %arg11[%c0_158, %c0_159] : memref<3x32xf32, #tpu.memory_space<vmem>>, vector<3x32xf32>
    %cst_160 = arith.constant dense<0.000000e+00> : vector<4x32xf32>
    %157 = tpu.matmul %155, %156, %cst_160 {dimension_numbers = #tpu.dot_dimension_numbers<[1], [0], [0], [1], [0, 0, 1, 1], [], []>} : vector<4x3xf32>, vector<3x32xf32>, vector<4x32xf32> -> vector<4x32xf32>
    %c0_161 = arith.constant 0 : index
    %c0_162 = arith.constant 0 : index
    %158 = vector.load %arg10[%c0_161, %c0_162] : memref<64x4xf32, #tpu.memory_space<vmem>>, vector<64x4xf32>
    %cst_163 = arith.constant dense<0.000000e+00> : vector<64x32xf32>
    %159 = tpu.matmul %158, %157, %cst_163 {dimension_numbers = #tpu.dot_dimension_numbers<[1], [0], [0], [1], [0, 0, 1, 1], [], []>} : vector<64x4xf32>, vector<4x32xf32>, vector<64x32xf32> -> vector<64x32xf32>
    %c0_164 = arith.constant 0 : index
    %c0_165 = arith.constant 0 : index
    %c0_166 = arith.constant 0 : index
    %160 = vector.load %arg12[%c0_164, %c0_165, %c0_166] : memref<1x64x32xf32, #tpu.memory_space<vmem>>, vector<1x64x32xf32>
    %161 = vector.shape_cast %160 : vector<1x64x32xf32> to vector<64x32xf32>
    %162 = vector.shape_cast %159 : vector<64x32xf32> to vector<1x64x32xf32>
    tpu.vector_store %arg12[%c0_164, %c0_165, %c0_166], %162 {strides = array<i32>} : memref<1x64x32xf32, #tpu.memory_space<vmem>>, vector<1x64x32xf32>,
    return
  }
  func.func @transform_0(%arg0: i32) -> (i32, i32, i32) {
    %c0_i32 = arith.constant 0 : i32
    %c0_i32_0 = arith.constant 0 : i32
    %c0_i32_1 = arith.constant 0 : i32
    return %arg0, %c0_i32, %c0_i32_0 : i32, i32, i32
  }
  func.func @transform_1(%arg0: i32) -> (i32, i32, i32) {
    %c0_i32 = arith.constant 0 : i32
    %c0_i32_0 = arith.constant 0 : i32
    %c0_i32_1 = arith.constant 0 : i32
    %c0_i32_2 = arith.constant 0 : i32
    return %c0_i32, %c0_i32_0, %c0_i32_1 : i32, i32, i32
  }
  func.func @transform_2(%arg0: i32) -> (i32, i32, i32) {
    %c0_i32 = arith.constant 0 : i32
    %c0_i32_0 = arith.constant 0 : i32
    %c0_i32_1 = arith.constant 0 : i32
    %c0_i32_2 = arith.constant 0 : i32
    return %c0_i32, %c0_i32_0, %c0_i32_1 : i32, i32, i32
  }
  func.func @transform_3(%arg0: i32) -> (i32, i32) {
    %c0_i32 = arith.constant 0 : i32
    %c0_i32_0 = arith.constant 0 : i32
    %c0_i32_1 = arith.constant 0 : i32
    return %c0_i32, %c0_i32_0 : i32, i32
  }
  func.func @transform_4(%arg0: i32) -> (i32, i32, i32) {
    %c0_i32 = arith.constant 0 : i32
    %c0_i32_0 = arith.constant 0 : i32
    %c0_i32_1 = arith.constant 0 : i32
    %c0_i32_2 = arith.constant 0 : i32
    return %c0_i32, %c0_i32_0, %c0_i32_1 : i32, i32, i32
  }
  func.func @transform_5(%arg0: i32) -> (i32, i32, i32) {
    %c0_i32 = arith.constant 0 : i32
    %c0_i32_0 = arith.constant 0 : i32
    %c0_i32_1 = arith.constant 0 : i32
    %c0_i32_2 = arith.constant 0 : i32
    return %c0_i32, %c0_i32_0, %c0_i32_1 : i32, i32, i32
  }
  func.func @transform_6(%arg0: i32) -> (i32, i32, i32) {
    %c0_i32 = arith.constant 0 : i32
    %c0_i32_0 = arith.constant 0 : i32
    %c0_i32_1 = arith.constant 0 : i32
    %c0_i32_2 = arith.constant 0 : i32
    return %c0_i32, %c0_i32_0, %c0_i32_1 : i32, i32, i32
  }
  func.func @transform_7(%arg0: i32) -> (i32, i32, i32) {
    %c0_i32 = arith.constant 0 : i32
    %c0_i32_0 = arith.constant 0 : i32
    %c0_i32_1 = arith.constant 0 : i32
    %c0_i32_2 = arith.constant 0 : i32
    return %c0_i32, %c0_i32_0, %c0_i32_1 : i32, i32, i32
  }
  func.func @transform_8(%arg0: i32) -> (i32, i32, i32) {
    %c0_i32 = arith.constant 0 : i32
    %c0_i32_0 = arith.constant 0 : i32
    %c0_i32_1 = arith.constant 0 : i32
    %c0_i32_2 = arith.constant 0 : i32
    return %c0_i32, %c0_i32_0, %c0_i32_1 : i32, i32, i32
  }
  func.func @transform_9(%arg0: i32) -> (i32, i32) {
    %c0_i32 = arith.constant 0 : i32
    %c0_i32_0 = arith.constant 0 : i32
    %c0_i32_1 = arith.constant 0 : i32
    return %c0_i32, %c0_i32_0 : i32, i32
  }
  func.func @transform_10(%arg0: i32) -> (i32, i32) {
    %c0_i32 = arith.constant 0 : i32
    %c0_i32_0 = arith.constant 0 : i32
    %c0_i32_1 = arith.constant 0 : i32
    return %c0_i32, %c0_i32_0 : i32, i32
  }
  func.func @transform_11(%arg0: i32) -> (i32, i32, i32) {
    %c0_i32 = arith.constant 0 : i32
    %c0_i32_0 = arith.constant 0 : i32
    %c0_i32_1 = arith.constant 0 : i32
    return %arg0, %c0_i32, %c0_i32_0 : i32, i32, i32
  }
}

module attributes {stable_mosaic.version = 11 : i64} {
  func.func @_fusion_b_kernel(%arg0: i32, %arg1: i32, %arg2: memref<1x4x512xf32, #tpu.memory_space<vmem>>, %arg3: memref<1x4x512xbf16, #tpu.memory_space<vmem>>, %arg4: memref<1x8x512xf32, #tpu.memory_space<vmem>>, %arg5: memref<1x8x512xbf16, #tpu.memory_space<vmem>>, %arg6: memref<4x4xbf16, #tpu.memory_space<vmem>>, %arg7: memref<4x1xf32, #tpu.memory_space<vmem>>, %arg8: memref<16x4xbf16, #tpu.memory_space<vmem>>, %arg9: memref<16x1xf32, #tpu.memory_space<vmem>>, %arg10: memref<8x8xbf16, #tpu.memory_space<vmem>>, %arg11: memref<8x8xbf16, #tpu.memory_space<vmem>>, %arg12: memref<8x1xf32, #tpu.memory_space<vmem>>, %arg13: memref<1x8x512xf32, #tpu.memory_space<vmem>>) attributes {dimension_semantics = [#tpu.dimension_semantics<parallel>, #tpu.dimension_semantics<parallel>], iteration_bounds = array<i64: 2, 1>, scalar_prefetch = 0 : i64, scratch_operands = 0 : i64, tpu.core_type = #tpu.core_type<tc>, window_params = [{transform_indices = @transform_0, window_bounds = array<i64: 1, 4, 512>}, {transform_indices = @transform_1, window_bounds = array<i64: 1, 4, 512>}, {transform_indices = @transform_2, window_bounds = array<i64: 1, 8, 512>}, {transform_indices = @transform_3, window_bounds = array<i64: 1, 8, 512>}, {pipeline_mode = #tpu.pipeline_mode<synchronous>, transform_indices = @transform_4, window_bounds = array<i64: 4, 4>}, {pipeline_mode = #tpu.pipeline_mode<synchronous>, transform_indices = @transform_5, window_bounds = array<i64: 4, 1>}, {pipeline_mode = #tpu.pipeline_mode<synchronous>, transform_indices = @transform_6, window_bounds = array<i64: 16, 4>}, {pipeline_mode = #tpu.pipeline_mode<synchronous>, transform_indices = @transform_7, window_bounds = array<i64: 16, 1>}, {pipeline_mode = #tpu.pipeline_mode<synchronous>, transform_indices = @transform_8, window_bounds = array<i64: 8, 8>}, {pipeline_mode = #tpu.pipeline_mode<synchronous>, transform_indices = @transform_9, window_bounds = array<i64: 8, 8>}, {pipeline_mode = #tpu.pipeline_mode<synchronous>, transform_indices = @transform_10, window_bounds = array<i64: 8, 1>}, {transform_indices = @transform_11, window_bounds = array<i64: 1, 8, 512>}]} {
    %c0 = arith.constant 0 : index
    %c0_0 = arith.constant 0 : index
    %0 = vector.load %arg6[%c0, %c0_0] : memref<4x4xbf16, #tpu.memory_space<vmem>>, vector<4x4xbf16>
    %c0_1 = arith.constant 0 : index
    %c0_2 = arith.constant 0 : index
    %c0_3 = arith.constant 0 : index
    %1 = vector.load %arg3[%c0_1, %c0_2, %c0_3] : memref<1x4x512xbf16, #tpu.memory_space<vmem>>, vector<1x4x512xbf16>
    %2 = vector.shape_cast %1 : vector<1x4x512xbf16> to vector<4x512xbf16>
    %cst = arith.constant dense<0.000000e+00> : vector<4x512xf32>
    %3 = tpu.matmul %0, %2, %cst {dimension_numbers = #tpu.dot_dimension_numbers<[1], [0], [0], [1], [0, 0, 1, 1], [], []>} : vector<4x4xbf16>, vector<4x512xbf16>, vector<4x512xf32> -> vector<4x512xf32>
    %c0_4 = arith.constant 0 : index
    %c0_5 = arith.constant 0 : index
    %4 = vector.load %arg7[%c0_4, %c0_5] : memref<4x1xf32, #tpu.memory_space<vmem>>, vector<4x1xf32>
    %5 = vector.broadcast %4 : vector<4x1xf32> to vector<4x512xf32>
    %6 = arith.addf %3, %5 : vector<4x512xf32>
    %c0_6 = arith.constant 0 : index
    %c0_7 = arith.constant 0 : index
    %c0_8 = arith.constant 0 : index
    %7 = vector.load %arg2[%c0_6, %c0_7, %c0_8] : memref<1x4x512xf32, #tpu.memory_space<vmem>>, vector<1x4x512xf32>
    %8 = vector.shape_cast %7 : vector<1x4x512xf32> to vector<4x512xf32>
    %9 = arith.addf %8, %6 : vector<4x512xf32>
    %10 = arith.truncf %9 : vector<4x512xf32> to vector<4x512xbf16>
    %c0_9 = arith.constant 0 : index
    %c0_10 = arith.constant 0 : index
    %11 = vector.load %arg8[%c0_9, %c0_10] : memref<16x4xbf16, #tpu.memory_space<vmem>>, vector<16x4xbf16>
    %cst_11 = arith.constant dense<0.000000e+00> : vector<16x512xf32>
    %12 = tpu.matmul %11, %10, %cst_11 {dimension_numbers = #tpu.dot_dimension_numbers<[1], [0], [0], [1], [0, 0, 1, 1], [], []>} : vector<16x4xbf16>, vector<4x512xbf16>, vector<16x512xf32> -> vector<16x512xf32>
    %c0_12 = arith.constant 0 : index
    %c0_13 = arith.constant 0 : index
    %13 = vector.load %arg9[%c0_12, %c0_13] : memref<16x1xf32, #tpu.memory_space<vmem>>, vector<16x1xf32>
    %14 = vector.broadcast %13 : vector<16x1xf32> to vector<16x512xf32>
    %15 = arith.addf %12, %14 : vector<16x512xf32>
    %16 = arith.negf %15 : vector<16x512xf32>
    %17 = math.exp %16 : vector<16x512xf32>
    %cst_14 = arith.constant 1.000000e+00 : f32
    %18 = vector.broadcast %cst_14 : f32 to vector<16x512xf32>
    %19 = arith.addf %18, %17 : vector<16x512xf32>
    %20 = arith.divf %18, %19 : vector<16x512xf32>
    %c0_15 = arith.constant 0 : index
    %c0_16 = arith.constant 0 : index
    %c0_17 = arith.constant 0 : index
    %21 = vector.load %arg4[%c0_15, %c0_16, %c0_17] : memref<1x8x512xf32, #tpu.memory_space<vmem>>, vector<1x8x512xf32>
    %22 = vector.shape_cast %21 : vector<1x8x512xf32> to vector<8x512xf32>
    %c0_18 = arith.constant 0 : index
    %c0_19 = arith.constant 0 : index
    %c0_20 = arith.constant 0 : index
    %23 = vector.load %arg5[%c0_18, %c0_19, %c0_20] : memref<1x8x512xbf16, #tpu.memory_space<vmem>>, vector<1x8x512xbf16>
    %24 = vector.shape_cast %23 : vector<1x8x512xbf16> to vector<8x512xbf16>
    %25 = arith.extf %24 : vector<8x512xbf16> to vector<8x512xf32>
    %26 = vector.extract_strided_slice %20 {offsets = [0, 0], sizes = [8, 512], strides = [1, 1]} : vector<16x512xf32> to vector<8x512xf32>
    %27 = arith.mulf %22, %26 : vector<8x512xf32>
    %28 = arith.truncf %27 : vector<8x512xf32> to vector<8x512xbf16>
    %29 = vector.extract_strided_slice %20 {offsets = [8, 0], sizes = [8, 512], strides = [1, 1]} : vector<16x512xf32> to vector<8x512xf32>
    %30 = arith.mulf %25, %29 : vector<8x512xf32>
    %31 = arith.truncf %30 : vector<8x512xf32> to vector<8x512xbf16>
    %c0_21 = arith.constant 0 : index
    %c0_22 = arith.constant 0 : index
    %32 = vector.load %arg10[%c0_21, %c0_22] : memref<8x8xbf16, #tpu.memory_space<vmem>>, vector<8x8xbf16>
    %cst_23 = arith.constant dense<0.000000e+00> : vector<8x512xf32>
    %33 = tpu.matmul %32, %28, %cst_23 {dimension_numbers = #tpu.dot_dimension_numbers<[1], [0], [0], [1], [0, 0, 1, 1], [], []>} : vector<8x8xbf16>, vector<8x512xbf16>, vector<8x512xf32> -> vector<8x512xf32>
    %c0_24 = arith.constant 0 : index
    %c0_25 = arith.constant 0 : index
    %34 = vector.load %arg11[%c0_24, %c0_25] : memref<8x8xbf16, #tpu.memory_space<vmem>>, vector<8x8xbf16>
    %cst_26 = arith.constant dense<0.000000e+00> : vector<8x512xf32>
    %35 = tpu.matmul %34, %31, %cst_26 {dimension_numbers = #tpu.dot_dimension_numbers<[1], [0], [0], [1], [0, 0, 1, 1], [], []>} : vector<8x8xbf16>, vector<8x512xbf16>, vector<8x512xf32> -> vector<8x512xf32>
    %36 = arith.addf %33, %35 : vector<8x512xf32>
    %c0_27 = arith.constant 0 : index
    %c0_28 = arith.constant 0 : index
    %37 = vector.load %arg12[%c0_27, %c0_28] : memref<8x1xf32, #tpu.memory_space<vmem>>, vector<8x1xf32>
    %38 = vector.broadcast %37 : vector<8x1xf32> to vector<8x512xf32>
    %39 = arith.addf %36, %38 : vector<8x512xf32>
    %c0_29 = arith.constant 0 : index
    %c0_30 = arith.constant 0 : index
    %c0_31 = arith.constant 0 : index
    %40 = vector.load %arg13[%c0_29, %c0_30, %c0_31] : memref<1x8x512xf32, #tpu.memory_space<vmem>>, vector<1x8x512xf32>
    %41 = vector.shape_cast %40 : vector<1x8x512xf32> to vector<8x512xf32>
    %42 = vector.shape_cast %39 : vector<8x512xf32> to vector<1x8x512xf32>
    tpu.vector_store %arg13[%c0_29, %c0_30, %c0_31], %42 {strides = array<i32>} : memref<1x8x512xf32, #tpu.memory_space<vmem>>, vector<1x8x512xf32>,
    return
  }
  func.func @transform_0(%arg0: i32, %arg1: i32) -> (i32, i32, i32) {
    %c0_i32 = arith.constant 0 : i32
    %c0_i32_0 = arith.constant 0 : i32
    return %arg0, %c0_i32, %arg1 : i32, i32, i32
  }
  func.func @transform_1(%arg0: i32, %arg1: i32) -> (i32, i32, i32) {
    %c0_i32 = arith.constant 0 : i32
    %c0_i32_0 = arith.constant 0 : i32
    return %arg0, %c0_i32, %arg1 : i32, i32, i32
  }
  func.func @transform_2(%arg0: i32, %arg1: i32) -> (i32, i32, i32) {
    %c0_i32 = arith.constant 0 : i32
    %c0_i32_0 = arith.constant 0 : i32
    return %arg0, %c0_i32, %arg1 : i32, i32, i32
  }
  func.func @transform_3(%arg0: i32, %arg1: i32) -> (i32, i32, i32) {
    %c0_i32 = arith.constant 0 : i32
    %c0_i32_0 = arith.constant 0 : i32
    return %arg0, %c0_i32, %arg1 : i32, i32, i32
  }
  func.func @transform_4(%arg0: i32, %arg1: i32) -> (i32, i32) {
    %c0_i32 = arith.constant 0 : i32
    %c0_i32_0 = arith.constant 0 : i32
    %c0_i32_1 = arith.constant 0 : i32
    return %c0_i32, %c0_i32_0 : i32, i32
  }
  func.func @transform_5(%arg0: i32, %arg1: i32) -> (i32, i32) {
    %c0_i32 = arith.constant 0 : i32
    %c0_i32_0 = arith.constant 0 : i32
    %c0_i32_1 = arith.constant 0 : i32
    return %c0_i32, %c0_i32_0 : i32, i32
  }
  func.func @transform_6(%arg0: i32, %arg1: i32) -> (i32, i32) {
    %c0_i32 = arith.constant 0 : i32
    %c0_i32_0 = arith.constant 0 : i32
    %c0_i32_1 = arith.constant 0 : i32
    return %c0_i32, %c0_i32_0 : i32, i32
  }
  func.func @transform_7(%arg0: i32, %arg1: i32) -> (i32, i32) {
    %c0_i32 = arith.constant 0 : i32
    %c0_i32_0 = arith.constant 0 : i32
    %c0_i32_1 = arith.constant 0 : i32
    return %c0_i32, %c0_i32_0 : i32, i32
  }
  func.func @transform_8(%arg0: i32, %arg1: i32) -> (i32, i32) {
    %c0_i32 = arith.constant 0 : i32
    %c0_i32_0 = arith.constant 0 : i32
    %c0_i32_1 = arith.constant 0 : i32
    return %c0_i32, %c0_i32_0 : i32, i32
  }
  func.func @transform_9(%arg0: i32, %arg1: i32) -> (i32, i32) {
    %c0_i32 = arith.constant 0 : i32
    %c0_i32_0 = arith.constant 0 : i32
    %c0_i32_1 = arith.constant 0 : i32
    return %c0_i32, %c0_i32_0 : i32, i32
  }
  func.func @transform_10(%arg0: i32, %arg1: i32) -> (i32, i32) {
    %c0_i32 = arith.constant 0 : i32
    %c0_i32_0 = arith.constant 0 : i32
    %c0_i32_1 = arith.constant 0 : i32
    return %c0_i32, %c0_i32_0 : i32, i32
  }
  func.func @transform_11(%arg0: i32, %arg1: i32) -> (i32, i32, i32) {
    %c0_i32 = arith.constant 0 : i32
    %c0_i32_0 = arith.constant 0 : i32
    return %arg0, %c0_i32, %arg1 : i32, i32, i32
  }
}

</mosaic_0001>

<llo_original>
// kernel: weight_upsample_forward.3
$region0: #{weight_upsample_forward.3}
  #allocation0 [shape = 'u32[]', space=smem, size = 0x4, offset = 0x4, fixed_abs, tag = 'smem constant byte address 0x4 - core index']
  #allocation1 [shape = 'u32[144,128]{1,0:T(1,128)}', space=vmem, size = 0x12000, scoped, tag = 'internal scratch']
  %s0 = inlined_call_operand.vmem [shape: f32[2,8,512], index: 0, kind: input, shape index: {}]
  %s1 = inlined_call_operand.vmem [shape: f32[1,1,512], index: 1, kind: input, shape index: {}]
  %s2 = inlined_call_operand.vmem [shape: bf16[4,8], index: 2, kind: input, shape index: {}]
  %s3 = inlined_call_operand.vmem [shape: bf16[4,8], index: 3, kind: input, shape index: {}]
  %s4 = inlined_call_operand.vmem [shape: f32[4,1], index: 4, kind: input, shape index: {}]
  %s5 = inlined_call_operand.vmem [shape: bf16[2,4,512], index: 5, kind: output, shape index: {0}]
  %s6 = inlined_call_operand.vmem [shape: bf16[2,8,512], index: 6, kind: output, shape index: {1}]
  %7 = xla_tuple %s5, %s6
  %s8 = sld [smem:[#allocation0]]
  $region61: #{weight_upsample_forward.3} parent=0
    _
  %s10 = ssub.s32 1, %s8
  %s11 = scalar_select 0, %s10, %s8
  loop: start=0, step=1, limit=4
  $region2: #{weight_upsample_forward.3} parent=0 // loop_pre_header
    _
  $region3: #{weight_upsample_forward.3} parent=0 // loop_header
    %s13 = sphi 0, %s17
    %p14 = scmp.ge.s32.totalorder %s13, 4
    %s20 = sphi 0, %s32
    %s21 = sphi 0, %s28
    %s22 = sphi 0, %s20
    %s23 = sphi 0, %s21
    %s24 = sphi 0, %s22
    %s25 = sphi 0, %s23
    %s37 = sphi 0, %s39
    %s40 = sphi 0, %s37
    %s41 = sphi 0, %s40
    %s57 = sphi 0, %s41
    %s63 = sphi 0, %s65
    %s66 = sphi 0, %s63
    %s67 = sphi 0, %s66
    %s83 = sphi 0, %s67
    %s87 = sphi 0, %s87
    %s89 = sphi 0, %s87
    %s90 = sphi 0, %s89
    %s104 = sphi 0, %s90
    %s108 = sphi 0, %s108
    %s110 = sphi 0, %s108
    %s111 = sphi 0, %s110
    %s125 = sphi 0, %s111
    %s129 = sphi 0, %s129
    %s131 = sphi 0, %s129
    %s132 = sphi 0, %s131
    %s146 = sphi 0, %s132
    %s154 = sphi 0, %s156
    %s157 = sphi 0, %s154
    %s158 = sphi 0, %s157
    %s174 = sphi 0, %s158
    %s182 = sphi 0, %s184
    %s185 = sphi 0, %s182
    %s186 = sphi 0, %s185
    %s202 = sphi 0, %s186
  $region4: #{weight_upsample_forward.3} parent=0 // loop_header_branch
    %16 = sbr.rel (%p14) target = $region8
  $region5: #{weight_upsample_forward.3} parent=0 // loop_body
    %s18 = ssub.s32 %s13, 1
    %s19 = ssub.s32 %s13, 2
    %s26 = sadd.s32 1, %s21
    %p27 = scmp.ge.s32.totalorder %s26, 1
    %s28 = scalar_select %p27, 0, %s26
    %s29 = sadd.s32 1, %s20
    %s30 = scalar_select %p27, %s29, %s20
    %p31 = scmp.ge.s32.totalorder %s30, 2
    %s32 = scalar_select %p31, 0, %s30
    %s33 = ssub.s32 %s20, %s32
    %s34 = ssub.s32 %s21, %s28
    %s35 = sor.u32 %s33, %s34
    %p36 = scmp.eq.s32.totalorder %s35, 0
    %s38 = sadd.s32 %s37, 1
    %s39 = scalar_select %p36, %s37, %s38
    %p42 = pneg %p36
    %p43 = scmp.eq.s32.totalorder %s13, 1
    %p44 = por %p42, %p43
    %p45 = scmp.ne.s32.totalorder %s37, %s40
    %p46 = scmp.eq.s32.totalorder %s13, 0
    %p47 = por %p45, %p46
    %p48 = scmp.ne.s32.totalorder %s37, %s40
    %p49 = scmp.eq.s32.totalorder %s18, 1
    %p50 = por %p48, %p49
    %p51 = scmp.ne.s32.totalorder %s40, %s41
    %p52 = scmp.eq.s32.totalorder %s18, 0
    %p53 = por %p51, %p52
    %p54 = scmp.ne.s32.totalorder %s40, %s41
    %p55 = scmp.eq.s32.totalorder %s19, 1
    %p56 = por %p54, %p55
    %p58 = scmp.ne.s32.totalorder %s41, %s57
    %p59 = scmp.eq.s32.totalorder %s19, 0
    %p60 = por %p58, %p59
    %s61 = ssub.s32 %s21, %s28
    %p62 = scmp.eq.s32.totalorder %s61, 0
    %s64 = sadd.s32 %s63, 1
    %s65 = scalar_select %p62, %s63, %s64
    %p68 = pneg %p62
    %p69 = scmp.eq.s32.totalorder %s13, 1
    %p70 = por %p68, %p69
    %p71 = scmp.ne.s32.totalorder %s63, %s66
    %p72 = scmp.eq.s32.totalorder %s13, 0
    %p73 = por %p71, %p72
    %p74 = scmp.ne.s32.totalorder %s63, %s66
    %p75 = scmp.eq.s32.totalorder %s18, 1
    %p76 = por %p74, %p75
    %p77 = scmp.ne.s32.totalorder %s66, %s67
    %p78 = scmp.eq.s32.totalorder %s18, 0
    %p79 = por %p77, %p78
    %p80 = scmp.ne.s32.totalorder %s66, %s67
    %p81 = scmp.eq.s32.totalorder %s19, 1
    %p82 = por %p80, %p81
    %p84 = scmp.ne.s32.totalorder %s67, %s83
    %p85 = scmp.eq.s32.totalorder %s19, 0
    %p86 = por %p84, %p85
    %s88 = sadd.s32 %s87, 1
    %p91 = scmp.eq.s32.totalorder %s13, 1
    %p92 = scmp.ne.s32.totalorder %s87, %s89
    %p93 = scmp.eq.s32.totalorder %s13, 0
    %p94 = por %p92, %p93
    %p95 = scmp.ne.s32.totalorder %s87, %s89
    %p96 = scmp.eq.s32.totalorder %s18, 1
    %p97 = por %p95, %p96
    %p98 = scmp.ne.s32.totalorder %s89, %s90
    %p99 = scmp.eq.s32.totalorder %s18, 0
    %p100 = por %p98, %p99
    %p101 = scmp.ne.s32.totalorder %s89, %s90
    %p102 = scmp.eq.s32.totalorder %s19, 1
    %p103 = por %p101, %p102
    %p105 = scmp.ne.s32.totalorder %s90, %s104
    %p106 = scmp.eq.s32.totalorder %s19, 0
    %p107 = por %p105, %p106
    %s109 = sadd.s32 %s108, 1
    %p112 = scmp.eq.s32.totalorder %s13, 1
    %p113 = scmp.ne.s32.totalorder %s108, %s110
    %p114 = scmp.eq.s32.totalorder %s13, 0
    %p115 = por %p113, %p114
    %p116 = scmp.ne.s32.totalorder %s108, %s110
    %p117 = scmp.eq.s32.totalorder %s18, 1
    %p118 = por %p116, %p117
    %p119 = scmp.ne.s32.totalorder %s110, %s111
    %p120 = scmp.eq.s32.totalorder %s18, 0
    %p121 = por %p119, %p120
    %p122 = scmp.ne.s32.totalorder %s110, %s111
    %p123 = scmp.eq.s32.totalorder %s19, 1
    %p124 = por %p122, %p123
    %p126 = scmp.ne.s32.totalorder %s111, %s125
    %p127 = scmp.eq.s32.totalorder %s19, 0
    %p128 = por %p126, %p127
    %s130 = sadd.s32 %s129, 1
    %p133 = scmp.eq.s32.totalorder %s13, 1
    %p134 = scmp.ne.s32.totalorder %s129, %s131
    %p135 = scmp.eq.s32.totalorder %s13, 0
    %p136 = por %p134, %p135
    %p137 = scmp.ne.s32.totalorder %s129, %s131
    %p138 = scmp.eq.s32.totalorder %s18, 1
    %p139 = por %p137, %p138
    %p140 = scmp.ne.s32.totalorder %s131, %s132
    %p141 = scmp.eq.s32.totalorder %s18, 0
    %p142 = por %p140, %p141
    %p143 = scmp.ne.s32.totalorder %s131, %s132
    %p144 = scmp.eq.s32.totalorder %s19, 1
    %p145 = por %p143, %p144
    %p147 = scmp.ne.s32.totalorder %s132, %s146
    %p148 = scmp.eq.s32.totalorder %s19, 0
    %p149 = por %p147, %p148
    %s150 = ssub.s32 %s20, %s32
    %s151 = ssub.s32 %s21, %s28
    %s152 = sor.u32 %s150, %s151
    %p153 = scmp.eq.s32.totalorder %s152, 0
    %s155 = sadd.s32 %s154, 1
    %s156 = scalar_select %p153, %s154, %s155
    %p159 = pneg %p153
    %p160 = scmp.eq.s32.totalorder %s13, 1
    %p161 = por %p159, %p160
    %p162 = scmp.ne.s32.totalorder %s154, %s157
    %p163 = scmp.eq.s32.totalorder %s13, 0
    %p164 = por %p162, %p163
    %p165 = scmp.ne.s32.totalorder %s154, %s157
    %p166 = scmp.eq.s32.totalorder %s18, 1
    %p167 = por %p165, %p166
    %p168 = scmp.ne.s32.totalorder %s157, %s158
    %p169 = scmp.eq.s32.totalorder %s18, 0
    %p170 = por %p168, %p169
    %p171 = scmp.ne.s32.totalorder %s157, %s158
    %p172 = scmp.eq.s32.totalorder %s19, 1
    %p173 = por %p171, %p172
    %p175 = scmp.ne.s32.totalorder %s158, %s174
    %p176 = scmp.eq.s32.totalorder %s19, 0
    %p177 = por %p175, %p176
    %s178 = ssub.s32 %s20, %s32
    %s179 = ssub.s32 %s21, %s28
    %s180 = sor.u32 %s178, %s179
    %p181 = scmp.eq.s32.totalorder %s180, 0
    %s183 = sadd.s32 %s182, 1
    %s184 = scalar_select %p181, %s182, %s183
    %p187 = pneg %p181
    %p188 = scmp.eq.s32.totalorder %s13, 1
    %p189 = por %p187, %p188
    %p190 = scmp.ne.s32.totalorder %s182, %s185
    %p191 = scmp.eq.s32.totalorder %s13, 0
    %p192 = por %p190, %p191
    %p193 = scmp.ne.s32.totalorder %s182, %s185
    %p194 = scmp.eq.s32.totalorder %s18, 1
    %p195 = por %p193, %p194
    %p196 = scmp.ne.s32.totalorder %s185, %s186
    %p197 = scmp.eq.s32.totalorder %s18, 0
    %p198 = por %p196, %p197
    %p199 = scmp.ne.s32.totalorder %s185, %s186
    %p200 = scmp.eq.s32.totalorder %s19, 1
    %p201 = por %p199, %p200
    %p203 = scmp.ne.s32.totalorder %s186, %s202
    %p204 = scmp.eq.s32.totalorder %s19, 0
    %p205 = por %p203, %p204
    %p206 = scmp.le.s32.totalorder 1, %s13
    %p207 = scmp.lt.s32.totalorder %s13, 3
    %p208 = pnand %p206, %p207
    %p209 = pneg %p208
    // Predicated region
    $region9: #{weight_upsample_forward.3} parent=5 // pred_check
      _
    $region10: #{weight_upsample_forward.3} parent=5 // pred_check_branch
      %211 = sbr.rel (%p208) target = $region12
    $region11: #{weight_upsample_forward.3} parent=5 // pred_region
      %s212 = ssub.s32 %s13, 1
      // Predicated region
      $region13: #{weight_upsample_forward.3} parent=11 // pred_check
        %p213 = pneg %p79
      $region14: #{weight_upsample_forward.3} parent=11 // pred_check_branch
        %215 = sbr.rel (%p213) target = $region16
      $region15: #{weight_upsample_forward.3} parent=11 // pred_region
        %s216 = smul.u32 4, %s23
        %p217 = scmp.lt.s32.totalorder %s216, 3
        %s218 = scalar_select %p217, %s216, 3
        %s219 = scalar_lea.vmem %s1, %s218
        %s220 = smul.u32 4, %s23
      $region16: #{weight_upsample_forward.3} parent=11 // pred_fallthru
        _
      // Predicated region
      $region17: #{weight_upsample_forward.3} parent=11 // pred_check
        %p221 = pneg %p100
      $region18: #{weight_upsample_forward.3} parent=11 // pred_check_branch
        %223 = sbr.rel (%p221) target = $region20
      $region19: #{weight_upsample_forward.3} parent=11 // pred_region
        _
      $region20: #{weight_upsample_forward.3} parent=11 // pred_fallthru
        _
      // Predicated region
      $region21: #{weight_upsample_forward.3} parent=11 // pred_check
        %p224 = pneg %p121
      $region22: #{weight_upsample_forward.3} parent=11 // pred_check_branch
        %226 = sbr.rel (%p224) target = $region24
      $region23: #{weight_upsample_forward.3} parent=11 // pred_region
        _
      $region24: #{weight_upsample_forward.3} parent=11 // pred_fallthru
        _
      // Predicated region
      $region25: #{weight_upsample_forward.3} parent=11 // pred_check
        %p227 = pneg %p142
      $region26: #{weight_upsample_forward.3} parent=11 // pred_check_branch
        %229 = sbr.rel (%p227) target = $region28
      $region27: #{weight_upsample_forward.3} parent=11 // pred_region
        _
      $region28: #{weight_upsample_forward.3} parent=11 // pred_fallthru
        _
    $region12: #{weight_upsample_forward.3} parent=5 // pred_fallthru
      _
    %p230 = scmp.lt.s32.totalorder %s13, 2
    // Predicated region
    $region29: #{weight_upsample_forward.3} parent=5 // pred_check
      %p231 = pneg %p230
    $region30: #{weight_upsample_forward.3} parent=5 // pred_check_branch
      %233 = sbr.rel (%p231) target = $region32
    $region31: #{weight_upsample_forward.3} parent=5 // pred_region
      // Predicated region
      $region33: #{weight_upsample_forward.3} parent=31 // pred_check
        %p234 = pneg %p47
      $region34: #{weight_upsample_forward.3} parent=31 // pred_check_branch
        %236 = sbr.rel (%p234) target = $region36
      $region35: #{weight_upsample_forward.3} parent=31 // pred_region
        %s237 = smul.u32 4, %s21
        %p238 = scmp.lt.s32.totalorder %s20, 1
        %s239 = scalar_select %p238, %s20, 1
        %p240 = scmp.lt.s32.totalorder %s237, 3
        %s241 = scalar_select %p240, %s237, 3
        %s242 = smul.addr %s239, 4
        %s243 = sadd.s32 %s241, %s242
        %s244 = smul.addr %s243, 8
        %s245 = scalar_lea.vmem %s0, %s244
        %s246 = smul.u32 4, %s21
      $region36: #{weight_upsample_forward.3} parent=31 // pred_fallthru
        _
    $region32: #{weight_upsample_forward.3} parent=5 // pred_fallthru
      _
    %p247 = scmp.le.s32.totalorder 1, %s13
    %p248 = scmp.lt.s32.totalorder %s13, 3
    %p249 = pnand %p247, %p248
    %p250 = pneg %p249
    // Predicated region
    $region37: #{weight_upsample_forward.3} parent=5 // pred_check
      _
    $region38: #{weight_upsample_forward.3} parent=5 // pred_check_branch
      %252 = sbr.rel (%p249) target = $region40
    $region39: #{weight_upsample_forward.3} parent=5 // pred_region
      %s253 = ssub.s32 %s13, 1
      %s254 = smul.u32 4, %s23
      %p255 = scmp.lt.s32.totalorder %s22, 1
      %s256 = scalar_select %p255, %s22, 1
      %p257 = scmp.lt.s32.totalorder %s254, 3
      %s258 = scalar_select %p257, %s254, 3
      %s259 = smul.addr %s256, 4
      %s260 = sadd.s32 %s258, %s259
      %s261 = smul.addr %s260, 8
      %s262 = scalar_lea.vmem %s0, %s261
      %p263 = pneg %p53
      %p264 = pneg %p50
      %s265 = smul.u32 4, %s23
      %p266 = scmp.lt.s32.totalorder %s265, 3
      %s267 = scalar_select %p266, %s265, 3
      %s268 = scalar_lea.vmem %s1, %s267
      %p269 = pneg %p79
      %p270 = pneg %p76
      %p271 = pneg %p100
      %p272 = pneg %p97
      %p273 = pneg %p121
      %p274 = pneg %p118
      %p275 = pneg %p142
      %p276 = pneg %p139
      %p277 = pneg %p170
      %p278 = pneg %p167
      %s279 = smul.u32 4, %s23
      %p280 = scmp.lt.s32.totalorder %s22, 1
      %s281 = scalar_select %p280, %s22, 1
      %p282 = scmp.lt.s32.totalorder %s279, 3
      %s283 = scalar_select %p282, %s279, 3
      %s284 = smul.addr %s281, 4
      %s285 = sadd.s32 %s283, %s284
      %s286 = smul.addr %s285, 2
      %s287 = scalar_lea.vmem %s5, %s286
      %p288 = pneg %p198
      %p289 = pneg %p195
      %s290 = smul.u32 4, %s23
      %p291 = scmp.lt.s32.totalorder %s22, 1
      %s292 = scalar_select %p291, %s22, 1
      %p293 = scmp.lt.s32.totalorder %s290, 3
      %s294 = scalar_select %p293, %s290, 3
      %s295 = smul.addr %s292, 4
      %s296 = sadd.s32 %s294, %s295
      %s297 = smul.addr %s296, 4
      %s298 = scalar_lea.vmem %s6, %s297
      %s299 = smul.u32 4, %s23
      %p300 = scmp.lt.s32.totalorder %s22, 1
      %s301 = scalar_select %p300, %s22, 1
      %p302 = scmp.lt.s32.totalorder %s299, 3
      %s303 = scalar_select %p302, %s299, 3
      %s304 = smul.addr %s301, 4
      %s305 = sadd.s32 %s303, %s304
      %s306 = smul.addr %s305, 8
      %s307 = scalar_lea.vmem %s0, %s306
      %s308 = smul.u32 4, %s23
      %s309 = smul.u32 4, %s23
      %p310 = scmp.lt.s32.totalorder %s309, 3
      %s311 = scalar_select %p310, %s309, 3
      %s312 = scalar_lea.vmem %s1, %s311
      %s313 = smul.u32 4, %s23
      %s314 = smul.u32 4, %s23
      %p315 = scmp.lt.s32.totalorder %s22, 1
      %s316 = scalar_select %p315, %s22, 1
      %p317 = scmp.lt.s32.totalorder %s314, 3
      %s318 = scalar_select %p317, %s314, 3
      %s319 = smul.addr %s316, 4
      %s320 = sadd.s32 %s318, %s319
      %s321 = smul.addr %s320, 2
      %s322 = scalar_lea.vmem %s5, %s321
      %s323 = smul.u32 4, %s23
      %s324 = smul.u32 4, %s23
      %p325 = scmp.lt.s32.totalorder %s22, 1
      %s326 = scalar_select %p325, %s22, 1
      %p327 = scmp.lt.s32.totalorder %s324, 3
      %s328 = scalar_select %p327, %s324, 3
      %s329 = smul.addr %s326, 4
      %s330 = sadd.s32 %s328, %s329
      %s331 = smul.addr %s330, 4
      %s332 = scalar_lea.vmem %s6, %s331
      %s333 = smul.u32 4, %s23
      %v335 = vld [vmem:[%s307] sm:$0xff]
      %v336 = vld [vmem:[%s307 + $0x8] sm:$0xff]
      %v337 = vld [vmem:[%s307 + $0x10] sm:$0xff]
      %v338 = vld [vmem:[%s307 + $0x18] sm:$0xff]
      %v339 = vld [vmem:[%s312] sm:$0xf]
      %v341 = vlaneseq
      %v342 = vshrl.u32 %v341, 7
      %v343 = vsub.s32 0, %v342
      %v344 = vrot.slane %v339, %v343
      %v345 = vlaneseq
      %v346 = vshrl.u32 %v345, 7
      %v347 = vsub.s32 1, %v346
      %v348 = vrot.slane %v339, %v347
      %v349 = vlaneseq
      %v350 = vshrl.u32 %v349, 7
      %v351 = vsub.s32 2, %v350
      %v352 = vrot.slane %v339, %v351
      %v353 = vlaneseq
      %v354 = vshrl.u32 %v353, 7
      %v355 = vsub.s32 3, %v354
      %v356 = vrot.slane %v339, %v355
      %v361 = vmul.f32 %v335, %v344
      %v362 = vmul.f32 %v336, %v348
      %v363 = vmul.f32 %v337, %v352
      %v364 = vmul.f32 %v338, %v356
      %v365 = vpack.c.bf16 %v361, %v361
      %v366 = vpack.c.bf16 %v362, %v362
      %v367 = vpack.c.bf16 %v363, %v363
      %v368 = vpack.c.bf16 %v364, %v364
      %v369 = vld [vmem:[%s2] sm:$0x3]
      %v370 = vpack.c.bf16 %v335, %v335
      %v371 = vpack.c.bf16 %v336, %v336
      %v372 = vpack.c.bf16 %v337, %v337
      %v373 = vpack.c.bf16 %v338, %v338
      %v374 = vld [vmem:[%s3] sm:$0x3]
      %vm375 = vcmask 64512
      %v377 = vsel %vm375, %v374, 0
      %vm379 = vcmask 1043456
      %v381 = vsel %vm379, %v365, 0
      %v384 = vsel %vm379, %v366, 0
      %v387 = vsel %vm379, %v367, 0
      %v390 = vsel %vm379, %v368, 0
      %392 = vmatprep.subr.bf16.mxu0 %v384
      %393 = vmatpush1.bf16.msra.mxu0 %v381
      %394 = vmatprep.subr.bf16.mxu0 0
      %395 = vmatpush1.bf16.msra.mxu0 0
      %396 = vmatprep.subr.bf16.mxu0 0
      %397 = vmatpush1.bf16.msra.mxu0 0
      %398 = vmatprep.subr.bf16.mxu0 0
      %399 = vmatpush1.bf16.msra.mxu0 0
      %400 = vmatprep.subr.bf16.mxu0 0
      %401 = vmatpush1.bf16.msra.mxu0 0
      %402 = vmatprep.subr.bf16.mxu0 0
      %403 = vmatpush1.bf16.msra.mxu0 0
      %404 = vmatprep.subr.bf16.mxu0 0
      %405 = vmatpush1.bf16.msra.mxu0 0
      %406 = vmatprep.subr.bf16.mxu0 0
      %407 = vmatpush1.bf16.msra.mxu0 0
      %408 = vmatprep.subr.bf16.mxu0 0
      %409 = vmatpush1.bf16.msra.mxu0 0
      %410 = vmatprep.subr.bf16.mxu0 0
      %411 = vmatpush1.bf16.msra.mxu0 0
      %412 = vmatprep.subr.bf16.mxu0 0
      %413 = vmatpush1.bf16.msra.mxu0 0
      %414 = vmatprep.subr.bf16.mxu0 0
      %415 = vmatpush1.bf16.msra.mxu0 0
      %416 = vmatprep.subr.bf16.mxu0 0
      %417 = vmatpush1.bf16.msra.mxu0 0
      %418 = vmatprep.subr.bf16.mxu0 0
      %419 = vmatpush1.bf16.msra.mxu0 0
      %420 = vmatprep.subr.bf16.mxu0 0
      %421 = vmatpush1.bf16.msra.mxu0 0
      %422 = vmatprep.subr.bf16.mxu0 0
      %423 = vmatpush1.bf16.msra.mxu0 0
      %424 = vmatprep.mubr.bf16.mxu0 0
      %425 = vmatmul.mubr.bf16.gmra.mrb[0].mxu0 %v377
      %v426 = vpop.f32.mrb[0].mxu0
      %v427 = vadd.f32 0.0, %v426
      %v428 = vpop.f32.mrb[0].mxu0
      %v429 = vadd.f32 0.0, %v428
      %v430 = vpop.f32.mrb[0].mxu0
      %v431 = vpop.f32.mrb[0].mxu0
      %432 = vdwg.mxu0
      %433 = vmatprep.subr.bf16.mxu0 %v390
      %434 = vmatpush1.bf16.msra.mxu0 %v387
      %435 = vmatprep.subr.bf16.mxu0 0
      %436 = vmatpush1.bf16.msra.mxu0 0
      %437 = vmatprep.subr.bf16.mxu0 0
      %438 = vmatpush1.bf16.msra.mxu0 0
      %439 = vmatprep.subr.bf16.mxu0 0
      %440 = vmatpush1.bf16.msra.mxu0 0
      %441 = vmatprep.subr.bf16.mxu0 0
      %442 = vmatpush1.bf16.msra.mxu0 0
      %443 = vmatprep.subr.bf16.mxu0 0
      %444 = vmatpush1.bf16.msra.mxu0 0
      %445 = vmatprep.subr.bf16.mxu0 0
      %446 = vmatpush1.bf16.msra.mxu0 0
      %447 = vmatprep.subr.bf16.mxu0 0
      %448 = vmatpush1.bf16.msra.mxu0 0
      %449 = vmatprep.subr.bf16.mxu0 0
      %450 = vmatpush1.bf16.msra.mxu0 0
      %451 = vmatprep.subr.bf16.mxu0 0
      %452 = vmatpush1.bf16.msra.mxu0 0
      %453 = vmatprep.subr.bf16.mxu0 0
      %454 = vmatpush1.bf16.msra.mxu0 0
      %455 = vmatprep.subr.bf16.mxu0 0
      %456 = vmatpush1.bf16.msra.mxu0 0
      %457 = vmatprep.subr.bf16.mxu0 0
      %458 = vmatpush1.bf16.msra.mxu0 0
      %459 = vmatprep.subr.bf16.mxu0 0
      %460 = vmatpush1.bf16.msra.mxu0 0
      %461 = vmatprep.subr.bf16.mxu0 0
      %462 = vmatpush1.bf16.msra.mxu0 0
      %463 = vmatprep.subr.bf16.mxu0 0
      %464 = vmatpush1.bf16.msra.mxu0 0
      %465 = vmatprep.mubr.bf16.mxu0 0
      %466 = vmatmul.mubr.bf16.gmra.mrb[0].mxu0 %v377
      %v467 = vpop.f32.mrb[0].mxu0
      %v468 = vadd.f32 0.0, %v467
      %v469 = vpop.f32.mrb[0].mxu0
      %v470 = vadd.f32 0.0, %v469
      %v471 = vpop.f32.mrb[0].mxu0
      %v472 = vpop.f32.mrb[0].mxu0
      %473 = vdwg.mxu0
      %v475 = vsel %vm375, %v369, 0
      %v478 = vsel %vm379, %v370, 0
      %v481 = vsel %vm379, %v371, 0
      %v484 = vsel %vm379, %v372, 0
      %v487 = vsel %vm379, %v373, 0
      %489 = vmatprep.subr.bf16.mxu0 %v481
      %490 = vmatpush1.bf16.msra.mxu0 %v478
      %491 = vmatprep.subr.bf16.mxu0 0
      %492 = vmatpush1.bf16.msra.mxu0 0
      %493 = vmatprep.subr.bf16.mxu0 0
      %494 = vmatpush1.bf16.msra.mxu0 0
      %495 = vmatprep.subr.bf16.mxu0 0
      %496 = vmatpush1.bf16.msra.mxu0 0
      %497 = vmatprep.subr.bf16.mxu0 0
      %498 = vmatpush1.bf16.msra.mxu0 0
      %499 = vmatprep.subr.bf16.mxu0 0
      %500 = vmatpush1.bf16.msra.mxu0 0
      %501 = vmatprep.subr.bf16.mxu0 0
      %502 = vmatpush1.bf16.msra.mxu0 0
      %503 = vmatprep.subr.bf16.mxu0 0
      %504 = vmatpush1.bf16.msra.mxu0 0
      %505 = vmatprep.subr.bf16.mxu0 0
      %506 = vmatpush1.bf16.msra.mxu0 0
      %507 = vmatprep.subr.bf16.mxu0 0
      %508 = vmatpush1.bf16.msra.mxu0 0
      %509 = vmatprep.subr.bf16.mxu0 0
      %510 = vmatpush1.bf16.msra.mxu0 0
      %511 = vmatprep.subr.bf16.mxu0 0
      %512 = vmatpush1.bf16.msra.mxu0 0
      %513 = vmatprep.subr.bf16.mxu0 0
      %514 = vmatpush1.bf16.msra.mxu0 0
      %515 = vmatprep.subr.bf16.mxu0 0
      %516 = vmatpush1.bf16.msra.mxu0 0
      %517 = vmatprep.subr.bf16.mxu0 0
      %518 = vmatpush1.bf16.msra.mxu0 0
      %519 = vmatprep.subr.bf16.mxu0 0
      %520 = vmatpush1.bf16.msra.mxu0 0
      %521 = vmatprep.mubr.bf16.mxu0 0
      %522 = vmatmul.mubr.bf16.gmra.mrb[0].mxu0 %v475
      %v523 = vpop.f32.mrb[0].mxu0
      %v524 = vadd.f32 %v427, %v523
      %v525 = vpop.f32.mrb[0].mxu0
      %v526 = vadd.f32 %v429, %v525
      %v527 = vpop.f32.mrb[0].mxu0
      %v528 = vpop.f32.mrb[0].mxu0
      %529 = vdwg.mxu0
      %530 = vmatprep.subr.bf16.mxu0 %v487
      %531 = vmatpush1.bf16.msra.mxu0 %v484
      %532 = vmatprep.subr.bf16.mxu0 0
      %533 = vmatpush1.bf16.msra.mxu0 0
      %534 = vmatprep.subr.bf16.mxu0 0
      %535 = vmatpush1.bf16.msra.mxu0 0
      %536 = vmatprep.subr.bf16.mxu0 0
      %537 = vmatpush1.bf16.msra.mxu0 0
      %538 = vmatprep.subr.bf16.mxu0 0
      %539 = vmatpush1.bf16.msra.mxu0 0
      %540 = vmatprep.subr.bf16.mxu0 0
      %541 = vmatpush1.bf16.msra.mxu0 0
      %542 = vmatprep.subr.bf16.mxu0 0
      %543 = vmatpush1.bf16.msra.mxu0 0
      %544 = vmatprep.subr.bf16.mxu0 0
      %545 = vmatpush1.bf16.msra.mxu0 0
      %546 = vmatprep.subr.bf16.mxu0 0
      %547 = vmatpush1.bf16.msra.mxu0 0
      %548 = vmatprep.subr.bf16.mxu0 0
      %549 = vmatpush1.bf16.msra.mxu0 0
      %550 = vmatprep.subr.bf16.mxu0 0
      %551 = vmatpush1.bf16.msra.mxu0 0
      %552 = vmatprep.subr.bf16.mxu0 0
      %553 = vmatpush1.bf16.msra.mxu0 0
      %554 = vmatprep.subr.bf16.mxu0 0
      %555 = vmatpush1.bf16.msra.mxu0 0
      %556 = vmatprep.subr.bf16.mxu0 0
      %557 = vmatpush1.bf16.msra.mxu0 0
      %558 = vmatprep.subr.bf16.mxu0 0
      %559 = vmatpush1.bf16.msra.mxu0 0
      %560 = vmatprep.subr.bf16.mxu0 0
      %561 = vmatpush1.bf16.msra.mxu0 0
      %562 = vmatprep.mubr.bf16.mxu0 0
      %563 = vmatmul.mubr.bf16.gmra.mrb[0].mxu0 %v475
      %v564 = vpop.f32.mrb[0].mxu0
      %v565 = vadd.f32 %v468, %v564
      %v566 = vpop.f32.mrb[0].mxu0
      %v567 = vadd.f32 %v470, %v566
      %v568 = vpop.f32.mrb[0].mxu0
      %v569 = vpop.f32.mrb[0].mxu0
      %570 = vdwg.mxu0
      %v571 = vld [vmem:[%s4] sm:$0xf]
      %573 = vset.pattern.permute.xlu0 0
      %574 = vperm.xlu0 %573, %v571
      %v575 = vpop.permute.xlu0 %574
      %v577 = vadd.f32 %v524, %v575
      %v578 = vadd.f32 %v526, %v575
      %v579 = vadd.f32 %v565, %v575
      %v580 = vadd.f32 %v567, %v575
      %v581 = vpack.c.bf16 %v577, %v577
      %v582 = vpack.c.bf16 %v578, %v578
      %v583 = vpack.c.bf16 %v579, %v579
      %v584 = vpack.c.bf16 %v580, %v580
      %v589 = vcombine.low %v581, %v582
      %v590 = vcombine.low %v583, %v584
      %v592 = vunpack.c.l.s4 1983009808
      %v593 = vunpack.c.0.s8 %v592
      %v594 = vlaneseq
      %v595 = vshrl.u32 %v594, 7
      %v596 = vsub.s32 %v593, %v595
      %v597 = vrot.slane %v589, %v596
      %v599 = vunpack.c.l.s4 1983009808
      %v600 = vunpack.c.0.s8 %v599
      %v601 = vlaneseq
      %v602 = vshrl.u32 %v601, 7
      %v603 = vsub.s32 %v600, %v602
      %v604 = vrot.slane %v590, %v603
      %v605 = vcombine.low %v597, %v604
      %607 = vst [vmem:[%s322] sm:$0xff] %v605
      %v612 = vunpack.c.l.b16 %v365
      %v613 = vunpack.c.l.b16 %v366
      %v614 = vunpack.c.l.b16 %v367
      %v615 = vunpack.c.l.b16 %v368
      %v616 = vpack.c.b16 %v613, %v612
      %v617 = vpack.c.b16 %v615, %v614
      %620 = vst [vmem:[%s332] sm:$0xff] %v616
      %621 = vst [vmem:[%s332 + $0x8] sm:$0xff] %v617
      %s622 = smul.u32 4, %s23
      %p623 = scmp.lt.s32.totalorder %s22, 1
      %s624 = scalar_select %p623, %s22, 1
      %p625 = scmp.lt.s32.totalorder %s622, 3
      %s626 = scalar_select %p625, %s622, 3
      %s627 = smul.addr %s624, 4
      %s628 = sadd.s32 %s626, %s627
      %s629 = smul.addr %s628, 2
      %s630 = scalar_lea.vmem %s5, %s629
      %s631 = smul.u32 4, %s23
      %p632 = scmp.lt.s32.totalorder %s22, 1
      %s633 = scalar_select %p632, %s22, 1
      %p634 = scmp.lt.s32.totalorder %s631, 3
      %s635 = scalar_select %p634, %s631, 3
      %s636 = smul.addr %s633, 4
      %s637 = sadd.s32 %s635, %s636
      %s638 = smul.addr %s637, 4
      %s639 = scalar_lea.vmem %s6, %s638
      // Predicated region
      $region41: #{weight_upsample_forward.3} parent=39 // pred_check
        %p640 = pneg %p167
      $region42: #{weight_upsample_forward.3} parent=39 // pred_check_branch
        %642 = sbr.rel (%p640) target = $region44
      $region43: #{weight_upsample_forward.3} parent=39 // pred_region
        %s643 = smul.u32 4, %s23
      $region44: #{weight_upsample_forward.3} parent=39 // pred_fallthru
        _
      // Predicated region
      $region45: #{weight_upsample_forward.3} parent=39 // pred_check
        %p644 = pneg %p195
      $region46: #{weight_upsample_forward.3} parent=39 // pred_check_branch
        %646 = sbr.rel (%p644) target = $region48
      $region47: #{weight_upsample_forward.3} parent=39 // pred_region
        %s647 = smul.u32 4, %s23
      $region48: #{weight_upsample_forward.3} parent=39 // pred_fallthru
        _
    $region40: #{weight_upsample_forward.3} parent=5 // pred_fallthru
      _
    %p648 = scmp.le.s32.totalorder 2, %s13
    // Predicated region
    $region49: #{weight_upsample_forward.3} parent=5 // pred_check
      %p649 = pneg %p648
    $region50: #{weight_upsample_forward.3} parent=5 // pred_check_branch
      %651 = sbr.rel (%p649) target = $region52
    $region51: #{weight_upsample_forward.3} parent=5 // pred_region
      %s652 = ssub.s32 %s13, 2
      // Predicated region
      $region53: #{weight_upsample_forward.3} parent=51 // pred_check
        %p653 = pneg %p173
      $region54: #{weight_upsample_forward.3} parent=51 // pred_check_branch
        %655 = sbr.rel (%p653) target = $region56
      $region55: #{weight_upsample_forward.3} parent=51 // pred_region
        %s656 = smul.u32 4, %s25
        %p657 = scmp.lt.s32.totalorder %s24, 1
        %s658 = scalar_select %p657, %s24, 1
        %p659 = scmp.lt.s32.totalorder %s656, 3
        %s660 = scalar_select %p659, %s656, 3
        %s661 = smul.addr %s658, 4
        %s662 = sadd.s32 %s660, %s661
        %s663 = smul.addr %s662, 2
        %s664 = scalar_lea.vmem %s5, %s663
      $region56: #{weight_upsample_forward.3} parent=51 // pred_fallthru
        _
      // Predicated region
      $region57: #{weight_upsample_forward.3} parent=51 // pred_check
        %p665 = pneg %p201
      $region58: #{weight_upsample_forward.3} parent=51 // pred_check_branch
        %667 = sbr.rel (%p665) target = $region60
      $region59: #{weight_upsample_forward.3} parent=51 // pred_region
        %s668 = smul.u32 4, %s25
        %p669 = scmp.lt.s32.totalorder %s24, 1
        %s670 = scalar_select %p669, %s24, 1
        %p671 = scmp.lt.s32.totalorder %s668, 3
        %s672 = scalar_select %p671, %s668, 3
        %s673 = smul.addr %s670, 4
        %s674 = sadd.s32 %s672, %s673
        %s675 = smul.addr %s674, 4
        %s676 = scalar_lea.vmem %s6, %s675
      $region60: #{weight_upsample_forward.3} parent=51 // pred_fallthru
        _
    $region52: #{weight_upsample_forward.3} parent=5 // pred_fallthru
      _
  $region6: #{weight_upsample_forward.3} parent=0 // loop_footer
    %s17 = sadd.s32 1, %s13
  $region7: #{weight_upsample_forward.3} parent=0 // loop_footer_branch
    %12 = sbr.rel target = $region3
  $region8: #{weight_upsample_forward.3} parent=0 // loop_exit
    _

// kernel: weight_upsample_forward.5
$region0: #{weight_upsample_forward.5}
  #allocation0 [shape = 'u32[]', space=smem, size = 0x4, offset = 0x4, fixed_abs, tag = 'smem constant byte address 0x4 - core index']
  #allocation1 [shape = 'u32[144,128]{1,0:T(1,128)}', space=vmem, size = 0x12000, scoped, tag = 'internal scratch']
  %s0 = inlined_call_operand.vmem [shape: f32[2,4,512], index: 0, kind: input, shape index: {}]
  %s1 = inlined_call_operand.vmem [shape: bf16[2,4,512], index: 1, kind: input, shape index: {}]
  %s2 = inlined_call_operand.vmem [shape: f32[2,8,512], index: 2, kind: input, shape index: {}]
  %s3 = inlined_call_operand.vmem [shape: bf16[2,8,512], index: 3, kind: input, shape index: {}]
  %s4 = inlined_call_operand.vmem [shape: bf16[4,4], index: 4, kind: input, shape index: {}]
  %s5 = inlined_call_operand.vmem [shape: f32[4,1], index: 5, kind: input, shape index: {}]
  %s6 = inlined_call_operand.vmem [shape: bf16[16,4], index: 6, kind: input, shape index: {}]
  %s7 = inlined_call_operand.vmem [shape: f32[16,1], index: 7, kind: input, shape index: {}]
  %s8 = inlined_call_operand.vmem [shape: bf16[8,8], index: 8, kind: input, shape index: {}]
  %s9 = inlined_call_operand.vmem [shape: bf16[8,8], index: 9, kind: input, shape index: {}]
  %s10 = inlined_call_operand.vmem [shape: f32[8,1], index: 10, kind: input, shape index: {}]
  %s11 = inlined_call_operand.vmem [shape: f32[2,8,512], index: 11, kind: output, shape index: {}]
  %s12 = sld [smem:[#allocation0]]
  $region77: #{weight_upsample_forward.5} parent=0
    _
  %s14 = ssub.s32 1, %s12
  %s15 = scalar_select 0, %s14, %s12
  loop: start=0, step=1, limit=4
  $region2: #{weight_upsample_forward.5} parent=0 // loop_pre_header
    _
  $region3: #{weight_upsample_forward.5} parent=0 // loop_header
    %s17 = sphi 0, %s21
    %p18 = scmp.ge.s32.totalorder %s17, 4
    %s24 = sphi 0, %s36
    %s25 = sphi 0, %s32
    %s26 = sphi 0, %s24
    %s27 = sphi 0, %s25
    %s28 = sphi 0, %s26
    %s29 = sphi 0, %s27
    %s41 = sphi 0, %s43
    %s44 = sphi 0, %s41
    %s45 = sphi 0, %s44
    %s61 = sphi 0, %s45
    %s69 = sphi 0, %s71
    %s72 = sphi 0, %s69
    %s73 = sphi 0, %s72
    %s89 = sphi 0, %s73
    %s97 = sphi 0, %s99
    %s100 = sphi 0, %s97
    %s101 = sphi 0, %s100
    %s117 = sphi 0, %s101
    %s125 = sphi 0, %s127
    %s128 = sphi 0, %s125
    %s129 = sphi 0, %s128
    %s145 = sphi 0, %s129
    %s149 = sphi 0, %s149
    %s151 = sphi 0, %s149
    %s152 = sphi 0, %s151
    %s166 = sphi 0, %s152
    %s170 = sphi 0, %s170
    %s172 = sphi 0, %s170
    %s173 = sphi 0, %s172
    %s187 = sphi 0, %s173
    %s191 = sphi 0, %s191
    %s193 = sphi 0, %s191
    %s194 = sphi 0, %s193
    %s208 = sphi 0, %s194
    %s212 = sphi 0, %s212
    %s214 = sphi 0, %s212
    %s215 = sphi 0, %s214
    %s229 = sphi 0, %s215
    %s233 = sphi 0, %s233
    %s235 = sphi 0, %s233
    %s236 = sphi 0, %s235
    %s250 = sphi 0, %s236
    %s254 = sphi 0, %s254
    %s256 = sphi 0, %s254
    %s257 = sphi 0, %s256
    %s271 = sphi 0, %s257
    %s275 = sphi 0, %s275
    %s277 = sphi 0, %s275
    %s278 = sphi 0, %s277
    %s292 = sphi 0, %s278
    %s300 = sphi 0, %s302
    %s303 = sphi 0, %s300
    %s304 = sphi 0, %s303
    %s320 = sphi 0, %s304
  $region4: #{weight_upsample_forward.5} parent=0 // loop_header_branch
    %20 = sbr.rel (%p18) target = $region8
  $region5: #{weight_upsample_forward.5} parent=0 // loop_body
    %s22 = ssub.s32 %s17, 1
    %s23 = ssub.s32 %s17, 2
    %s30 = sadd.s32 1, %s25
    %p31 = scmp.ge.s32.totalorder %s30, 1
    %s32 = scalar_select %p31, 0, %s30
    %s33 = sadd.s32 1, %s24
    %s34 = scalar_select %p31, %s33, %s24
    %p35 = scmp.ge.s32.totalorder %s34, 2
    %s36 = scalar_select %p35, 0, %s34
    %s37 = ssub.s32 %s24, %s36
    %s38 = ssub.s32 %s25, %s32
    %s39 = sor.u32 %s37, %s38
    %p40 = scmp.eq.s32.totalorder %s39, 0
    %s42 = sadd.s32 %s41, 1
    %s43 = scalar_select %p40, %s41, %s42
    %p46 = pneg %p40
    %p47 = scmp.eq.s32.totalorder %s17, 1
    %p48 = por %p46, %p47
    %p49 = scmp.ne.s32.totalorder %s41, %s44
    %p50 = scmp.eq.s32.totalorder %s17, 0
    %p51 = por %p49, %p50
    %p52 = scmp.ne.s32.totalorder %s41, %s44
    %p53 = scmp.eq.s32.totalorder %s22, 1
    %p54 = por %p52, %p53
    %p55 = scmp.ne.s32.totalorder %s44, %s45
    %p56 = scmp.eq.s32.totalorder %s22, 0
    %p57 = por %p55, %p56
    %p58 = scmp.ne.s32.totalorder %s44, %s45
    %p59 = scmp.eq.s32.totalorder %s23, 1
    %p60 = por %p58, %p59
    %p62 = scmp.ne.s32.totalorder %s45, %s61
    %p63 = scmp.eq.s32.totalorder %s23, 0
    %p64 = por %p62, %p63
    %s65 = ssub.s32 %s24, %s36
    %s66 = ssub.s32 %s25, %s32
    %s67 = sor.u32 %s65, %s66
    %p68 = scmp.eq.s32.totalorder %s67, 0
    %s70 = sadd.s32 %s69, 1
    %s71 = scalar_select %p68, %s69, %s70
    %p74 = pneg %p68
    %p75 = scmp.eq.s32.totalorder %s17, 1
    %p76 = por %p74, %p75
    %p77 = scmp.ne.s32.totalorder %s69, %s72
    %p78 = scmp.eq.s32.totalorder %s17, 0
    %p79 = por %p77, %p78
    %p80 = scmp.ne.s32.totalorder %s69, %s72
    %p81 = scmp.eq.s32.totalorder %s22, 1
    %p82 = por %p80, %p81
    %p83 = scmp.ne.s32.totalorder %s72, %s73
    %p84 = scmp.eq.s32.totalorder %s22, 0
    %p85 = por %p83, %p84
    %p86 = scmp.ne.s32.totalorder %s72, %s73
    %p87 = scmp.eq.s32.totalorder %s23, 1
    %p88 = por %p86, %p87
    %p90 = scmp.ne.s32.totalorder %s73, %s89
    %p91 = scmp.eq.s32.totalorder %s23, 0
    %p92 = por %p90, %p91
    %s93 = ssub.s32 %s24, %s36
    %s94 = ssub.s32 %s25, %s32
    %s95 = sor.u32 %s93, %s94
    %p96 = scmp.eq.s32.totalorder %s95, 0
    %s98 = sadd.s32 %s97, 1
    %s99 = scalar_select %p96, %s97, %s98
    %p102 = pneg %p96
    %p103 = scmp.eq.s32.totalorder %s17, 1
    %p104 = por %p102, %p103
    %p105 = scmp.ne.s32.totalorder %s97, %s100
    %p106 = scmp.eq.s32.totalorder %s17, 0
    %p107 = por %p105, %p106
    %p108 = scmp.ne.s32.totalorder %s97, %s100
    %p109 = scmp.eq.s32.totalorder %s22, 1
    %p110 = por %p108, %p109
    %p111 = scmp.ne.s32.totalorder %s100, %s101
    %p112 = scmp.eq.s32.totalorder %s22, 0
    %p113 = por %p111, %p112
    %p114 = scmp.ne.s32.totalorder %s100, %s101
    %p115 = scmp.eq.s32.totalorder %s23, 1
    %p116 = por %p114, %p115
    %p118 = scmp.ne.s32.totalorder %s101, %s117
    %p119 = scmp.eq.s32.totalorder %s23, 0
    %p120 = por %p118, %p119
    %s121 = ssub.s32 %s24, %s36
    %s122 = ssub.s32 %s25, %s32
    %s123 = sor.u32 %s121, %s122
    %p124 = scmp.eq.s32.totalorder %s123, 0
    %s126 = sadd.s32 %s125, 1
    %s127 = scalar_select %p124, %s125, %s126
    %p130 = pneg %p124
    %p131 = scmp.eq.s32.totalorder %s17, 1
    %p132 = por %p130, %p131
    %p133 = scmp.ne.s32.totalorder %s125, %s128
    %p134 = scmp.eq.s32.totalorder %s17, 0
    %p135 = por %p133, %p134
    %p136 = scmp.ne.s32.totalorder %s125, %s128
    %p137 = scmp.eq.s32.totalorder %s22, 1
    %p138 = por %p136, %p137
    %p139 = scmp.ne.s32.totalorder %s128, %s129
    %p140 = scmp.eq.s32.totalorder %s22, 0
    %p141 = por %p139, %p140
    %p142 = scmp.ne.s32.totalorder %s128, %s129
    %p143 = scmp.eq.s32.totalorder %s23, 1
    %p144 = por %p142, %p143
    %p146 = scmp.ne.s32.totalorder %s129, %s145
    %p147 = scmp.eq.s32.totalorder %s23, 0
    %p148 = por %p146, %p147
    %s150 = sadd.s32 %s149, 1
    %p153 = scmp.eq.s32.totalorder %s17, 1
    %p154 = scmp.ne.s32.totalorder %s149, %s151
    %p155 = scmp.eq.s32.totalorder %s17, 0
    %p156 = por %p154, %p155
    %p157 = scmp.ne.s32.totalorder %s149, %s151
    %p158 = scmp.eq.s32.totalorder %s22, 1
    %p159 = por %p157, %p158
    %p160 = scmp.ne.s32.totalorder %s151, %s152
    %p161 = scmp.eq.s32.totalorder %s22, 0
    %p162 = por %p160, %p161
    %p163 = scmp.ne.s32.totalorder %s151, %s152
    %p164 = scmp.eq.s32.totalorder %s23, 1
    %p165 = por %p163, %p164
    %p167 = scmp.ne.s32.totalorder %s152, %s166
    %p168 = scmp.eq.s32.totalorder %s23, 0
    %p169 = por %p167, %p168
    %s171 = sadd.s32 %s170, 1
    %p174 = scmp.eq.s32.totalorder %s17, 1
    %p175 = scmp.ne.s32.totalorder %s170, %s172
    %p176 = scmp.eq.s32.totalorder %s17, 0
    %p177 = por %p175, %p176
    %p178 = scmp.ne.s32.totalorder %s170, %s172
    %p179 = scmp.eq.s32.totalorder %s22, 1
    %p180 = por %p178, %p179
    %p181 = scmp.ne.s32.totalorder %s172, %s173
    %p182 = scmp.eq.s32.totalorder %s22, 0
    %p183 = por %p181, %p182
    %p184 = scmp.ne.s32.totalorder %s172, %s173
    %p185 = scmp.eq.s32.totalorder %s23, 1
    %p186 = por %p184, %p185
    %p188 = scmp.ne.s32.totalorder %s173, %s187
    %p189 = scmp.eq.s32.totalorder %s23, 0
    %p190 = por %p188, %p189
    %s192 = sadd.s32 %s191, 1
    %p195 = scmp.eq.s32.totalorder %s17, 1
    %p196 = scmp.ne.s32.totalorder %s191, %s193
    %p197 = scmp.eq.s32.totalorder %s17, 0
    %p198 = por %p196, %p197
    %p199 = scmp.ne.s32.totalorder %s191, %s193
    %p200 = scmp.eq.s32.totalorder %s22, 1
    %p201 = por %p199, %p200
    %p202 = scmp.ne.s32.totalorder %s193, %s194
    %p203 = scmp.eq.s32.totalorder %s22, 0
    %p204 = por %p202, %p203
    %p205 = scmp.ne.s32.totalorder %s193, %s194
    %p206 = scmp.eq.s32.totalorder %s23, 1
    %p207 = por %p205, %p206
    %p209 = scmp.ne.s32.totalorder %s194, %s208
    %p210 = scmp.eq.s32.totalorder %s23, 0
    %p211 = por %p209, %p210
    %s213 = sadd.s32 %s212, 1
    %p216 = scmp.eq.s32.totalorder %s17, 1
    %p217 = scmp.ne.s32.totalorder %s212, %s214
    %p218 = scmp.eq.s32.totalorder %s17, 0
    %p219 = por %p217, %p218
    %p220 = scmp.ne.s32.totalorder %s212, %s214
    %p221 = scmp.eq.s32.totalorder %s22, 1
    %p222 = por %p220, %p221
    %p223 = scmp.ne.s32.totalorder %s214, %s215
    %p224 = scmp.eq.s32.totalorder %s22, 0
    %p225 = por %p223, %p224
    %p226 = scmp.ne.s32.totalorder %s214, %s215
    %p227 = scmp.eq.s32.totalorder %s23, 1
    %p228 = por %p226, %p227
    %p230 = scmp.ne.s32.totalorder %s215, %s229
    %p231 = scmp.eq.s32.totalorder %s23, 0
    %p232 = por %p230, %p231
    %s234 = sadd.s32 %s233, 1
    %p237 = scmp.eq.s32.totalorder %s17, 1
    %p238 = scmp.ne.s32.totalorder %s233, %s235
    %p239 = scmp.eq.s32.totalorder %s17, 0
    %p240 = por %p238, %p239
    %p241 = scmp.ne.s32.totalorder %s233, %s235
    %p242 = scmp.eq.s32.totalorder %s22, 1
    %p243 = por %p241, %p242
    %p244 = scmp.ne.s32.totalorder %s235, %s236
    %p245 = scmp.eq.s32.totalorder %s22, 0
    %p246 = por %p244, %p245
    %p247 = scmp.ne.s32.totalorder %s235, %s236
    %p248 = scmp.eq.s32.totalorder %s23, 1
    %p249 = por %p247, %p248
    %p251 = scmp.ne.s32.totalorder %s236, %s250
    %p252 = scmp.eq.s32.totalorder %s23, 0
    %p253 = por %p251, %p252
    %s255 = sadd.s32 %s254, 1
    %p258 = scmp.eq.s32.totalorder %s17, 1
    %p259 = scmp.ne.s32.totalorder %s254, %s256
    %p260 = scmp.eq.s32.totalorder %s17, 0
    %p261 = por %p259, %p260
    %p262 = scmp.ne.s32.totalorder %s254, %s256
    %p263 = scmp.eq.s32.totalorder %s22, 1
    %p264 = por %p262, %p263
    %p265 = scmp.ne.s32.totalorder %s256, %s257
    %p266 = scmp.eq.s32.totalorder %s22, 0
    %p267 = por %p265, %p266
    %p268 = scmp.ne.s32.totalorder %s256, %s257
    %p269 = scmp.eq.s32.totalorder %s23, 1
    %p270 = por %p268, %p269
    %p272 = scmp.ne.s32.totalorder %s257, %s271
    %p273 = scmp.eq.s32.totalorder %s23, 0
    %p274 = por %p272, %p273
    %s276 = sadd.s32 %s275, 1
    %p279 = scmp.eq.s32.totalorder %s17, 1
    %p280 = scmp.ne.s32.totalorder %s275, %s277
    %p281 = scmp.eq.s32.totalorder %s17, 0
    %p282 = por %p280, %p281
    %p283 = scmp.ne.s32.totalorder %s275, %s277
    %p284 = scmp.eq.s32.totalorder %s22, 1
    %p285 = por %p283, %p284
    %p286 = scmp.ne.s32.totalorder %s277, %s278
    %p287 = scmp.eq.s32.totalorder %s22, 0
    %p288 = por %p286, %p287
    %p289 = scmp.ne.s32.totalorder %s277, %s278
    %p290 = scmp.eq.s32.totalorder %s23, 1
    %p291 = por %p289, %p290
    %p293 = scmp.ne.s32.totalorder %s278, %s292
    %p294 = scmp.eq.s32.totalorder %s23, 0
    %p295 = por %p293, %p294
    %s296 = ssub.s32 %s24, %s36
    %s297 = ssub.s32 %s25, %s32
    %s298 = sor.u32 %s296, %s297
    %p299 = scmp.eq.s32.totalorder %s298, 0
    %s301 = sadd.s32 %s300, 1
    %s302 = scalar_select %p299, %s300, %s301
    %p305 = pneg %p299
    %p306 = scmp.eq.s32.totalorder %s17, 1
    %p307 = por %p305, %p306
    %p308 = scmp.ne.s32.totalorder %s300, %s303
    %p309 = scmp.eq.s32.totalorder %s17, 0
    %p310 = por %p308, %p309
    %p311 = scmp.ne.s32.totalorder %s300, %s303
    %p312 = scmp.eq.s32.totalorder %s22, 1
    %p313 = por %p311, %p312
    %p314 = scmp.ne.s32.totalorder %s303, %s304
    %p315 = scmp.eq.s32.totalorder %s22, 0
    %p316 = por %p314, %p315
    %p317 = scmp.ne.s32.totalorder %s303, %s304
    %p318 = scmp.eq.s32.totalorder %s23, 1
    %p319 = por %p317, %p318
    %p321 = scmp.ne.s32.totalorder %s304, %s320
    %p322 = scmp.eq.s32.totalorder %s23, 0
    %p323 = por %p321, %p322
    %p324 = scmp.le.s32.totalorder 1, %s17
    %p325 = scmp.lt.s32.totalorder %s17, 3
    %p326 = pnand %p324, %p325
    %p327 = pneg %p326
    // Predicated region
    $region9: #{weight_upsample_forward.5} parent=5 // pred_check
      _
    $region10: #{weight_upsample_forward.5} parent=5 // pred_check_branch
      %329 = sbr.rel (%p326) target = $region12
    $region11: #{weight_upsample_forward.5} parent=5 // pred_region
      %s330 = ssub.s32 %s17, 1
      // Predicated region
      $region13: #{weight_upsample_forward.5} parent=11 // pred_check
        %p331 = pneg %p162
      $region14: #{weight_upsample_forward.5} parent=11 // pred_check_branch
        %333 = sbr.rel (%p331) target = $region16
      $region15: #{weight_upsample_forward.5} parent=11 // pred_region
        _
      $region16: #{weight_upsample_forward.5} parent=11 // pred_fallthru
        _
      // Predicated region
      $region17: #{weight_upsample_forward.5} parent=11 // pred_check
        %p334 = pneg %p183
      $region18: #{weight_upsample_forward.5} parent=11 // pred_check_branch
        %336 = sbr.rel (%p334) target = $region20
      $region19: #{weight_upsample_forward.5} parent=11 // pred_region
        _
      $region20: #{weight_upsample_forward.5} parent=11 // pred_fallthru
        _
      // Predicated region
      $region21: #{weight_upsample_forward.5} parent=11 // pred_check
        %p337 = pneg %p204
      $region22: #{weight_upsample_forward.5} parent=11 // pred_check_branch
        %339 = sbr.rel (%p337) target = $region24
      $region23: #{weight_upsample_forward.5} parent=11 // pred_region
        _
      $region24: #{weight_upsample_forward.5} parent=11 // pred_fallthru
        _
      // Predicated region
      $region25: #{weight_upsample_forward.5} parent=11 // pred_check
        %p340 = pneg %p225
      $region26: #{weight_upsample_forward.5} parent=11 // pred_check_branch
        %342 = sbr.rel (%p340) target = $region28
      $region27: #{weight_upsample_forward.5} parent=11 // pred_region
        _
      $region28: #{weight_upsample_forward.5} parent=11 // pred_fallthru
        _
      // Predicated region
      $region29: #{weight_upsample_forward.5} parent=11 // pred_check
        %p343 = pneg %p246
      $region30: #{weight_upsample_forward.5} parent=11 // pred_check_branch
        %345 = sbr.rel (%p343) target = $region32
      $region31: #{weight_upsample_forward.5} parent=11 // pred_region
        _
      $region32: #{weight_upsample_forward.5} parent=11 // pred_fallthru
        _
      // Predicated region
      $region33: #{weight_upsample_forward.5} parent=11 // pred_check
        %p346 = pneg %p267
      $region34: #{weight_upsample_forward.5} parent=11 // pred_check_branch
        %348 = sbr.rel (%p346) target = $region36
      $region35: #{weight_upsample_forward.5} parent=11 // pred_region
        _
      $region36: #{weight_upsample_forward.5} parent=11 // pred_fallthru
        _
      // Predicated region
      $region37: #{weight_upsample_forward.5} parent=11 // pred_check
        %p349 = pneg %p288
      $region38: #{weight_upsample_forward.5} parent=11 // pred_check_branch
        %351 = sbr.rel (%p349) target = $region40
      $region39: #{weight_upsample_forward.5} parent=11 // pred_region
        _
      $region40: #{weight_upsample_forward.5} parent=11 // pred_fallthru
        _
    $region12: #{weight_upsample_forward.5} parent=5 // pred_fallthru
      _
    %p352 = scmp.lt.s32.totalorder %s17, 2
    // Predicated region
    $region41: #{weight_upsample_forward.5} parent=5 // pred_check
      %p353 = pneg %p352
    $region42: #{weight_upsample_forward.5} parent=5 // pred_check_branch
      %355 = sbr.rel (%p353) target = $region44
    $region43: #{weight_upsample_forward.5} parent=5 // pred_region
      // Predicated region
      $region45: #{weight_upsample_forward.5} parent=43 // pred_check
        %p356 = pneg %p51
      $region46: #{weight_upsample_forward.5} parent=43 // pred_check_branch
        %358 = sbr.rel (%p356) target = $region48
      $region47: #{weight_upsample_forward.5} parent=43 // pred_region
        %s359 = smul.u32 4, %s25
        %p360 = scmp.lt.s32.totalorder %s24, 1
        %s361 = scalar_select %p360, %s24, 1
        %p362 = scmp.lt.s32.totalorder %s359, 3
        %s363 = scalar_select %p362, %s359, 3
        %s364 = smul.addr %s361, 4
        %s365 = sadd.s32 %s363, %s364
        %s366 = smul.addr %s365, 4
        %s367 = scalar_lea.vmem %s0, %s366
        %s368 = smul.u32 4, %s25
      $region48: #{weight_upsample_forward.5} parent=43 // pred_fallthru
        _
      // Predicated region
      $region49: #{weight_upsample_forward.5} parent=43 // pred_check
        %p369 = pneg %p79
      $region50: #{weight_upsample_forward.5} parent=43 // pred_check_branch
        %371 = sbr.rel (%p369) target = $region52
      $region51: #{weight_upsample_forward.5} parent=43 // pred_region
        %s372 = smul.u32 4, %s25
        %p373 = scmp.lt.s32.totalorder %s24, 1
        %s374 = scalar_select %p373, %s24, 1
        %p375 = scmp.lt.s32.totalorder %s372, 3
        %s376 = scalar_select %p375, %s372, 3
        %s377 = smul.addr %s374, 4
        %s378 = sadd.s32 %s376, %s377
        %s379 = smul.addr %s378, 2
        %s380 = scalar_lea.vmem %s1, %s379
        %s381 = smul.u32 4, %s25
      $region52: #{weight_upsample_forward.5} parent=43 // pred_fallthru
        _
      // Predicated region
      $region53: #{weight_upsample_forward.5} parent=43 // pred_check
        %p382 = pneg %p107
      $region54: #{weight_upsample_forward.5} parent=43 // pred_check_branch
        %384 = sbr.rel (%p382) target = $region56
      $region55: #{weight_upsample_forward.5} parent=43 // pred_region
        %s385 = smul.u32 4, %s25
        %p386 = scmp.lt.s32.totalorder %s24, 1
        %s387 = scalar_select %p386, %s24, 1
        %p388 = scmp.lt.s32.totalorder %s385, 3
        %s389 = scalar_select %p388, %s385, 3
        %s390 = smul.addr %s387, 4
        %s391 = sadd.s32 %s389, %s390
        %s392 = smul.addr %s391, 8
        %s393 = scalar_lea.vmem %s2, %s392
        %s394 = smul.u32 4, %s25
      $region56: #{weight_upsample_forward.5} parent=43 // pred_fallthru
        _
      // Predicated region
      $region57: #{weight_upsample_forward.5} parent=43 // pred_check
        %p395 = pneg %p135
      $region58: #{weight_upsample_forward.5} parent=43 // pred_check_branch
        %397 = sbr.rel (%p395) target = $region60
      $region59: #{weight_upsample_forward.5} parent=43 // pred_region
        %s398 = smul.u32 4, %s25
        %p399 = scmp.lt.s32.totalorder %s24, 1
        %s400 = scalar_select %p399, %s24, 1
        %p401 = scmp.lt.s32.totalorder %s398, 3
        %s402 = scalar_select %p401, %s398, 3
        %s403 = smul.addr %s400, 4
        %s404 = sadd.s32 %s402, %s403
        %s405 = smul.addr %s404, 4
        %s406 = scalar_lea.vmem %s3, %s405
        %s407 = smul.u32 4, %s25
      $region60: #{weight_upsample_forward.5} parent=43 // pred_fallthru
        _
    $region44: #{weight_upsample_forward.5} parent=5 // pred_fallthru
      _
    %p408 = scmp.le.s32.totalorder 1, %s17
    %p409 = scmp.lt.s32.totalorder %s17, 3
    %p410 = pnand %p408, %p409
    %p411 = pneg %p410
    // Predicated region
    $region61: #{weight_upsample_forward.5} parent=5 // pred_check
      _
    $region62: #{weight_upsample_forward.5} parent=5 // pred_check_branch
      %413 = sbr.rel (%p410) target = $region64
    $region63: #{weight_upsample_forward.5} parent=5 // pred_region
      %s414 = ssub.s32 %s17, 1
      %s415 = smul.u32 4, %s27
      %p416 = scmp.lt.s32.totalorder %s26, 1
      %s417 = scalar_select %p416, %s26, 1
      %p418 = scmp.lt.s32.totalorder %s415, 3
      %s419 = scalar_select %p418, %s415, 3
      %s420 = smul.addr %s417, 4
      %s421 = sadd.s32 %s419, %s420
      %s422 = smul.addr %s421, 4
      %s423 = scalar_lea.vmem %s0, %s422
      %p424 = pneg %p57
      %p425 = pneg %p54
      %s426 = smul.u32 4, %s27
      %p427 = scmp.lt.s32.totalorder %s26, 1
      %s428 = scalar_select %p427, %s26, 1
      %p429 = scmp.lt.s32.totalorder %s426, 3
      %s430 = scalar_select %p429, %s426, 3
      %s431 = smul.addr %s428, 4
      %s432 = sadd.s32 %s430, %s431
      %s433 = smul.addr %s432, 2
      %s434 = scalar_lea.vmem %s1, %s433
      %p435 = pneg %p85
      %p436 = pneg %p82
      %s437 = smul.u32 4, %s27
      %p438 = scmp.lt.s32.totalorder %s26, 1
      %s439 = scalar_select %p438, %s26, 1
      %p440 = scmp.lt.s32.totalorder %s437, 3
      %s441 = scalar_select %p440, %s437, 3
      %s442 = smul.addr %s439, 4
      %s443 = sadd.s32 %s441, %s442
      %s444 = smul.addr %s443, 8
      %s445 = scalar_lea.vmem %s2, %s444
      %p446 = pneg %p113
      %p447 = pneg %p110
      %s448 = smul.u32 4, %s27
      %p449 = scmp.lt.s32.totalorder %s26, 1
      %s450 = scalar_select %p449, %s26, 1
      %p451 = scmp.lt.s32.totalorder %s448, 3
      %s452 = scalar_select %p451, %s448, 3
      %s453 = smul.addr %s450, 4
      %s454 = sadd.s32 %s452, %s453
      %s455 = smul.addr %s454, 4
      %s456 = scalar_lea.vmem %s3, %s455
      %p457 = pneg %p141
      %p458 = pneg %p138
      %p459 = pneg %p162
      %p460 = pneg %p159
      %p461 = pneg %p183
      %p462 = pneg %p180
      %p463 = pneg %p204
      %p464 = pneg %p201
      %p465 = pneg %p225
      %p466 = pneg %p222
      %p467 = pneg %p246
      %p468 = pneg %p243
      %p469 = pneg %p267
      %p470 = pneg %p264
      %p471 = pneg %p288
      %p472 = pneg %p285
      %p473 = pneg %p316
      %p474 = pneg %p313
      %s475 = smul.u32 4, %s27
      %p476 = scmp.lt.s32.totalorder %s26, 1
      %s477 = scalar_select %p476, %s26, 1
      %p478 = scmp.lt.s32.totalorder %s475, 3
      %s479 = scalar_select %p478, %s475, 3
      %s480 = smul.addr %s477, 4
      %s481 = sadd.s32 %s479, %s480
      %s482 = smul.addr %s481, 8
      %s483 = scalar_lea.vmem %s11, %s482
      %s484 = smul.u32 4, %s27
      %p485 = scmp.lt.s32.totalorder %s26, 1
      %s486 = scalar_select %p485, %s26, 1
      %p487 = scmp.lt.s32.totalorder %s484, 3
      %s488 = scalar_select %p487, %s484, 3
      %s489 = smul.addr %s486, 4
      %s490 = sadd.s32 %s488, %s489
      %s491 = smul.addr %s490, 4
      %s492 = scalar_lea.vmem %s0, %s491
      %s493 = smul.u32 4, %s27
      %s494 = smul.u32 4, %s27
      %p495 = scmp.lt.s32.totalorder %s26, 1
      %s496 = scalar_select %p495, %s26, 1
      %p497 = scmp.lt.s32.totalorder %s494, 3
      %s498 = scalar_select %p497, %s494, 3
      %s499 = smul.addr %s496, 4
      %s500 = sadd.s32 %s498, %s499
      %s501 = smul.addr %s500, 2
      %s502 = scalar_lea.vmem %s1, %s501
      %s503 = smul.u32 4, %s27
      %s504 = smul.u32 4, %s27
      %p505 = scmp.lt.s32.totalorder %s26, 1
      %s506 = scalar_select %p505, %s26, 1
      %p507 = scmp.lt.s32.totalorder %s504, 3
      %s508 = scalar_select %p507, %s504, 3
      %s509 = smul.addr %s506, 4
      %s510 = sadd.s32 %s508, %s509
      %s511 = smul.addr %s510, 8
      %s512 = scalar_lea.vmem %s2, %s511
      %s513 = smul.u32 4, %s27
      %s514 = smul.u32 4, %s27
      %p515 = scmp.lt.s32.totalorder %s26, 1
      %s516 = scalar_select %p515, %s26, 1
      %p517 = scmp.lt.s32.totalorder %s514, 3
      %s518 = scalar_select %p517, %s514, 3
      %s519 = smul.addr %s516, 4
      %s520 = sadd.s32 %s518, %s519
      %s521 = smul.addr %s520, 4
      %s522 = scalar_lea.vmem %s3, %s521
      %s523 = smul.u32 4, %s27
      %s524 = smul.u32 4, %s27
      %p525 = scmp.lt.s32.totalorder %s26, 1
      %s526 = scalar_select %p525, %s26, 1
      %p527 = scmp.lt.s32.totalorder %s524, 3
      %s528 = scalar_select %p527, %s524, 3
      %s529 = smul.addr %s526, 4
      %s530 = sadd.s32 %s528, %s529
      %s531 = smul.addr %s530, 8
      %s532 = scalar_lea.vmem %s11, %s531
      %s533 = smul.u32 4, %s27
      %v535 = vld [vmem:[%s4] sm:$0x3]
      %v536 = vld [vmem:[%s502] sm:$0xff]
      %v537 = vld [vmem:[%s5] sm:$0xf]
      %539 = vset.pattern.permute.xlu0 0
      %540 = vperm.xlu0 %539, %v537
      %v541 = vpop.permute.xlu0 %540
      %v544 = vcombine.high %v536, %v536
      %v546 = vunpack.c.l.s4 1983009808
      %v547 = vunpack.c.0.s8 %v546
      %v548 = vlaneseq
      %v549 = vshrl.u32 %v548, 7
      %v550 = vsub.s32 %v547, %v549
      %v551 = vrot.slane %v536, %v550
      %v553 = vunpack.c.l.s4 1983009808
      %v554 = vunpack.c.0.s8 %v553
      %v555 = vlaneseq
      %v556 = vshrl.u32 %v555, 7
      %v557 = vsub.s32 %v554, %v556
      %v558 = vrot.slane %v544, %v557
      %v559 = vcombine.high %v551, %v551
      %v560 = vcombine.high %v558, %v558
      %vm561 = vcmask 31744
      %v563 = vsel %vm561, %v535, 0
      %vm565 = vcmask 1041408
      %v567 = vsel %vm565, %v551, 0
      %v570 = vsel %vm565, %v559, 0
      %v573 = vsel %vm565, %v558, 0
      %v576 = vsel %vm565, %v560, 0
      %578 = vmatprep.subr.bf16.mxu0 %v570
      %579 = vmatpush1.bf16.msra.mxu0 %v567
      %580 = vmatprep.subr.bf16.mxu0 0
      %581 = vmatpush1.bf16.msra.mxu0 0
      %582 = vmatprep.subr.bf16.mxu0 0
      %583 = vmatpush1.bf16.msra.mxu0 0
      %584 = vmatprep.subr.bf16.mxu0 0
      %585 = vmatpush1.bf16.msra.mxu0 0
      %586 = vmatprep.subr.bf16.mxu0 0
      %587 = vmatpush1.bf16.msra.mxu0 0
      %588 = vmatprep.subr.bf16.mxu0 0
      %589 = vmatpush1.bf16.msra.mxu0 0
      %590 = vmatprep.subr.bf16.mxu0 0
      %591 = vmatpush1.bf16.msra.mxu0 0
      %592 = vmatprep.subr.bf16.mxu0 0
      %593 = vmatpush1.bf16.msra.mxu0 0
      %594 = vmatprep.subr.bf16.mxu0 0
      %595 = vmatpush1.bf16.msra.mxu0 0
      %596 = vmatprep.subr.bf16.mxu0 0
      %597 = vmatpush1.bf16.msra.mxu0 0
      %598 = vmatprep.subr.bf16.mxu0 0
      %599 = vmatpush1.bf16.msra.mxu0 0
      %600 = vmatprep.subr.bf16.mxu0 0
      %601 = vmatpush1.bf16.msra.mxu0 0
      %602 = vmatprep.subr.bf16.mxu0 0
      %603 = vmatpush1.bf16.msra.mxu0 0
      %604 = vmatprep.subr.bf16.mxu0 0
      %605 = vmatpush1.bf16.msra.mxu0 0
      %606 = vmatprep.subr.bf16.mxu0 0
      %607 = vmatpush1.bf16.msra.mxu0 0
      %608 = vmatprep.subr.bf16.mxu0 0
      %609 = vmatpush1.bf16.msra.mxu0 0
      %610 = vmatprep.mubr.bf16.mxu0 0
      %611 = vmatmul.mubr.bf16.gmra.mrb[0].mxu0 %v563
      %v612 = vpop.f32.mrb[0].mxu0
      %v613 = vadd.f32 %v541, %v612
      %v614 = vpop.f32.mrb[0].mxu0
      %v615 = vadd.f32 %v541, %v614
      %v616 = vpop.f32.mrb[0].mxu0
      %v617 = vpop.f32.mrb[0].mxu0
      %618 = vdwg.mxu0
      %619 = vmatprep.subr.bf16.mxu0 %v576
      %620 = vmatpush1.bf16.msra.mxu0 %v573
      %621 = vmatprep.subr.bf16.mxu0 0
      %622 = vmatpush1.bf16.msra.mxu0 0
      %623 = vmatprep.subr.bf16.mxu0 0
      %624 = vmatpush1.bf16.msra.mxu0 0
      %625 = vmatprep.subr.bf16.mxu0 0
      %626 = vmatpush1.bf16.msra.mxu0 0
      %627 = vmatprep.subr.bf16.mxu0 0
      %628 = vmatpush1.bf16.msra.mxu0 0
      %629 = vmatprep.subr.bf16.mxu0 0
      %630 = vmatpush1.bf16.msra.mxu0 0
      %631 = vmatprep.subr.bf16.mxu0 0
      %632 = vmatpush1.bf16.msra.mxu0 0
      %633 = vmatprep.subr.bf16.mxu0 0
      %634 = vmatpush1.bf16.msra.mxu0 0
      %635 = vmatprep.subr.bf16.mxu0 0
      %636 = vmatpush1.bf16.msra.mxu0 0
      %637 = vmatprep.subr.bf16.mxu0 0
      %638 = vmatpush1.bf16.msra.mxu0 0
      %639 = vmatprep.subr.bf16.mxu0 0
      %640 = vmatpush1.bf16.msra.mxu0 0
      %641 = vmatprep.subr.bf16.mxu0 0
      %642 = vmatpush1.bf16.msra.mxu0 0
      %643 = vmatprep.subr.bf16.mxu0 0
      %644 = vmatpush1.bf16.msra.mxu0 0
      %645 = vmatprep.subr.bf16.mxu0 0
      %646 = vmatpush1.bf16.msra.mxu0 0
      %647 = vmatprep.subr.bf16.mxu0 0
      %648 = vmatpush1.bf16.msra.mxu0 0
      %649 = vmatprep.subr.bf16.mxu0 0
      %650 = vmatpush1.bf16.msra.mxu0 0
      %651 = vmatprep.mubr.bf16.mxu0 0
      %652 = vmatmul.mubr.bf16.gmra.mrb[0].mxu0 %v563
      %v653 = vpop.f32.mrb[0].mxu0
      %v654 = vadd.f32 %v541, %v653
      %v655 = vpop.f32.mrb[0].mxu0
      %v656 = vadd.f32 %v541, %v655
      %v657 = vpop.f32.mrb[0].mxu0
      %v658 = vpop.f32.mrb[0].mxu0
      %659 = vdwg.mxu0
      %v660 = vld [vmem:[%s492] sm:$0xff]
      %v661 = vld [vmem:[%s492 + $0x8] sm:$0xff]
      %v666 = vcombine.low %v613, %v615
      %v667 = vcombine.low %v654, %v656
      %v670 = vadd.f32 %v660, %v666
      %v671 = vadd.f32 %v661, %v667
      %v674 = vcombine.high %v670, %v670
      %v675 = vcombine.high %v671, %v671
      %v678 = vpack.c.bf16 %v670, %v670
      %v679 = vpack.c.bf16 %v674, %v674
      %v680 = vpack.c.bf16 %v671, %v671
      %v681 = vpack.c.bf16 %v675, %v675
      %v682 = vld [vmem:[%s6] sm:$0xf]
      %v683 = vld [vmem:[%s6 + $0x4] sm:$0xf]
      %v684 = vld [vmem:[%s7] sm:$0xff]
      %v685 = vld [vmem:[%s7 + $0x8] sm:$0xff]
      %687 = vset.pattern.permute.xlu0 0
      %688 = vperm.xlu0 %687, %v684
      %v689 = vpop.permute.xlu0 %688
      %692 = vset.pattern.permute.xlu0 0
      %693 = vperm.xlu0 %692, %v685
      %v694 = vpop.permute.xlu0 %693
      %v698 = vunpack.c.l.b16 %v682
      %v699 = vunpack.c.l.b16 %v683
      %v700 = vpack.c.b16 %v699, %v698
      %v702 = vsel %vm561, %v700, 0
      %v705 = vsel %vm565, %v678, 0
      %v708 = vsel %vm565, %v679, 0
      %v711 = vsel %vm565, %v680, 0
      %v714 = vsel %vm565, %v681, 0
      %716 = vmatprep.subr.bf16.mxu0 %v708
      %717 = vmatpush1.bf16.msra.mxu0 %v705
      %718 = vmatprep.subr.bf16.mxu0 0
      %719 = vmatpush1.bf16.msra.mxu0 0
      %720 = vmatprep.subr.bf16.mxu0 0
      %721 = vmatpush1.bf16.msra.mxu0 0
      %722 = vmatprep.subr.bf16.mxu0 0
      %723 = vmatpush1.bf16.msra.mxu0 0
      %724 = vmatprep.subr.bf16.mxu0 0
      %725 = vmatpush1.bf16.msra.mxu0 0
      %726 = vmatprep.subr.bf16.mxu0 0
      %727 = vmatpush1.bf16.msra.mxu0 0
      %728 = vmatprep.subr.bf16.mxu0 0
      %729 = vmatpush1.bf16.msra.mxu0 0
      %730 = vmatprep.subr.bf16.mxu0 0
      %731 = vmatpush1.bf16.msra.mxu0 0
      %732 = vmatprep.subr.bf16.mxu0 0
      %733 = vmatpush1.bf16.msra.mxu0 0
      %734 = vmatprep.subr.bf16.mxu0 0
      %735 = vmatpush1.bf16.msra.mxu0 0
      %736 = vmatprep.subr.bf16.mxu0 0
      %737 = vmatpush1.bf16.msra.mxu0 0
      %738 = vmatprep.subr.bf16.mxu0 0
      %739 = vmatpush1.bf16.msra.mxu0 0
      %740 = vmatprep.subr.bf16.mxu0 0
      %741 = vmatpush1.bf16.msra.mxu0 0
      %742 = vmatprep.subr.bf16.mxu0 0
      %743 = vmatpush1.bf16.msra.mxu0 0
      %744 = vmatprep.subr.bf16.mxu0 0
      %745 = vmatpush1.bf16.msra.mxu0 0
      %746 = vmatprep.subr.bf16.mxu0 0
      %747 = vmatpush1.bf16.msra.mxu0 0
      %748 = vmatprep.mubr.bf16.mxu0 0
      %749 = vmatmul.mubr.bf16.gmra.mrb[0].mxu0 %v702
      %v750 = vpop.f32.mrb[0].mxu0
      %v751 = vadd.f32 %v689, %v750
      %v752 = vpop.f32.mrb[0].mxu0
      %v753 = vadd.f32 %v689, %v752
      %v754 = vpop.f32.mrb[0].mxu0
      %v755 = vadd.f32 %v694, %v754
      %v756 = vpop.f32.mrb[0].mxu0
      %v757 = vadd.f32 %v694, %v756
      %758 = vdwg.mxu0
      %759 = vmatprep.subr.bf16.mxu0 %v714
      %760 = vmatpush1.bf16.msra.mxu0 %v711
      %761 = vmatprep.subr.bf16.mxu0 0
      %762 = vmatpush1.bf16.msra.mxu0 0
      %763 = vmatprep.subr.bf16.mxu0 0
      %764 = vmatpush1.bf16.msra.mxu0 0
      %765 = vmatprep.subr.bf16.mxu0 0
      %766 = vmatpush1.bf16.msra.mxu0 0
      %767 = vmatprep.subr.bf16.mxu0 0
      %768 = vmatpush1.bf16.msra.mxu0 0
      %769 = vmatprep.subr.bf16.mxu0 0
      %770 = vmatpush1.bf16.msra.mxu0 0
      %771 = vmatprep.subr.bf16.mxu0 0
      %772 = vmatpush1.bf16.msra.mxu0 0
      %773 = vmatprep.subr.bf16.mxu0 0
      %774 = vmatpush1.bf16.msra.mxu0 0
      %775 = vmatprep.subr.bf16.mxu0 0
      %776 = vmatpush1.bf16.msra.mxu0 0
      %777 = vmatprep.subr.bf16.mxu0 0
      %778 = vmatpush1.bf16.msra.mxu0 0
      %779 = vmatprep.subr.bf16.mxu0 0
      %780 = vmatpush1.bf16.msra.mxu0 0
      %781 = vmatprep.subr.bf16.mxu0 0
      %782 = vmatpush1.bf16.msra.mxu0 0
      %783 = vmatprep.subr.bf16.mxu0 0
      %784 = vmatpush1.bf16.msra.mxu0 0
      %785 = vmatprep.subr.bf16.mxu0 0
      %786 = vmatpush1.bf16.msra.mxu0 0
      %787 = vmatprep.subr.bf16.mxu0 0
      %788 = vmatpush1.bf16.msra.mxu0 0
      %789 = vmatprep.subr.bf16.mxu0 0
      %790 = vmatpush1.bf16.msra.mxu0 0
      %791 = vmatprep.mubr.bf16.mxu0 0
      %792 = vmatmul.mubr.bf16.gmra.mrb[0].mxu0 %v702
      %v793 = vpop.f32.mrb[0].mxu0
      %v794 = vadd.f32 %v689, %v793
      %v795 = vpop.f32.mrb[0].mxu0
      %v796 = vadd.f32 %v689, %v795
      %v797 = vpop.f32.mrb[0].mxu0
      %v798 = vadd.f32 %v694, %v797
      %v799 = vpop.f32.mrb[0].mxu0
      %v800 = vadd.f32 %v694, %v799
      %801 = vdwg.mxu0
      %v802 = vxor.u32 %v751, 2147483648
      %v803 = vxor.u32 %v753, 2147483648
      %v804 = vxor.u32 %v794, 2147483648
      %v805 = vxor.u32 %v796, 2147483648
      %v806 = vxor.u32 %v755, 2147483648
      %v807 = vxor.u32 %v757, 2147483648
      %v808 = vxor.u32 %v798, 2147483648
      %v809 = vxor.u32 %v800, 2147483648
      %v810 = vmul.f32 %v802, 1.442695
      %v811 = vpow.pop %v810
      %v812 = vmul.f32 %v803, 1.442695
      %v813 = vpow.pop %v812
      %v814 = vmul.f32 %v804, 1.442695
      %v815 = vpow.pop %v814
      %v816 = vmul.f32 %v805, 1.442695
      %v817 = vpow.pop %v816
      %v818 = vmul.f32 %v806, 1.442695
      %v819 = vpow.pop %v818
      %v820 = vmul.f32 %v807, 1.442695
      %v821 = vpow.pop %v820
      %v822 = vmul.f32 %v808, 1.442695
      %v823 = vpow.pop %v822
      %v824 = vmul.f32 %v809, 1.442695
      %v825 = vpow.pop %v824
      %v826 = vadd.f32 %v811, 1.0
      %v827 = vadd.f32 %v813, 1.0
      %v828 = vadd.f32 %v815, 1.0
      %v829 = vadd.f32 %v817, 1.0
      %v830 = vadd.f32 %v819, 1.0
      %v831 = vadd.f32 %v821, 1.0
      %v832 = vadd.f32 %v823, 1.0
      %v833 = vadd.f32 %v825, 1.0
      %v834 = vrcp.pop %v826
      %v835 = vmul.f32 1.0, %v834
      %v836 = vrcp.pop %v827
      %v837 = vmul.f32 1.0, %v836
      %v838 = vrcp.pop %v828
      %v839 = vmul.f32 1.0, %v838
      %v840 = vrcp.pop %v829
      %v841 = vmul.f32 1.0, %v840
      %v842 = vrcp.pop %v830
      %v843 = vmul.f32 1.0, %v842
      %v844 = vrcp.pop %v831
      %v845 = vmul.f32 1.0, %v844
      %v846 = vrcp.pop %v832
      %v847 = vmul.f32 1.0, %v846
      %v848 = vrcp.pop %v833
      %v849 = vmul.f32 1.0, %v848
      %v850 = vld [vmem:[%s512] sm:$0xff]
      %v851 = vld [vmem:[%s512 + $0x8] sm:$0xff]
      %v852 = vld [vmem:[%s512 + $0x10] sm:$0xff]
      %v853 = vld [vmem:[%s512 + $0x18] sm:$0xff]
      %v854 = vld [vmem:[%s522] sm:$0xff]
      %v855 = vld [vmem:[%s522 + $0x8] sm:$0xff]
      %v856 = vunpack.c.l.bf16 %v854
      %v857 = vunpack.c.h.bf16 %v854
      %v858 = vunpack.c.l.bf16 %v855
      %v859 = vunpack.c.h.bf16 %v855
      %v860 = vmul.f32 %v850, %v835
      %v861 = vmul.f32 %v851, %v837
      %v862 = vmul.f32 %v852, %v839
      %v863 = vmul.f32 %v853, %v841
      %v864 = vpack.c.bf16 %v860, %v860
      %v865 = vpack.c.bf16 %v861, %v861
      %v866 = vpack.c.bf16 %v862, %v862
      %v867 = vpack.c.bf16 %v863, %v863
      %v868 = vmul.f32 %v856, %v843
      %v869 = vmul.f32 %v857, %v845
      %v870 = vmul.f32 %v858, %v847
      %v871 = vmul.f32 %v859, %v849
      %v872 = vpack.c.bf16 %v868, %v868
      %v873 = vpack.c.bf16 %v869, %v869
      %v874 = vpack.c.bf16 %v870, %v870
      %v875 = vpack.c.bf16 %v871, %v871
      %v876 = vld [vmem:[%s8] sm:$0xf]
      %v877 = vld [vmem:[%s9] sm:$0xf]
      %vm878 = vcmask 64512
      %v880 = vsel %vm878, %v877, 0
      %vm882 = vcmask 1043456
      %v884 = vsel %vm882, %v872, 0
      %v887 = vsel %vm882, %v873, 0
      %v890 = vsel %vm882, %v874, 0
      %v893 = vsel %vm882, %v875, 0
      %895 = vmatprep.subr.bf16.mxu0 %v887
      %896 = vmatpush1.bf16.msra.mxu0 %v884
      %897 = vmatprep.subr.bf16.mxu0 0
      %898 = vmatpush1.bf16.msra.mxu0 0
      %899 = vmatprep.subr.bf16.mxu0 0
      %900 = vmatpush1.bf16.msra.mxu0 0
      %901 = vmatprep.subr.bf16.mxu0 0
      %902 = vmatpush1.bf16.msra.mxu0 0
      %903 = vmatprep.subr.bf16.mxu0 0
      %904 = vmatpush1.bf16.msra.mxu0 0
      %905 = vmatprep.subr.bf16.mxu0 0
      %906 = vmatpush1.bf16.msra.mxu0 0
      %907 = vmatprep.subr.bf16.mxu0 0
      %908 = vmatpush1.bf16.msra.mxu0 0
      %909 = vmatprep.subr.bf16.mxu0 0
      %910 = vmatpush1.bf16.msra.mxu0 0
      %911 = vmatprep.subr.bf16.mxu0 0
      %912 = vmatpush1.bf16.msra.mxu0 0
      %913 = vmatprep.subr.bf16.mxu0 0
      %914 = vmatpush1.bf16.msra.mxu0 0
      %915 = vmatprep.subr.bf16.mxu0 0
      %916 = vmatpush1.bf16.msra.mxu0 0
      %917 = vmatprep.subr.bf16.mxu0 0
      %918 = vmatpush1.bf16.msra.mxu0 0
      %919 = vmatprep.subr.bf16.mxu0 0
      %920 = vmatpush1.bf16.msra.mxu0 0
      %921 = vmatprep.subr.bf16.mxu0 0
      %922 = vmatpush1.bf16.msra.mxu0 0
      %923 = vmatprep.subr.bf16.mxu0 0
      %924 = vmatpush1.bf16.msra.mxu0 0
      %925 = vmatprep.subr.bf16.mxu0 0
      %926 = vmatpush1.bf16.msra.mxu0 0
      %927 = vmatprep.mubr.bf16.mxu0 0
      %928 = vmatmul.mubr.bf16.gmra.mrb[0].mxu0 %v880
      %v929 = vpop.f32.mrb[0].mxu0
      %v930 = vadd.f32 0.0, %v929
      %v931 = vpop.f32.mrb[0].mxu0
      %v932 = vadd.f32 0.0, %v931
      %v933 = vpop.f32.mrb[0].mxu0
      %v934 = vpop.f32.mrb[0].mxu0
      %935 = vdwg.mxu0
      %936 = vmatprep.subr.bf16.mxu0 %v893
      %937 = vmatpush1.bf16.msra.mxu0 %v890
      %938 = vmatprep.subr.bf16.mxu0 0
      %939 = vmatpush1.bf16.msra.mxu0 0
      %940 = vmatprep.subr.bf16.mxu0 0
      %941 = vmatpush1.bf16.msra.mxu0 0
      %942 = vmatprep.subr.bf16.mxu0 0
      %943 = vmatpush1.bf16.msra.mxu0 0
      %944 = vmatprep.subr.bf16.mxu0 0
      %945 = vmatpush1.bf16.msra.mxu0 0
      %946 = vmatprep.subr.bf16.mxu0 0
      %947 = vmatpush1.bf16.msra.mxu0 0
      %948 = vmatprep.subr.bf16.mxu0 0
      %949 = vmatpush1.bf16.msra.mxu0 0
      %950 = vmatprep.subr.bf16.mxu0 0
      %951 = vmatpush1.bf16.msra.mxu0 0
      %952 = vmatprep.subr.bf16.mxu0 0
      %953 = vmatpush1.bf16.msra.mxu0 0
      %954 = vmatprep.subr.bf16.mxu0 0
      %955 = vmatpush1.bf16.msra.mxu0 0
      %956 = vmatprep.subr.bf16.mxu0 0
      %957 = vmatpush1.bf16.msra.mxu0 0
      %958 = vmatprep.subr.bf16.mxu0 0
      %959 = vmatpush1.bf16.msra.mxu0 0
      %960 = vmatprep.subr.bf16.mxu0 0
      %961 = vmatpush1.bf16.msra.mxu0 0
      %962 = vmatprep.subr.bf16.mxu0 0
      %963 = vmatpush1.bf16.msra.mxu0 0
      %964 = vmatprep.subr.bf16.mxu0 0
      %965 = vmatpush1.bf16.msra.mxu0 0
      %966 = vmatprep.subr.bf16.mxu0 0
      %967 = vmatpush1.bf16.msra.mxu0 0
      %968 = vmatprep.mubr.bf16.mxu0 0
      %969 = vmatmul.mubr.bf16.gmra.mrb[0].mxu0 %v880
      %v970 = vpop.f32.mrb[0].mxu0
      %v971 = vadd.f32 0.0, %v970
      %v972 = vpop.f32.mrb[0].mxu0
      %v973 = vadd.f32 0.0, %v972
      %v974 = vpop.f32.mrb[0].mxu0
      %v975 = vpop.f32.mrb[0].mxu0
      %976 = vdwg.mxu0
      %v978 = vsel %vm878, %v876, 0
      %v981 = vsel %vm882, %v864, 0
      %v984 = vsel %vm882, %v865, 0
      %v987 = vsel %vm882, %v866, 0
      %v990 = vsel %vm882, %v867, 0
      %992 = vmatprep.subr.bf16.mxu0 %v984
      %993 = vmatpush1.bf16.msra.mxu0 %v981
      %994 = vmatprep.subr.bf16.mxu0 0
      %995 = vmatpush1.bf16.msra.mxu0 0
      %996 = vmatprep.subr.bf16.mxu0 0
      %997 = vmatpush1.bf16.msra.mxu0 0
      %998 = vmatprep.subr.bf16.mxu0 0
      %999 = vmatpush1.bf16.msra.mxu0 0
      %1000 = vmatprep.subr.bf16.mxu0 0
      %1001 = vmatpush1.bf16.msra.mxu0 0
      %1002 = vmatprep.subr.bf16.mxu0 0
      %1003 = vmatpush1.bf16.msra.mxu0 0
      %1004 = vmatprep.subr.bf16.mxu0 0
      %1005 = vmatpush1.bf16.msra.mxu0 0
      %1006 = vmatprep.subr.bf16.mxu0 0
      %1007 = vmatpush1.bf16.msra.mxu0 0
      %1008 = vmatprep.subr.bf16.mxu0 0
      %1009 = vmatpush1.bf16.msra.mxu0 0
      %1010 = vmatprep.subr.bf16.mxu0 0
      %1011 = vmatpush1.bf16.msra.mxu0 0
      %1012 = vmatprep.subr.bf16.mxu0 0
      %1013 = vmatpush1.bf16.msra.mxu0 0
      %1014 = vmatprep.subr.bf16.mxu0 0
      %1015 = vmatpush1.bf16.msra.mxu0 0
      %1016 = vmatprep.subr.bf16.mxu0 0
      %1017 = vmatpush1.bf16.msra.mxu0 0
      %1018 = vmatprep.subr.bf16.mxu0 0
      %1019 = vmatpush1.bf16.msra.mxu0 0
      %1020 = vmatprep.subr.bf16.mxu0 0
      %1021 = vmatpush1.bf16.msra.mxu0 0
      %1022 = vmatprep.subr.bf16.mxu0 0
      %1023 = vmatpush1.bf16.msra.mxu0 0
      %1024 = vmatprep.mubr.bf16.mxu0 0
      %1025 = vmatmul.mubr.bf16.gmra.mrb[0].mxu0 %v978
      %v1026 = vpop.f32.mrb[0].mxu0
      %v1027 = vadd.f32 %v930, %v1026
      %v1028 = vpop.f32.mrb[0].mxu0
      %v1029 = vadd.f32 %v932, %v1028
      %v1030 = vpop.f32.mrb[0].mxu0
      %v1031 = vpop.f32.mrb[0].mxu0
      %1032 = vdwg.mxu0
      %1033 = vmatprep.subr.bf16.mxu0 %v990
      %1034 = vmatpush1.bf16.msra.mxu0 %v987
      %1035 = vmatprep.subr.bf16.mxu0 0
      %1036 = vmatpush1.bf16.msra.mxu0 0
      %1037 = vmatprep.subr.bf16.mxu0 0
      %1038 = vmatpush1.bf16.msra.mxu0 0
      %1039 = vmatprep.subr.bf16.mxu0 0
      %1040 = vmatpush1.bf16.msra.mxu0 0
      %1041 = vmatprep.subr.bf16.mxu0 0
      %1042 = vmatpush1.bf16.msra.mxu0 0
      %1043 = vmatprep.subr.bf16.mxu0 0
      %1044 = vmatpush1.bf16.msra.mxu0 0
      %1045 = vmatprep.subr.bf16.mxu0 0
      %1046 = vmatpush1.bf16.msra.mxu0 0
      %1047 = vmatprep.subr.bf16.mxu0 0
      %1048 = vmatpush1.bf16.msra.mxu0 0
      %1049 = vmatprep.subr.bf16.mxu0 0
      %1050 = vmatpush1.bf16.msra.mxu0 0
      %1051 = vmatprep.subr.bf16.mxu0 0
      %1052 = vmatpush1.bf16.msra.mxu0 0
      %1053 = vmatprep.subr.bf16.mxu0 0
      %1054 = vmatpush1.bf16.msra.mxu0 0
      %1055 = vmatprep.subr.bf16.mxu0 0
      %1056 = vmatpush1.bf16.msra.mxu0 0
      %1057 = vmatprep.subr.bf16.mxu0 0
      %1058 = vmatpush1.bf16.msra.mxu0 0
      %1059 = vmatprep.subr.bf16.mxu0 0
      %1060 = vmatpush1.bf16.msra.mxu0 0
      %1061 = vmatprep.subr.bf16.mxu0 0
      %1062 = vmatpush1.bf16.msra.mxu0 0
      %1063 = vmatprep.subr.bf16.mxu0 0
      %1064 = vmatpush1.bf16.msra.mxu0 0
      %1065 = vmatprep.mubr.bf16.mxu0 0
      %1066 = vmatmul.mubr.bf16.gmra.mrb[0].mxu0 %v978
      %v1067 = vpop.f32.mrb[0].mxu0
      %v1068 = vadd.f32 %v971, %v1067
      %v1069 = vpop.f32.mrb[0].mxu0
      %v1070 = vadd.f32 %v973, %v1069
      %v1071 = vpop.f32.mrb[0].mxu0
      %v1072 = vpop.f32.mrb[0].mxu0
      %1073 = vdwg.mxu0
      %v1074 = vld [vmem:[%s10] sm:$0xff]
      %1076 = vset.pattern.permute.xlu0 0
      %1077 = vperm.xlu0 %1076, %v1074
      %v1078 = vpop.permute.xlu0 %1077
      %v1080 = vadd.f32 %v1027, %v1078
      %v1081 = vadd.f32 %v1029, %v1078
      %v1082 = vadd.f32 %v1068, %v1078
      %v1083 = vadd.f32 %v1070, %v1078
      %1084 = vst [vmem:[%s532] sm:$0xff] %v1080
      %1085 = vst [vmem:[%s532 + $0x8] sm:$0xff] %v1081
      %1086 = vst [vmem:[%s532 + $0x10] sm:$0xff] %v1082
      %1087 = vst [vmem:[%s532 + $0x18] sm:$0xff] %v1083
      %s1088 = smul.u32 4, %s27
      %p1089 = scmp.lt.s32.totalorder %s26, 1
      %s1090 = scalar_select %p1089, %s26, 1
      %p1091 = scmp.lt.s32.totalorder %s1088, 3
      %s1092 = scalar_select %p1091, %s1088, 3
      %s1093 = smul.addr %s1090, 4
      %s1094 = sadd.s32 %s1092, %s1093
      %s1095 = smul.addr %s1094, 8
      %s1096 = scalar_lea.vmem %s11, %s1095
      // Predicated region
      $region65: #{weight_upsample_forward.5} parent=63 // pred_check
        %p1097 = pneg %p313
      $region66: #{weight_upsample_forward.5} parent=63 // pred_check_branch
        %1099 = sbr.rel (%p1097) target = $region68
      $region67: #{weight_upsample_forward.5} parent=63 // pred_region
        %s1100 = smul.u32 4, %s27
      $region68: #{weight_upsample_forward.5} parent=63 // pred_fallthru
        _
    $region64: #{weight_upsample_forward.5} parent=5 // pred_fallthru
      _
    %p1101 = scmp.le.s32.totalorder 2, %s17
    // Predicated region
    $region69: #{weight_upsample_forward.5} parent=5 // pred_check
      %p1102 = pneg %p1101
    $region70: #{weight_upsample_forward.5} parent=5 // pred_check_branch
      %1104 = sbr.rel (%p1102) target = $region72
    $region71: #{weight_upsample_forward.5} parent=5 // pred_region
      %s1105 = ssub.s32 %s17, 2
      // Predicated region
      $region73: #{weight_upsample_forward.5} parent=71 // pred_check
        %p1106 = pneg %p319
      $region74: #{weight_upsample_forward.5} parent=71 // pred_check_branch
        %1108 = sbr.rel (%p1106) target = $region76
      $region75: #{weight_upsample_forward.5} parent=71 // pred_region
        %s1109 = smul.u32 4, %s29
        %p1110 = scmp.lt.s32.totalorder %s28, 1
        %s1111 = scalar_select %p1110, %s28, 1
        %p1112 = scmp.lt.s32.totalorder %s1109, 3
        %s1113 = scalar_select %p1112, %s1109, 3
        %s1114 = smul.addr %s1111, 4
        %s1115 = sadd.s32 %s1113, %s1114
        %s1116 = smul.addr %s1115, 8
        %s1117 = scalar_lea.vmem %s11, %s1116
      $region76: #{weight_upsample_forward.5} parent=71 // pred_fallthru
        _
    $region72: #{weight_upsample_forward.5} parent=5 // pred_fallthru
      _
  $region6: #{weight_upsample_forward.5} parent=0 // loop_footer
    %s21 = sadd.s32 1, %s17
  $region7: #{weight_upsample_forward.5} parent=0 // loop_footer_branch
    %16 = sbr.rel target = $region3
  $region8: #{weight_upsample_forward.5} parent=0 // loop_exit
    _

// kernel: weight_upsample_forward.4
$region0: #{weight_upsample_forward.4}
  #allocation0 [shape = 'u32[]', space=smem, size = 0x4, offset = 0x4, fixed_abs, tag = 'smem constant byte address 0x4 - core index']
  #allocation1 [shape = 'u32[144,128]{1,0:T(1,128)}', space=vmem, size = 0x12000, scoped, tag = 'internal scratch']
  %s0 = inlined_call_operand.vmem [shape: bf16[2,64,32], index: 0, kind: input, shape index: {}]
  %s1 = inlined_call_operand.vmem [shape: f32[3,28,64], index: 1, kind: input, shape index: {}]
  %s2 = inlined_call_operand.vmem [shape: f32[3,32,15], index: 2, kind: input, shape index: {}]
  %s3 = inlined_call_operand.vmem [shape: f32[28,1], index: 3, kind: input, shape index: {}]
  %s4 = inlined_call_operand.vmem [shape: f32[7,4,28], index: 4, kind: input, shape index: {}]
  %s5 = inlined_call_operand.vmem [shape: f32[7,15,3], index: 5, kind: input, shape index: {}]
  %s6 = inlined_call_operand.vmem [shape: f32[9,4,4], index: 6, kind: input, shape index: {}]
  %s7 = inlined_call_operand.vmem [shape: f32[3,3,3], index: 7, kind: input, shape index: {}]
  %s8 = inlined_call_operand.vmem [shape: f32[3,4,1], index: 8, kind: input, shape index: {}]
  %s9 = inlined_call_operand.vmem [shape: f32[64,4], index: 9, kind: input, shape index: {}]
  %s10 = inlined_call_operand.vmem [shape: f32[3,32], index: 10, kind: input, shape index: {}]
  %s11 = inlined_call_operand.vmem [shape: f32[2,64,32], index: 11, kind: output, shape index: {}]
  %s12 = sld [smem:[#allocation0]]
  $region77: #{weight_upsample_forward.4} parent=0
    _
  %s14 = ssub.s32 1, %s12
  %s15 = scalar_select 0, %s14, %s12
  loop: start=0, step=1, limit=4
  $region2: #{weight_upsample_forward.4} parent=0 // loop_pre_header
    _
  $region3: #{weight_upsample_forward.4} parent=0 // loop_header
    %s17 = sphi 0, %s21
    %p18 = scmp.ge.s32.totalorder %s17, 4
    %s27 = sphi 0, %s29
    %s30 = sphi 0, %s27
    %s31 = sphi 0, %s30
    %s47 = sphi 0, %s31
    %s51 = sphi 0, %s51
    %s53 = sphi 0, %s51
    %s54 = sphi 0, %s53
    %s68 = sphi 0, %s54
    %s72 = sphi 0, %s72
    %s74 = sphi 0, %s72
    %s75 = sphi 0, %s74
    %s89 = sphi 0, %s75
    %s93 = sphi 0, %s93
    %s95 = sphi 0, %s93
    %s96 = sphi 0, %s95
    %s110 = sphi 0, %s96
    %s114 = sphi 0, %s114
    %s116 = sphi 0, %s114
    %s117 = sphi 0, %s116
    %s131 = sphi 0, %s117
    %s135 = sphi 0, %s135
    %s137 = sphi 0, %s135
    %s138 = sphi 0, %s137
    %s152 = sphi 0, %s138
    %s156 = sphi 0, %s156
    %s158 = sphi 0, %s156
    %s159 = sphi 0, %s158
    %s173 = sphi 0, %s159
    %s177 = sphi 0, %s177
    %s179 = sphi 0, %s177
    %s180 = sphi 0, %s179
    %s194 = sphi 0, %s180
    %s198 = sphi 0, %s198
    %s200 = sphi 0, %s198
    %s201 = sphi 0, %s200
    %s215 = sphi 0, %s201
    %s219 = sphi 0, %s219
    %s221 = sphi 0, %s219
    %s222 = sphi 0, %s221
    %s236 = sphi 0, %s222
    %s240 = sphi 0, %s240
    %s242 = sphi 0, %s240
    %s243 = sphi 0, %s242
    %s257 = sphi 0, %s243
    %s263 = sphi 0, %s265
    %s266 = sphi 0, %s263
    %s267 = sphi 0, %s266
    %s283 = sphi 0, %s267
  $region4: #{weight_upsample_forward.4} parent=0 // loop_header_branch
    %20 = sbr.rel (%p18) target = $region8
  $region5: #{weight_upsample_forward.4} parent=0 // loop_body
    %s22 = ssub.s32 %s17, 1
    %s23 = ssub.s32 %s17, 2
    %s24 = sadd.s32 %s17, 1
    %s25 = ssub.s32 %s17, %s24
    %p26 = scmp.eq.s32.totalorder %s25, 0
    %s28 = sadd.s32 %s27, 1
    %s29 = scalar_select %p26, %s27, %s28
    %p32 = pneg %p26
    %p33 = scmp.eq.s32.totalorder %s17, 1
    %p34 = por %p32, %p33
    %p35 = scmp.ne.s32.totalorder %s27, %s30
    %p36 = scmp.eq.s32.totalorder %s17, 0
    %p37 = por %p35, %p36
    %p38 = scmp.ne.s32.totalorder %s27, %s30
    %p39 = scmp.eq.s32.totalorder %s22, 1
    %p40 = por %p38, %p39
    %p41 = scmp.ne.s32.totalorder %s30, %s31
    %p42 = scmp.eq.s32.totalorder %s22, 0
    %p43 = por %p41, %p42
    %p44 = scmp.ne.s32.totalorder %s30, %s31
    %p45 = scmp.eq.s32.totalorder %s23, 1
    %p46 = por %p44, %p45
    %p48 = scmp.ne.s32.totalorder %s31, %s47
    %p49 = scmp.eq.s32.totalorder %s23, 0
    %p50 = por %p48, %p49
    %s52 = sadd.s32 %s51, 1
    %p55 = scmp.eq.s32.totalorder %s17, 1
    %p56 = scmp.ne.s32.totalorder %s51, %s53
    %p57 = scmp.eq.s32.totalorder %s17, 0
    %p58 = por %p56, %p57
    %p59 = scmp.ne.s32.totalorder %s51, %s53
    %p60 = scmp.eq.s32.totalorder %s22, 1
    %p61 = por %p59, %p60
    %p62 = scmp.ne.s32.totalorder %s53, %s54
    %p63 = scmp.eq.s32.totalorder %s22, 0
    %p64 = por %p62, %p63
    %p65 = scmp.ne.s32.totalorder %s53, %s54
    %p66 = scmp.eq.s32.totalorder %s23, 1
    %p67 = por %p65, %p66
    %p69 = scmp.ne.s32.totalorder %s54, %s68
    %p70 = scmp.eq.s32.totalorder %s23, 0
    %p71 = por %p69, %p70
    %s73 = sadd.s32 %s72, 1
    %p76 = scmp.eq.s32.totalorder %s17, 1
    %p77 = scmp.ne.s32.totalorder %s72, %s74
    %p78 = scmp.eq.s32.totalorder %s17, 0
    %p79 = por %p77, %p78
    %p80 = scmp.ne.s32.totalorder %s72, %s74
    %p81 = scmp.eq.s32.totalorder %s22, 1
    %p82 = por %p80, %p81
    %p83 = scmp.ne.s32.totalorder %s74, %s75
    %p84 = scmp.eq.s32.totalorder %s22, 0
    %p85 = por %p83, %p84
    %p86 = scmp.ne.s32.totalorder %s74, %s75
    %p87 = scmp.eq.s32.totalorder %s23, 1
    %p88 = por %p86, %p87
    %p90 = scmp.ne.s32.totalorder %s75, %s89
    %p91 = scmp.eq.s32.totalorder %s23, 0
    %p92 = por %p90, %p91
    %s94 = sadd.s32 %s93, 1
    %p97 = scmp.eq.s32.totalorder %s17, 1
    %p98 = scmp.ne.s32.totalorder %s93, %s95
    %p99 = scmp.eq.s32.totalorder %s17, 0
    %p100 = por %p98, %p99
    %p101 = scmp.ne.s32.totalorder %s93, %s95
    %p102 = scmp.eq.s32.totalorder %s22, 1
    %p103 = por %p101, %p102
    %p104 = scmp.ne.s32.totalorder %s95, %s96
    %p105 = scmp.eq.s32.totalorder %s22, 0
    %p106 = por %p104, %p105
    %p107 = scmp.ne.s32.totalorder %s95, %s96
    %p108 = scmp.eq.s32.totalorder %s23, 1
    %p109 = por %p107, %p108
    %p111 = scmp.ne.s32.totalorder %s96, %s110
    %p112 = scmp.eq.s32.totalorder %s23, 0
    %p113 = por %p111, %p112
    %s115 = sadd.s32 %s114, 1
    %p118 = scmp.eq.s32.totalorder %s17, 1
    %p119 = scmp.ne.s32.totalorder %s114, %s116
    %p120 = scmp.eq.s32.totalorder %s17, 0
    %p121 = por %p119, %p120
    %p122 = scmp.ne.s32.totalorder %s114, %s116
    %p123 = scmp.eq.s32.totalorder %s22, 1
    %p124 = por %p122, %p123
    %p125 = scmp.ne.s32.totalorder %s116, %s117
    %p126 = scmp.eq.s32.totalorder %s22, 0
    %p127 = por %p125, %p126
    %p128 = scmp.ne.s32.totalorder %s116, %s117
    %p129 = scmp.eq.s32.totalorder %s23, 1
    %p130 = por %p128, %p129
    %p132 = scmp.ne.s32.totalorder %s117, %s131
    %p133 = scmp.eq.s32.totalorder %s23, 0
    %p134 = por %p132, %p133
    %s136 = sadd.s32 %s135, 1
    %p139 = scmp.eq.s32.totalorder %s17, 1
    %p140 = scmp.ne.s32.totalorder %s135, %s137
    %p141 = scmp.eq.s32.totalorder %s17, 0
    %p142 = por %p140, %p141
    %p143 = scmp.ne.s32.totalorder %s135, %s137
    %p144 = scmp.eq.s32.totalorder %s22, 1
    %p145 = por %p143, %p144
    %p146 = scmp.ne.s32.totalorder %s137, %s138
    %p147 = scmp.eq.s32.totalorder %s22, 0
    %p148 = por %p146, %p147
    %p149 = scmp.ne.s32.totalorder %s137, %s138
    %p150 = scmp.eq.s32.totalorder %s23, 1
    %p151 = por %p149, %p150
    %p153 = scmp.ne.s32.totalorder %s138, %s152
    %p154 = scmp.eq.s32.totalorder %s23, 0
    %p155 = por %p153, %p154
    %s157 = sadd.s32 %s156, 1
    %p160 = scmp.eq.s32.totalorder %s17, 1
    %p161 = scmp.ne.s32.totalorder %s156, %s158
    %p162 = scmp.eq.s32.totalorder %s17, 0
    %p163 = por %p161, %p162
    %p164 = scmp.ne.s32.totalorder %s156, %s158
    %p165 = scmp.eq.s32.totalorder %s22, 1
    %p166 = por %p164, %p165
    %p167 = scmp.ne.s32.totalorder %s158, %s159
    %p168 = scmp.eq.s32.totalorder %s22, 0
    %p169 = por %p167, %p168
    %p170 = scmp.ne.s32.totalorder %s158, %s159
    %p171 = scmp.eq.s32.totalorder %s23, 1
    %p172 = por %p170, %p171
    %p174 = scmp.ne.s32.totalorder %s159, %s173
    %p175 = scmp.eq.s32.totalorder %s23, 0
    %p176 = por %p174, %p175
    %s178 = sadd.s32 %s177, 1
    %p181 = scmp.eq.s32.totalorder %s17, 1
    %p182 = scmp.ne.s32.totalorder %s177, %s179
    %p183 = scmp.eq.s32.totalorder %s17, 0
    %p184 = por %p182, %p183
    %p185 = scmp.ne.s32.totalorder %s177, %s179
    %p186 = scmp.eq.s32.totalorder %s22, 1
    %p187 = por %p185, %p186
    %p188 = scmp.ne.s32.totalorder %s179, %s180
    %p189 = scmp.eq.s32.totalorder %s22, 0
    %p190 = por %p188, %p189
    %p191 = scmp.ne.s32.totalorder %s179, %s180
    %p192 = scmp.eq.s32.totalorder %s23, 1
    %p193 = por %p191, %p192
    %p195 = scmp.ne.s32.totalorder %s180, %s194
    %p196 = scmp.eq.s32.totalorder %s23, 0
    %p197 = por %p195, %p196
    %s199 = sadd.s32 %s198, 1
    %p202 = scmp.eq.s32.totalorder %s17, 1
    %p203 = scmp.ne.s32.totalorder %s198, %s200
    %p204 = scmp.eq.s32.totalorder %s17, 0
    %p205 = por %p203, %p204
    %p206 = scmp.ne.s32.totalorder %s198, %s200
    %p207 = scmp.eq.s32.totalorder %s22, 1
    %p208 = por %p206, %p207
    %p209 = scmp.ne.s32.totalorder %s200, %s201
    %p210 = scmp.eq.s32.totalorder %s22, 0
    %p211 = por %p209, %p210
    %p212 = scmp.ne.s32.totalorder %s200, %s201
    %p213 = scmp.eq.s32.totalorder %s23, 1
    %p214 = por %p212, %p213
    %p216 = scmp.ne.s32.totalorder %s201, %s215
    %p217 = scmp.eq.s32.totalorder %s23, 0
    %p218 = por %p216, %p217
    %s220 = sadd.s32 %s219, 1
    %p223 = scmp.eq.s32.totalorder %s17, 1
    %p224 = scmp.ne.s32.totalorder %s219, %s221
    %p225 = scmp.eq.s32.totalorder %s17, 0
    %p226 = por %p224, %p225
    %p227 = scmp.ne.s32.totalorder %s219, %s221
    %p228 = scmp.eq.s32.totalorder %s22, 1
    %p229 = por %p227, %p228
    %p230 = scmp.ne.s32.totalorder %s221, %s222
    %p231 = scmp.eq.s32.totalorder %s22, 0
    %p232 = por %p230, %p231
    %p233 = scmp.ne.s32.totalorder %s221, %s222
    %p234 = scmp.eq.s32.totalorder %s23, 1
    %p235 = por %p233, %p234
    %p237 = scmp.ne.s32.totalorder %s222, %s236
    %p238 = scmp.eq.s32.totalorder %s23, 0
    %p239 = por %p237, %p238
    %s241 = sadd.s32 %s240, 1
    %p244 = scmp.eq.s32.totalorder %s17, 1
    %p245 = scmp.ne.s32.totalorder %s240, %s242
    %p246 = scmp.eq.s32.totalorder %s17, 0
    %p247 = por %p245, %p246
    %p248 = scmp.ne.s32.totalorder %s240, %s242
    %p249 = scmp.eq.s32.totalorder %s22, 1
    %p250 = por %p248, %p249
    %p251 = scmp.ne.s32.totalorder %s242, %s243
    %p252 = scmp.eq.s32.totalorder %s22, 0
    %p253 = por %p251, %p252
    %p254 = scmp.ne.s32.totalorder %s242, %s243
    %p255 = scmp.eq.s32.totalorder %s23, 1
    %p256 = por %p254, %p255
    %p258 = scmp.ne.s32.totalorder %s243, %s257
    %p259 = scmp.eq.s32.totalorder %s23, 0
    %p260 = por %p258, %p259
    %s261 = ssub.s32 %s17, %s24
    %p262 = scmp.eq.s32.totalorder %s261, 0
    %s264 = sadd.s32 %s263, 1
    %s265 = scalar_select %p262, %s263, %s264
    %p268 = pneg %p262
    %p269 = scmp.eq.s32.totalorder %s17, 1
    %p270 = por %p268, %p269
    %p271 = scmp.ne.s32.totalorder %s263, %s266
    %p272 = scmp.eq.s32.totalorder %s17, 0
    %p273 = por %p271, %p272
    %p274 = scmp.ne.s32.totalorder %s263, %s266
    %p275 = scmp.eq.s32.totalorder %s22, 1
    %p276 = por %p274, %p275
    %p277 = scmp.ne.s32.totalorder %s266, %s267
    %p278 = scmp.eq.s32.totalorder %s22, 0
    %p279 = por %p277, %p278
    %p280 = scmp.ne.s32.totalorder %s266, %s267
    %p281 = scmp.eq.s32.totalorder %s23, 1
    %p282 = por %p280, %p281
    %p284 = scmp.ne.s32.totalorder %s267, %s283
    %p285 = scmp.eq.s32.totalorder %s23, 0
    %p286 = por %p284, %p285
    %p287 = scmp.le.s32.totalorder 1, %s17
    %p288 = scmp.lt.s32.totalorder %s17, 3
    %p289 = pnand %p287, %p288
    %p290 = pneg %p289
    // Predicated region
    $region9: #{weight_upsample_forward.4} parent=5 // pred_check
      _
    $region10: #{weight_upsample_forward.4} parent=5 // pred_check_branch
      %292 = sbr.rel (%p289) target = $region12
    $region11: #{weight_upsample_forward.4} parent=5 // pred_region
      %s293 = ssub.s32 %s17, 1
      // Predicated region
      $region13: #{weight_upsample_forward.4} parent=11 // pred_check
        %p294 = pneg %p64
      $region14: #{weight_upsample_forward.4} parent=11 // pred_check_branch
        %296 = sbr.rel (%p294) target = $region16
      $region15: #{weight_upsample_forward.4} parent=11 // pred_region
        _
      $region16: #{weight_upsample_forward.4} parent=11 // pred_fallthru
        _
      // Predicated region
      $region17: #{weight_upsample_forward.4} parent=11 // pred_check
        %p297 = pneg %p85
      $region18: #{weight_upsample_forward.4} parent=11 // pred_check_branch
        %299 = sbr.rel (%p297) target = $region20
      $region19: #{weight_upsample_forward.4} parent=11 // pred_region
        _
      $region20: #{weight_upsample_forward.4} parent=11 // pred_fallthru
        _
      // Predicated region
      $region21: #{weight_upsample_forward.4} parent=11 // pred_check
        %p300 = pneg %p106
      $region22: #{weight_upsample_forward.4} parent=11 // pred_check_branch
        %302 = sbr.rel (%p300) target = $region24
      $region23: #{weight_upsample_forward.4} parent=11 // pred_region
        _
      $region24: #{weight_upsample_forward.4} parent=11 // pred_fallthru
        _
      // Predicated region
      $region25: #{weight_upsample_forward.4} parent=11 // pred_check
        %p303 = pneg %p127
      $region26: #{weight_upsample_forward.4} parent=11 // pred_check_branch
        %305 = sbr.rel (%p303) target = $region28
      $region27: #{weight_upsample_forward.4} parent=11 // pred_region
        _
      $region28: #{weight_upsample_forward.4} parent=11 // pred_fallthru
        _
      // Predicated region
      $region29: #{weight_upsample_forward.4} parent=11 // pred_check
        %p306 = pneg %p148
      $region30: #{weight_upsample_forward.4} parent=11 // pred_check_branch
        %308 = sbr.rel (%p306) target = $region32
      $region31: #{weight_upsample_forward.4} parent=11 // pred_region
        _
      $region32: #{weight_upsample_forward.4} parent=11 // pred_fallthru
        _
      // Predicated region
      $region33: #{weight_upsample_forward.4} parent=11 // pred_check
        %p309 = pneg %p169
      $region34: #{weight_upsample_forward.4} parent=11 // pred_check_branch
        %311 = sbr.rel (%p309) target = $region36
      $region35: #{weight_upsample_forward.4} parent=11 // pred_region
        _
      $region36: #{weight_upsample_forward.4} parent=11 // pred_fallthru
        _
      // Predicated region
      $region37: #{weight_upsample_forward.4} parent=11 // pred_check
        %p312 = pneg %p190
      $region38: #{weight_upsample_forward.4} parent=11 // pred_check_branch
        %314 = sbr.rel (%p312) target = $region40
      $region39: #{weight_upsample_forward.4} parent=11 // pred_region
        _
      $region40: #{weight_upsample_forward.4} parent=11 // pred_fallthru
        _
      // Predicated region
      $region41: #{weight_upsample_forward.4} parent=11 // pred_check
        %p315 = pneg %p211
      $region42: #{weight_upsample_forward.4} parent=11 // pred_check_branch
        %317 = sbr.rel (%p315) target = $region44
      $region43: #{weight_upsample_forward.4} parent=11 // pred_region
        _
      $region44: #{weight_upsample_forward.4} parent=11 // pred_fallthru
        _
      // Predicated region
      $region45: #{weight_upsample_forward.4} parent=11 // pred_check
        %p318 = pneg %p232
      $region46: #{weight_upsample_forward.4} parent=11 // pred_check_branch
        %320 = sbr.rel (%p318) target = $region48
      $region47: #{weight_upsample_forward.4} parent=11 // pred_region
        _
      $region48: #{weight_upsample_forward.4} parent=11 // pred_fallthru
        _
      // Predicated region
      $region49: #{weight_upsample_forward.4} parent=11 // pred_check
        %p321 = pneg %p253
      $region50: #{weight_upsample_forward.4} parent=11 // pred_check_branch
        %323 = sbr.rel (%p321) target = $region52
      $region51: #{weight_upsample_forward.4} parent=11 // pred_region
        _
      $region52: #{weight_upsample_forward.4} parent=11 // pred_fallthru
        _
    $region12: #{weight_upsample_forward.4} parent=5 // pred_fallthru
      _
    %p324 = scmp.lt.s32.totalorder %s17, 2
    // Predicated region
    $region53: #{weight_upsample_forward.4} parent=5 // pred_check
      %p325 = pneg %p324
    $region54: #{weight_upsample_forward.4} parent=5 // pred_check_branch
      %327 = sbr.rel (%p325) target = $region56
    $region55: #{weight_upsample_forward.4} parent=5 // pred_region
      // Predicated region
      $region57: #{weight_upsample_forward.4} parent=55 // pred_check
        %p328 = pneg %p37
      $region58: #{weight_upsample_forward.4} parent=55 // pred_check_branch
        %330 = sbr.rel (%p328) target = $region60
      $region59: #{weight_upsample_forward.4} parent=55 // pred_region
        %p331 = scmp.lt.s32.totalorder %s17, 1
        %s332 = scalar_select %p331, %s17, 1
        %s333 = smul.addr %s332, 8
        %s334 = smul.addr %s333, 4
        %s335 = scalar_lea.vmem %s0, %s334
      $region60: #{weight_upsample_forward.4} parent=55 // pred_fallthru
        _
    $region56: #{weight_upsample_forward.4} parent=5 // pred_fallthru
      _
    %p336 = scmp.le.s32.totalorder 1, %s17
    %p337 = scmp.lt.s32.totalorder %s17, 3
    %p338 = pnand %p336, %p337
    %p339 = pneg %p338
    // Predicated region
    $region61: #{weight_upsample_forward.4} parent=5 // pred_check
      _
    $region62: #{weight_upsample_forward.4} parent=5 // pred_check_branch
      %341 = sbr.rel (%p338) target = $region64
    $region63: #{weight_upsample_forward.4} parent=5 // pred_region
      %s342 = ssub.s32 %s17, 1
      %p343 = scmp.lt.s32.totalorder %s22, 1
      %s344 = scalar_select %p343, %s22, 1
      %s345 = smul.addr %s344, 8
      %s346 = smul.addr %s345, 4
      %s347 = scalar_lea.vmem %s0, %s346
      %p348 = pneg %p43
      %p349 = pneg %p40
      %p350 = pneg %p64
      %p351 = pneg %p61
      %p352 = pneg %p85
      %p353 = pneg %p82
      %p354 = pneg %p106
      %p355 = pneg %p103
      %p356 = pneg %p127
      %p357 = pneg %p124
      %p358 = pneg %p148
      %p359 = pneg %p145
      %p360 = pneg %p169
      %p361 = pneg %p166
      %p362 = pneg %p190
      %p363 = pneg %p187
      %p364 = pneg %p211
      %p365 = pneg %p208
      %p366 = pneg %p232
      %p367 = pneg %p229
      %p368 = pneg %p253
      %p369 = pneg %p250
      %p370 = pneg %p279
      %p371 = pneg %p276
      %p372 = scmp.lt.s32.totalorder %s22, 1
      %s373 = scalar_select %p372, %s22, 1
      %s374 = smul.addr %s373, 8
      %s375 = smul.addr %s374, 8
      %s376 = scalar_lea.vmem %s11, %s375
      %p377 = scmp.lt.s32.totalorder %s22, 1
      %s378 = scalar_select %p377, %s22, 1
      %s379 = smul.addr %s378, 8
      %s380 = smul.addr %s379, 4
      %s381 = scalar_lea.vmem %s0, %s380
      %p382 = scmp.lt.s32.totalorder %s22, 1
      %s383 = scalar_select %p382, %s22, 1
      %s384 = smul.addr %s383, 8
      %s385 = smul.addr %s384, 8
      %s386 = scalar_lea.vmem %s11, %s385
      %v387 = vld [vmem:[%s381] sm:$0xf]
      %v388 = vld [vmem:[%s381 + $0x4] sm:$0xf]
      %v389 = vld [vmem:[%s381 + $0x8] sm:$0xf]
      %v390 = vld [vmem:[%s381 + $0xc] sm:$0xf]
      %v391 = vld [vmem:[%s381 + $0x10] sm:$0xf]
      %v392 = vld [vmem:[%s381 + $0x14] sm:$0xf]
      %v393 = vld [vmem:[%s381 + $0x18] sm:$0xf]
      %v394 = vld [vmem:[%s381 + $0x1c] sm:$0xf]
      %v395 = vunpack.c.l.bf16 %v387
      %v396 = vunpack.c.l.bf16 %v388
      %v397 = vunpack.c.l.bf16 %v389
      %v398 = vunpack.c.l.bf16 %v390
      %v399 = vunpack.c.l.bf16 %v391
      %v400 = vunpack.c.l.bf16 %v392
      %v401 = vunpack.c.l.bf16 %v393
      %v402 = vunpack.c.l.bf16 %v394
      %v403 = vld [vmem:[%s2] sm:$0xff]
      %v404 = vld [vmem:[%s2 + $0x8] sm:$0xff]
      %v405 = vld [vmem:[%s2 + $0x10] sm:$0xff]
      %v406 = vld [vmem:[%s2 + $0x18] sm:$0xff]
      %vm407 = vcmask 261120
      %v409 = vsel %vm407, %v395, 0
      %v412 = vsel %vm407, %v396, 0
      %v415 = vsel %vm407, %v397, 0
      %v418 = vsel %vm407, %v398, 0
      %v421 = vsel %vm407, %v399, 0
      %v424 = vsel %vm407, %v400, 0
      %v427 = vsel %vm407, %v401, 0
      %v430 = vsel %vm407, %v402, 0
      %432 = vmatprep.subr.mxu0 0.0
      %433 = vmatpush1.msra.mxu0 %v403
      %434 = vmatprep.subr.mxu0 0.0
      %435 = vmatpush1.msra.mxu0 %v404
      %436 = vmatprep.subr.mxu0 0.0
      %437 = vmatpush1.msra.mxu0 %v405
      %438 = vmatprep.subr.mxu0 0.0
      %439 = vmatpush1.msra.mxu0 %v406
      %440 = vmatprep.subr.mxu0 0.0
      %441 = vmatpush1.msra.mxu0 0.0
      %442 = vmatprep.subr.mxu0 0.0
      %443 = vmatpush1.msra.mxu0 0.0
      %444 = vmatprep.subr.mxu0 0.0
      %445 = vmatpush1.msra.mxu0 0.0
      %446 = vmatprep.subr.mxu0 0.0
      %447 = vmatpush1.msra.mxu0 0.0
      %448 = vmatprep.subr.mxu0 0.0
      %449 = vmatpush1.msra.mxu0 0.0
      %450 = vmatprep.subr.mxu0 0.0
      %451 = vmatpush1.msra.mxu0 0.0
      %452 = vmatprep.subr.mxu0 0.0
      %453 = vmatpush1.msra.mxu0 0.0
      %454 = vmatprep.subr.mxu0 0.0
      %455 = vmatpush1.msra.mxu0 0.0
      %456 = vmatprep.subr.mxu0 0.0
      %457 = vmatpush1.msra.mxu0 0.0
      %458 = vmatprep.subr.mxu0 0.0
      %459 = vmatpush1.msra.mxu0 0.0
      %460 = vmatprep.subr.mxu0 0.0
      %461 = vmatpush1.msra.mxu0 0.0
      %462 = vmatprep.subr.mxu0 0.0
      %463 = vmatpush1.msra.mxu0 0.0
      %464 = vmatprep.subr.mxu0 0.0
      %465 = vmatpush1.msra.mxu0 0.0
      %466 = vmatprep.subr.mxu0 0.0
      %467 = vmatpush1.msra.mxu0 0.0
      %468 = vmatprep.subr.mxu0 0.0
      %469 = vmatpush1.msra.mxu0 0.0
      %470 = vmatprep.subr.mxu0 0.0
      %471 = vmatpush1.msra.mxu0 0.0
      %472 = vmatprep.subr.mxu0 0.0
      %473 = vmatpush1.msra.mxu0 0.0
      %474 = vmatprep.subr.mxu0 0.0
      %475 = vmatpush1.msra.mxu0 0.0
      %476 = vmatprep.subr.mxu0 0.0
      %477 = vmatpush1.msra.mxu0 0.0
      %478 = vmatprep.subr.mxu0 0.0
      %479 = vmatpush1.msra.mxu0 0.0
      %480 = vmatprep.subr.mxu0 0.0
      %481 = vmatpush1.msra.mxu0 0.0
      %482 = vmatprep.subr.mxu0 0.0
      %483 = vmatpush1.msra.mxu0 0.0
      %484 = vmatprep.subr.mxu0 0.0
      %485 = vmatpush1.msra.mxu0 0.0
      %486 = vmatprep.subr.mxu0 0.0
      %487 = vmatpush1.msra.mxu0 0.0
      %488 = vmatprep.subr.mxu0 0.0
      %489 = vmatpush1.msra.mxu0 0.0
      %490 = vmatprep.subr.mxu0 0.0
      %491 = vmatpush1.msra.mxu0 0.0
      %492 = vmatprep.subr.mxu0 0.0
      %493 = vmatpush1.msra.mxu0 0.0
      %494 = vmatprep.subr.mxu0 0.0
      %495 = vmatpush1.msra.mxu0 0.0
      %496 = vmatprep.mubr.f32.mxu0 0.0
      %497 = vmatmul.mubr.f32.gmra.mrb[0].mxu0 %v409
      %v498 = vpop.f32.mrb[0].mxu0
      %v499 = vadd.f32 0.0, %v498
      %v500 = vpop.f32.mrb[0].mxu0
      %501 = vmatprep.mubr.f32.mxu0 0.0
      %502 = vmatmul.mubr.f32.gmra.mrb[0].mxu0 %v412
      %v503 = vpop.f32.mrb[0].mxu0
      %v504 = vadd.f32 0.0, %v503
      %v505 = vpop.f32.mrb[0].mxu0
      %506 = vmatprep.mubr.f32.mxu0 0.0
      %507 = vmatmul.mubr.f32.gmra.mrb[0].mxu0 %v415
      %v508 = vpop.f32.mrb[0].mxu0
      %v509 = vadd.f32 0.0, %v508
      %v510 = vpop.f32.mrb[0].mxu0
      %511 = vmatprep.mubr.f32.mxu0 0.0
      %512 = vmatmul.mubr.f32.gmra.mrb[0].mxu0 %v418
      %v513 = vpop.f32.mrb[0].mxu0
      %v514 = vadd.f32 0.0, %v513
      %v515 = vpop.f32.mrb[0].mxu0
      %516 = vmatprep.mubr.f32.mxu0 0.0
      %517 = vmatmul.mubr.f32.gmra.mrb[0].mxu0 %v421
      %v518 = vpop.f32.mrb[0].mxu0
      %v519 = vadd.f32 0.0, %v518
      %v520 = vpop.f32.mrb[0].mxu0
      %521 = vmatprep.mubr.f32.mxu0 0.0
      %522 = vmatmul.mubr.f32.gmra.mrb[0].mxu0 %v424
      %v523 = vpop.f32.mrb[0].mxu0
      %v524 = vadd.f32 0.0, %v523
      %v525 = vpop.f32.mrb[0].mxu0
      %526 = vmatprep.mubr.f32.mxu0 0.0
      %527 = vmatmul.mubr.f32.gmra.mrb[0].mxu0 %v427
      %v528 = vpop.f32.mrb[0].mxu0
      %v529 = vadd.f32 0.0, %v528
      %v530 = vpop.f32.mrb[0].mxu0
      %531 = vmatprep.mubr.f32.mxu0 0.0
      %532 = vmatmul.mubr.f32.gmra.mrb[0].mxu0 %v430
      %v533 = vpop.f32.mrb[0].mxu0
      %v534 = vadd.f32 0.0, %v533
      %v535 = vpop.f32.mrb[0].mxu0
      %536 = vdwg.mxu0
      %v537 = vld [vmem:[%s1] sm:$0xff]
      %v538 = vld [vmem:[%s1 + $0x8] sm:$0xff]
      %v539 = vld [vmem:[%s1 + $0x10] sm:$0xff]
      %v540 = vld [vmem:[%s1 + $0x18] sm:$0xf]
      %s541 = scalar_lea.vmem %s2, 32
      %v542 = vld [vmem:[%s541] sm:$0xff]
      %v543 = vld [vmem:[%s541 + $0x8] sm:$0xff]
      %v544 = vld [vmem:[%s541 + $0x10] sm:$0xff]
      %v545 = vld [vmem:[%s541 + $0x18] sm:$0xff]
      %546 = vmatprep.subr.mxu0 0.0
      %547 = vmatpush1.msra.mxu0 %v542
      %548 = vmatprep.subr.mxu0 0.0
      %549 = vmatpush1.msra.mxu0 %v543
      %550 = vmatprep.subr.mxu0 0.0
      %551 = vmatpush1.msra.mxu0 %v544
      %552 = vmatprep.subr.mxu0 0.0
      %553 = vmatpush1.msra.mxu0 %v545
      %554 = vmatprep.subr.mxu0 0.0
      %555 = vmatpush1.msra.mxu0 0.0
      %556 = vmatprep.subr.mxu0 0.0
      %557 = vmatpush1.msra.mxu0 0.0
      %558 = vmatprep.subr.mxu0 0.0
      %559 = vmatpush1.msra.mxu0 0.0
      %560 = vmatprep.subr.mxu0 0.0
      %561 = vmatpush1.msra.mxu0 0.0
      %562 = vmatprep.subr.mxu0 0.0
      %563 = vmatpush1.msra.mxu0 0.0
      %564 = vmatprep.subr.mxu0 0.0
      %565 = vmatpush1.msra.mxu0 0.0
      %566 = vmatprep.subr.mxu0 0.0
      %567 = vmatpush1.msra.mxu0 0.0
      %568 = vmatprep.subr.mxu0 0.0
      %569 = vmatpush1.msra.mxu0 0.0
      %570 = vmatprep.subr.mxu0 0.0
      %571 = vmatpush1.msra.mxu0 0.0
      %572 = vmatprep.subr.mxu0 0.0
      %573 = vmatpush1.msra.mxu0 0.0
      %574 = vmatprep.subr.mxu0 0.0
      %575 = vmatpush1.msra.mxu0 0.0
      %576 = vmatprep.subr.mxu0 0.0
      %577 = vmatpush1.msra.mxu0 0.0
      %578 = vmatprep.subr.mxu0 0.0
      %579 = vmatpush1.msra.mxu0 0.0
      %580 = vmatprep.subr.mxu0 0.0
      %581 = vmatpush1.msra.mxu0 0.0
      %582 = vmatprep.subr.mxu0 0.0
      %583 = vmatpush1.msra.mxu0 0.0
      %584 = vmatprep.subr.mxu0 0.0
      %585 = vmatpush1.msra.mxu0 0.0
      %586 = vmatprep.subr.mxu0 0.0
      %587 = vmatpush1.msra.mxu0 0.0
      %588 = vmatprep.subr.mxu0 0.0
      %589 = vmatpush1.msra.mxu0 0.0
      %590 = vmatprep.subr.mxu0 0.0
      %591 = vmatpush1.msra.mxu0 0.0
      %592 = vmatprep.subr.mxu0 0.0
      %593 = vmatpush1.msra.mxu0 0.0
      %594 = vmatprep.subr.mxu0 0.0
      %595 = vmatpush1.msra.mxu0 0.0
      %596 = vmatprep.subr.mxu0 0.0
      %597 = vmatpush1.msra.mxu0 0.0
      %598 = vmatprep.subr.mxu0 0.0
      %599 = vmatpush1.msra.mxu0 0.0
      %600 = vmatprep.subr.mxu0 0.0
      %601 = vmatpush1.msra.mxu0 0.0
      %602 = vmatprep.subr.mxu0 0.0
      %603 = vmatpush1.msra.mxu0 0.0
      %604 = vmatprep.subr.mxu0 0.0
      %605 = vmatpush1.msra.mxu0 0.0
      %606 = vmatprep.subr.mxu0 0.0
      %607 = vmatpush1.msra.mxu0 0.0
      %608 = vmatprep.subr.mxu0 0.0
      %609 = vmatpush1.msra.mxu0 0.0
      %610 = vmatprep.mubr.f32.mxu0 0.0
      %611 = vmatmul.mubr.f32.gmra.mrb[0].mxu0 %v409
      %v612 = vpop.f32.mrb[0].mxu0
      %v613 = vadd.f32 0.0, %v612
      %v614 = vpop.f32.mrb[0].mxu0
      %615 = vmatprep.mubr.f32.mxu0 0.0
      %616 = vmatmul.mubr.f32.gmra.mrb[0].mxu0 %v412
      %v617 = vpop.f32.mrb[0].mxu0
      %v618 = vadd.f32 0.0, %v617
      %v619 = vpop.f32.mrb[0].mxu0
      %620 = vmatprep.mubr.f32.mxu0 0.0
      %621 = vmatmul.mubr.f32.gmra.mrb[0].mxu0 %v415
      %v622 = vpop.f32.mrb[0].mxu0
      %v623 = vadd.f32 0.0, %v622
      %v624 = vpop.f32.mrb[0].mxu0
      %625 = vmatprep.mubr.f32.mxu0 0.0
      %626 = vmatmul.mubr.f32.gmra.mrb[0].mxu0 %v418
      %v627 = vpop.f32.mrb[0].mxu0
      %v628 = vadd.f32 0.0, %v627
      %v629 = vpop.f32.mrb[0].mxu0
      %630 = vmatprep.mubr.f32.mxu0 0.0
      %631 = vmatmul.mubr.f32.gmra.mrb[0].mxu0 %v421
      %v632 = vpop.f32.mrb[0].mxu0
      %v633 = vadd.f32 0.0, %v632
      %v634 = vpop.f32.mrb[0].mxu0
      %635 = vmatprep.mubr.f32.mxu0 0.0
      %636 = vmatmul.mubr.f32.gmra.mrb[0].mxu0 %v424
      %v637 = vpop.f32.mrb[0].mxu0
      %v638 = vadd.f32 0.0, %v637
      %v639 = vpop.f32.mrb[0].mxu0
      %640 = vmatprep.mubr.f32.mxu0 0.0
      %641 = vmatmul.mubr.f32.gmra.mrb[0].mxu0 %v427
      %v642 = vpop.f32.mrb[0].mxu0
      %v643 = vadd.f32 0.0, %v642
      %v644 = vpop.f32.mrb[0].mxu0
      %645 = vmatprep.mubr.f32.mxu0 0.0
      %646 = vmatmul.mubr.f32.gmra.mrb[0].mxu0 %v430
      %v647 = vpop.f32.mrb[0].mxu0
      %v648 = vadd.f32 0.0, %v647
      %v649 = vpop.f32.mrb[0].mxu0
      %650 = vdwg.mxu0
      %s651 = scalar_lea.vmem %s1, 32
      %v652 = vld [vmem:[%s651] sm:$0xff]
      %v653 = vld [vmem:[%s651 + $0x8] sm:$0xff]
      %v654 = vld [vmem:[%s651 + $0x10] sm:$0xff]
      %v655 = vld [vmem:[%s651 + $0x18] sm:$0xf]
      %vm656 = vcmask 523264
      %v658 = vsel %vm656, %v652, 0
      %v661 = vsel %vm656, %v653, 0
      %v664 = vsel %vm656, %v654, 0
      %v667 = vsel %vm656, %v655, 0
      %669 = vmatprep.subr.mxu0 0.0
      %670 = vmatpush1.msra.mxu0 %v613
      %671 = vmatprep.subr.mxu0 0.0
      %672 = vmatpush1.msra.mxu0 %v618
      %673 = vmatprep.subr.mxu0 0.0
      %674 = vmatpush1.msra.mxu0 %v623
      %675 = vmatprep.subr.mxu0 0.0
      %676 = vmatpush1.msra.mxu0 %v628
      %677 = vmatprep.subr.mxu0 0.0
      %678 = vmatpush1.msra.mxu0 %v633
      %679 = vmatprep.subr.mxu0 0.0
      %680 = vmatpush1.msra.mxu0 %v638
      %681 = vmatprep.subr.mxu0 0.0
      %682 = vmatpush1.msra.mxu0 %v643
      %683 = vmatprep.subr.mxu0 0.0
      %684 = vmatpush1.msra.mxu0 %v648
      %685 = vmatprep.subr.mxu0 0.0
      %686 = vmatpush1.msra.mxu0 0.0
      %687 = vmatprep.subr.mxu0 0.0
      %688 = vmatpush1.msra.mxu0 0.0
      %689 = vmatprep.subr.mxu0 0.0
      %690 = vmatpush1.msra.mxu0 0.0
      %691 = vmatprep.subr.mxu0 0.0
      %692 = vmatpush1.msra.mxu0 0.0
      %693 = vmatprep.subr.mxu0 0.0
      %694 = vmatpush1.msra.mxu0 0.0
      %695 = vmatprep.subr.mxu0 0.0
      %696 = vmatpush1.msra.mxu0 0.0
      %697 = vmatprep.subr.mxu0 0.0
      %698 = vmatpush1.msra.mxu0 0.0
      %699 = vmatprep.subr.mxu0 0.0
      %700 = vmatpush1.msra.mxu0 0.0
      %701 = vmatprep.subr.mxu0 0.0
      %702 = vmatpush1.msra.mxu0 0.0
      %703 = vmatprep.subr.mxu0 0.0
      %704 = vmatpush1.msra.mxu0 0.0
      %705 = vmatprep.subr.mxu0 0.0
      %706 = vmatpush1.msra.mxu0 0.0
      %707 = vmatprep.subr.mxu0 0.0
      %708 = vmatpush1.msra.mxu0 0.0
      %709 = vmatprep.subr.mxu0 0.0
      %710 = vmatpush1.msra.mxu0 0.0
      %711 = vmatprep.subr.mxu0 0.0
      %712 = vmatpush1.msra.mxu0 0.0
      %713 = vmatprep.subr.mxu0 0.0
      %714 = vmatpush1.msra.mxu0 0.0
      %715 = vmatprep.subr.mxu0 0.0
      %716 = vmatpush1.msra.mxu0 0.0
      %717 = vmatprep.subr.mxu0 0.0
      %718 = vmatpush1.msra.mxu0 0.0
      %719 = vmatprep.subr.mxu0 0.0
      %720 = vmatpush1.msra.mxu0 0.0
      %721 = vmatprep.subr.mxu0 0.0
      %722 = vmatpush1.msra.mxu0 0.0
      %723 = vmatprep.subr.mxu0 0.0
      %724 = vmatpush1.msra.mxu0 0.0
      %725 = vmatprep.subr.mxu0 0.0
      %726 = vmatpush1.msra.mxu0 0.0
      %727 = vmatprep.subr.mxu0 0.0
      %728 = vmatpush1.msra.mxu0 0.0
      %729 = vmatprep.subr.mxu0 0.0
      %730 = vmatpush1.msra.mxu0 0.0
      %731 = vmatprep.subr.mxu0 0.0
      %732 = vmatpush1.msra.mxu0 0.0
      %733 = vmatprep.mubr.f32.mxu0 0.0
      %734 = vmatmul.mubr.f32.gmra.mrb[0].mxu0 %v658
      %v735 = vpop.f32.mrb[0].mxu0
      %v736 = vadd.f32 0.0, %v735
      %v737 = vpop.f32.mrb[0].mxu0
      %738 = vmatprep.mubr.f32.mxu0 0.0
      %739 = vmatmul.mubr.f32.gmra.mrb[0].mxu0 %v661
      %v740 = vpop.f32.mrb[0].mxu0
      %v741 = vadd.f32 0.0, %v740
      %v742 = vpop.f32.mrb[0].mxu0
      %743 = vmatprep.mubr.f32.mxu0 0.0
      %744 = vmatmul.mubr.f32.gmra.mrb[0].mxu0 %v664
      %v745 = vpop.f32.mrb[0].mxu0
      %v746 = vadd.f32 0.0, %v745
      %v747 = vpop.f32.mrb[0].mxu0
      %748 = vmatprep.mubr.f32.mxu0 0.0
      %749 = vmatmul.mubr.f32.gmra.mrb[0].mxu0 %v667
      %v750 = vpop.f32.mrb[0].mxu0
      %v751 = vadd.f32 0.0, %v750
      %v752 = vpop.f32.mrb[0].mxu0
      %753 = vdwg.mxu0
      %v755 = vsel %vm656, %v537, 0
      %v758 = vsel %vm656, %v538, 0
      %v761 = vsel %vm656, %v539, 0
      %v764 = vsel %vm656, %v540, 0
      %766 = vmatprep.subr.mxu0 0.0
      %767 = vmatpush1.msra.mxu0 %v499
      %768 = vmatprep.subr.mxu0 0.0
      %769 = vmatpush1.msra.mxu0 %v504
      %770 = vmatprep.subr.mxu0 0.0
      %771 = vmatpush1.msra.mxu0 %v509
      %772 = vmatprep.subr.mxu0 0.0
      %773 = vmatpush1.msra.mxu0 %v514
      %774 = vmatprep.subr.mxu0 0.0
      %775 = vmatpush1.msra.mxu0 %v519
      %776 = vmatprep.subr.mxu0 0.0
      %777 = vmatpush1.msra.mxu0 %v524
      %778 = vmatprep.subr.mxu0 0.0
      %779 = vmatpush1.msra.mxu0 %v529
      %780 = vmatprep.subr.mxu0 0.0
      %781 = vmatpush1.msra.mxu0 %v534
      %782 = vmatprep.subr.mxu0 0.0
      %783 = vmatpush1.msra.mxu0 0.0
      %784 = vmatprep.subr.mxu0 0.0
      %785 = vmatpush1.msra.mxu0 0.0
      %786 = vmatprep.subr.mxu0 0.0
      %787 = vmatpush1.msra.mxu0 0.0
      %788 = vmatprep.subr.mxu0 0.0
      %789 = vmatpush1.msra.mxu0 0.0
      %790 = vmatprep.subr.mxu0 0.0
      %791 = vmatpush1.msra.mxu0 0.0
      %792 = vmatprep.subr.mxu0 0.0
      %793 = vmatpush1.msra.mxu0 0.0
      %794 = vmatprep.subr.mxu0 0.0
      %795 = vmatpush1.msra.mxu0 0.0
      %796 = vmatprep.subr.mxu0 0.0
      %797 = vmatpush1.msra.mxu0 0.0
      %798 = vmatprep.subr.mxu0 0.0
      %799 = vmatpush1.msra.mxu0 0.0
      %800 = vmatprep.subr.mxu0 0.0
      %801 = vmatpush1.msra.mxu0 0.0
      %802 = vmatprep.subr.mxu0 0.0
      %803 = vmatpush1.msra.mxu0 0.0
      %804 = vmatprep.subr.mxu0 0.0
      %805 = vmatpush1.msra.mxu0 0.0
      %806 = vmatprep.subr.mxu0 0.0
      %807 = vmatpush1.msra.mxu0 0.0
      %808 = vmatprep.subr.mxu0 0.0
      %809 = vmatpush1.msra.mxu0 0.0
      %810 = vmatprep.subr.mxu0 0.0
      %811 = vmatpush1.msra.mxu0 0.0
      %812 = vmatprep.subr.mxu0 0.0
      %813 = vmatpush1.msra.mxu0 0.0
      %814 = vmatprep.subr.mxu0 0.0
      %815 = vmatpush1.msra.mxu0 0.0
      %816 = vmatprep.subr.mxu0 0.0
      %817 = vmatpush1.msra.mxu0 0.0
      %818 = vmatprep.subr.mxu0 0.0
      %819 = vmatpush1.msra.mxu0 0.0
      %820 = vmatprep.subr.mxu0 0.0
      %821 = vmatpush1.msra.mxu0 0.0
      %822 = vmatprep.subr.mxu0 0.0
      %823 = vmatpush1.msra.mxu0 0.0
      %824 = vmatprep.subr.mxu0 0.0
      %825 = vmatpush1.msra.mxu0 0.0
      %826 = vmatprep.subr.mxu0 0.0
      %827 = vmatpush1.msra.mxu0 0.0
      %828 = vmatprep.subr.mxu0 0.0
      %829 = vmatpush1.msra.mxu0 0.0
      %830 = vmatprep.mubr.f32.mxu0 0.0
      %831 = vmatmul.mubr.f32.gmra.mrb[0].mxu0 %v755
      %v832 = vpop.f32.mrb[0].mxu0
      %v833 = vadd.f32 %v736, %v832
      %v834 = vpop.f32.mrb[0].mxu0
      %835 = vmatprep.mubr.f32.mxu0 0.0
      %836 = vmatmul.mubr.f32.gmra.mrb[0].mxu0 %v758
      %v837 = vpop.f32.mrb[0].mxu0
      %v838 = vadd.f32 %v741, %v837
      %v839 = vpop.f32.mrb[0].mxu0
      %840 = vmatprep.mubr.f32.mxu0 0.0
      %841 = vmatmul.mubr.f32.gmra.mrb[0].mxu0 %v761
      %v842 = vpop.f32.mrb[0].mxu0
      %v843 = vadd.f32 %v746, %v842
      %v844 = vpop.f32.mrb[0].mxu0
      %845 = vmatprep.mubr.f32.mxu0 0.0
      %846 = vmatmul.mubr.f32.gmra.mrb[0].mxu0 %v764
      %v847 = vpop.f32.mrb[0].mxu0
      %v848 = vadd.f32 %v751, %v847
      %v849 = vpop.f32.mrb[0].mxu0
      %850 = vdwg.mxu0
      %s851 = scalar_lea.vmem %s2, 64
      %v852 = vld [vmem:[%s851] sm:$0xff]
      %v853 = vld [vmem:[%s851 + $0x8] sm:$0xff]
      %v854 = vld [vmem:[%s851 + $0x10] sm:$0xff]
      %v855 = vld [vmem:[%s851 + $0x18] sm:$0xff]
      %856 = vmatprep.subr.mxu0 0.0
      %857 = vmatpush1.msra.mxu0 %v852
      %858 = vmatprep.subr.mxu0 0.0
      %859 = vmatpush1.msra.mxu0 %v853
      %860 = vmatprep.subr.mxu0 0.0
      %861 = vmatpush1.msra.mxu0 %v854
      %862 = vmatprep.subr.mxu0 0.0
      %863 = vmatpush1.msra.mxu0 %v855
      %864 = vmatprep.subr.mxu0 0.0
      %865 = vmatpush1.msra.mxu0 0.0
      %866 = vmatprep.subr.mxu0 0.0
      %867 = vmatpush1.msra.mxu0 0.0
      %868 = vmatprep.subr.mxu0 0.0
      %869 = vmatpush1.msra.mxu0 0.0
      %870 = vmatprep.subr.mxu0 0.0
      %871 = vmatpush1.msra.mxu0 0.0
      %872 = vmatprep.subr.mxu0 0.0
      %873 = vmatpush1.msra.mxu0 0.0
      %874 = vmatprep.subr.mxu0 0.0
      %875 = vmatpush1.msra.mxu0 0.0
      %876 = vmatprep.subr.mxu0 0.0
      %877 = vmatpush1.msra.mxu0 0.0
      %878 = vmatprep.subr.mxu0 0.0
      %879 = vmatpush1.msra.mxu0 0.0
      %880 = vmatprep.subr.mxu0 0.0
      %881 = vmatpush1.msra.mxu0 0.0
      %882 = vmatprep.subr.mxu0 0.0
      %883 = vmatpush1.msra.mxu0 0.0
      %884 = vmatprep.subr.mxu0 0.0
      %885 = vmatpush1.msra.mxu0 0.0
      %886 = vmatprep.subr.mxu0 0.0
      %887 = vmatpush1.msra.mxu0 0.0
      %888 = vmatprep.subr.mxu0 0.0
      %889 = vmatpush1.msra.mxu0 0.0
      %890 = vmatprep.subr.mxu0 0.0
      %891 = vmatpush1.msra.mxu0 0.0
      %892 = vmatprep.subr.mxu0 0.0
      %893 = vmatpush1.msra.mxu0 0.0
      %894 = vmatprep.subr.mxu0 0.0
      %895 = vmatpush1.msra.mxu0 0.0
      %896 = vmatprep.subr.mxu0 0.0
      %897 = vmatpush1.msra.mxu0 0.0
      %898 = vmatprep.subr.mxu0 0.0
      %899 = vmatpush1.msra.mxu0 0.0
      %900 = vmatprep.subr.mxu0 0.0
      %901 = vmatpush1.msra.mxu0 0.0
      %902 = vmatprep.subr.mxu0 0.0
      %903 = vmatpush1.msra.mxu0 0.0
      %904 = vmatprep.subr.mxu0 0.0
      %905 = vmatpush1.msra.mxu0 0.0
      %906 = vmatprep.subr.mxu0 0.0
      %907 = vmatpush1.msra.mxu0 0.0
      %908 = vmatprep.subr.mxu0 0.0
      %909 = vmatpush1.msra.mxu0 0.0
      %910 = vmatprep.subr.mxu0 0.0
      %911 = vmatpush1.msra.mxu0 0.0
      %912 = vmatprep.subr.mxu0 0.0
      %913 = vmatpush1.msra.mxu0 0.0
      %914 = vmatprep.subr.mxu0 0.0
      %915 = vmatpush1.msra.mxu0 0.0
      %916 = vmatprep.subr.mxu0 0.0
      %917 = vmatpush1.msra.mxu0 0.0
      %918 = vmatprep.subr.mxu0 0.0
      %919 = vmatpush1.msra.mxu0 0.0
      %920 = vmatprep.mubr.f32.mxu0 0.0
      %921 = vmatmul.mubr.f32.gmra.mrb[0].mxu0 %v409
      %v922 = vpop.f32.mrb[0].mxu0
      %v923 = vadd.f32 0.0, %v922
      %v924 = vpop.f32.mrb[0].mxu0
      %925 = vmatprep.mubr.f32.mxu0 0.0
      %926 = vmatmul.mubr.f32.gmra.mrb[0].mxu0 %v412
      %v927 = vpop.f32.mrb[0].mxu0
      %v928 = vadd.f32 0.0, %v927
      %v929 = vpop.f32.mrb[0].mxu0
      %930 = vmatprep.mubr.f32.mxu0 0.0
      %931 = vmatmul.mubr.f32.gmra.mrb[0].mxu0 %v415
      %v932 = vpop.f32.mrb[0].mxu0
      %v933 = vadd.f32 0.0, %v932
      %v934 = vpop.f32.mrb[0].mxu0
      %935 = vmatprep.mubr.f32.mxu0 0.0
      %936 = vmatmul.mubr.f32.gmra.mrb[0].mxu0 %v418
      %v937 = vpop.f32.mrb[0].mxu0
      %v938 = vadd.f32 0.0, %v937
      %v939 = vpop.f32.mrb[0].mxu0
      %940 = vmatprep.mubr.f32.mxu0 0.0
      %941 = vmatmul.mubr.f32.gmra.mrb[0].mxu0 %v421
      %v942 = vpop.f32.mrb[0].mxu0
      %v943 = vadd.f32 0.0, %v942
      %v944 = vpop.f32.mrb[0].mxu0
      %945 = vmatprep.mubr.f32.mxu0 0.0
      %946 = vmatmul.mubr.f32.gmra.mrb[0].mxu0 %v424
      %v947 = vpop.f32.mrb[0].mxu0
      %v948 = vadd.f32 0.0, %v947
      %v949 = vpop.f32.mrb[0].mxu0
      %950 = vmatprep.mubr.f32.mxu0 0.0
      %951 = vmatmul.mubr.f32.gmra.mrb[0].mxu0 %v427
      %v952 = vpop.f32.mrb[0].mxu0
      %v953 = vadd.f32 0.0, %v952
      %v954 = vpop.f32.mrb[0].mxu0
      %955 = vmatprep.mubr.f32.mxu0 0.0
      %956 = vmatmul.mubr.f32.gmra.mrb[0].mxu0 %v430
      %v957 = vpop.f32.mrb[0].mxu0
      %v958 = vadd.f32 0.0, %v957
      %v959 = vpop.f32.mrb[0].mxu0
      %960 = vdwg.mxu0
      %s961 = scalar_lea.vmem %s1, 64
      %v962 = vld [vmem:[%s961] sm:$0xff]
      %v963 = vld [vmem:[%s961 + $0x8] sm:$0xff]
      %v964 = vld [vmem:[%s961 + $0x10] sm:$0xff]
      %v965 = vld [vmem:[%s961 + $0x18] sm:$0xf]
      %v967 = vsel %vm656, %v962, 0
      %v970 = vsel %vm656, %v963, 0
      %v973 = vsel %vm656, %v964, 0
      %v976 = vsel %vm656, %v965, 0
      %978 = vmatprep.subr.mxu0 0.0
      %979 = vmatpush1.msra.mxu0 %v923
      %980 = vmatprep.subr.mxu0 0.0
      %981 = vmatpush1.msra.mxu0 %v928
      %982 = vmatprep.subr.mxu0 0.0
      %983 = vmatpush1.msra.mxu0 %v933
      %984 = vmatprep.subr.mxu0 0.0
      %985 = vmatpush1.msra.mxu0 %v938
      %986 = vmatprep.subr.mxu0 0.0
      %987 = vmatpush1.msra.mxu0 %v943
      %988 = vmatprep.subr.mxu0 0.0
      %989 = vmatpush1.msra.mxu0 %v948
      %990 = vmatprep.subr.mxu0 0.0
      %991 = vmatpush1.msra.mxu0 %v953
      %992 = vmatprep.subr.mxu0 0.0
      %993 = vmatpush1.msra.mxu0 %v958
      %994 = vmatprep.subr.mxu0 0.0
      %995 = vmatpush1.msra.mxu0 0.0
      %996 = vmatprep.subr.mxu0 0.0
      %997 = vmatpush1.msra.mxu0 0.0
      %998 = vmatprep.subr.mxu0 0.0
      %999 = vmatpush1.msra.mxu0 0.0
      %1000 = vmatprep.subr.mxu0 0.0
      %1001 = vmatpush1.msra.mxu0 0.0
      %1002 = vmatprep.subr.mxu0 0.0
      %1003 = vmatpush1.msra.mxu0 0.0
      %1004 = vmatprep.subr.mxu0 0.0
      %1005 = vmatpush1.msra.mxu0 0.0
      %1006 = vmatprep.subr.mxu0 0.0
      %1007 = vmatpush1.msra.mxu0 0.0
      %1008 = vmatprep.subr.mxu0 0.0
      %1009 = vmatpush1.msra.mxu0 0.0
      %1010 = vmatprep.subr.mxu0 0.0
      %1011 = vmatpush1.msra.mxu0 0.0
      %1012 = vmatprep.subr.mxu0 0.0
      %1013 = vmatpush1.msra.mxu0 0.0
      %1014 = vmatprep.subr.mxu0 0.0
      %1015 = vmatpush1.msra.mxu0 0.0
      %1016 = vmatprep.subr.mxu0 0.0
      %1017 = vmatpush1.msra.mxu0 0.0
      %1018 = vmatprep.subr.mxu0 0.0
      %1019 = vmatpush1.msra.mxu0 0.0
      %1020 = vmatprep.subr.mxu0 0.0
      %1021 = vmatpush1.msra.mxu0 0.0
      %1022 = vmatprep.subr.mxu0 0.0
      %1023 = vmatpush1.msra.mxu0 0.0
      %1024 = vmatprep.subr.mxu0 0.0
      %1025 = vmatpush1.msra.mxu0 0.0
      %1026 = vmatprep.subr.mxu0 0.0
      %1027 = vmatpush1.msra.mxu0 0.0
      %1028 = vmatprep.subr.mxu0 0.0
      %1029 = vmatpush1.msra.mxu0 0.0
      %1030 = vmatprep.subr.mxu0 0.0
      %1031 = vmatpush1.msra.mxu0 0.0
      %1032 = vmatprep.subr.mxu0 0.0
      %1033 = vmatpush1.msra.mxu0 0.0
      %1034 = vmatprep.subr.mxu0 0.0
      %1035 = vmatpush1.msra.mxu0 0.0
      %1036 = vmatprep.subr.mxu0 0.0
      %1037 = vmatpush1.msra.mxu0 0.0
      %1038 = vmatprep.subr.mxu0 0.0
      %1039 = vmatpush1.msra.mxu0 0.0
      %1040 = vmatprep.subr.mxu0 0.0
      %1041 = vmatpush1.msra.mxu0 0.0
      %1042 = vmatprep.mubr.f32.mxu0 0.0
      %1043 = vmatmul.mubr.f32.gmra.mrb[0].mxu0 %v967
      %v1044 = vpop.f32.mrb[0].mxu0
      %v1045 = vadd.f32 0.0, %v1044
      %v1046 = vpop.f32.mrb[0].mxu0
      %1047 = vmatprep.mubr.f32.mxu0 0.0
      %1048 = vmatmul.mubr.f32.gmra.mrb[0].mxu0 %v970
      %v1049 = vpop.f32.mrb[0].mxu0
      %v1050 = vadd.f32 0.0, %v1049
      %v1051 = vpop.f32.mrb[0].mxu0
      %1052 = vmatprep.mubr.f32.mxu0 0.0
      %1053 = vmatmul.mubr.f32.gmra.mrb[0].mxu0 %v973
      %v1054 = vpop.f32.mrb[0].mxu0
      %v1055 = vadd.f32 0.0, %v1054
      %v1056 = vpop.f32.mrb[0].mxu0
      %1057 = vmatprep.mubr.f32.mxu0 0.0
      %1058 = vmatmul.mubr.f32.gmra.mrb[0].mxu0 %v976
      %v1059 = vpop.f32.mrb[0].mxu0
      %v1060 = vadd.f32 0.0, %v1059
      %v1061 = vpop.f32.mrb[0].mxu0
      %1062 = vdwg.mxu0
      %v1063 = vadd.f32 %v833, %v1045
      %v1064 = vadd.f32 %v838, %v1050
      %v1065 = vadd.f32 %v843, %v1055
      %v1066 = vadd.f32 %v848, %v1060
      %v1067 = vld [vmem:[%s3] sm:$0xff]
      %v1068 = vld [vmem:[%s3 + $0x8] sm:$0xff]
      %v1069 = vld [vmem:[%s3 + $0x10] sm:$0xff]
      %v1070 = vld [vmem:[%s3 + $0x18] sm:$0xf]
      %1072 = vset.pattern.permute.xlu0 0
      %1073 = vperm.xlu0 %1072, %v1067
      %v1074 = vpop.permute.xlu0 %1073
      %1077 = vset.pattern.permute.xlu0 0
      %1078 = vperm.xlu0 %1077, %v1068
      %v1079 = vpop.permute.xlu0 %1078
      %1082 = vset.pattern.permute.xlu0 0
      %1083 = vperm.xlu0 %1082, %v1069
      %v1084 = vpop.permute.xlu0 %1083
      %1087 = vset.pattern.permute.xlu0 0
      %1088 = vperm.xlu0 %1087, %v1070
      %v1089 = vpop.permute.xlu0 %1088
      %v1091 = vadd.f32 %v1063, %v1074
      %v1092 = vadd.f32 %v1064, %v1079
      %v1093 = vadd.f32 %v1065, %v1084
      %v1094 = vadd.f32 %v1066, %v1089
      %v1095 = vld [vmem:[%s5] sm:$0xff]
      %v1096 = vld [vmem:[%s5 + $0x8] sm:$0x7f]
      %vm1097 = vcmask 121856
      %v1099 = vsel %vm1097, %v1091, 0
      %v1102 = vsel %vm1097, %v1092, 0
      %v1105 = vsel %vm1097, %v1093, 0
      %v1108 = vsel %vm1097, %v1094, 0
      %vm1110 = vcmask 1046528
      %v1112 = vsel %vm1110, %v1096, 0
      %1114 = vmatprep.subr.mxu0 0.0
      %1115 = vmatpush1.msra.mxu0 %v1095
      %1116 = vmatprep.subr.mxu0 0.0
      %1117 = vmatpush1.msra.mxu0 %v1112
      %1118 = vmatprep.subr.mxu0 0.0
      %1119 = vmatpush1.msra.mxu0 0.0
      %1120 = vmatprep.subr.mxu0 0.0
      %1121 = vmatpush1.msra.mxu0 0.0
      %1122 = vmatprep.subr.mxu0 0.0
      %1123 = vmatpush1.msra.mxu0 0.0
      %1124 = vmatprep.subr.mxu0 0.0
      %1125 = vmatpush1.msra.mxu0 0.0
      %1126 = vmatprep.subr.mxu0 0.0
      %1127 = vmatpush1.msra.mxu0 0.0
      %1128 = vmatprep.subr.mxu0 0.0
      %1129 = vmatpush1.msra.mxu0 0.0
      %1130 = vmatprep.subr.mxu0 0.0
      %1131 = vmatpush1.msra.mxu0 0.0
      %1132 = vmatprep.subr.mxu0 0.0
      %1133 = vmatpush1.msra.mxu0 0.0
      %1134 = vmatprep.subr.mxu0 0.0
      %1135 = vmatpush1.msra.mxu0 0.0
      %1136 = vmatprep.subr.mxu0 0.0
      %1137 = vmatpush1.msra.mxu0 0.0
      %1138 = vmatprep.subr.mxu0 0.0
      %1139 = vmatpush1.msra.mxu0 0.0
      %1140 = vmatprep.subr.mxu0 0.0
      %1141 = vmatpush1.msra.mxu0 0.0
      %1142 = vmatprep.subr.mxu0 0.0
      %1143 = vmatpush1.msra.mxu0 0.0
      %1144 = vmatprep.subr.mxu0 0.0
      %1145 = vmatpush1.msra.mxu0 0.0
      %1146 = vmatprep.subr.mxu0 0.0
      %1147 = vmatpush1.msra.mxu0 0.0
      %1148 = vmatprep.subr.mxu0 0.0
      %1149 = vmatpush1.msra.mxu0 0.0
      %1150 = vmatprep.subr.mxu0 0.0
      %1151 = vmatpush1.msra.mxu0 0.0
      %1152 = vmatprep.subr.mxu0 0.0
      %1153 = vmatpush1.msra.mxu0 0.0
      %1154 = vmatprep.subr.mxu0 0.0
      %1155 = vmatpush1.msra.mxu0 0.0
      %1156 = vmatprep.subr.mxu0 0.0
      %1157 = vmatpush1.msra.mxu0 0.0
      %1158 = vmatprep.subr.mxu0 0.0
      %1159 = vmatpush1.msra.mxu0 0.0
      %1160 = vmatprep.subr.mxu0 0.0
      %1161 = vmatpush1.msra.mxu0 0.0
      %1162 = vmatprep.subr.mxu0 0.0
      %1163 = vmatpush1.msra.mxu0 0.0
      %1164 = vmatprep.subr.mxu0 0.0
      %1165 = vmatpush1.msra.mxu0 0.0
      %1166 = vmatprep.subr.mxu0 0.0
      %1167 = vmatpush1.msra.mxu0 0.0
      %1168 = vmatprep.subr.mxu0 0.0
      %1169 = vmatpush1.msra.mxu0 0.0
      %1170 = vmatprep.subr.mxu0 0.0
      %1171 = vmatpush1.msra.mxu0 0.0
      %1172 = vmatprep.subr.mxu0 0.0
      %1173 = vmatpush1.msra.mxu0 0.0
      %1174 = vmatprep.subr.mxu0 0.0
      %1175 = vmatpush1.msra.mxu0 0.0
      %1176 = vmatprep.subr.mxu0 0.0
      %1177 = vmatpush1.msra.mxu0 0.0
      %1178 = vmatprep.mubr.f32.mxu0 0.0
      %1179 = vmatmul.mubr.f32.gmra.mrb[0].mxu0 %v1099
      %v1180 = vpop.f32.mrb[0].mxu0
      %v1181 = vadd.f32 0.0, %v1180
      %v1182 = vpop.f32.mrb[0].mxu0
      %1183 = vmatprep.mubr.f32.mxu0 0.0
      %1184 = vmatmul.mubr.f32.gmra.mrb[0].mxu0 %v1102
      %v1185 = vpop.f32.mrb[0].mxu0
      %v1186 = vadd.f32 0.0, %v1185
      %v1187 = vpop.f32.mrb[0].mxu0
      %1188 = vmatprep.mubr.f32.mxu0 0.0
      %1189 = vmatmul.mubr.f32.gmra.mrb[0].mxu0 %v1105
      %v1190 = vpop.f32.mrb[0].mxu0
      %v1191 = vadd.f32 0.0, %v1190
      %v1192 = vpop.f32.mrb[0].mxu0
      %1193 = vmatprep.mubr.f32.mxu0 0.0
      %1194 = vmatmul.mubr.f32.gmra.mrb[0].mxu0 %v1108
      %v1195 = vpop.f32.mrb[0].mxu0
      %v1196 = vadd.f32 0.0, %v1195
      %v1197 = vpop.f32.mrb[0].mxu0
      %1198 = vdwg.mxu0
      %s1199 = scalar_lea.vmem %s5, 16
      %v1200 = vld [vmem:[%s1199] sm:$0xff]
      %v1201 = vld [vmem:[%s1199 + $0x8] sm:$0x7f]
      %v1203 = vsel %vm1110, %v1201, 0
      %1205 = vmatprep.subr.mxu0 0.0
      %1206 = vmatpush1.msra.mxu0 %v1200
      %1207 = vmatprep.subr.mxu0 0.0
      %1208 = vmatpush1.msra.mxu0 %v1203
      %1209 = vmatprep.subr.mxu0 0.0
      %1210 = vmatpush1.msra.mxu0 0.0
      %1211 = vmatprep.subr.mxu0 0.0
      %1212 = vmatpush1.msra.mxu0 0.0
      %1213 = vmatprep.subr.mxu0 0.0
      %1214 = vmatpush1.msra.mxu0 0.0
      %1215 = vmatprep.subr.mxu0 0.0
      %1216 = vmatpush1.msra.mxu0 0.0
      %1217 = vmatprep.subr.mxu0 0.0
      %1218 = vmatpush1.msra.mxu0 0.0
      %1219 = vmatprep.subr.mxu0 0.0
      %1220 = vmatpush1.msra.mxu0 0.0
      %1221 = vmatprep.subr.mxu0 0.0
      %1222 = vmatpush1.msra.mxu0 0.0
      %1223 = vmatprep.subr.mxu0 0.0
      %1224 = vmatpush1.msra.mxu0 0.0
      %1225 = vmatprep.subr.mxu0 0.0
      %1226 = vmatpush1.msra.mxu0 0.0
      %1227 = vmatprep.subr.mxu0 0.0
      %1228 = vmatpush1.msra.mxu0 0.0
      %1229 = vmatprep.subr.mxu0 0.0
      %1230 = vmatpush1.msra.mxu0 0.0
      %1231 = vmatprep.subr.mxu0 0.0
      %1232 = vmatpush1.msra.mxu0 0.0
      %1233 = vmatprep.subr.mxu0 0.0
      %1234 = vmatpush1.msra.mxu0 0.0
      %1235 = vmatprep.subr.mxu0 0.0
      %1236 = vmatpush1.msra.mxu0 0.0
      %1237 = vmatprep.subr.mxu0 0.0
      %1238 = vmatpush1.msra.mxu0 0.0
      %1239 = vmatprep.subr.mxu0 0.0
      %1240 = vmatpush1.msra.mxu0 0.0
      %1241 = vmatprep.subr.mxu0 0.0
      %1242 = vmatpush1.msra.mxu0 0.0
      %1243 = vmatprep.subr.mxu0 0.0
      %1244 = vmatpush1.msra.mxu0 0.0
      %1245 = vmatprep.subr.mxu0 0.0
      %1246 = vmatpush1.msra.mxu0 0.0
      %1247 = vmatprep.subr.mxu0 0.0
      %1248 = vmatpush1.msra.mxu0 0.0
      %1249 = vmatprep.subr.mxu0 0.0
      %1250 = vmatpush1.msra.mxu0 0.0
      %1251 = vmatprep.subr.mxu0 0.0
      %1252 = vmatpush1.msra.mxu0 0.0
      %1253 = vmatprep.subr.mxu0 0.0
      %1254 = vmatpush1.msra.mxu0 0.0
      %1255 = vmatprep.subr.mxu0 0.0
      %1256 = vmatpush1.msra.mxu0 0.0
      %1257 = vmatprep.subr.mxu0 0.0
      %1258 = vmatpush1.msra.mxu0 0.0
      %1259 = vmatprep.subr.mxu0 0.0
      %1260 = vmatpush1.msra.mxu0 0.0
      %1261 = vmatprep.subr.mxu0 0.0
      %1262 = vmatpush1.msra.mxu0 0.0
      %1263 = vmatprep.subr.mxu0 0.0
      %1264 = vmatpush1.msra.mxu0 0.0
      %1265 = vmatprep.subr.mxu0 0.0
      %1266 = vmatpush1.msra.mxu0 0.0
      %1267 = vmatprep.subr.mxu0 0.0
      %1268 = vmatpush1.msra.mxu0 0.0
      %1269 = vmatprep.mubr.f32.mxu0 0.0
      %1270 = vmatmul.mubr.f32.gmra.mrb[0].mxu0 %v1099
      %v1271 = vpop.f32.mrb[0].mxu0
      %v1272 = vadd.f32 0.0, %v1271
      %v1273 = vpop.f32.mrb[0].mxu0
      %1274 = vmatprep.mubr.f32.mxu0 0.0
      %1275 = vmatmul.mubr.f32.gmra.mrb[0].mxu0 %v1102
      %v1276 = vpop.f32.mrb[0].mxu0
      %v1277 = vadd.f32 0.0, %v1276
      %v1278 = vpop.f32.mrb[0].mxu0
      %1279 = vmatprep.mubr.f32.mxu0 0.0
      %1280 = vmatmul.mubr.f32.gmra.mrb[0].mxu0 %v1105
      %v1281 = vpop.f32.mrb[0].mxu0
      %v1282 = vadd.f32 0.0, %v1281
      %v1283 = vpop.f32.mrb[0].mxu0
      %1284 = vmatprep.mubr.f32.mxu0 0.0
      %1285 = vmatmul.mubr.f32.gmra.mrb[0].mxu0 %v1108
      %v1286 = vpop.f32.mrb[0].mxu0
      %v1287 = vadd.f32 0.0, %v1286
      %v1288 = vpop.f32.mrb[0].mxu0
      %1289 = vdwg.mxu0
      %v1290 = vmax.f32 %v1181, %v1272
      %v1291 = vmax.f32 %v1186, %v1277
      %v1292 = vmax.f32 %v1191, %v1282
      %v1293 = vmax.f32 %v1196, %v1287
      %s1294 = scalar_lea.vmem %s5, 32
      %v1295 = vld [vmem:[%s1294] sm:$0xff]
      %v1296 = vld [vmem:[%s1294 + $0x8] sm:$0x7f]
      %v1298 = vsel %vm1110, %v1296, 0
      %1300 = vmatprep.subr.mxu0 0.0
      %1301 = vmatpush1.msra.mxu0 %v1295
      %1302 = vmatprep.subr.mxu0 0.0
      %1303 = vmatpush1.msra.mxu0 %v1298
      %1304 = vmatprep.subr.mxu0 0.0
      %1305 = vmatpush1.msra.mxu0 0.0
      %1306 = vmatprep.subr.mxu0 0.0
      %1307 = vmatpush1.msra.mxu0 0.0
      %1308 = vmatprep.subr.mxu0 0.0
      %1309 = vmatpush1.msra.mxu0 0.0
      %1310 = vmatprep.subr.mxu0 0.0
      %1311 = vmatpush1.msra.mxu0 0.0
      %1312 = vmatprep.subr.mxu0 0.0
      %1313 = vmatpush1.msra.mxu0 0.0
      %1314 = vmatprep.subr.mxu0 0.0
      %1315 = vmatpush1.msra.mxu0 0.0
      %1316 = vmatprep.subr.mxu0 0.0
      %1317 = vmatpush1.msra.mxu0 0.0
      %1318 = vmatprep.subr.mxu0 0.0
      %1319 = vmatpush1.msra.mxu0 0.0
      %1320 = vmatprep.subr.mxu0 0.0
      %1321 = vmatpush1.msra.mxu0 0.0
      %1322 = vmatprep.subr.mxu0 0.0
      %1323 = vmatpush1.msra.mxu0 0.0
      %1324 = vmatprep.subr.mxu0 0.0
      %1325 = vmatpush1.msra.mxu0 0.0
      %1326 = vmatprep.subr.mxu0 0.0
      %1327 = vmatpush1.msra.mxu0 0.0
      %1328 = vmatprep.subr.mxu0 0.0
      %1329 = vmatpush1.msra.mxu0 0.0
      %1330 = vmatprep.subr.mxu0 0.0
      %1331 = vmatpush1.msra.mxu0 0.0
      %1332 = vmatprep.subr.mxu0 0.0
      %1333 = vmatpush1.msra.mxu0 0.0
      %1334 = vmatprep.subr.mxu0 0.0
      %1335 = vmatpush1.msra.mxu0 0.0
      %1336 = vmatprep.subr.mxu0 0.0
      %1337 = vmatpush1.msra.mxu0 0.0
      %1338 = vmatprep.subr.mxu0 0.0
      %1339 = vmatpush1.msra.mxu0 0.0
      %1340 = vmatprep.subr.mxu0 0.0
      %1341 = vmatpush1.msra.mxu0 0.0
      %1342 = vmatprep.subr.mxu0 0.0
      %1343 = vmatpush1.msra.mxu0 0.0
      %1344 = vmatprep.subr.mxu0 0.0
      %1345 = vmatpush1.msra.mxu0 0.0
      %1346 = vmatprep.subr.mxu0 0.0
      %1347 = vmatpush1.msra.mxu0 0.0
      %1348 = vmatprep.subr.mxu0 0.0
      %1349 = vmatpush1.msra.mxu0 0.0
      %1350 = vmatprep.subr.mxu0 0.0
      %1351 = vmatpush1.msra.mxu0 0.0
      %1352 = vmatprep.subr.mxu0 0.0
      %1353 = vmatpush1.msra.mxu0 0.0
      %1354 = vmatprep.subr.mxu0 0.0
      %1355 = vmatpush1.msra.mxu0 0.0
      %1356 = vmatprep.subr.mxu0 0.0
      %1357 = vmatpush1.msra.mxu0 0.0
      %1358 = vmatprep.subr.mxu0 0.0
      %1359 = vmatpush1.msra.mxu0 0.0
      %1360 = vmatprep.subr.mxu0 0.0
      %1361 = vmatpush1.msra.mxu0 0.0
      %1362 = vmatprep.subr.mxu0 0.0
      %1363 = vmatpush1.msra.mxu0 0.0
      %1364 = vmatprep.mubr.f32.mxu0 0.0
      %1365 = vmatmul.mubr.f32.gmra.mrb[0].mxu0 %v1099
      %v1366 = vpop.f32.mrb[0].mxu0
      %v1367 = vadd.f32 0.0, %v1366
      %v1368 = vpop.f32.mrb[0].mxu0
      %1369 = vmatprep.mubr.f32.mxu0 0.0
      %1370 = vmatmul.mubr.f32.gmra.mrb[0].mxu0 %v1102
      %v1371 = vpop.f32.mrb[0].mxu0
      %v1372 = vadd.f32 0.0, %v1371
      %v1373 = vpop.f32.mrb[0].mxu0
      %1374 = vmatprep.mubr.f32.mxu0 0.0
      %1375 = vmatmul.mubr.f32.gmra.mrb[0].mxu0 %v1105
      %v1376 = vpop.f32.mrb[0].mxu0
      %v1377 = vadd.f32 0.0, %v1376
      %v1378 = vpop.f32.mrb[0].mxu0
      %1379 = vmatprep.mubr.f32.mxu0 0.0
      %1380 = vmatmul.mubr.f32.gmra.mrb[0].mxu0 %v1108
      %v1381 = vpop.f32.mrb[0].mxu0
      %v1382 = vadd.f32 0.0, %v1381
      %v1383 = vpop.f32.mrb[0].mxu0
      %1384 = vdwg.mxu0
      %v1385 = vmax.f32 %v1290, %v1367
      %v1386 = vmax.f32 %v1291, %v1372
      %v1387 = vmax.f32 %v1292, %v1377
      %v1388 = vmax.f32 %v1293, %v1382
      %s1389 = scalar_lea.vmem %s5, 48
      %v1390 = vld [vmem:[%s1389] sm:$0xff]
      %v1391 = vld [vmem:[%s1389 + $0x8] sm:$0x7f]
      %v1393 = vsel %vm1110, %v1391, 0
      %1395 = vmatprep.subr.mxu0 0.0
      %1396 = vmatpush1.msra.mxu0 %v1390
      %1397 = vmatprep.subr.mxu0 0.0
      %1398 = vmatpush1.msra.mxu0 %v1393
      %1399 = vmatprep.subr.mxu0 0.0
      %1400 = vmatpush1.msra.mxu0 0.0
      %1401 = vmatprep.subr.mxu0 0.0
      %1402 = vmatpush1.msra.mxu0 0.0
      %1403 = vmatprep.subr.mxu0 0.0
      %1404 = vmatpush1.msra.mxu0 0.0
      %1405 = vmatprep.subr.mxu0 0.0
      %1406 = vmatpush1.msra.mxu0 0.0
      %1407 = vmatprep.subr.mxu0 0.0
      %1408 = vmatpush1.msra.mxu0 0.0
      %1409 = vmatprep.subr.mxu0 0.0
      %1410 = vmatpush1.msra.mxu0 0.0
      %1411 = vmatprep.subr.mxu0 0.0
      %1412 = vmatpush1.msra.mxu0 0.0
      %1413 = vmatprep.subr.mxu0 0.0
      %1414 = vmatpush1.msra.mxu0 0.0
      %1415 = vmatprep.subr.mxu0 0.0
      %1416 = vmatpush1.msra.mxu0 0.0
      %1417 = vmatprep.subr.mxu0 0.0
      %1418 = vmatpush1.msra.mxu0 0.0
      %1419 = vmatprep.subr.mxu0 0.0
      %1420 = vmatpush1.msra.mxu0 0.0
      %1421 = vmatprep.subr.mxu0 0.0
      %1422 = vmatpush1.msra.mxu0 0.0
      %1423 = vmatprep.subr.mxu0 0.0
      %1424 = vmatpush1.msra.mxu0 0.0
      %1425 = vmatprep.subr.mxu0 0.0
      %1426 = vmatpush1.msra.mxu0 0.0
      %1427 = vmatprep.subr.mxu0 0.0
      %1428 = vmatpush1.msra.mxu0 0.0
      %1429 = vmatprep.subr.mxu0 0.0
      %1430 = vmatpush1.msra.mxu0 0.0
      %1431 = vmatprep.subr.mxu0 0.0
      %1432 = vmatpush1.msra.mxu0 0.0
      %1433 = vmatprep.subr.mxu0 0.0
      %1434 = vmatpush1.msra.mxu0 0.0
      %1435 = vmatprep.subr.mxu0 0.0
      %1436 = vmatpush1.msra.mxu0 0.0
      %1437 = vmatprep.subr.mxu0 0.0
      %1438 = vmatpush1.msra.mxu0 0.0
      %1439 = vmatprep.subr.mxu0 0.0
      %1440 = vmatpush1.msra.mxu0 0.0
      %1441 = vmatprep.subr.mxu0 0.0
      %1442 = vmatpush1.msra.mxu0 0.0
      %1443 = vmatprep.subr.mxu0 0.0
      %1444 = vmatpush1.msra.mxu0 0.0
      %1445 = vmatprep.subr.mxu0 0.0
      %1446 = vmatpush1.msra.mxu0 0.0
      %1447 = vmatprep.subr.mxu0 0.0
      %1448 = vmatpush1.msra.mxu0 0.0
      %1449 = vmatprep.subr.mxu0 0.0
      %1450 = vmatpush1.msra.mxu0 0.0
      %1451 = vmatprep.subr.mxu0 0.0
      %1452 = vmatpush1.msra.mxu0 0.0
      %1453 = vmatprep.subr.mxu0 0.0
      %1454 = vmatpush1.msra.mxu0 0.0
      %1455 = vmatprep.subr.mxu0 0.0
      %1456 = vmatpush1.msra.mxu0 0.0
      %1457 = vmatprep.subr.mxu0 0.0
      %1458 = vmatpush1.msra.mxu0 0.0
      %1459 = vmatprep.mubr.f32.mxu0 0.0
      %1460 = vmatmul.mubr.f32.gmra.mrb[0].mxu0 %v1099
      %v1461 = vpop.f32.mrb[0].mxu0
      %v1462 = vadd.f32 0.0, %v1461
      %v1463 = vpop.f32.mrb[0].mxu0
      %1464 = vmatprep.mubr.f32.mxu0 0.0
      %1465 = vmatmul.mubr.f32.gmra.mrb[0].mxu0 %v1102
      %v1466 = vpop.f32.mrb[0].mxu0
      %v1467 = vadd.f32 0.0, %v1466
      %v1468 = vpop.f32.mrb[0].mxu0
      %1469 = vmatprep.mubr.f32.mxu0 0.0
      %1470 = vmatmul.mubr.f32.gmra.mrb[0].mxu0 %v1105
      %v1471 = vpop.f32.mrb[0].mxu0
      %v1472 = vadd.f32 0.0, %v1471
      %v1473 = vpop.f32.mrb[0].mxu0
      %1474 = vmatprep.mubr.f32.mxu0 0.0
      %1475 = vmatmul.mubr.f32.gmra.mrb[0].mxu0 %v1108
      %v1476 = vpop.f32.mrb[0].mxu0
      %v1477 = vadd.f32 0.0, %v1476
      %v1478 = vpop.f32.mrb[0].mxu0
      %1479 = vdwg.mxu0
      %v1480 = vmax.f32 %v1385, %v1462
      %v1481 = vmax.f32 %v1386, %v1467
      %v1482 = vmax.f32 %v1387, %v1472
      %v1483 = vmax.f32 %v1388, %v1477
      %s1484 = scalar_lea.vmem %s5, 64
      %v1485 = vld [vmem:[%s1484] sm:$0xff]
      %v1486 = vld [vmem:[%s1484 + $0x8] sm:$0x7f]
      %v1488 = vsel %vm1110, %v1486, 0
      %1490 = vmatprep.subr.mxu0 0.0
      %1491 = vmatpush1.msra.mxu0 %v1485
      %1492 = vmatprep.subr.mxu0 0.0
      %1493 = vmatpush1.msra.mxu0 %v1488
      %1494 = vmatprep.subr.mxu0 0.0
      %1495 = vmatpush1.msra.mxu0 0.0
      %1496 = vmatprep.subr.mxu0 0.0
      %1497 = vmatpush1.msra.mxu0 0.0
      %1498 = vmatprep.subr.mxu0 0.0
      %1499 = vmatpush1.msra.mxu0 0.0
      %1500 = vmatprep.subr.mxu0 0.0
      %1501 = vmatpush1.msra.mxu0 0.0
      %1502 = vmatprep.subr.mxu0 0.0
      %1503 = vmatpush1.msra.mxu0 0.0
      %1504 = vmatprep.subr.mxu0 0.0
      %1505 = vmatpush1.msra.mxu0 0.0
      %1506 = vmatprep.subr.mxu0 0.0
      %1507 = vmatpush1.msra.mxu0 0.0
      %1508 = vmatprep.subr.mxu0 0.0
      %1509 = vmatpush1.msra.mxu0 0.0
      %1510 = vmatprep.subr.mxu0 0.0
      %1511 = vmatpush1.msra.mxu0 0.0
      %1512 = vmatprep.subr.mxu0 0.0
      %1513 = vmatpush1.msra.mxu0 0.0
      %1514 = vmatprep.subr.mxu0 0.0
      %1515 = vmatpush1.msra.mxu0 0.0
      %1516 = vmatprep.subr.mxu0 0.0
      %1517 = vmatpush1.msra.mxu0 0.0
      %1518 = vmatprep.subr.mxu0 0.0
      %1519 = vmatpush1.msra.mxu0 0.0
      %1520 = vmatprep.subr.mxu0 0.0
      %1521 = vmatpush1.msra.mxu0 0.0
      %1522 = vmatprep.subr.mxu0 0.0
      %1523 = vmatpush1.msra.mxu0 0.0
      %1524 = vmatprep.subr.mxu0 0.0
      %1525 = vmatpush1.msra.mxu0 0.0
      %1526 = vmatprep.subr.mxu0 0.0
      %1527 = vmatpush1.msra.mxu0 0.0
      %1528 = vmatprep.subr.mxu0 0.0
      %1529 = vmatpush1.msra.mxu0 0.0
      %1530 = vmatprep.subr.mxu0 0.0
      %1531 = vmatpush1.msra.mxu0 0.0
      %1532 = vmatprep.subr.mxu0 0.0
      %1533 = vmatpush1.msra.mxu0 0.0
      %1534 = vmatprep.subr.mxu0 0.0
      %1535 = vmatpush1.msra.mxu0 0.0
      %1536 = vmatprep.subr.mxu0 0.0
      %1537 = vmatpush1.msra.mxu0 0.0
      %1538 = vmatprep.subr.mxu0 0.0
      %1539 = vmatpush1.msra.mxu0 0.0
      %1540 = vmatprep.subr.mxu0 0.0
      %1541 = vmatpush1.msra.mxu0 0.0
      %1542 = vmatprep.subr.mxu0 0.0
      %1543 = vmatpush1.msra.mxu0 0.0
      %1544 = vmatprep.subr.mxu0 0.0
      %1545 = vmatpush1.msra.mxu0 0.0
      %1546 = vmatprep.subr.mxu0 0.0
      %1547 = vmatpush1.msra.mxu0 0.0
      %1548 = vmatprep.subr.mxu0 0.0
      %1549 = vmatpush1.msra.mxu0 0.0
      %1550 = vmatprep.subr.mxu0 0.0
      %1551 = vmatpush1.msra.mxu0 0.0
      %1552 = vmatprep.subr.mxu0 0.0
      %1553 = vmatpush1.msra.mxu0 0.0
      %1554 = vmatprep.mubr.f32.mxu0 0.0
      %1555 = vmatmul.mubr.f32.gmra.mrb[0].mxu0 %v1099
      %v1556 = vpop.f32.mrb[0].mxu0
      %v1557 = vadd.f32 0.0, %v1556
      %v1558 = vpop.f32.mrb[0].mxu0
      %1559 = vmatprep.mubr.f32.mxu0 0.0
      %1560 = vmatmul.mubr.f32.gmra.mrb[0].mxu0 %v1102
      %v1561 = vpop.f32.mrb[0].mxu0
      %v1562 = vadd.f32 0.0, %v1561
      %v1563 = vpop.f32.mrb[0].mxu0
      %1564 = vmatprep.mubr.f32.mxu0 0.0
      %1565 = vmatmul.mubr.f32.gmra.mrb[0].mxu0 %v1105
      %v1566 = vpop.f32.mrb[0].mxu0
      %v1567 = vadd.f32 0.0, %v1566
      %v1568 = vpop.f32.mrb[0].mxu0
      %1569 = vmatprep.mubr.f32.mxu0 0.0
      %1570 = vmatmul.mubr.f32.gmra.mrb[0].mxu0 %v1108
      %v1571 = vpop.f32.mrb[0].mxu0
      %v1572 = vadd.f32 0.0, %v1571
      %v1573 = vpop.f32.mrb[0].mxu0
      %1574 = vdwg.mxu0
      %v1575 = vmax.f32 %v1480, %v1557
      %v1576 = vmax.f32 %v1481, %v1562
      %v1577 = vmax.f32 %v1482, %v1567
      %v1578 = vmax.f32 %v1483, %v1572
      %s1579 = scalar_lea.vmem %s5, 80
      %v1580 = vld [vmem:[%s1579] sm:$0xff]
      %v1581 = vld [vmem:[%s1579 + $0x8] sm:$0x7f]
      %v1583 = vsel %vm1110, %v1581, 0
      %1585 = vmatprep.subr.mxu0 0.0
      %1586 = vmatpush1.msra.mxu0 %v1580
      %1587 = vmatprep.subr.mxu0 0.0
      %1588 = vmatpush1.msra.mxu0 %v1583
      %1589 = vmatprep.subr.mxu0 0.0
      %1590 = vmatpush1.msra.mxu0 0.0
      %1591 = vmatprep.subr.mxu0 0.0
      %1592 = vmatpush1.msra.mxu0 0.0
      %1593 = vmatprep.subr.mxu0 0.0
      %1594 = vmatpush1.msra.mxu0 0.0
      %1595 = vmatprep.subr.mxu0 0.0
      %1596 = vmatpush1.msra.mxu0 0.0
      %1597 = vmatprep.subr.mxu0 0.0
      %1598 = vmatpush1.msra.mxu0 0.0
      %1599 = vmatprep.subr.mxu0 0.0
      %1600 = vmatpush1.msra.mxu0 0.0
      %1601 = vmatprep.subr.mxu0 0.0
      %1602 = vmatpush1.msra.mxu0 0.0
      %1603 = vmatprep.subr.mxu0 0.0
      %1604 = vmatpush1.msra.mxu0 0.0
      %1605 = vmatprep.subr.mxu0 0.0
      %1606 = vmatpush1.msra.mxu0 0.0
      %1607 = vmatprep.subr.mxu0 0.0
      %1608 = vmatpush1.msra.mxu0 0.0
      %1609 = vmatprep.subr.mxu0 0.0
      %1610 = vmatpush1.msra.mxu0 0.0
      %1611 = vmatprep.subr.mxu0 0.0
      %1612 = vmatpush1.msra.mxu0 0.0
      %1613 = vmatprep.subr.mxu0 0.0
      %1614 = vmatpush1.msra.mxu0 0.0
      %1615 = vmatprep.subr.mxu0 0.0
      %1616 = vmatpush1.msra.mxu0 0.0
      %1617 = vmatprep.subr.mxu0 0.0
      %1618 = vmatpush1.msra.mxu0 0.0
      %1619 = vmatprep.subr.mxu0 0.0
      %1620 = vmatpush1.msra.mxu0 0.0
      %1621 = vmatprep.subr.mxu0 0.0
      %1622 = vmatpush1.msra.mxu0 0.0
      %1623 = vmatprep.subr.mxu0 0.0
      %1624 = vmatpush1.msra.mxu0 0.0
      %1625 = vmatprep.subr.mxu0 0.0
      %1626 = vmatpush1.msra.mxu0 0.0
      %1627 = vmatprep.subr.mxu0 0.0
      %1628 = vmatpush1.msra.mxu0 0.0
      %1629 = vmatprep.subr.mxu0 0.0
      %1630 = vmatpush1.msra.mxu0 0.0
      %1631 = vmatprep.subr.mxu0 0.0
      %1632 = vmatpush1.msra.mxu0 0.0
      %1633 = vmatprep.subr.mxu0 0.0
      %1634 = vmatpush1.msra.mxu0 0.0
      %1635 = vmatprep.subr.mxu0 0.0
      %1636 = vmatpush1.msra.mxu0 0.0
      %1637 = vmatprep.subr.mxu0 0.0
      %1638 = vmatpush1.msra.mxu0 0.0
      %1639 = vmatprep.subr.mxu0 0.0
      %1640 = vmatpush1.msra.mxu0 0.0
      %1641 = vmatprep.subr.mxu0 0.0
      %1642 = vmatpush1.msra.mxu0 0.0
      %1643 = vmatprep.subr.mxu0 0.0
      %1644 = vmatpush1.msra.mxu0 0.0
      %1645 = vmatprep.subr.mxu0 0.0
      %1646 = vmatpush1.msra.mxu0 0.0
      %1647 = vmatprep.subr.mxu0 0.0
      %1648 = vmatpush1.msra.mxu0 0.0
      %1649 = vmatprep.mubr.f32.mxu0 0.0
      %1650 = vmatmul.mubr.f32.gmra.mrb[0].mxu0 %v1099
      %v1651 = vpop.f32.mrb[0].mxu0
      %v1652 = vadd.f32 0.0, %v1651
      %v1653 = vpop.f32.mrb[0].mxu0
      %1654 = vmatprep.mubr.f32.mxu0 0.0
      %1655 = vmatmul.mubr.f32.gmra.mrb[0].mxu0 %v1102
      %v1656 = vpop.f32.mrb[0].mxu0
      %v1657 = vadd.f32 0.0, %v1656
      %v1658 = vpop.f32.mrb[0].mxu0
      %1659 = vmatprep.mubr.f32.mxu0 0.0
      %1660 = vmatmul.mubr.f32.gmra.mrb[0].mxu0 %v1105
      %v1661 = vpop.f32.mrb[0].mxu0
      %v1662 = vadd.f32 0.0, %v1661
      %v1663 = vpop.f32.mrb[0].mxu0
      %1664 = vmatprep.mubr.f32.mxu0 0.0
      %1665 = vmatmul.mubr.f32.gmra.mrb[0].mxu0 %v1108
      %v1666 = vpop.f32.mrb[0].mxu0
      %v1667 = vadd.f32 0.0, %v1666
      %v1668 = vpop.f32.mrb[0].mxu0
      %1669 = vdwg.mxu0
      %v1670 = vmax.f32 %v1575, %v1652
      %v1671 = vmax.f32 %v1576, %v1657
      %v1672 = vmax.f32 %v1577, %v1662
      %v1673 = vmax.f32 %v1578, %v1667
      %s1674 = scalar_lea.vmem %s5, 96
      %v1675 = vld [vmem:[%s1674] sm:$0xff]
      %v1676 = vld [vmem:[%s1674 + $0x8] sm:$0x7f]
      %v1678 = vsel %vm1110, %v1676, 0
      %1680 = vmatprep.subr.mxu0 0.0
      %1681 = vmatpush1.msra.mxu0 %v1675
      %1682 = vmatprep.subr.mxu0 0.0
      %1683 = vmatpush1.msra.mxu0 %v1678
      %1684 = vmatprep.subr.mxu0 0.0
      %1685 = vmatpush1.msra.mxu0 0.0
      %1686 = vmatprep.subr.mxu0 0.0
      %1687 = vmatpush1.msra.mxu0 0.0
      %1688 = vmatprep.subr.mxu0 0.0
      %1689 = vmatpush1.msra.mxu0 0.0
      %1690 = vmatprep.subr.mxu0 0.0
      %1691 = vmatpush1.msra.mxu0 0.0
      %1692 = vmatprep.subr.mxu0 0.0
      %1693 = vmatpush1.msra.mxu0 0.0
      %1694 = vmatprep.subr.mxu0 0.0
      %1695 = vmatpush1.msra.mxu0 0.0
      %1696 = vmatprep.subr.mxu0 0.0
      %1697 = vmatpush1.msra.mxu0 0.0
      %1698 = vmatprep.subr.mxu0 0.0
      %1699 = vmatpush1.msra.mxu0 0.0
      %1700 = vmatprep.subr.mxu0 0.0
      %1701 = vmatpush1.msra.mxu0 0.0
      %1702 = vmatprep.subr.mxu0 0.0
      %1703 = vmatpush1.msra.mxu0 0.0
      %1704 = vmatprep.subr.mxu0 0.0
      %1705 = vmatpush1.msra.mxu0 0.0
      %1706 = vmatprep.subr.mxu0 0.0
      %1707 = vmatpush1.msra.mxu0 0.0
      %1708 = vmatprep.subr.mxu0 0.0
      %1709 = vmatpush1.msra.mxu0 0.0
      %1710 = vmatprep.subr.mxu0 0.0
      %1711 = vmatpush1.msra.mxu0 0.0
      %1712 = vmatprep.subr.mxu0 0.0
      %1713 = vmatpush1.msra.mxu0 0.0
      %1714 = vmatprep.subr.mxu0 0.0
      %1715 = vmatpush1.msra.mxu0 0.0
      %1716 = vmatprep.subr.mxu0 0.0
      %1717 = vmatpush1.msra.mxu0 0.0
      %1718 = vmatprep.subr.mxu0 0.0
      %1719 = vmatpush1.msra.mxu0 0.0
      %1720 = vmatprep.subr.mxu0 0.0
      %1721 = vmatpush1.msra.mxu0 0.0
      %1722 = vmatprep.subr.mxu0 0.0
      %1723 = vmatpush1.msra.mxu0 0.0
      %1724 = vmatprep.subr.mxu0 0.0
      %1725 = vmatpush1.msra.mxu0 0.0
      %1726 = vmatprep.subr.mxu0 0.0
      %1727 = vmatpush1.msra.mxu0 0.0
      %1728 = vmatprep.subr.mxu0 0.0
      %1729 = vmatpush1.msra.mxu0 0.0
      %1730 = vmatprep.subr.mxu0 0.0
      %1731 = vmatpush1.msra.mxu0 0.0
      %1732 = vmatprep.subr.mxu0 0.0
      %1733 = vmatpush1.msra.mxu0 0.0
      %1734 = vmatprep.subr.mxu0 0.0
      %1735 = vmatpush1.msra.mxu0 0.0
      %1736 = vmatprep.subr.mxu0 0.0
      %1737 = vmatpush1.msra.mxu0 0.0
      %1738 = vmatprep.subr.mxu0 0.0
      %1739 = vmatpush1.msra.mxu0 0.0
      %1740 = vmatprep.subr.mxu0 0.0
      %1741 = vmatpush1.msra.mxu0 0.0
      %1742 = vmatprep.subr.mxu0 0.0
      %1743 = vmatpush1.msra.mxu0 0.0
      %1744 = vmatprep.mubr.f32.mxu0 0.0
      %1745 = vmatmul.mubr.f32.gmra.mrb[0].mxu0 %v1099
      %v1746 = vpop.f32.mrb[0].mxu0
      %v1747 = vadd.f32 0.0, %v1746
      %v1748 = vpop.f32.mrb[0].mxu0
      %1749 = vmatprep.mubr.f32.mxu0 0.0
      %1750 = vmatmul.mubr.f32.gmra.mrb[0].mxu0 %v1102
      %v1751 = vpop.f32.mrb[0].mxu0
      %v1752 = vadd.f32 0.0, %v1751
      %v1753 = vpop.f32.mrb[0].mxu0
      %1754 = vmatprep.mubr.f32.mxu0 0.0
      %1755 = vmatmul.mubr.f32.gmra.mrb[0].mxu0 %v1105
      %v1756 = vpop.f32.mrb[0].mxu0
      %v1757 = vadd.f32 0.0, %v1756
      %v1758 = vpop.f32.mrb[0].mxu0
      %1759 = vmatprep.mubr.f32.mxu0 0.0
      %1760 = vmatmul.mubr.f32.gmra.mrb[0].mxu0 %v1108
      %v1761 = vpop.f32.mrb[0].mxu0
      %v1762 = vadd.f32 0.0, %v1761
      %v1763 = vpop.f32.mrb[0].mxu0
      %1764 = vdwg.mxu0
      %v1765 = vmax.f32 %v1670, %v1747
      %v1766 = vmax.f32 %v1671, %v1752
      %v1767 = vmax.f32 %v1672, %v1757
      %v1768 = vmax.f32 %v1673, %v1762
      %v1769 = vld [vmem:[%s4] sm:$0xf]
      %vm1770 = vcmask 228352
      %v1772 = vsel %vm1770, %v1769, 0
      %vm1774 = vcmask 1043456
      %v1776 = vsel %vm1774, %v1768, 0
      %1778 = vmatprep.subr.mxu0 0.0
      %1779 = vmatpush1.msra.mxu0 %v1765
      %1780 = vmatprep.subr.mxu0 0.0
      %1781 = vmatpush1.msra.mxu0 %v1766
      %1782 = vmatprep.subr.mxu0 0.0
      %1783 = vmatpush1.msra.mxu0 %v1767
      %1784 = vmatprep.subr.mxu0 0.0
      %1785 = vmatpush1.msra.mxu0 %v1776
      %1786 = vmatprep.subr.mxu0 0.0
      %1787 = vmatpush1.msra.mxu0 0.0
      %1788 = vmatprep.subr.mxu0 0.0
      %1789 = vmatpush1.msra.mxu0 0.0
      %1790 = vmatprep.subr.mxu0 0.0
      %1791 = vmatpush1.msra.mxu0 0.0
      %1792 = vmatprep.subr.mxu0 0.0
      %1793 = vmatpush1.msra.mxu0 0.0
      %1794 = vmatprep.subr.mxu0 0.0
      %1795 = vmatpush1.msra.mxu0 0.0
      %1796 = vmatprep.subr.mxu0 0.0
      %1797 = vmatpush1.msra.mxu0 0.0
      %1798 = vmatprep.subr.mxu0 0.0
      %1799 = vmatpush1.msra.mxu0 0.0
      %1800 = vmatprep.subr.mxu0 0.0
      %1801 = vmatpush1.msra.mxu0 0.0
      %1802 = vmatprep.subr.mxu0 0.0
      %1803 = vmatpush1.msra.mxu0 0.0
      %1804 = vmatprep.subr.mxu0 0.0
      %1805 = vmatpush1.msra.mxu0 0.0
      %1806 = vmatprep.subr.mxu0 0.0
      %1807 = vmatpush1.msra.mxu0 0.0
      %1808 = vmatprep.subr.mxu0 0.0
      %1809 = vmatpush1.msra.mxu0 0.0
      %1810 = vmatprep.subr.mxu0 0.0
      %1811 = vmatpush1.msra.mxu0 0.0
      %1812 = vmatprep.subr.mxu0 0.0
      %1813 = vmatpush1.msra.mxu0 0.0
      %1814 = vmatprep.subr.mxu0 0.0
      %1815 = vmatpush1.msra.mxu0 0.0
      %1816 = vmatprep.subr.mxu0 0.0
      %1817 = vmatpush1.msra.mxu0 0.0
      %1818 = vmatprep.subr.mxu0 0.0
      %1819 = vmatpush1.msra.mxu0 0.0
      %1820 = vmatprep.subr.mxu0 0.0
      %1821 = vmatpush1.msra.mxu0 0.0
      %1822 = vmatprep.subr.mxu0 0.0
      %1823 = vmatpush1.msra.mxu0 0.0
      %1824 = vmatprep.subr.mxu0 0.0
      %1825 = vmatpush1.msra.mxu0 0.0
      %1826 = vmatprep.subr.mxu0 0.0
      %1827 = vmatpush1.msra.mxu0 0.0
      %1828 = vmatprep.subr.mxu0 0.0
      %1829 = vmatpush1.msra.mxu0 0.0
      %1830 = vmatprep.subr.mxu0 0.0
      %1831 = vmatpush1.msra.mxu0 0.0
      %1832 = vmatprep.subr.mxu0 0.0
      %1833 = vmatpush1.msra.mxu0 0.0
      %1834 = vmatprep.subr.mxu0 0.0
      %1835 = vmatpush1.msra.mxu0 0.0
      %1836 = vmatprep.subr.mxu0 0.0
      %1837 = vmatpush1.msra.mxu0 0.0
      %1838 = vmatprep.subr.mxu0 0.0
      %1839 = vmatpush1.msra.mxu0 0.0
      %1840 = vmatprep.subr.mxu0 0.0
      %1841 = vmatpush1.msra.mxu0 0.0
      %1842 = vmatprep.mubr.f32.mxu0 0.0
      %1843 = vmatmul.mubr.f32.gmra.mrb[0].mxu0 %v1772
      %v1844 = vpop.f32.mrb[0].mxu0
      %v1845 = vadd.f32 0.0, %v1844
      %v1846 = vpop.f32.mrb[0].mxu0
      %1847 = vdwg.mxu0
      %s1848 = scalar_lea.vmem %s4, 4
      %v1849 = vld [vmem:[%s1848] sm:$0xf]
      %v1851 = vsel %vm1770, %v1849, 0
      %1853 = vmatprep.subr.mxu0 0.0
      %1854 = vmatpush1.msra.mxu0 %v1765
      %1855 = vmatprep.subr.mxu0 0.0
      %1856 = vmatpush1.msra.mxu0 %v1766
      %1857 = vmatprep.subr.mxu0 0.0
      %1858 = vmatpush1.msra.mxu0 %v1767
      %1859 = vmatprep.subr.mxu0 0.0
      %1860 = vmatpush1.msra.mxu0 %v1776
      %1861 = vmatprep.subr.mxu0 0.0
      %1862 = vmatpush1.msra.mxu0 0.0
      %1863 = vmatprep.subr.mxu0 0.0
      %1864 = vmatpush1.msra.mxu0 0.0
      %1865 = vmatprep.subr.mxu0 0.0
      %1866 = vmatpush1.msra.mxu0 0.0
      %1867 = vmatprep.subr.mxu0 0.0
      %1868 = vmatpush1.msra.mxu0 0.0
      %1869 = vmatprep.subr.mxu0 0.0
      %1870 = vmatpush1.msra.mxu0 0.0
      %1871 = vmatprep.subr.mxu0 0.0
      %1872 = vmatpush1.msra.mxu0 0.0
      %1873 = vmatprep.subr.mxu0 0.0
      %1874 = vmatpush1.msra.mxu0 0.0
      %1875 = vmatprep.subr.mxu0 0.0
      %1876 = vmatpush1.msra.mxu0 0.0
      %1877 = vmatprep.subr.mxu0 0.0
      %1878 = vmatpush1.msra.mxu0 0.0
      %1879 = vmatprep.subr.mxu0 0.0
      %1880 = vmatpush1.msra.mxu0 0.0
      %1881 = vmatprep.subr.mxu0 0.0
      %1882 = vmatpush1.msra.mxu0 0.0
      %1883 = vmatprep.subr.mxu0 0.0
      %1884 = vmatpush1.msra.mxu0 0.0
      %1885 = vmatprep.subr.mxu0 0.0
      %1886 = vmatpush1.msra.mxu0 0.0
      %1887 = vmatprep.subr.mxu0 0.0
      %1888 = vmatpush1.msra.mxu0 0.0
      %1889 = vmatprep.subr.mxu0 0.0
      %1890 = vmatpush1.msra.mxu0 0.0
      %1891 = vmatprep.subr.mxu0 0.0
      %1892 = vmatpush1.msra.mxu0 0.0
      %1893 = vmatprep.subr.mxu0 0.0
      %1894 = vmatpush1.msra.mxu0 0.0
      %1895 = vmatprep.subr.mxu0 0.0
      %1896 = vmatpush1.msra.mxu0 0.0
      %1897 = vmatprep.subr.mxu0 0.0
      %1898 = vmatpush1.msra.mxu0 0.0
      %1899 = vmatprep.subr.mxu0 0.0
      %1900 = vmatpush1.msra.mxu0 0.0
      %1901 = vmatprep.subr.mxu0 0.0
      %1902 = vmatpush1.msra.mxu0 0.0
      %1903 = vmatprep.subr.mxu0 0.0
      %1904 = vmatpush1.msra.mxu0 0.0
      %1905 = vmatprep.subr.mxu0 0.0
      %1906 = vmatpush1.msra.mxu0 0.0
      %1907 = vmatprep.subr.mxu0 0.0
      %1908 = vmatpush1.msra.mxu0 0.0
      %1909 = vmatprep.subr.mxu0 0.0
      %1910 = vmatpush1.msra.mxu0 0.0
      %1911 = vmatprep.subr.mxu0 0.0
      %1912 = vmatpush1.msra.mxu0 0.0
      %1913 = vmatprep.subr.mxu0 0.0
      %1914 = vmatpush1.msra.mxu0 0.0
      %1915 = vmatprep.subr.mxu0 0.0
      %1916 = vmatpush1.msra.mxu0 0.0
      %1917 = vmatprep.mubr.f32.mxu0 0.0
      %1918 = vmatmul.mubr.f32.gmra.mrb[0].mxu0 %v1851
      %v1919 = vpop.f32.mrb[0].mxu0
      %v1920 = vadd.f32 0.0, %v1919
      %v1921 = vpop.f32.mrb[0].mxu0
      %1922 = vdwg.mxu0
      %v1923 = vmax.f32 %v1845, %v1920
      %s1924 = scalar_lea.vmem %s4, 8
      %v1925 = vld [vmem:[%s1924] sm:$0xf]
      %v1927 = vsel %vm1770, %v1925, 0
      %1929 = vmatprep.subr.mxu0 0.0
      %1930 = vmatpush1.msra.mxu0 %v1765
      %1931 = vmatprep.subr.mxu0 0.0
      %1932 = vmatpush1.msra.mxu0 %v1766
      %1933 = vmatprep.subr.mxu0 0.0
      %1934 = vmatpush1.msra.mxu0 %v1767
      %1935 = vmatprep.subr.mxu0 0.0
      %1936 = vmatpush1.msra.mxu0 %v1776
      %1937 = vmatprep.subr.mxu0 0.0
      %1938 = vmatpush1.msra.mxu0 0.0
      %1939 = vmatprep.subr.mxu0 0.0
      %1940 = vmatpush1.msra.mxu0 0.0
      %1941 = vmatprep.subr.mxu0 0.0
      %1942 = vmatpush1.msra.mxu0 0.0
      %1943 = vmatprep.subr.mxu0 0.0
      %1944 = vmatpush1.msra.mxu0 0.0
      %1945 = vmatprep.subr.mxu0 0.0
      %1946 = vmatpush1.msra.mxu0 0.0
      %1947 = vmatprep.subr.mxu0 0.0
      %1948 = vmatpush1.msra.mxu0 0.0
      %1949 = vmatprep.subr.mxu0 0.0
      %1950 = vmatpush1.msra.mxu0 0.0
      %1951 = vmatprep.subr.mxu0 0.0
      %1952 = vmatpush1.msra.mxu0 0.0
      %1953 = vmatprep.subr.mxu0 0.0
      %1954 = vmatpush1.msra.mxu0 0.0
      %1955 = vmatprep.subr.mxu0 0.0
      %1956 = vmatpush1.msra.mxu0 0.0
      %1957 = vmatprep.subr.mxu0 0.0
      %1958 = vmatpush1.msra.mxu0 0.0
      %1959 = vmatprep.subr.mxu0 0.0
      %1960 = vmatpush1.msra.mxu0 0.0
      %1961 = vmatprep.subr.mxu0 0.0
      %1962 = vmatpush1.msra.mxu0 0.0
      %1963 = vmatprep.subr.mxu0 0.0
      %1964 = vmatpush1.msra.mxu0 0.0
      %1965 = vmatprep.subr.mxu0 0.0
      %1966 = vmatpush1.msra.mxu0 0.0
      %1967 = vmatprep.subr.mxu0 0.0
      %1968 = vmatpush1.msra.mxu0 0.0
      %1969 = vmatprep.subr.mxu0 0.0
      %1970 = vmatpush1.msra.mxu0 0.0
      %1971 = vmatprep.subr.mxu0 0.0
      %1972 = vmatpush1.msra.mxu0 0.0
      %1973 = vmatprep.subr.mxu0 0.0
      %1974 = vmatpush1.msra.mxu0 0.0
      %1975 = vmatprep.subr.mxu0 0.0
      %1976 = vmatpush1.msra.mxu0 0.0
      %1977 = vmatprep.subr.mxu0 0.0
      %1978 = vmatpush1.msra.mxu0 0.0
      %1979 = vmatprep.subr.mxu0 0.0
      %1980 = vmatpush1.msra.mxu0 0.0
      %1981 = vmatprep.subr.mxu0 0.0
      %1982 = vmatpush1.msra.mxu0 0.0
      %1983 = vmatprep.subr.mxu0 0.0
      %1984 = vmatpush1.msra.mxu0 0.0
      %1985 = vmatprep.subr.mxu0 0.0
      %1986 = vmatpush1.msra.mxu0 0.0
      %1987 = vmatprep.subr.mxu0 0.0
      %1988 = vmatpush1.msra.mxu0 0.0
      %1989 = vmatprep.subr.mxu0 0.0
      %1990 = vmatpush1.msra.mxu0 0.0
      %1991 = vmatprep.subr.mxu0 0.0
      %1992 = vmatpush1.msra.mxu0 0.0
      %1993 = vmatprep.mubr.f32.mxu0 0.0
      %1994 = vmatmul.mubr.f32.gmra.mrb[0].mxu0 %v1927
      %v1995 = vpop.f32.mrb[0].mxu0
      %v1996 = vadd.f32 0.0, %v1995
      %v1997 = vpop.f32.mrb[0].mxu0
      %1998 = vdwg.mxu0
      %v1999 = vmax.f32 %v1923, %v1996
      %s2000 = scalar_lea.vmem %s4, 12
      %v2001 = vld [vmem:[%s2000] sm:$0xf]
      %v2003 = vsel %vm1770, %v2001, 0
      %2005 = vmatprep.subr.mxu0 0.0
      %2006 = vmatpush1.msra.mxu0 %v1765
      %2007 = vmatprep.subr.mxu0 0.0
      %2008 = vmatpush1.msra.mxu0 %v1766
      %2009 = vmatprep.subr.mxu0 0.0
      %2010 = vmatpush1.msra.mxu0 %v1767
      %2011 = vmatprep.subr.mxu0 0.0
      %2012 = vmatpush1.msra.mxu0 %v1776
      %2013 = vmatprep.subr.mxu0 0.0
      %2014 = vmatpush1.msra.mxu0 0.0
      %2015 = vmatprep.subr.mxu0 0.0
      %2016 = vmatpush1.msra.mxu0 0.0
      %2017 = vmatprep.subr.mxu0 0.0
      %2018 = vmatpush1.msra.mxu0 0.0
      %2019 = vmatprep.subr.mxu0 0.0
      %2020 = vmatpush1.msra.mxu0 0.0
      %2021 = vmatprep.subr.mxu0 0.0
      %2022 = vmatpush1.msra.mxu0 0.0
      %2023 = vmatprep.subr.mxu0 0.0
      %2024 = vmatpush1.msra.mxu0 0.0
      %2025 = vmatprep.subr.mxu0 0.0
      %2026 = vmatpush1.msra.mxu0 0.0
      %2027 = vmatprep.subr.mxu0 0.0
      %2028 = vmatpush1.msra.mxu0 0.0
      %2029 = vmatprep.subr.mxu0 0.0
      %2030 = vmatpush1.msra.mxu0 0.0
      %2031 = vmatprep.subr.mxu0 0.0
      %2032 = vmatpush1.msra.mxu0 0.0
      %2033 = vmatprep.subr.mxu0 0.0
      %2034 = vmatpush1.msra.mxu0 0.0
      %2035 = vmatprep.subr.mxu0 0.0
      %2036 = vmatpush1.msra.mxu0 0.0
      %2037 = vmatprep.subr.mxu0 0.0
      %2038 = vmatpush1.msra.mxu0 0.0
      %2039 = vmatprep.subr.mxu0 0.0
      %2040 = vmatpush1.msra.mxu0 0.0
      %2041 = vmatprep.subr.mxu0 0.0
      %2042 = vmatpush1.msra.mxu0 0.0
      %2043 = vmatprep.subr.mxu0 0.0
      %2044 = vmatpush1.msra.mxu0 0.0
      %2045 = vmatprep.subr.mxu0 0.0
      %2046 = vmatpush1.msra.mxu0 0.0
      %2047 = vmatprep.subr.mxu0 0.0
      %2048 = vmatpush1.msra.mxu0 0.0
      %2049 = vmatprep.subr.mxu0 0.0
      %2050 = vmatpush1.msra.mxu0 0.0
      %2051 = vmatprep.subr.mxu0 0.0
      %2052 = vmatpush1.msra.mxu0 0.0
      %2053 = vmatprep.subr.mxu0 0.0
      %2054 = vmatpush1.msra.mxu0 0.0
      %2055 = vmatprep.subr.mxu0 0.0
      %2056 = vmatpush1.msra.mxu0 0.0
      %2057 = vmatprep.subr.mxu0 0.0
      %2058 = vmatpush1.msra.mxu0 0.0
      %2059 = vmatprep.subr.mxu0 0.0
      %2060 = vmatpush1.msra.mxu0 0.0
      %2061 = vmatprep.subr.mxu0 0.0
      %2062 = vmatpush1.msra.mxu0 0.0
      %2063 = vmatprep.subr.mxu0 0.0
      %2064 = vmatpush1.msra.mxu0 0.0
      %2065 = vmatprep.subr.mxu0 0.0
      %2066 = vmatpush1.msra.mxu0 0.0
      %2067 = vmatprep.subr.mxu0 0.0
      %2068 = vmatpush1.msra.mxu0 0.0
      %2069 = vmatprep.mubr.f32.mxu0 0.0
      %2070 = vmatmul.mubr.f32.gmra.mrb[0].mxu0 %v2003
      %v2071 = vpop.f32.mrb[0].mxu0
      %v2072 = vadd.f32 0.0, %v2071
      %v2073 = vpop.f32.mrb[0].mxu0
      %2074 = vdwg.mxu0
      %v2075 = vmax.f32 %v1999, %v2072
      %s2076 = scalar_lea.vmem %s4, 16
      %v2077 = vld [vmem:[%s2076] sm:$0xf]
      %v2079 = vsel %vm1770, %v2077, 0
      %2081 = vmatprep.subr.mxu0 0.0
      %2082 = vmatpush1.msra.mxu0 %v1765
      %2083 = vmatprep.subr.mxu0 0.0
      %2084 = vmatpush1.msra.mxu0 %v1766
      %2085 = vmatprep.subr.mxu0 0.0
      %2086 = vmatpush1.msra.mxu0 %v1767
      %2087 = vmatprep.subr.mxu0 0.0
      %2088 = vmatpush1.msra.mxu0 %v1776
      %2089 = vmatprep.subr.mxu0 0.0
      %2090 = vmatpush1.msra.mxu0 0.0
      %2091 = vmatprep.subr.mxu0 0.0
      %2092 = vmatpush1.msra.mxu0 0.0
      %2093 = vmatprep.subr.mxu0 0.0
      %2094 = vmatpush1.msra.mxu0 0.0
      %2095 = vmatprep.subr.mxu0 0.0
      %2096 = vmatpush1.msra.mxu0 0.0
      %2097 = vmatprep.subr.mxu0 0.0
      %2098 = vmatpush1.msra.mxu0 0.0
      %2099 = vmatprep.subr.mxu0 0.0
      %2100 = vmatpush1.msra.mxu0 0.0
      %2101 = vmatprep.subr.mxu0 0.0
      %2102 = vmatpush1.msra.mxu0 0.0
      %2103 = vmatprep.subr.mxu0 0.0
      %2104 = vmatpush1.msra.mxu0 0.0
      %2105 = vmatprep.subr.mxu0 0.0
      %2106 = vmatpush1.msra.mxu0 0.0
      %2107 = vmatprep.subr.mxu0 0.0
      %2108 = vmatpush1.msra.mxu0 0.0
      %2109 = vmatprep.subr.mxu0 0.0
      %2110 = vmatpush1.msra.mxu0 0.0
      %2111 = vmatprep.subr.mxu0 0.0
      %2112 = vmatpush1.msra.mxu0 0.0
      %2113 = vmatprep.subr.mxu0 0.0
      %2114 = vmatpush1.msra.mxu0 0.0
      %2115 = vmatprep.subr.mxu0 0.0
      %2116 = vmatpush1.msra.mxu0 0.0
      %2117 = vmatprep.subr.mxu0 0.0
      %2118 = vmatpush1.msra.mxu0 0.0
      %2119 = vmatprep.subr.mxu0 0.0
      %2120 = vmatpush1.msra.mxu0 0.0
      %2121 = vmatprep.subr.mxu0 0.0
      %2122 = vmatpush1.msra.mxu0 0.0
      %2123 = vmatprep.subr.mxu0 0.0
      %2124 = vmatpush1.msra.mxu0 0.0
      %2125 = vmatprep.subr.mxu0 0.0
      %2126 = vmatpush1.msra.mxu0 0.0
      %2127 = vmatprep.subr.mxu0 0.0
      %2128 = vmatpush1.msra.mxu0 0.0
      %2129 = vmatprep.subr.mxu0 0.0
      %2130 = vmatpush1.msra.mxu0 0.0
      %2131 = vmatprep.subr.mxu0 0.0
      %2132 = vmatpush1.msra.mxu0 0.0
      %2133 = vmatprep.subr.mxu0 0.0
      %2134 = vmatpush1.msra.mxu0 0.0
      %2135 = vmatprep.subr.mxu0 0.0
      %2136 = vmatpush1.msra.mxu0 0.0
      %2137 = vmatprep.subr.mxu0 0.0
      %2138 = vmatpush1.msra.mxu0 0.0
      %2139 = vmatprep.subr.mxu0 0.0
      %2140 = vmatpush1.msra.mxu0 0.0
      %2141 = vmatprep.subr.mxu0 0.0
      %2142 = vmatpush1.msra.mxu0 0.0
      %2143 = vmatprep.subr.mxu0 0.0
      %2144 = vmatpush1.msra.mxu0 0.0
      %2145 = vmatprep.mubr.f32.mxu0 0.0
      %2146 = vmatmul.mubr.f32.gmra.mrb[0].mxu0 %v2079
      %v2147 = vpop.f32.mrb[0].mxu0
      %v2148 = vadd.f32 0.0, %v2147
      %v2149 = vpop.f32.mrb[0].mxu0
      %2150 = vdwg.mxu0
      %v2151 = vmax.f32 %v2075, %v2148
      %s2152 = scalar_lea.vmem %s4, 20
      %v2153 = vld [vmem:[%s2152] sm:$0xf]
      %v2155 = vsel %vm1770, %v2153, 0
      %2157 = vmatprep.subr.mxu0 0.0
      %2158 = vmatpush1.msra.mxu0 %v1765
      %2159 = vmatprep.subr.mxu0 0.0
      %2160 = vmatpush1.msra.mxu0 %v1766
      %2161 = vmatprep.subr.mxu0 0.0
      %2162 = vmatpush1.msra.mxu0 %v1767
      %2163 = vmatprep.subr.mxu0 0.0
      %2164 = vmatpush1.msra.mxu0 %v1776
      %2165 = vmatprep.subr.mxu0 0.0
      %2166 = vmatpush1.msra.mxu0 0.0
      %2167 = vmatprep.subr.mxu0 0.0
      %2168 = vmatpush1.msra.mxu0 0.0
      %2169 = vmatprep.subr.mxu0 0.0
      %2170 = vmatpush1.msra.mxu0 0.0
      %2171 = vmatprep.subr.mxu0 0.0
      %2172 = vmatpush1.msra.mxu0 0.0
      %2173 = vmatprep.subr.mxu0 0.0
      %2174 = vmatpush1.msra.mxu0 0.0
      %2175 = vmatprep.subr.mxu0 0.0
      %2176 = vmatpush1.msra.mxu0 0.0
      %2177 = vmatprep.subr.mxu0 0.0
      %2178 = vmatpush1.msra.mxu0 0.0
      %2179 = vmatprep.subr.mxu0 0.0
      %2180 = vmatpush1.msra.mxu0 0.0
      %2181 = vmatprep.subr.mxu0 0.0
      %2182 = vmatpush1.msra.mxu0 0.0
      %2183 = vmatprep.subr.mxu0 0.0
      %2184 = vmatpush1.msra.mxu0 0.0
      %2185 = vmatprep.subr.mxu0 0.0
      %2186 = vmatpush1.msra.mxu0 0.0
      %2187 = vmatprep.subr.mxu0 0.0
      %2188 = vmatpush1.msra.mxu0 0.0
      %2189 = vmatprep.subr.mxu0 0.0
      %2190 = vmatpush1.msra.mxu0 0.0
      %2191 = vmatprep.subr.mxu0 0.0
      %2192 = vmatpush1.msra.mxu0 0.0
      %2193 = vmatprep.subr.mxu0 0.0
      %2194 = vmatpush1.msra.mxu0 0.0
      %2195 = vmatprep.subr.mxu0 0.0
      %2196 = vmatpush1.msra.mxu0 0.0
      %2197 = vmatprep.subr.mxu0 0.0
      %2198 = vmatpush1.msra.mxu0 0.0
      %2199 = vmatprep.subr.mxu0 0.0
      %2200 = vmatpush1.msra.mxu0 0.0
      %2201 = vmatprep.subr.mxu0 0.0
      %2202 = vmatpush1.msra.mxu0 0.0
      %2203 = vmatprep.subr.mxu0 0.0
      %2204 = vmatpush1.msra.mxu0 0.0
      %2205 = vmatprep.subr.mxu0 0.0
      %2206 = vmatpush1.msra.mxu0 0.0
      %2207 = vmatprep.subr.mxu0 0.0
      %2208 = vmatpush1.msra.mxu0 0.0
      %2209 = vmatprep.subr.mxu0 0.0
      %2210 = vmatpush1.msra.mxu0 0.0
      %2211 = vmatprep.subr.mxu0 0.0
      %2212 = vmatpush1.msra.mxu0 0.0
      %2213 = vmatprep.subr.mxu0 0.0
      %2214 = vmatpush1.msra.mxu0 0.0
      %2215 = vmatprep.subr.mxu0 0.0
      %2216 = vmatpush1.msra.mxu0 0.0
      %2217 = vmatprep.subr.mxu0 0.0
      %2218 = vmatpush1.msra.mxu0 0.0
      %2219 = vmatprep.subr.mxu0 0.0
      %2220 = vmatpush1.msra.mxu0 0.0
      %2221 = vmatprep.mubr.f32.mxu0 0.0
      %2222 = vmatmul.mubr.f32.gmra.mrb[0].mxu0 %v2155
      %v2223 = vpop.f32.mrb[0].mxu0
      %v2224 = vadd.f32 0.0, %v2223
      %v2225 = vpop.f32.mrb[0].mxu0
      %2226 = vdwg.mxu0
      %v2227 = vmax.f32 %v2151, %v2224
      %s2228 = scalar_lea.vmem %s4, 24
      %v2229 = vld [vmem:[%s2228] sm:$0xf]
      %v2231 = vsel %vm1770, %v2229, 0
      %2233 = vmatprep.subr.mxu0 0.0
      %2234 = vmatpush1.msra.mxu0 %v1765
      %2235 = vmatprep.subr.mxu0 0.0
      %2236 = vmatpush1.msra.mxu0 %v1766
      %2237 = vmatprep.subr.mxu0 0.0
      %2238 = vmatpush1.msra.mxu0 %v1767
      %2239 = vmatprep.subr.mxu0 0.0
      %2240 = vmatpush1.msra.mxu0 %v1776
      %2241 = vmatprep.subr.mxu0 0.0
      %2242 = vmatpush1.msra.mxu0 0.0
      %2243 = vmatprep.subr.mxu0 0.0
      %2244 = vmatpush1.msra.mxu0 0.0
      %2245 = vmatprep.subr.mxu0 0.0
      %2246 = vmatpush1.msra.mxu0 0.0
      %2247 = vmatprep.subr.mxu0 0.0
      %2248 = vmatpush1.msra.mxu0 0.0
      %2249 = vmatprep.subr.mxu0 0.0
      %2250 = vmatpush1.msra.mxu0 0.0
      %2251 = vmatprep.subr.mxu0 0.0
      %2252 = vmatpush1.msra.mxu0 0.0
      %2253 = vmatprep.subr.mxu0 0.0
      %2254 = vmatpush1.msra.mxu0 0.0
      %2255 = vmatprep.subr.mxu0 0.0
      %2256 = vmatpush1.msra.mxu0 0.0
      %2257 = vmatprep.subr.mxu0 0.0
      %2258 = vmatpush1.msra.mxu0 0.0
      %2259 = vmatprep.subr.mxu0 0.0
      %2260 = vmatpush1.msra.mxu0 0.0
      %2261 = vmatprep.subr.mxu0 0.0
      %2262 = vmatpush1.msra.mxu0 0.0
      %2263 = vmatprep.subr.mxu0 0.0
      %2264 = vmatpush1.msra.mxu0 0.0
      %2265 = vmatprep.subr.mxu0 0.0
      %2266 = vmatpush1.msra.mxu0 0.0
      %2267 = vmatprep.subr.mxu0 0.0
      %2268 = vmatpush1.msra.mxu0 0.0
      %2269 = vmatprep.subr.mxu0 0.0
      %2270 = vmatpush1.msra.mxu0 0.0
      %2271 = vmatprep.subr.mxu0 0.0
      %2272 = vmatpush1.msra.mxu0 0.0
      %2273 = vmatprep.subr.mxu0 0.0
      %2274 = vmatpush1.msra.mxu0 0.0
      %2275 = vmatprep.subr.mxu0 0.0
      %2276 = vmatpush1.msra.mxu0 0.0
      %2277 = vmatprep.subr.mxu0 0.0
      %2278 = vmatpush1.msra.mxu0 0.0
      %2279 = vmatprep.subr.mxu0 0.0
      %2280 = vmatpush1.msra.mxu0 0.0
      %2281 = vmatprep.subr.mxu0 0.0
      %2282 = vmatpush1.msra.mxu0 0.0
      %2283 = vmatprep.subr.mxu0 0.0
      %2284 = vmatpush1.msra.mxu0 0.0
      %2285 = vmatprep.subr.mxu0 0.0
      %2286 = vmatpush1.msra.mxu0 0.0
      %2287 = vmatprep.subr.mxu0 0.0
      %2288 = vmatpush1.msra.mxu0 0.0
      %2289 = vmatprep.subr.mxu0 0.0
      %2290 = vmatpush1.msra.mxu0 0.0
      %2291 = vmatprep.subr.mxu0 0.0
      %2292 = vmatpush1.msra.mxu0 0.0
      %2293 = vmatprep.subr.mxu0 0.0
      %2294 = vmatpush1.msra.mxu0 0.0
      %2295 = vmatprep.subr.mxu0 0.0
      %2296 = vmatpush1.msra.mxu0 0.0
      %2297 = vmatprep.mubr.f32.mxu0 0.0
      %2298 = vmatmul.mubr.f32.gmra.mrb[0].mxu0 %v2231
      %v2299 = vpop.f32.mrb[0].mxu0
      %v2300 = vadd.f32 0.0, %v2299
      %v2301 = vpop.f32.mrb[0].mxu0
      %2302 = vdwg.mxu0
      %v2303 = vmax.f32 %v2227, %v2300
      %v2304 = vld [vmem:[%s7] sm:$0x7]
      %vm2305 = vcmask 23552
      %v2307 = vsel %vm2305, %v2303, 0
      %vm2309 = vcmask 1042432
      %v2311 = vsel %vm2309, %v2304, 0
      %2313 = vmatprep.subr.mxu0 0.0
      %2314 = vmatpush1.msra.mxu0 %v2311
      %2315 = vmatprep.subr.mxu0 0.0
      %2316 = vmatpush1.msra.mxu0 0.0
      %2317 = vmatprep.subr.mxu0 0.0
      %2318 = vmatpush1.msra.mxu0 0.0
      %2319 = vmatprep.subr.mxu0 0.0
      %2320 = vmatpush1.msra.mxu0 0.0
      %2321 = vmatprep.subr.mxu0 0.0
      %2322 = vmatpush1.msra.mxu0 0.0
      %2323 = vmatprep.subr.mxu0 0.0
      %2324 = vmatpush1.msra.mxu0 0.0
      %2325 = vmatprep.subr.mxu0 0.0
      %2326 = vmatpush1.msra.mxu0 0.0
      %2327 = vmatprep.subr.mxu0 0.0
      %2328 = vmatpush1.msra.mxu0 0.0
      %2329 = vmatprep.subr.mxu0 0.0
      %2330 = vmatpush1.msra.mxu0 0.0
      %2331 = vmatprep.subr.mxu0 0.0
      %2332 = vmatpush1.msra.mxu0 0.0
      %2333 = vmatprep.subr.mxu0 0.0
      %2334 = vmatpush1.msra.mxu0 0.0
      %2335 = vmatprep.subr.mxu0 0.0
      %2336 = vmatpush1.msra.mxu0 0.0
      %2337 = vmatprep.subr.mxu0 0.0
      %2338 = vmatpush1.msra.mxu0 0.0
      %2339 = vmatprep.subr.mxu0 0.0
      %2340 = vmatpush1.msra.mxu0 0.0
      %2341 = vmatprep.subr.mxu0 0.0
      %2342 = vmatpush1.msra.mxu0 0.0
      %2343 = vmatprep.subr.mxu0 0.0
      %2344 = vmatpush1.msra.mxu0 0.0
      %2345 = vmatprep.subr.mxu0 0.0
      %2346 = vmatpush1.msra.mxu0 0.0
      %2347 = vmatprep.subr.mxu0 0.0
      %2348 = vmatpush1.msra.mxu0 0.0
      %2349 = vmatprep.subr.mxu0 0.0
      %2350 = vmatpush1.msra.mxu0 0.0
      %2351 = vmatprep.subr.mxu0 0.0
      %2352 = vmatpush1.msra.mxu0 0.0
      %2353 = vmatprep.subr.mxu0 0.0
      %2354 = vmatpush1.msra.mxu0 0.0
      %2355 = vmatprep.subr.mxu0 0.0
      %2356 = vmatpush1.msra.mxu0 0.0
      %2357 = vmatprep.subr.mxu0 0.0
      %2358 = vmatpush1.msra.mxu0 0.0
      %2359 = vmatprep.subr.mxu0 0.0
      %2360 = vmatpush1.msra.mxu0 0.0
      %2361 = vmatprep.subr.mxu0 0.0
      %2362 = vmatpush1.msra.mxu0 0.0
      %2363 = vmatprep.subr.mxu0 0.0
      %2364 = vmatpush1.msra.mxu0 0.0
      %2365 = vmatprep.subr.mxu0 0.0
      %2366 = vmatpush1.msra.mxu0 0.0
      %2367 = vmatprep.subr.mxu0 0.0
      %2368 = vmatpush1.msra.mxu0 0.0
      %2369 = vmatprep.subr.mxu0 0.0
      %2370 = vmatpush1.msra.mxu0 0.0
      %2371 = vmatprep.subr.mxu0 0.0
      %2372 = vmatpush1.msra.mxu0 0.0
      %2373 = vmatprep.subr.mxu0 0.0
      %2374 = vmatpush1.msra.mxu0 0.0
      %2375 = vmatprep.subr.mxu0 0.0
      %2376 = vmatpush1.msra.mxu0 0.0
      %2377 = vmatprep.mubr.f32.mxu0 0.0
      %2378 = vmatmul.mubr.f32.gmra.mrb[0].mxu0 %v2307
      %v2379 = vpop.f32.mrb[0].mxu0
      %v2380 = vadd.f32 0.0, %v2379
      %v2381 = vpop.f32.mrb[0].mxu0
      %2382 = vdwg.mxu0
      %v2383 = vld [vmem:[%s6] sm:$0xf]
      %s2384 = scalar_lea.vmem %s7, 4
      %v2385 = vld [vmem:[%s2384] sm:$0x7]
      %v2387 = vsel %vm2309, %v2385, 0
      %2389 = vmatprep.subr.mxu0 0.0
      %2390 = vmatpush1.msra.mxu0 %v2387
      %2391 = vmatprep.subr.mxu0 0.0
      %2392 = vmatpush1.msra.mxu0 0.0
      %2393 = vmatprep.subr.mxu0 0.0
      %2394 = vmatpush1.msra.mxu0 0.0
      %2395 = vmatprep.subr.mxu0 0.0
      %2396 = vmatpush1.msra.mxu0 0.0
      %2397 = vmatprep.subr.mxu0 0.0
      %2398 = vmatpush1.msra.mxu0 0.0
      %2399 = vmatprep.subr.mxu0 0.0
      %2400 = vmatpush1.msra.mxu0 0.0
      %2401 = vmatprep.subr.mxu0 0.0
      %2402 = vmatpush1.msra.mxu0 0.0
      %2403 = vmatprep.subr.mxu0 0.0
      %2404 = vmatpush1.msra.mxu0 0.0
      %2405 = vmatprep.subr.mxu0 0.0
      %2406 = vmatpush1.msra.mxu0 0.0
      %2407 = vmatprep.subr.mxu0 0.0
      %2408 = vmatpush1.msra.mxu0 0.0
      %2409 = vmatprep.subr.mxu0 0.0
      %2410 = vmatpush1.msra.mxu0 0.0
      %2411 = vmatprep.subr.mxu0 0.0
      %2412 = vmatpush1.msra.mxu0 0.0
      %2413 = vmatprep.subr.mxu0 0.0
      %2414 = vmatpush1.msra.mxu0 0.0
      %2415 = vmatprep.subr.mxu0 0.0
      %2416 = vmatpush1.msra.mxu0 0.0
      %2417 = vmatprep.subr.mxu0 0.0
      %2418 = vmatpush1.msra.mxu0 0.0
      %2419 = vmatprep.subr.mxu0 0.0
      %2420 = vmatpush1.msra.mxu0 0.0
      %2421 = vmatprep.subr.mxu0 0.0
      %2422 = vmatpush1.msra.mxu0 0.0
      %2423 = vmatprep.subr.mxu0 0.0
      %2424 = vmatpush1.msra.mxu0 0.0
      %2425 = vmatprep.subr.mxu0 0.0
      %2426 = vmatpush1.msra.mxu0 0.0
      %2427 = vmatprep.subr.mxu0 0.0
      %2428 = vmatpush1.msra.mxu0 0.0
      %2429 = vmatprep.subr.mxu0 0.0
      %2430 = vmatpush1.msra.mxu0 0.0
      %2431 = vmatprep.subr.mxu0 0.0
      %2432 = vmatpush1.msra.mxu0 0.0
      %2433 = vmatprep.subr.mxu0 0.0
      %2434 = vmatpush1.msra.mxu0 0.0
      %2435 = vmatprep.subr.mxu0 0.0
      %2436 = vmatpush1.msra.mxu0 0.0
      %2437 = vmatprep.subr.mxu0 0.0
      %2438 = vmatpush1.msra.mxu0 0.0
      %2439 = vmatprep.subr.mxu0 0.0
      %2440 = vmatpush1.msra.mxu0 0.0
      %2441 = vmatprep.subr.mxu0 0.0
      %2442 = vmatpush1.msra.mxu0 0.0
      %2443 = vmatprep.subr.mxu0 0.0
      %2444 = vmatpush1.msra.mxu0 0.0
      %2445 = vmatprep.subr.mxu0 0.0
      %2446 = vmatpush1.msra.mxu0 0.0
      %2447 = vmatprep.subr.mxu0 0.0
      %2448 = vmatpush1.msra.mxu0 0.0
      %2449 = vmatprep.subr.mxu0 0.0
      %2450 = vmatpush1.msra.mxu0 0.0
      %2451 = vmatprep.subr.mxu0 0.0
      %2452 = vmatpush1.msra.mxu0 0.0
      %2453 = vmatprep.mubr.f32.mxu0 0.0
      %2454 = vmatmul.mubr.f32.gmra.mrb[0].mxu0 %v2307
      %v2455 = vpop.f32.mrb[0].mxu0
      %v2456 = vadd.f32 0.0, %v2455
      %v2457 = vpop.f32.mrb[0].mxu0
      %2458 = vdwg.mxu0
      %s2459 = scalar_lea.vmem %s6, 4
      %v2460 = vld [vmem:[%s2459] sm:$0xf]
      %vm2461 = vcmask 31744
      %v2463 = vsel %vm2461, %v2460, 0
      %v2466 = vsel %vm1774, %v2456, 0
      %2468 = vmatprep.subr.mxu0 0.0
      %2469 = vmatpush1.msra.mxu0 %v2466
      %2470 = vmatprep.subr.mxu0 0.0
      %2471 = vmatpush1.msra.mxu0 0.0
      %2472 = vmatprep.subr.mxu0 0.0
      %2473 = vmatpush1.msra.mxu0 0.0
      %2474 = vmatprep.subr.mxu0 0.0
      %2475 = vmatpush1.msra.mxu0 0.0
      %2476 = vmatprep.subr.mxu0 0.0
      %2477 = vmatpush1.msra.mxu0 0.0
      %2478 = vmatprep.subr.mxu0 0.0
      %2479 = vmatpush1.msra.mxu0 0.0
      %2480 = vmatprep.subr.mxu0 0.0
      %2481 = vmatpush1.msra.mxu0 0.0
      %2482 = vmatprep.subr.mxu0 0.0
      %2483 = vmatpush1.msra.mxu0 0.0
      %2484 = vmatprep.subr.mxu0 0.0
      %2485 = vmatpush1.msra.mxu0 0.0
      %2486 = vmatprep.subr.mxu0 0.0
      %2487 = vmatpush1.msra.mxu0 0.0
      %2488 = vmatprep.subr.mxu0 0.0
      %2489 = vmatpush1.msra.mxu0 0.0
      %2490 = vmatprep.subr.mxu0 0.0
      %2491 = vmatpush1.msra.mxu0 0.0
      %2492 = vmatprep.subr.mxu0 0.0
      %2493 = vmatpush1.msra.mxu0 0.0
      %2494 = vmatprep.subr.mxu0 0.0
      %2495 = vmatpush1.msra.mxu0 0.0
      %2496 = vmatprep.subr.mxu0 0.0
      %2497 = vmatpush1.msra.mxu0 0.0
      %2498 = vmatprep.subr.mxu0 0.0
      %2499 = vmatpush1.msra.mxu0 0.0
      %2500 = vmatprep.subr.mxu0 0.0
      %2501 = vmatpush1.msra.mxu0 0.0
      %2502 = vmatprep.subr.mxu0 0.0
      %2503 = vmatpush1.msra.mxu0 0.0
      %2504 = vmatprep.subr.mxu0 0.0
      %2505 = vmatpush1.msra.mxu0 0.0
      %2506 = vmatprep.subr.mxu0 0.0
      %2507 = vmatpush1.msra.mxu0 0.0
      %2508 = vmatprep.subr.mxu0 0.0
      %2509 = vmatpush1.msra.mxu0 0.0
      %2510 = vmatprep.subr.mxu0 0.0
      %2511 = vmatpush1.msra.mxu0 0.0
      %2512 = vmatprep.subr.mxu0 0.0
      %2513 = vmatpush1.msra.mxu0 0.0
      %2514 = vmatprep.subr.mxu0 0.0
      %2515 = vmatpush1.msra.mxu0 0.0
      %2516 = vmatprep.subr.mxu0 0.0
      %2517 = vmatpush1.msra.mxu0 0.0
      %2518 = vmatprep.subr.mxu0 0.0
      %2519 = vmatpush1.msra.mxu0 0.0
      %2520 = vmatprep.subr.mxu0 0.0
      %2521 = vmatpush1.msra.mxu0 0.0
      %2522 = vmatprep.subr.mxu0 0.0
      %2523 = vmatpush1.msra.mxu0 0.0
      %2524 = vmatprep.subr.mxu0 0.0
      %2525 = vmatpush1.msra.mxu0 0.0
      %2526 = vmatprep.subr.mxu0 0.0
      %2527 = vmatpush1.msra.mxu0 0.0
      %2528 = vmatprep.subr.mxu0 0.0
      %2529 = vmatpush1.msra.mxu0 0.0
      %2530 = vmatprep.subr.mxu0 0.0
      %2531 = vmatpush1.msra.mxu0 0.0
      %2532 = vmatprep.mubr.f32.mxu0 0.0
      %2533 = vmatmul.mubr.f32.gmra.mrb[0].mxu0 %v2463
      %v2534 = vpop.f32.mrb[0].mxu0
      %v2535 = vadd.f32 0.0, %v2534
      %v2536 = vpop.f32.mrb[0].mxu0
      %2537 = vdwg.mxu0
      %v2539 = vsel %vm2461, %v2383, 0
      %v2542 = vsel %vm1774, %v2380, 0
      %2544 = vmatprep.subr.mxu0 0.0
      %2545 = vmatpush1.msra.mxu0 %v2542
      %2546 = vmatprep.subr.mxu0 0.0
      %2547 = vmatpush1.msra.mxu0 0.0
      %2548 = vmatprep.subr.mxu0 0.0
      %2549 = vmatpush1.msra.mxu0 0.0
      %2550 = vmatprep.subr.mxu0 0.0
      %2551 = vmatpush1.msra.mxu0 0.0
      %2552 = vmatprep.subr.mxu0 0.0
      %2553 = vmatpush1.msra.mxu0 0.0
      %2554 = vmatprep.subr.mxu0 0.0
      %2555 = vmatpush1.msra.mxu0 0.0
      %2556 = vmatprep.subr.mxu0 0.0
      %2557 = vmatpush1.msra.mxu0 0.0
      %2558 = vmatprep.subr.mxu0 0.0
      %2559 = vmatpush1.msra.mxu0 0.0
      %2560 = vmatprep.subr.mxu0 0.0
      %2561 = vmatpush1.msra.mxu0 0.0
      %2562 = vmatprep.subr.mxu0 0.0
      %2563 = vmatpush1.msra.mxu0 0.0
      %2564 = vmatprep.subr.mxu0 0.0
      %2565 = vmatpush1.msra.mxu0 0.0
      %2566 = vmatprep.subr.mxu0 0.0
      %2567 = vmatpush1.msra.mxu0 0.0
      %2568 = vmatprep.subr.mxu0 0.0
      %2569 = vmatpush1.msra.mxu0 0.0
      %2570 = vmatprep.subr.mxu0 0.0
      %2571 = vmatpush1.msra.mxu0 0.0
      %2572 = vmatprep.subr.mxu0 0.0
      %2573 = vmatpush1.msra.mxu0 0.0
      %2574 = vmatprep.subr.mxu0 0.0
      %2575 = vmatpush1.msra.mxu0 0.0
      %2576 = vmatprep.subr.mxu0 0.0
      %2577 = vmatpush1.msra.mxu0 0.0
      %2578 = vmatprep.subr.mxu0 0.0
      %2579 = vmatpush1.msra.mxu0 0.0
      %2580 = vmatprep.subr.mxu0 0.0
      %2581 = vmatpush1.msra.mxu0 0.0
      %2582 = vmatprep.subr.mxu0 0.0
      %2583 = vmatpush1.msra.mxu0 0.0
      %2584 = vmatprep.subr.mxu0 0.0
      %2585 = vmatpush1.msra.mxu0 0.0
      %2586 = vmatprep.subr.mxu0 0.0
      %2587 = vmatpush1.msra.mxu0 0.0
      %2588 = vmatprep.subr.mxu0 0.0
      %2589 = vmatpush1.msra.mxu0 0.0
      %2590 = vmatprep.subr.mxu0 0.0
      %2591 = vmatpush1.msra.mxu0 0.0
      %2592 = vmatprep.subr.mxu0 0.0
      %2593 = vmatpush1.msra.mxu0 0.0
      %2594 = vmatprep.subr.mxu0 0.0
      %2595 = vmatpush1.msra.mxu0 0.0
      %2596 = vmatprep.subr.mxu0 0.0
      %2597 = vmatpush1.msra.mxu0 0.0
      %2598 = vmatprep.subr.mxu0 0.0
      %2599 = vmatpush1.msra.mxu0 0.0
      %2600 = vmatprep.subr.mxu0 0.0
      %2601 = vmatpush1.msra.mxu0 0.0
      %2602 = vmatprep.subr.mxu0 0.0
      %2603 = vmatpush1.msra.mxu0 0.0
      %2604 = vmatprep.subr.mxu0 0.0
      %2605 = vmatpush1.msra.mxu0 0.0
      %2606 = vmatprep.subr.mxu0 0.0
      %2607 = vmatpush1.msra.mxu0 0.0
      %2608 = vmatprep.mubr.f32.mxu0 0.0
      %2609 = vmatmul.mubr.f32.gmra.mrb[0].mxu0 %v2539
      %v2610 = vpop.f32.mrb[0].mxu0
      %v2611 = vadd.f32 %v2535, %v2610
      %v2612 = vpop.f32.mrb[0].mxu0
      %2613 = vdwg.mxu0
      %s2614 = scalar_lea.vmem %s7, 8
      %v2615 = vld [vmem:[%s2614] sm:$0x7]
      %v2617 = vsel %vm2309, %v2615, 0
      %2619 = vmatprep.subr.mxu0 0.0
      %2620 = vmatpush1.msra.mxu0 %v2617
      %2621 = vmatprep.subr.mxu0 0.0
      %2622 = vmatpush1.msra.mxu0 0.0
      %2623 = vmatprep.subr.mxu0 0.0
      %2624 = vmatpush1.msra.mxu0 0.0
      %2625 = vmatprep.subr.mxu0 0.0
      %2626 = vmatpush1.msra.mxu0 0.0
      %2627 = vmatprep.subr.mxu0 0.0
      %2628 = vmatpush1.msra.mxu0 0.0
      %2629 = vmatprep.subr.mxu0 0.0
      %2630 = vmatpush1.msra.mxu0 0.0
      %2631 = vmatprep.subr.mxu0 0.0
      %2632 = vmatpush1.msra.mxu0 0.0
      %2633 = vmatprep.subr.mxu0 0.0
      %2634 = vmatpush1.msra.mxu0 0.0
      %2635 = vmatprep.subr.mxu0 0.0
      %2636 = vmatpush1.msra.mxu0 0.0
      %2637 = vmatprep.subr.mxu0 0.0
      %2638 = vmatpush1.msra.mxu0 0.0
      %2639 = vmatprep.subr.mxu0 0.0
      %2640 = vmatpush1.msra.mxu0 0.0
      %2641 = vmatprep.subr.mxu0 0.0
      %2642 = vmatpush1.msra.mxu0 0.0
      %2643 = vmatprep.subr.mxu0 0.0
      %2644 = vmatpush1.msra.mxu0 0.0
      %2645 = vmatprep.subr.mxu0 0.0
      %2646 = vmatpush1.msra.mxu0 0.0
      %2647 = vmatprep.subr.mxu0 0.0
      %2648 = vmatpush1.msra.mxu0 0.0
      %2649 = vmatprep.subr.mxu0 0.0
      %2650 = vmatpush1.msra.mxu0 0.0
      %2651 = vmatprep.subr.mxu0 0.0
      %2652 = vmatpush1.msra.mxu0 0.0
      %2653 = vmatprep.subr.mxu0 0.0
      %2654 = vmatpush1.msra.mxu0 0.0
      %2655 = vmatprep.subr.mxu0 0.0
      %2656 = vmatpush1.msra.mxu0 0.0
      %2657 = vmatprep.subr.mxu0 0.0
      %2658 = vmatpush1.msra.mxu0 0.0
      %2659 = vmatprep.subr.mxu0 0.0
      %2660 = vmatpush1.msra.mxu0 0.0
      %2661 = vmatprep.subr.mxu0 0.0
      %2662 = vmatpush1.msra.mxu0 0.0
      %2663 = vmatprep.subr.mxu0 0.0
      %2664 = vmatpush1.msra.mxu0 0.0
      %2665 = vmatprep.subr.mxu0 0.0
      %2666 = vmatpush1.msra.mxu0 0.0
      %2667 = vmatprep.subr.mxu0 0.0
      %2668 = vmatpush1.msra.mxu0 0.0
      %2669 = vmatprep.subr.mxu0 0.0
      %2670 = vmatpush1.msra.mxu0 0.0
      %2671 = vmatprep.subr.mxu0 0.0
      %2672 = vmatpush1.msra.mxu0 0.0
      %2673 = vmatprep.subr.mxu0 0.0
      %2674 = vmatpush1.msra.mxu0 0.0
      %2675 = vmatprep.subr.mxu0 0.0
      %2676 = vmatpush1.msra.mxu0 0.0
      %2677 = vmatprep.subr.mxu0 0.0
      %2678 = vmatpush1.msra.mxu0 0.0
      %2679 = vmatprep.subr.mxu0 0.0
      %2680 = vmatpush1.msra.mxu0 0.0
      %2681 = vmatprep.subr.mxu0 0.0
      %2682 = vmatpush1.msra.mxu0 0.0
      %2683 = vmatprep.mubr.f32.mxu0 0.0
      %2684 = vmatmul.mubr.f32.gmra.mrb[0].mxu0 %v2307
      %v2685 = vpop.f32.mrb[0].mxu0
      %v2686 = vadd.f32 0.0, %v2685
      %v2687 = vpop.f32.mrb[0].mxu0
      %2688 = vdwg.mxu0
      %s2689 = scalar_lea.vmem %s6, 8
      %v2690 = vld [vmem:[%s2689] sm:$0xf]
      %v2692 = vsel %vm2461, %v2690, 0
      %v2695 = vsel %vm1774, %v2686, 0
      %2697 = vmatprep.subr.mxu0 0.0
      %2698 = vmatpush1.msra.mxu0 %v2695
      %2699 = vmatprep.subr.mxu0 0.0
      %2700 = vmatpush1.msra.mxu0 0.0
      %2701 = vmatprep.subr.mxu0 0.0
      %2702 = vmatpush1.msra.mxu0 0.0
      %2703 = vmatprep.subr.mxu0 0.0
      %2704 = vmatpush1.msra.mxu0 0.0
      %2705 = vmatprep.subr.mxu0 0.0
      %2706 = vmatpush1.msra.mxu0 0.0
      %2707 = vmatprep.subr.mxu0 0.0
      %2708 = vmatpush1.msra.mxu0 0.0
      %2709 = vmatprep.subr.mxu0 0.0
      %2710 = vmatpush1.msra.mxu0 0.0
      %2711 = vmatprep.subr.mxu0 0.0
      %2712 = vmatpush1.msra.mxu0 0.0
      %2713 = vmatprep.subr.mxu0 0.0
      %2714 = vmatpush1.msra.mxu0 0.0
      %2715 = vmatprep.subr.mxu0 0.0
      %2716 = vmatpush1.msra.mxu0 0.0
      %2717 = vmatprep.subr.mxu0 0.0
      %2718 = vmatpush1.msra.mxu0 0.0
      %2719 = vmatprep.subr.mxu0 0.0
      %2720 = vmatpush1.msra.mxu0 0.0
      %2721 = vmatprep.subr.mxu0 0.0
      %2722 = vmatpush1.msra.mxu0 0.0
      %2723 = vmatprep.subr.mxu0 0.0
      %2724 = vmatpush1.msra.mxu0 0.0
      %2725 = vmatprep.subr.mxu0 0.0
      %2726 = vmatpush1.msra.mxu0 0.0
      %2727 = vmatprep.subr.mxu0 0.0
      %2728 = vmatpush1.msra.mxu0 0.0
      %2729 = vmatprep.subr.mxu0 0.0
      %2730 = vmatpush1.msra.mxu0 0.0
      %2731 = vmatprep.subr.mxu0 0.0
      %2732 = vmatpush1.msra.mxu0 0.0
      %2733 = vmatprep.subr.mxu0 0.0
      %2734 = vmatpush1.msra.mxu0 0.0
      %2735 = vmatprep.subr.mxu0 0.0
      %2736 = vmatpush1.msra.mxu0 0.0
      %2737 = vmatprep.subr.mxu0 0.0
      %2738 = vmatpush1.msra.mxu0 0.0
      %2739 = vmatprep.subr.mxu0 0.0
      %2740 = vmatpush1.msra.mxu0 0.0
      %2741 = vmatprep.subr.mxu0 0.0
      %2742 = vmatpush1.msra.mxu0 0.0
      %2743 = vmatprep.subr.mxu0 0.0
      %2744 = vmatpush1.msra.mxu0 0.0
      %2745 = vmatprep.subr.mxu0 0.0
      %2746 = vmatpush1.msra.mxu0 0.0
      %2747 = vmatprep.subr.mxu0 0.0
      %2748 = vmatpush1.msra.mxu0 0.0
      %2749 = vmatprep.subr.mxu0 0.0
      %2750 = vmatpush1.msra.mxu0 0.0
      %2751 = vmatprep.subr.mxu0 0.0
      %2752 = vmatpush1.msra.mxu0 0.0
      %2753 = vmatprep.subr.mxu0 0.0
      %2754 = vmatpush1.msra.mxu0 0.0
      %2755 = vmatprep.subr.mxu0 0.0
      %2756 = vmatpush1.msra.mxu0 0.0
      %2757 = vmatprep.subr.mxu0 0.0
      %2758 = vmatpush1.msra.mxu0 0.0
      %2759 = vmatprep.subr.mxu0 0.0
      %2760 = vmatpush1.msra.mxu0 0.0
      %2761 = vmatprep.mubr.f32.mxu0 0.0
      %2762 = vmatmul.mubr.f32.gmra.mrb[0].mxu0 %v2692
      %v2763 = vpop.f32.mrb[0].mxu0
      %v2764 = vadd.f32 0.0, %v2763
      %v2765 = vpop.f32.mrb[0].mxu0
      %2766 = vdwg.mxu0
      %v2767 = vadd.f32 %v2611, %v2764
      %v2768 = vld [vmem:[%s8] sm:$0xf]
      %2770 = vset.pattern.permute.xlu0 0
      %2771 = vperm.xlu0 %2770, %v2768
      %v2772 = vpop.permute.xlu0 %2771
      %v2774 = vadd.f32 %v2767, %v2772
      %v2775 = vmax.f32 %v2774, 0.0
      %v2777 = vsel %vm2305, %v2775, 0
      %2779 = vmatprep.subr.mxu0 0.0
      %2780 = vmatpush1.msra.mxu0 %v2311
      %2781 = vmatprep.subr.mxu0 0.0
      %2782 = vmatpush1.msra.mxu0 0.0
      %2783 = vmatprep.subr.mxu0 0.0
      %2784 = vmatpush1.msra.mxu0 0.0
      %2785 = vmatprep.subr.mxu0 0.0
      %2786 = vmatpush1.msra.mxu0 0.0
      %2787 = vmatprep.subr.mxu0 0.0
      %2788 = vmatpush1.msra.mxu0 0.0
      %2789 = vmatprep.subr.mxu0 0.0
      %2790 = vmatpush1.msra.mxu0 0.0
      %2791 = vmatprep.subr.mxu0 0.0
      %2792 = vmatpush1.msra.mxu0 0.0
      %2793 = vmatprep.subr.mxu0 0.0
      %2794 = vmatpush1.msra.mxu0 0.0
      %2795 = vmatprep.subr.mxu0 0.0
      %2796 = vmatpush1.msra.mxu0 0.0
      %2797 = vmatprep.subr.mxu0 0.0
      %2798 = vmatpush1.msra.mxu0 0.0
      %2799 = vmatprep.subr.mxu0 0.0
      %2800 = vmatpush1.msra.mxu0 0.0
      %2801 = vmatprep.subr.mxu0 0.0
      %2802 = vmatpush1.msra.mxu0 0.0
      %2803 = vmatprep.subr.mxu0 0.0
      %2804 = vmatpush1.msra.mxu0 0.0
      %2805 = vmatprep.subr.mxu0 0.0
      %2806 = vmatpush1.msra.mxu0 0.0
      %2807 = vmatprep.subr.mxu0 0.0
      %2808 = vmatpush1.msra.mxu0 0.0
      %2809 = vmatprep.subr.mxu0 0.0
      %2810 = vmatpush1.msra.mxu0 0.0
      %2811 = vmatprep.subr.mxu0 0.0
      %2812 = vmatpush1.msra.mxu0 0.0
      %2813 = vmatprep.subr.mxu0 0.0
      %2814 = vmatpush1.msra.mxu0 0.0
      %2815 = vmatprep.subr.mxu0 0.0
      %2816 = vmatpush1.msra.mxu0 0.0
      %2817 = vmatprep.subr.mxu0 0.0
      %2818 = vmatpush1.msra.mxu0 0.0
      %2819 = vmatprep.subr.mxu0 0.0
      %2820 = vmatpush1.msra.mxu0 0.0
      %2821 = vmatprep.subr.mxu0 0.0
      %2822 = vmatpush1.msra.mxu0 0.0
      %2823 = vmatprep.subr.mxu0 0.0
      %2824 = vmatpush1.msra.mxu0 0.0
      %2825 = vmatprep.subr.mxu0 0.0
      %2826 = vmatpush1.msra.mxu0 0.0
      %2827 = vmatprep.subr.mxu0 0.0
      %2828 = vmatpush1.msra.mxu0 0.0
      %2829 = vmatprep.subr.mxu0 0.0
      %2830 = vmatpush1.msra.mxu0 0.0
      %2831 = vmatprep.subr.mxu0 0.0
      %2832 = vmatpush1.msra.mxu0 0.0
      %2833 = vmatprep.subr.mxu0 0.0
      %2834 = vmatpush1.msra.mxu0 0.0
      %2835 = vmatprep.subr.mxu0 0.0
      %2836 = vmatpush1.msra.mxu0 0.0
      %2837 = vmatprep.subr.mxu0 0.0
      %2838 = vmatpush1.msra.mxu0 0.0
      %2839 = vmatprep.subr.mxu0 0.0
      %2840 = vmatpush1.msra.mxu0 0.0
      %2841 = vmatprep.subr.mxu0 0.0
      %2842 = vmatpush1.msra.mxu0 0.0
      %2843 = vmatprep.mubr.f32.mxu0 0.0
      %2844 = vmatmul.mubr.f32.gmra.mrb[0].mxu0 %v2777
      %v2845 = vpop.f32.mrb[0].mxu0
      %v2846 = vadd.f32 0.0, %v2845
      %v2847 = vpop.f32.mrb[0].mxu0
      %2848 = vdwg.mxu0
      %s2849 = scalar_lea.vmem %s6, 12
      %v2850 = vld [vmem:[%s2849] sm:$0xf]
      %2851 = vmatprep.subr.mxu0 0.0
      %2852 = vmatpush1.msra.mxu0 %v2387
      %2853 = vmatprep.subr.mxu0 0.0
      %2854 = vmatpush1.msra.mxu0 0.0
      %2855 = vmatprep.subr.mxu0 0.0
      %2856 = vmatpush1.msra.mxu0 0.0
      %2857 = vmatprep.subr.mxu0 0.0
      %2858 = vmatpush1.msra.mxu0 0.0
      %2859 = vmatprep.subr.mxu0 0.0
      %2860 = vmatpush1.msra.mxu0 0.0
      %2861 = vmatprep.subr.mxu0 0.0
      %2862 = vmatpush1.msra.mxu0 0.0
      %2863 = vmatprep.subr.mxu0 0.0
      %2864 = vmatpush1.msra.mxu0 0.0
      %2865 = vmatprep.subr.mxu0 0.0
      %2866 = vmatpush1.msra.mxu0 0.0
      %2867 = vmatprep.subr.mxu0 0.0
      %2868 = vmatpush1.msra.mxu0 0.0
      %2869 = vmatprep.subr.mxu0 0.0
      %2870 = vmatpush1.msra.mxu0 0.0
      %2871 = vmatprep.subr.mxu0 0.0
      %2872 = vmatpush1.msra.mxu0 0.0
      %2873 = vmatprep.subr.mxu0 0.0
      %2874 = vmatpush1.msra.mxu0 0.0
      %2875 = vmatprep.subr.mxu0 0.0
      %2876 = vmatpush1.msra.mxu0 0.0
      %2877 = vmatprep.subr.mxu0 0.0
      %2878 = vmatpush1.msra.mxu0 0.0
      %2879 = vmatprep.subr.mxu0 0.0
      %2880 = vmatpush1.msra.mxu0 0.0
      %2881 = vmatprep.subr.mxu0 0.0
      %2882 = vmatpush1.msra.mxu0 0.0
      %2883 = vmatprep.subr.mxu0 0.0
      %2884 = vmatpush1.msra.mxu0 0.0
      %2885 = vmatprep.subr.mxu0 0.0
      %2886 = vmatpush1.msra.mxu0 0.0
      %2887 = vmatprep.subr.mxu0 0.0
      %2888 = vmatpush1.msra.mxu0 0.0
      %2889 = vmatprep.subr.mxu0 0.0
      %2890 = vmatpush1.msra.mxu0 0.0
      %2891 = vmatprep.subr.mxu0 0.0
      %2892 = vmatpush1.msra.mxu0 0.0
      %2893 = vmatprep.subr.mxu0 0.0
      %2894 = vmatpush1.msra.mxu0 0.0
      %2895 = vmatprep.subr.mxu0 0.0
      %2896 = vmatpush1.msra.mxu0 0.0
      %2897 = vmatprep.subr.mxu0 0.0
      %2898 = vmatpush1.msra.mxu0 0.0
      %2899 = vmatprep.subr.mxu0 0.0
      %2900 = vmatpush1.msra.mxu0 0.0
      %2901 = vmatprep.subr.mxu0 0.0
      %2902 = vmatpush1.msra.mxu0 0.0
      %2903 = vmatprep.subr.mxu0 0.0
      %2904 = vmatpush1.msra.mxu0 0.0
      %2905 = vmatprep.subr.mxu0 0.0
      %2906 = vmatpush1.msra.mxu0 0.0
      %2907 = vmatprep.subr.mxu0 0.0
      %2908 = vmatpush1.msra.mxu0 0.0
      %2909 = vmatprep.subr.mxu0 0.0
      %2910 = vmatpush1.msra.mxu0 0.0
      %2911 = vmatprep.subr.mxu0 0.0
      %2912 = vmatpush1.msra.mxu0 0.0
      %2913 = vmatprep.subr.mxu0 0.0
      %2914 = vmatpush1.msra.mxu0 0.0
      %2915 = vmatprep.mubr.f32.mxu0 0.0
      %2916 = vmatmul.mubr.f32.gmra.mrb[0].mxu0 %v2777
      %v2917 = vpop.f32.mrb[0].mxu0
      %v2918 = vadd.f32 0.0, %v2917
      %v2919 = vpop.f32.mrb[0].mxu0
      %2920 = vdwg.mxu0
      %s2921 = scalar_lea.vmem %s6, 16
      %v2922 = vld [vmem:[%s2921] sm:$0xf]
      %v2924 = vsel %vm2461, %v2922, 0
      %v2927 = vsel %vm1774, %v2918, 0
      %2929 = vmatprep.subr.mxu0 0.0
      %2930 = vmatpush1.msra.mxu0 %v2927
      %2931 = vmatprep.subr.mxu0 0.0
      %2932 = vmatpush1.msra.mxu0 0.0
      %2933 = vmatprep.subr.mxu0 0.0
      %2934 = vmatpush1.msra.mxu0 0.0
      %2935 = vmatprep.subr.mxu0 0.0
      %2936 = vmatpush1.msra.mxu0 0.0
      %2937 = vmatprep.subr.mxu0 0.0
      %2938 = vmatpush1.msra.mxu0 0.0
      %2939 = vmatprep.subr.mxu0 0.0
      %2940 = vmatpush1.msra.mxu0 0.0
      %2941 = vmatprep.subr.mxu0 0.0
      %2942 = vmatpush1.msra.mxu0 0.0
      %2943 = vmatprep.subr.mxu0 0.0
      %2944 = vmatpush1.msra.mxu0 0.0
      %2945 = vmatprep.subr.mxu0 0.0
      %2946 = vmatpush1.msra.mxu0 0.0
      %2947 = vmatprep.subr.mxu0 0.0
      %2948 = vmatpush1.msra.mxu0 0.0
      %2949 = vmatprep.subr.mxu0 0.0
      %2950 = vmatpush1.msra.mxu0 0.0
      %2951 = vmatprep.subr.mxu0 0.0
      %2952 = vmatpush1.msra.mxu0 0.0
      %2953 = vmatprep.subr.mxu0 0.0
      %2954 = vmatpush1.msra.mxu0 0.0
      %2955 = vmatprep.subr.mxu0 0.0
      %2956 = vmatpush1.msra.mxu0 0.0
      %2957 = vmatprep.subr.mxu0 0.0
      %2958 = vmatpush1.msra.mxu0 0.0
      %2959 = vmatprep.subr.mxu0 0.0
      %2960 = vmatpush1.msra.mxu0 0.0
      %2961 = vmatprep.subr.mxu0 0.0
      %2962 = vmatpush1.msra.mxu0 0.0
      %2963 = vmatprep.subr.mxu0 0.0
      %2964 = vmatpush1.msra.mxu0 0.0
      %2965 = vmatprep.subr.mxu0 0.0
      %2966 = vmatpush1.msra.mxu0 0.0
      %2967 = vmatprep.subr.mxu0 0.0
      %2968 = vmatpush1.msra.mxu0 0.0
      %2969 = vmatprep.subr.mxu0 0.0
      %2970 = vmatpush1.msra.mxu0 0.0
      %2971 = vmatprep.subr.mxu0 0.0
      %2972 = vmatpush1.msra.mxu0 0.0
      %2973 = vmatprep.subr.mxu0 0.0
      %2974 = vmatpush1.msra.mxu0 0.0
      %2975 = vmatprep.subr.mxu0 0.0
      %2976 = vmatpush1.msra.mxu0 0.0
      %2977 = vmatprep.subr.mxu0 0.0
      %2978 = vmatpush1.msra.mxu0 0.0
      %2979 = vmatprep.subr.mxu0 0.0
      %2980 = vmatpush1.msra.mxu0 0.0
      %2981 = vmatprep.subr.mxu0 0.0
      %2982 = vmatpush1.msra.mxu0 0.0
      %2983 = vmatprep.subr.mxu0 0.0
      %2984 = vmatpush1.msra.mxu0 0.0
      %2985 = vmatprep.subr.mxu0 0.0
      %2986 = vmatpush1.msra.mxu0 0.0
      %2987 = vmatprep.subr.mxu0 0.0
      %2988 = vmatpush1.msra.mxu0 0.0
      %2989 = vmatprep.subr.mxu0 0.0
      %2990 = vmatpush1.msra.mxu0 0.0
      %2991 = vmatprep.subr.mxu0 0.0
      %2992 = vmatpush1.msra.mxu0 0.0
      %2993 = vmatprep.mubr.f32.mxu0 0.0
      %2994 = vmatmul.mubr.f32.gmra.mrb[0].mxu0 %v2924
      %v2995 = vpop.f32.mrb[0].mxu0
      %v2996 = vadd.f32 0.0, %v2995
      %v2997 = vpop.f32.mrb[0].mxu0
      %2998 = vdwg.mxu0
      %v3000 = vsel %vm2461, %v2850, 0
      %v3003 = vsel %vm1774, %v2846, 0
      %3005 = vmatprep.subr.mxu0 0.0
      %3006 = vmatpush1.msra.mxu0 %v3003
      %3007 = vmatprep.subr.mxu0 0.0
      %3008 = vmatpush1.msra.mxu0 0.0
      %3009 = vmatprep.subr.mxu0 0.0
      %3010 = vmatpush1.msra.mxu0 0.0
      %3011 = vmatprep.subr.mxu0 0.0
      %3012 = vmatpush1.msra.mxu0 0.0
      %3013 = vmatprep.subr.mxu0 0.0
      %3014 = vmatpush1.msra.mxu0 0.0
      %3015 = vmatprep.subr.mxu0 0.0
      %3016 = vmatpush1.msra.mxu0 0.0
      %3017 = vmatprep.subr.mxu0 0.0
      %3018 = vmatpush1.msra.mxu0 0.0
      %3019 = vmatprep.subr.mxu0 0.0
      %3020 = vmatpush1.msra.mxu0 0.0
      %3021 = vmatprep.subr.mxu0 0.0
      %3022 = vmatpush1.msra.mxu0 0.0
      %3023 = vmatprep.subr.mxu0 0.0
      %3024 = vmatpush1.msra.mxu0 0.0
      %3025 = vmatprep.subr.mxu0 0.0
      %3026 = vmatpush1.msra.mxu0 0.0
      %3027 = vmatprep.subr.mxu0 0.0
      %3028 = vmatpush1.msra.mxu0 0.0
      %3029 = vmatprep.subr.mxu0 0.0
      %3030 = vmatpush1.msra.mxu0 0.0
      %3031 = vmatprep.subr.mxu0 0.0
      %3032 = vmatpush1.msra.mxu0 0.0
      %3033 = vmatprep.subr.mxu0 0.0
      %3034 = vmatpush1.msra.mxu0 0.0
      %3035 = vmatprep.subr.mxu0 0.0
      %3036 = vmatpush1.msra.mxu0 0.0
      %3037 = vmatprep.subr.mxu0 0.0
      %3038 = vmatpush1.msra.mxu0 0.0
      %3039 = vmatprep.subr.mxu0 0.0
      %3040 = vmatpush1.msra.mxu0 0.0
      %3041 = vmatprep.subr.mxu0 0.0
      %3042 = vmatpush1.msra.mxu0 0.0
      %3043 = vmatprep.subr.mxu0 0.0
      %3044 = vmatpush1.msra.mxu0 0.0
      %3045 = vmatprep.subr.mxu0 0.0
      %3046 = vmatpush1.msra.mxu0 0.0
      %3047 = vmatprep.subr.mxu0 0.0
      %3048 = vmatpush1.msra.mxu0 0.0
      %3049 = vmatprep.subr.mxu0 0.0
      %3050 = vmatpush1.msra.mxu0 0.0
      %3051 = vmatprep.subr.mxu0 0.0
      %3052 = vmatpush1.msra.mxu0 0.0
      %3053 = vmatprep.subr.mxu0 0.0
      %3054 = vmatpush1.msra.mxu0 0.0
      %3055 = vmatprep.subr.mxu0 0.0
      %3056 = vmatpush1.msra.mxu0 0.0
      %3057 = vmatprep.subr.mxu0 0.0
      %3058 = vmatpush1.msra.mxu0 0.0
      %3059 = vmatprep.subr.mxu0 0.0
      %3060 = vmatpush1.msra.mxu0 0.0
      %3061 = vmatprep.subr.mxu0 0.0
      %3062 = vmatpush1.msra.mxu0 0.0
      %3063 = vmatprep.subr.mxu0 0.0
      %3064 = vmatpush1.msra.mxu0 0.0
      %3065 = vmatprep.subr.mxu0 0.0
      %3066 = vmatpush1.msra.mxu0 0.0
      %3067 = vmatprep.subr.mxu0 0.0
      %3068 = vmatpush1.msra.mxu0 0.0
      %3069 = vmatprep.mubr.f32.mxu0 0.0
      %3070 = vmatmul.mubr.f32.gmra.mrb[0].mxu0 %v3000
      %v3071 = vpop.f32.mrb[0].mxu0
      %v3072 = vadd.f32 %v2996, %v3071
      %v3073 = vpop.f32.mrb[0].mxu0
      %3074 = vdwg.mxu0
      %3075 = vmatprep.subr.mxu0 0.0
      %3076 = vmatpush1.msra.mxu0 %v2617
      %3077 = vmatprep.subr.mxu0 0.0
      %3078 = vmatpush1.msra.mxu0 0.0
      %3079 = vmatprep.subr.mxu0 0.0
      %3080 = vmatpush1.msra.mxu0 0.0
      %3081 = vmatprep.subr.mxu0 0.0
      %3082 = vmatpush1.msra.mxu0 0.0
      %3083 = vmatprep.subr.mxu0 0.0
      %3084 = vmatpush1.msra.mxu0 0.0
      %3085 = vmatprep.subr.mxu0 0.0
      %3086 = vmatpush1.msra.mxu0 0.0
      %3087 = vmatprep.subr.mxu0 0.0
      %3088 = vmatpush1.msra.mxu0 0.0
      %3089 = vmatprep.subr.mxu0 0.0
      %3090 = vmatpush1.msra.mxu0 0.0
      %3091 = vmatprep.subr.mxu0 0.0
      %3092 = vmatpush1.msra.mxu0 0.0
      %3093 = vmatprep.subr.mxu0 0.0
      %3094 = vmatpush1.msra.mxu0 0.0
      %3095 = vmatprep.subr.mxu0 0.0
      %3096 = vmatpush1.msra.mxu0 0.0
      %3097 = vmatprep.subr.mxu0 0.0
      %3098 = vmatpush1.msra.mxu0 0.0
      %3099 = vmatprep.subr.mxu0 0.0
      %3100 = vmatpush1.msra.mxu0 0.0
      %3101 = vmatprep.subr.mxu0 0.0
      %3102 = vmatpush1.msra.mxu0 0.0
      %3103 = vmatprep.subr.mxu0 0.0
      %3104 = vmatpush1.msra.mxu0 0.0
      %3105 = vmatprep.subr.mxu0 0.0
      %3106 = vmatpush1.msra.mxu0 0.0
      %3107 = vmatprep.subr.mxu0 0.0
      %3108 = vmatpush1.msra.mxu0 0.0
      %3109 = vmatprep.subr.mxu0 0.0
      %3110 = vmatpush1.msra.mxu0 0.0
      %3111 = vmatprep.subr.mxu0 0.0
      %3112 = vmatpush1.msra.mxu0 0.0
      %3113 = vmatprep.subr.mxu0 0.0
      %3114 = vmatpush1.msra.mxu0 0.0
      %3115 = vmatprep.subr.mxu0 0.0
      %3116 = vmatpush1.msra.mxu0 0.0
      %3117 = vmatprep.subr.mxu0 0.0
      %3118 = vmatpush1.msra.mxu0 0.0
      %3119 = vmatprep.subr.mxu0 0.0
      %3120 = vmatpush1.msra.mxu0 0.0
      %3121 = vmatprep.subr.mxu0 0.0
      %3122 = vmatpush1.msra.mxu0 0.0
      %3123 = vmatprep.subr.mxu0 0.0
      %3124 = vmatpush1.msra.mxu0 0.0
      %3125 = vmatprep.subr.mxu0 0.0
      %3126 = vmatpush1.msra.mxu0 0.0
      %3127 = vmatprep.subr.mxu0 0.0
      %3128 = vmatpush1.msra.mxu0 0.0
      %3129 = vmatprep.subr.mxu0 0.0
      %3130 = vmatpush1.msra.mxu0 0.0
      %3131 = vmatprep.subr.mxu0 0.0
      %3132 = vmatpush1.msra.mxu0 0.0
      %3133 = vmatprep.subr.mxu0 0.0
      %3134 = vmatpush1.msra.mxu0 0.0
      %3135 = vmatprep.subr.mxu0 0.0
      %3136 = vmatpush1.msra.mxu0 0.0
      %3137 = vmatprep.subr.mxu0 0.0
      %3138 = vmatpush1.msra.mxu0 0.0
      %3139 = vmatprep.mubr.f32.mxu0 0.0
      %3140 = vmatmul.mubr.f32.gmra.mrb[0].mxu0 %v2777
      %v3141 = vpop.f32.mrb[0].mxu0
      %v3142 = vadd.f32 0.0, %v3141
      %v3143 = vpop.f32.mrb[0].mxu0
      %3144 = vdwg.mxu0
      %s3145 = scalar_lea.vmem %s6, 20
      %v3146 = vld [vmem:[%s3145] sm:$0xf]
      %v3148 = vsel %vm2461, %v3146, 0
      %v3151 = vsel %vm1774, %v3142, 0
      %3153 = vmatprep.subr.mxu0 0.0
      %3154 = vmatpush1.msra.mxu0 %v3151
      %3155 = vmatprep.subr.mxu0 0.0
      %3156 = vmatpush1.msra.mxu0 0.0
      %3157 = vmatprep.subr.mxu0 0.0
      %3158 = vmatpush1.msra.mxu0 0.0
      %3159 = vmatprep.subr.mxu0 0.0
      %3160 = vmatpush1.msra.mxu0 0.0
      %3161 = vmatprep.subr.mxu0 0.0
      %3162 = vmatpush1.msra.mxu0 0.0
      %3163 = vmatprep.subr.mxu0 0.0
      %3164 = vmatpush1.msra.mxu0 0.0
      %3165 = vmatprep.subr.mxu0 0.0
      %3166 = vmatpush1.msra.mxu0 0.0
      %3167 = vmatprep.subr.mxu0 0.0
      %3168 = vmatpush1.msra.mxu0 0.0
      %3169 = vmatprep.subr.mxu0 0.0
      %3170 = vmatpush1.msra.mxu0 0.0
      %3171 = vmatprep.subr.mxu0 0.0
      %3172 = vmatpush1.msra.mxu0 0.0
      %3173 = vmatprep.subr.mxu0 0.0
      %3174 = vmatpush1.msra.mxu0 0.0
      %3175 = vmatprep.subr.mxu0 0.0
      %3176 = vmatpush1.msra.mxu0 0.0
      %3177 = vmatprep.subr.mxu0 0.0
      %3178 = vmatpush1.msra.mxu0 0.0
      %3179 = vmatprep.subr.mxu0 0.0
      %3180 = vmatpush1.msra.mxu0 0.0
      %3181 = vmatprep.subr.mxu0 0.0
      %3182 = vmatpush1.msra.mxu0 0.0
      %3183 = vmatprep.subr.mxu0 0.0
      %3184 = vmatpush1.msra.mxu0 0.0
      %3185 = vmatprep.subr.mxu0 0.0
      %3186 = vmatpush1.msra.mxu0 0.0
      %3187 = vmatprep.subr.mxu0 0.0
      %3188 = vmatpush1.msra.mxu0 0.0
      %3189 = vmatprep.subr.mxu0 0.0
      %3190 = vmatpush1.msra.mxu0 0.0
      %3191 = vmatprep.subr.mxu0 0.0
      %3192 = vmatpush1.msra.mxu0 0.0
      %3193 = vmatprep.subr.mxu0 0.0
      %3194 = vmatpush1.msra.mxu0 0.0
      %3195 = vmatprep.subr.mxu0 0.0
      %3196 = vmatpush1.msra.mxu0 0.0
      %3197 = vmatprep.subr.mxu0 0.0
      %3198 = vmatpush1.msra.mxu0 0.0
      %3199 = vmatprep.subr.mxu0 0.0
      %3200 = vmatpush1.msra.mxu0 0.0
      %3201 = vmatprep.subr.mxu0 0.0
      %3202 = vmatpush1.msra.mxu0 0.0
      %3203 = vmatprep.subr.mxu0 0.0
      %3204 = vmatpush1.msra.mxu0 0.0
      %3205 = vmatprep.subr.mxu0 0.0
      %3206 = vmatpush1.msra.mxu0 0.0
      %3207 = vmatprep.subr.mxu0 0.0
      %3208 = vmatpush1.msra.mxu0 0.0
      %3209 = vmatprep.subr.mxu0 0.0
      %3210 = vmatpush1.msra.mxu0 0.0
      %3211 = vmatprep.subr.mxu0 0.0
      %3212 = vmatpush1.msra.mxu0 0.0
      %3213 = vmatprep.subr.mxu0 0.0
      %3214 = vmatpush1.msra.mxu0 0.0
      %3215 = vmatprep.subr.mxu0 0.0
      %3216 = vmatpush1.msra.mxu0 0.0
      %3217 = vmatprep.mubr.f32.mxu0 0.0
      %3218 = vmatmul.mubr.f32.gmra.mrb[0].mxu0 %v3148
      %v3219 = vpop.f32.mrb[0].mxu0
      %v3220 = vadd.f32 0.0, %v3219
      %v3221 = vpop.f32.mrb[0].mxu0
      %3222 = vdwg.mxu0
      %v3223 = vadd.f32 %v3072, %v3220
      %s3224 = scalar_lea.vmem %s8, 4
      %v3225 = vld [vmem:[%s3224] sm:$0xf]
      %3227 = vset.pattern.permute.xlu0 0
      %3228 = vperm.xlu0 %3227, %v3225
      %v3229 = vpop.permute.xlu0 %3228
      %v3231 = vadd.f32 %v3223, %v3229
      %v3232 = vmax.f32 %v3231, 0.0
      %v3234 = vsel %vm2305, %v3232, 0
      %3236 = vmatprep.subr.mxu0 0.0
      %3237 = vmatpush1.msra.mxu0 %v2311
      %3238 = vmatprep.subr.mxu0 0.0
      %3239 = vmatpush1.msra.mxu0 0.0
      %3240 = vmatprep.subr.mxu0 0.0
      %3241 = vmatpush1.msra.mxu0 0.0
      %3242 = vmatprep.subr.mxu0 0.0
      %3243 = vmatpush1.msra.mxu0 0.0
      %3244 = vmatprep.subr.mxu0 0.0
      %3245 = vmatpush1.msra.mxu0 0.0
      %3246 = vmatprep.subr.mxu0 0.0
      %3247 = vmatpush1.msra.mxu0 0.0
      %3248 = vmatprep.subr.mxu0 0.0
      %3249 = vmatpush1.msra.mxu0 0.0
      %3250 = vmatprep.subr.mxu0 0.0
      %3251 = vmatpush1.msra.mxu0 0.0
      %3252 = vmatprep.subr.mxu0 0.0
      %3253 = vmatpush1.msra.mxu0 0.0
      %3254 = vmatprep.subr.mxu0 0.0
      %3255 = vmatpush1.msra.mxu0 0.0
      %3256 = vmatprep.subr.mxu0 0.0
      %3257 = vmatpush1.msra.mxu0 0.0
      %3258 = vmatprep.subr.mxu0 0.0
      %3259 = vmatpush1.msra.mxu0 0.0
      %3260 = vmatprep.subr.mxu0 0.0
      %3261 = vmatpush1.msra.mxu0 0.0
      %3262 = vmatprep.subr.mxu0 0.0
      %3263 = vmatpush1.msra.mxu0 0.0
      %3264 = vmatprep.subr.mxu0 0.0
      %3265 = vmatpush1.msra.mxu0 0.0
      %3266 = vmatprep.subr.mxu0 0.0
      %3267 = vmatpush1.msra.mxu0 0.0
      %3268 = vmatprep.subr.mxu0 0.0
      %3269 = vmatpush1.msra.mxu0 0.0
      %3270 = vmatprep.subr.mxu0 0.0
      %3271 = vmatpush1.msra.mxu0 0.0
      %3272 = vmatprep.subr.mxu0 0.0
      %3273 = vmatpush1.msra.mxu0 0.0
      %3274 = vmatprep.subr.mxu0 0.0
      %3275 = vmatpush1.msra.mxu0 0.0
      %3276 = vmatprep.subr.mxu0 0.0
      %3277 = vmatpush1.msra.mxu0 0.0
      %3278 = vmatprep.subr.mxu0 0.0
      %3279 = vmatpush1.msra.mxu0 0.0
      %3280 = vmatprep.subr.mxu0 0.0
      %3281 = vmatpush1.msra.mxu0 0.0
      %3282 = vmatprep.subr.mxu0 0.0
      %3283 = vmatpush1.msra.mxu0 0.0
      %3284 = vmatprep.subr.mxu0 0.0
      %3285 = vmatpush1.msra.mxu0 0.0
      %3286 = vmatprep.subr.mxu0 0.0
      %3287 = vmatpush1.msra.mxu0 0.0
      %3288 = vmatprep.subr.mxu0 0.0
      %3289 = vmatpush1.msra.mxu0 0.0
      %3290 = vmatprep.subr.mxu0 0.0
      %3291 = vmatpush1.msra.mxu0 0.0
      %3292 = vmatprep.subr.mxu0 0.0
      %3293 = vmatpush1.msra.mxu0 0.0
      %3294 = vmatprep.subr.mxu0 0.0
      %3295 = vmatpush1.msra.mxu0 0.0
      %3296 = vmatprep.subr.mxu0 0.0
      %3297 = vmatpush1.msra.mxu0 0.0
      %3298 = vmatprep.subr.mxu0 0.0
      %3299 = vmatpush1.msra.mxu0 0.0
      %3300 = vmatprep.mubr.f32.mxu0 0.0
      %3301 = vmatmul.mubr.f32.gmra.mrb[0].mxu0 %v3234
      %v3302 = vpop.f32.mrb[0].mxu0
      %v3303 = vadd.f32 0.0, %v3302
      %v3304 = vpop.f32.mrb[0].mxu0
      %3305 = vdwg.mxu0
      %s3306 = scalar_lea.vmem %s6, 24
      %v3307 = vld [vmem:[%s3306] sm:$0xf]
      %3308 = vmatprep.subr.mxu0 0.0
      %3309 = vmatpush1.msra.mxu0 %v2387
      %3310 = vmatprep.subr.mxu0 0.0
      %3311 = vmatpush1.msra.mxu0 0.0
      %3312 = vmatprep.subr.mxu0 0.0
      %3313 = vmatpush1.msra.mxu0 0.0
      %3314 = vmatprep.subr.mxu0 0.0
      %3315 = vmatpush1.msra.mxu0 0.0
      %3316 = vmatprep.subr.mxu0 0.0
      %3317 = vmatpush1.msra.mxu0 0.0
      %3318 = vmatprep.subr.mxu0 0.0
      %3319 = vmatpush1.msra.mxu0 0.0
      %3320 = vmatprep.subr.mxu0 0.0
      %3321 = vmatpush1.msra.mxu0 0.0
      %3322 = vmatprep.subr.mxu0 0.0
      %3323 = vmatpush1.msra.mxu0 0.0
      %3324 = vmatprep.subr.mxu0 0.0
      %3325 = vmatpush1.msra.mxu0 0.0
      %3326 = vmatprep.subr.mxu0 0.0
      %3327 = vmatpush1.msra.mxu0 0.0
      %3328 = vmatprep.subr.mxu0 0.0
      %3329 = vmatpush1.msra.mxu0 0.0
      %3330 = vmatprep.subr.mxu0 0.0
      %3331 = vmatpush1.msra.mxu0 0.0
      %3332 = vmatprep.subr.mxu0 0.0
      %3333 = vmatpush1.msra.mxu0 0.0
      %3334 = vmatprep.subr.mxu0 0.0
      %3335 = vmatpush1.msra.mxu0 0.0
      %3336 = vmatprep.subr.mxu0 0.0
      %3337 = vmatpush1.msra.mxu0 0.0
      %3338 = vmatprep.subr.mxu0 0.0
      %3339 = vmatpush1.msra.mxu0 0.0
      %3340 = vmatprep.subr.mxu0 0.0
      %3341 = vmatpush1.msra.mxu0 0.0
      %3342 = vmatprep.subr.mxu0 0.0
      %3343 = vmatpush1.msra.mxu0 0.0
      %3344 = vmatprep.subr.mxu0 0.0
      %3345 = vmatpush1.msra.mxu0 0.0
      %3346 = vmatprep.subr.mxu0 0.0
      %3347 = vmatpush1.msra.mxu0 0.0
      %3348 = vmatprep.subr.mxu0 0.0
      %3349 = vmatpush1.msra.mxu0 0.0
      %3350 = vmatprep.subr.mxu0 0.0
      %3351 = vmatpush1.msra.mxu0 0.0
      %3352 = vmatprep.subr.mxu0 0.0
      %3353 = vmatpush1.msra.mxu0 0.0
      %3354 = vmatprep.subr.mxu0 0.0
      %3355 = vmatpush1.msra.mxu0 0.0
      %3356 = vmatprep.subr.mxu0 0.0
      %3357 = vmatpush1.msra.mxu0 0.0
      %3358 = vmatprep.subr.mxu0 0.0
      %3359 = vmatpush1.msra.mxu0 0.0
      %3360 = vmatprep.subr.mxu0 0.0
      %3361 = vmatpush1.msra.mxu0 0.0
      %3362 = vmatprep.subr.mxu0 0.0
      %3363 = vmatpush1.msra.mxu0 0.0
      %3364 = vmatprep.subr.mxu0 0.0
      %3365 = vmatpush1.msra.mxu0 0.0
      %3366 = vmatprep.subr.mxu0 0.0
      %3367 = vmatpush1.msra.mxu0 0.0
      %3368 = vmatprep.subr.mxu0 0.0
      %3369 = vmatpush1.msra.mxu0 0.0
      %3370 = vmatprep.subr.mxu0 0.0
      %3371 = vmatpush1.msra.mxu0 0.0
      %3372 = vmatprep.mubr.f32.mxu0 0.0
      %3373 = vmatmul.mubr.f32.gmra.mrb[0].mxu0 %v3234
      %v3374 = vpop.f32.mrb[0].mxu0
      %v3375 = vadd.f32 0.0, %v3374
      %v3376 = vpop.f32.mrb[0].mxu0
      %3377 = vdwg.mxu0
      %s3378 = scalar_lea.vmem %s6, 28
      %v3379 = vld [vmem:[%s3378] sm:$0xf]
      %v3381 = vsel %vm2461, %v3379, 0
      %v3384 = vsel %vm1774, %v3375, 0
      %3386 = vmatprep.subr.mxu0 0.0
      %3387 = vmatpush1.msra.mxu0 %v3384
      %3388 = vmatprep.subr.mxu0 0.0
      %3389 = vmatpush1.msra.mxu0 0.0
      %3390 = vmatprep.subr.mxu0 0.0
      %3391 = vmatpush1.msra.mxu0 0.0
      %3392 = vmatprep.subr.mxu0 0.0
      %3393 = vmatpush1.msra.mxu0 0.0
      %3394 = vmatprep.subr.mxu0 0.0
      %3395 = vmatpush1.msra.mxu0 0.0
      %3396 = vmatprep.subr.mxu0 0.0
      %3397 = vmatpush1.msra.mxu0 0.0
      %3398 = vmatprep.subr.mxu0 0.0
      %3399 = vmatpush1.msra.mxu0 0.0
      %3400 = vmatprep.subr.mxu0 0.0
      %3401 = vmatpush1.msra.mxu0 0.0
      %3402 = vmatprep.subr.mxu0 0.0
      %3403 = vmatpush1.msra.mxu0 0.0
      %3404 = vmatprep.subr.mxu0 0.0
      %3405 = vmatpush1.msra.mxu0 0.0
      %3406 = vmatprep.subr.mxu0 0.0
      %3407 = vmatpush1.msra.mxu0 0.0
      %3408 = vmatprep.subr.mxu0 0.0
      %3409 = vmatpush1.msra.mxu0 0.0
      %3410 = vmatprep.subr.mxu0 0.0
      %3411 = vmatpush1.msra.mxu0 0.0
      %3412 = vmatprep.subr.mxu0 0.0
      %3413 = vmatpush1.msra.mxu0 0.0
      %3414 = vmatprep.subr.mxu0 0.0
      %3415 = vmatpush1.msra.mxu0 0.0
      %3416 = vmatprep.subr.mxu0 0.0
      %3417 = vmatpush1.msra.mxu0 0.0
      %3418 = vmatprep.subr.mxu0 0.0
      %3419 = vmatpush1.msra.mxu0 0.0
      %3420 = vmatprep.subr.mxu0 0.0
      %3421 = vmatpush1.msra.mxu0 0.0
      %3422 = vmatprep.subr.mxu0 0.0
      %3423 = vmatpush1.msra.mxu0 0.0
      %3424 = vmatprep.subr.mxu0 0.0
      %3425 = vmatpush1.msra.mxu0 0.0
      %3426 = vmatprep.subr.mxu0 0.0
      %3427 = vmatpush1.msra.mxu0 0.0
      %3428 = vmatprep.subr.mxu0 0.0
      %3429 = vmatpush1.msra.mxu0 0.0
      %3430 = vmatprep.subr.mxu0 0.0
      %3431 = vmatpush1.msra.mxu0 0.0
      %3432 = vmatprep.subr.mxu0 0.0
      %3433 = vmatpush1.msra.mxu0 0.0
      %3434 = vmatprep.subr.mxu0 0.0
      %3435 = vmatpush1.msra.mxu0 0.0
      %3436 = vmatprep.subr.mxu0 0.0
      %3437 = vmatpush1.msra.mxu0 0.0
      %3438 = vmatprep.subr.mxu0 0.0
      %3439 = vmatpush1.msra.mxu0 0.0
      %3440 = vmatprep.subr.mxu0 0.0
      %3441 = vmatpush1.msra.mxu0 0.0
      %3442 = vmatprep.subr.mxu0 0.0
      %3443 = vmatpush1.msra.mxu0 0.0
      %3444 = vmatprep.subr.mxu0 0.0
      %3445 = vmatpush1.msra.mxu0 0.0
      %3446 = vmatprep.subr.mxu0 0.0
      %3447 = vmatpush1.msra.mxu0 0.0
      %3448 = vmatprep.subr.mxu0 0.0
      %3449 = vmatpush1.msra.mxu0 0.0
      %3450 = vmatprep.mubr.f32.mxu0 0.0
      %3451 = vmatmul.mubr.f32.gmra.mrb[0].mxu0 %v3381
      %v3452 = vpop.f32.mrb[0].mxu0
      %v3453 = vadd.f32 0.0, %v3452
      %v3454 = vpop.f32.mrb[0].mxu0
      %3455 = vdwg.mxu0
      %v3457 = vsel %vm2461, %v3307, 0
      %v3460 = vsel %vm1774, %v3303, 0
      %3462 = vmatprep.subr.mxu0 0.0
      %3463 = vmatpush1.msra.mxu0 %v3460
      %3464 = vmatprep.subr.mxu0 0.0
      %3465 = vmatpush1.msra.mxu0 0.0
      %3466 = vmatprep.subr.mxu0 0.0
      %3467 = vmatpush1.msra.mxu0 0.0
      %3468 = vmatprep.subr.mxu0 0.0
      %3469 = vmatpush1.msra.mxu0 0.0
      %3470 = vmatprep.subr.mxu0 0.0
      %3471 = vmatpush1.msra.mxu0 0.0
      %3472 = vmatprep.subr.mxu0 0.0
      %3473 = vmatpush1.msra.mxu0 0.0
      %3474 = vmatprep.subr.mxu0 0.0
      %3475 = vmatpush1.msra.mxu0 0.0
      %3476 = vmatprep.subr.mxu0 0.0
      %3477 = vmatpush1.msra.mxu0 0.0
      %3478 = vmatprep.subr.mxu0 0.0
      %3479 = vmatpush1.msra.mxu0 0.0
      %3480 = vmatprep.subr.mxu0 0.0
      %3481 = vmatpush1.msra.mxu0 0.0
      %3482 = vmatprep.subr.mxu0 0.0
      %3483 = vmatpush1.msra.mxu0 0.0
      %3484 = vmatprep.subr.mxu0 0.0
      %3485 = vmatpush1.msra.mxu0 0.0
      %3486 = vmatprep.subr.mxu0 0.0
      %3487 = vmatpush1.msra.mxu0 0.0
      %3488 = vmatprep.subr.mxu0 0.0
      %3489 = vmatpush1.msra.mxu0 0.0
      %3490 = vmatprep.subr.mxu0 0.0
      %3491 = vmatpush1.msra.mxu0 0.0
      %3492 = vmatprep.subr.mxu0 0.0
      %3493 = vmatpush1.msra.mxu0 0.0
      %3494 = vmatprep.subr.mxu0 0.0
      %3495 = vmatpush1.msra.mxu0 0.0
      %3496 = vmatprep.subr.mxu0 0.0
      %3497 = vmatpush1.msra.mxu0 0.0
      %3498 = vmatprep.subr.mxu0 0.0
      %3499 = vmatpush1.msra.mxu0 0.0
      %3500 = vmatprep.subr.mxu0 0.0
      %3501 = vmatpush1.msra.mxu0 0.0
      %3502 = vmatprep.subr.mxu0 0.0
      %3503 = vmatpush1.msra.mxu0 0.0
      %3504 = vmatprep.subr.mxu0 0.0
      %3505 = vmatpush1.msra.mxu0 0.0
      %3506 = vmatprep.subr.mxu0 0.0
      %3507 = vmatpush1.msra.mxu0 0.0
      %3508 = vmatprep.subr.mxu0 0.0
      %3509 = vmatpush1.msra.mxu0 0.0
      %3510 = vmatprep.subr.mxu0 0.0
      %3511 = vmatpush1.msra.mxu0 0.0
      %3512 = vmatprep.subr.mxu0 0.0
      %3513 = vmatpush1.msra.mxu0 0.0
      %3514 = vmatprep.subr.mxu0 0.0
      %3515 = vmatpush1.msra.mxu0 0.0
      %3516 = vmatprep.subr.mxu0 0.0
      %3517 = vmatpush1.msra.mxu0 0.0
      %3518 = vmatprep.subr.mxu0 0.0
      %3519 = vmatpush1.msra.mxu0 0.0
      %3520 = vmatprep.subr.mxu0 0.0
      %3521 = vmatpush1.msra.mxu0 0.0
      %3522 = vmatprep.subr.mxu0 0.0
      %3523 = vmatpush1.msra.mxu0 0.0
      %3524 = vmatprep.subr.mxu0 0.0
      %3525 = vmatpush1.msra.mxu0 0.0
      %3526 = vmatprep.mubr.f32.mxu0 0.0
      %3527 = vmatmul.mubr.f32.gmra.mrb[0].mxu0 %v3457
      %v3528 = vpop.f32.mrb[0].mxu0
      %v3529 = vadd.f32 %v3453, %v3528
      %v3530 = vpop.f32.mrb[0].mxu0
      %3531 = vdwg.mxu0
      %3532 = vmatprep.subr.mxu0 0.0
      %3533 = vmatpush1.msra.mxu0 %v2617
      %3534 = vmatprep.subr.mxu0 0.0
      %3535 = vmatpush1.msra.mxu0 0.0
      %3536 = vmatprep.subr.mxu0 0.0
      %3537 = vmatpush1.msra.mxu0 0.0
      %3538 = vmatprep.subr.mxu0 0.0
      %3539 = vmatpush1.msra.mxu0 0.0
      %3540 = vmatprep.subr.mxu0 0.0
      %3541 = vmatpush1.msra.mxu0 0.0
      %3542 = vmatprep.subr.mxu0 0.0
      %3543 = vmatpush1.msra.mxu0 0.0
      %3544 = vmatprep.subr.mxu0 0.0
      %3545 = vmatpush1.msra.mxu0 0.0
      %3546 = vmatprep.subr.mxu0 0.0
      %3547 = vmatpush1.msra.mxu0 0.0
      %3548 = vmatprep.subr.mxu0 0.0
      %3549 = vmatpush1.msra.mxu0 0.0
      %3550 = vmatprep.subr.mxu0 0.0
      %3551 = vmatpush1.msra.mxu0 0.0
      %3552 = vmatprep.subr.mxu0 0.0
      %3553 = vmatpush1.msra.mxu0 0.0
      %3554 = vmatprep.subr.mxu0 0.0
      %3555 = vmatpush1.msra.mxu0 0.0
      %3556 = vmatprep.subr.mxu0 0.0
      %3557 = vmatpush1.msra.mxu0 0.0
      %3558 = vmatprep.subr.mxu0 0.0
      %3559 = vmatpush1.msra.mxu0 0.0
      %3560 = vmatprep.subr.mxu0 0.0
      %3561 = vmatpush1.msra.mxu0 0.0
      %3562 = vmatprep.subr.mxu0 0.0
      %3563 = vmatpush1.msra.mxu0 0.0
      %3564 = vmatprep.subr.mxu0 0.0
      %3565 = vmatpush1.msra.mxu0 0.0
      %3566 = vmatprep.subr.mxu0 0.0
      %3567 = vmatpush1.msra.mxu0 0.0
      %3568 = vmatprep.subr.mxu0 0.0
      %3569 = vmatpush1.msra.mxu0 0.0
      %3570 = vmatprep.subr.mxu0 0.0
      %3571 = vmatpush1.msra.mxu0 0.0
      %3572 = vmatprep.subr.mxu0 0.0
      %3573 = vmatpush1.msra.mxu0 0.0
      %3574 = vmatprep.subr.mxu0 0.0
      %3575 = vmatpush1.msra.mxu0 0.0
      %3576 = vmatprep.subr.mxu0 0.0
      %3577 = vmatpush1.msra.mxu0 0.0
      %3578 = vmatprep.subr.mxu0 0.0
      %3579 = vmatpush1.msra.mxu0 0.0
      %3580 = vmatprep.subr.mxu0 0.0
      %3581 = vmatpush1.msra.mxu0 0.0
      %3582 = vmatprep.subr.mxu0 0.0
      %3583 = vmatpush1.msra.mxu0 0.0
      %3584 = vmatprep.subr.mxu0 0.0
      %3585 = vmatpush1.msra.mxu0 0.0
      %3586 = vmatprep.subr.mxu0 0.0
      %3587 = vmatpush1.msra.mxu0 0.0
      %3588 = vmatprep.subr.mxu0 0.0
      %3589 = vmatpush1.msra.mxu0 0.0
      %3590 = vmatprep.subr.mxu0 0.0
      %3591 = vmatpush1.msra.mxu0 0.0
      %3592 = vmatprep.subr.mxu0 0.0
      %3593 = vmatpush1.msra.mxu0 0.0
      %3594 = vmatprep.subr.mxu0 0.0
      %3595 = vmatpush1.msra.mxu0 0.0
      %3596 = vmatprep.mubr.f32.mxu0 0.0
      %3597 = vmatmul.mubr.f32.gmra.mrb[0].mxu0 %v3234
      %v3598 = vpop.f32.mrb[0].mxu0
      %v3599 = vadd.f32 0.0, %v3598
      %v3600 = vpop.f32.mrb[0].mxu0
      %3601 = vdwg.mxu0
      %s3602 = scalar_lea.vmem %s6, 32
      %v3603 = vld [vmem:[%s3602] sm:$0xf]
      %v3605 = vsel %vm2461, %v3603, 0
      %v3608 = vsel %vm1774, %v3599, 0
      %3610 = vmatprep.subr.mxu0 0.0
      %3611 = vmatpush1.msra.mxu0 %v3608
      %3612 = vmatprep.subr.mxu0 0.0
      %3613 = vmatpush1.msra.mxu0 0.0
      %3614 = vmatprep.subr.mxu0 0.0
      %3615 = vmatpush1.msra.mxu0 0.0
      %3616 = vmatprep.subr.mxu0 0.0
      %3617 = vmatpush1.msra.mxu0 0.0
      %3618 = vmatprep.subr.mxu0 0.0
      %3619 = vmatpush1.msra.mxu0 0.0
      %3620 = vmatprep.subr.mxu0 0.0
      %3621 = vmatpush1.msra.mxu0 0.0
      %3622 = vmatprep.subr.mxu0 0.0
      %3623 = vmatpush1.msra.mxu0 0.0
      %3624 = vmatprep.subr.mxu0 0.0
      %3625 = vmatpush1.msra.mxu0 0.0
      %3626 = vmatprep.subr.mxu0 0.0
      %3627 = vmatpush1.msra.mxu0 0.0
      %3628 = vmatprep.subr.mxu0 0.0
      %3629 = vmatpush1.msra.mxu0 0.0
      %3630 = vmatprep.subr.mxu0 0.0
      %3631 = vmatpush1.msra.mxu0 0.0
      %3632 = vmatprep.subr.mxu0 0.0
      %3633 = vmatpush1.msra.mxu0 0.0
      %3634 = vmatprep.subr.mxu0 0.0
      %3635 = vmatpush1.msra.mxu0 0.0
      %3636 = vmatprep.subr.mxu0 0.0
      %3637 = vmatpush1.msra.mxu0 0.0
      %3638 = vmatprep.subr.mxu0 0.0
      %3639 = vmatpush1.msra.mxu0 0.0
      %3640 = vmatprep.subr.mxu0 0.0
      %3641 = vmatpush1.msra.mxu0 0.0
      %3642 = vmatprep.subr.mxu0 0.0
      %3643 = vmatpush1.msra.mxu0 0.0
      %3644 = vmatprep.subr.mxu0 0.0
      %3645 = vmatpush1.msra.mxu0 0.0
      %3646 = vmatprep.subr.mxu0 0.0
      %3647 = vmatpush1.msra.mxu0 0.0
      %3648 = vmatprep.subr.mxu0 0.0
      %3649 = vmatpush1.msra.mxu0 0.0
      %3650 = vmatprep.subr.mxu0 0.0
      %3651 = vmatpush1.msra.mxu0 0.0
      %3652 = vmatprep.subr.mxu0 0.0
      %3653 = vmatpush1.msra.mxu0 0.0
      %3654 = vmatprep.subr.mxu0 0.0
      %3655 = vmatpush1.msra.mxu0 0.0
      %3656 = vmatprep.subr.mxu0 0.0
      %3657 = vmatpush1.msra.mxu0 0.0
      %3658 = vmatprep.subr.mxu0 0.0
      %3659 = vmatpush1.msra.mxu0 0.0
      %3660 = vmatprep.subr.mxu0 0.0
      %3661 = vmatpush1.msra.mxu0 0.0
      %3662 = vmatprep.subr.mxu0 0.0
      %3663 = vmatpush1.msra.mxu0 0.0
      %3664 = vmatprep.subr.mxu0 0.0
      %3665 = vmatpush1.msra.mxu0 0.0
      %3666 = vmatprep.subr.mxu0 0.0
      %3667 = vmatpush1.msra.mxu0 0.0
      %3668 = vmatprep.subr.mxu0 0.0
      %3669 = vmatpush1.msra.mxu0 0.0
      %3670 = vmatprep.subr.mxu0 0.0
      %3671 = vmatpush1.msra.mxu0 0.0
      %3672 = vmatprep.subr.mxu0 0.0
      %3673 = vmatpush1.msra.mxu0 0.0
      %3674 = vmatprep.mubr.f32.mxu0 0.0
      %3675 = vmatmul.mubr.f32.gmra.mrb[0].mxu0 %v3605
      %v3676 = vpop.f32.mrb[0].mxu0
      %v3677 = vadd.f32 0.0, %v3676
      %v3678 = vpop.f32.mrb[0].mxu0
      %3679 = vdwg.mxu0
      %v3680 = vadd.f32 %v3529, %v3677
      %s3681 = scalar_lea.vmem %s8, 8
      %v3682 = vld [vmem:[%s3681] sm:$0xf]
      %3684 = vset.pattern.permute.xlu0 0
      %3685 = vperm.xlu0 %3684, %v3682
      %v3686 = vpop.permute.xlu0 %3685
      %v3688 = vadd.f32 %v3680, %v3686
      %v3689 = vld [vmem:[%s10] sm:$0x7]
      %v3691 = vsel %vm2305, %v3688, 0
      %v3694 = vsel %vm2309, %v3689, 0
      %3696 = vmatprep.subr.mxu0 0.0
      %3697 = vmatpush1.msra.mxu0 %v3694
      %3698 = vmatprep.subr.mxu0 0.0
      %3699 = vmatpush1.msra.mxu0 0.0
      %3700 = vmatprep.subr.mxu0 0.0
      %3701 = vmatpush1.msra.mxu0 0.0
      %3702 = vmatprep.subr.mxu0 0.0
      %3703 = vmatpush1.msra.mxu0 0.0
      %3704 = vmatprep.subr.mxu0 0.0
      %3705 = vmatpush1.msra.mxu0 0.0
      %3706 = vmatprep.subr.mxu0 0.0
      %3707 = vmatpush1.msra.mxu0 0.0
      %3708 = vmatprep.subr.mxu0 0.0
      %3709 = vmatpush1.msra.mxu0 0.0
      %3710 = vmatprep.subr.mxu0 0.0
      %3711 = vmatpush1.msra.mxu0 0.0
      %3712 = vmatprep.subr.mxu0 0.0
      %3713 = vmatpush1.msra.mxu0 0.0
      %3714 = vmatprep.subr.mxu0 0.0
      %3715 = vmatpush1.msra.mxu0 0.0
      %3716 = vmatprep.subr.mxu0 0.0
      %3717 = vmatpush1.msra.mxu0 0.0
      %3718 = vmatprep.subr.mxu0 0.0
      %3719 = vmatpush1.msra.mxu0 0.0
      %3720 = vmatprep.subr.mxu0 0.0
      %3721 = vmatpush1.msra.mxu0 0.0
      %3722 = vmatprep.subr.mxu0 0.0
      %3723 = vmatpush1.msra.mxu0 0.0
      %3724 = vmatprep.subr.mxu0 0.0
      %3725 = vmatpush1.msra.mxu0 0.0
      %3726 = vmatprep.subr.mxu0 0.0
      %3727 = vmatpush1.msra.mxu0 0.0
      %3728 = vmatprep.subr.mxu0 0.0
      %3729 = vmatpush1.msra.mxu0 0.0
      %3730 = vmatprep.subr.mxu0 0.0
      %3731 = vmatpush1.msra.mxu0 0.0
      %3732 = vmatprep.subr.mxu0 0.0
      %3733 = vmatpush1.msra.mxu0 0.0
      %3734 = vmatprep.subr.mxu0 0.0
      %3735 = vmatpush1.msra.mxu0 0.0
      %3736 = vmatprep.subr.mxu0 0.0
      %3737 = vmatpush1.msra.mxu0 0.0
      %3738 = vmatprep.subr.mxu0 0.0
      %3739 = vmatpush1.msra.mxu0 0.0
      %3740 = vmatprep.subr.mxu0 0.0
      %3741 = vmatpush1.msra.mxu0 0.0
      %3742 = vmatprep.subr.mxu0 0.0
      %3743 = vmatpush1.msra.mxu0 0.0
      %3744 = vmatprep.subr.mxu0 0.0
      %3745 = vmatpush1.msra.mxu0 0.0
      %3746 = vmatprep.subr.mxu0 0.0
      %3747 = vmatpush1.msra.mxu0 0.0
      %3748 = vmatprep.subr.mxu0 0.0
      %3749 = vmatpush1.msra.mxu0 0.0
      %3750 = vmatprep.subr.mxu0 0.0
      %3751 = vmatpush1.msra.mxu0 0.0
      %3752 = vmatprep.subr.mxu0 0.0
      %3753 = vmatpush1.msra.mxu0 0.0
      %3754 = vmatprep.subr.mxu0 0.0
      %3755 = vmatpush1.msra.mxu0 0.0
      %3756 = vmatprep.subr.mxu0 0.0
      %3757 = vmatpush1.msra.mxu0 0.0
      %3758 = vmatprep.subr.mxu0 0.0
      %3759 = vmatpush1.msra.mxu0 0.0
      %3760 = vmatprep.mubr.f32.mxu0 0.0
      %3761 = vmatmul.mubr.f32.gmra.mrb[0].mxu0 %v3691
      %v3762 = vpop.f32.mrb[0].mxu0
      %v3763 = vadd.f32 0.0, %v3762
      %v3764 = vpop.f32.mrb[0].mxu0
      %3765 = vdwg.mxu0
      %v3766 = vld [vmem:[%s9] sm:$0xff]
      %v3767 = vld [vmem:[%s9 + $0x8] sm:$0xff]
      %v3768 = vld [vmem:[%s9 + $0x10] sm:$0xff]
      %v3769 = vld [vmem:[%s9 + $0x18] sm:$0xff]
      %v3770 = vld [vmem:[%s9 + $0x20] sm:$0xff]
      %v3771 = vld [vmem:[%s9 + $0x28] sm:$0xff]
      %v3772 = vld [vmem:[%s9 + $0x30] sm:$0xff]
      %v3773 = vld [vmem:[%s9 + $0x38] sm:$0xff]
      %v3775 = vsel %vm2461, %v3766, 0
      %v3778 = vsel %vm2461, %v3767, 0
      %v3781 = vsel %vm2461, %v3768, 0
      %v3784 = vsel %vm2461, %v3769, 0
      %v3787 = vsel %vm2461, %v3770, 0
      %v3790 = vsel %vm2461, %v3771, 0
      %v3793 = vsel %vm2461, %v3772, 0
      %v3796 = vsel %vm2461, %v3773, 0
      %v3799 = vsel %vm1774, %v3763, 0
      %3801 = vmatprep.subr.mxu0 0.0
      %3802 = vmatpush1.msra.mxu0 %v3799
      %3803 = vmatprep.subr.mxu0 0.0
      %3804 = vmatpush1.msra.mxu0 0.0
      %3805 = vmatprep.subr.mxu0 0.0
      %3806 = vmatpush1.msra.mxu0 0.0
      %3807 = vmatprep.subr.mxu0 0.0
      %3808 = vmatpush1.msra.mxu0 0.0
      %3809 = vmatprep.subr.mxu0 0.0
      %3810 = vmatpush1.msra.mxu0 0.0
      %3811 = vmatprep.subr.mxu0 0.0
      %3812 = vmatpush1.msra.mxu0 0.0
      %3813 = vmatprep.subr.mxu0 0.0
      %3814 = vmatpush1.msra.mxu0 0.0
      %3815 = vmatprep.subr.mxu0 0.0
      %3816 = vmatpush1.msra.mxu0 0.0
      %3817 = vmatprep.subr.mxu0 0.0
      %3818 = vmatpush1.msra.mxu0 0.0
      %3819 = vmatprep.subr.mxu0 0.0
      %3820 = vmatpush1.msra.mxu0 0.0
      %3821 = vmatprep.subr.mxu0 0.0
      %3822 = vmatpush1.msra.mxu0 0.0
      %3823 = vmatprep.subr.mxu0 0.0
      %3824 = vmatpush1.msra.mxu0 0.0
      %3825 = vmatprep.subr.mxu0 0.0
      %3826 = vmatpush1.msra.mxu0 0.0
      %3827 = vmatprep.subr.mxu0 0.0
      %3828 = vmatpush1.msra.mxu0 0.0
      %3829 = vmatprep.subr.mxu0 0.0
      %3830 = vmatpush1.msra.mxu0 0.0
      %3831 = vmatprep.subr.mxu0 0.0
      %3832 = vmatpush1.msra.mxu0 0.0
      %3833 = vmatprep.subr.mxu0 0.0
      %3834 = vmatpush1.msra.mxu0 0.0
      %3835 = vmatprep.subr.mxu0 0.0
      %3836 = vmatpush1.msra.mxu0 0.0
      %3837 = vmatprep.subr.mxu0 0.0
      %3838 = vmatpush1.msra.mxu0 0.0
      %3839 = vmatprep.subr.mxu0 0.0
      %3840 = vmatpush1.msra.mxu0 0.0
      %3841 = vmatprep.subr.mxu0 0.0
      %3842 = vmatpush1.msra.mxu0 0.0
      %3843 = vmatprep.subr.mxu0 0.0
      %3844 = vmatpush1.msra.mxu0 0.0
      %3845 = vmatprep.subr.mxu0 0.0
      %3846 = vmatpush1.msra.mxu0 0.0
      %3847 = vmatprep.subr.mxu0 0.0
      %3848 = vmatpush1.msra.mxu0 0.0
      %3849 = vmatprep.subr.mxu0 0.0
      %3850 = vmatpush1.msra.mxu0 0.0
      %3851 = vmatprep.subr.mxu0 0.0
      %3852 = vmatpush1.msra.mxu0 0.0
      %3853 = vmatprep.subr.mxu0 0.0
      %3854 = vmatpush1.msra.mxu0 0.0
      %3855 = vmatprep.subr.mxu0 0.0
      %3856 = vmatpush1.msra.mxu0 0.0
      %3857 = vmatprep.subr.mxu0 0.0
      %3858 = vmatpush1.msra.mxu0 0.0
      %3859 = vmatprep.subr.mxu0 0.0
      %3860 = vmatpush1.msra.mxu0 0.0
      %3861 = vmatprep.subr.mxu0 0.0
      %3862 = vmatpush1.msra.mxu0 0.0
      %3863 = vmatprep.subr.mxu0 0.0
      %3864 = vmatpush1.msra.mxu0 0.0
      %3865 = vmatprep.mubr.f32.mxu0 0.0
      %3866 = vmatmul.mubr.f32.gmra.mrb[0].mxu0 %v3775
      %v3867 = vpop.f32.mrb[0].mxu0
      %v3868 = vadd.f32 0.0, %v3867
      %v3869 = vpop.f32.mrb[0].mxu0
      %3870 = vmatprep.mubr.f32.mxu0 0.0
      %3871 = vmatmul.mubr.f32.gmra.mrb[0].mxu0 %v3778
      %v3872 = vpop.f32.mrb[0].mxu0
      %v3873 = vadd.f32 0.0, %v3872
      %v3874 = vpop.f32.mrb[0].mxu0
      %3875 = vmatprep.mubr.f32.mxu0 0.0
      %3876 = vmatmul.mubr.f32.gmra.mrb[0].mxu0 %v3781
      %v3877 = vpop.f32.mrb[0].mxu0
      %v3878 = vadd.f32 0.0, %v3877
      %v3879 = vpop.f32.mrb[0].mxu0
      %3880 = vmatprep.mubr.f32.mxu0 0.0
      %3881 = vmatmul.mubr.f32.gmra.mrb[0].mxu0 %v3784
      %v3882 = vpop.f32.mrb[0].mxu0
      %v3883 = vadd.f32 0.0, %v3882
      %v3884 = vpop.f32.mrb[0].mxu0
      %3885 = vmatprep.mubr.f32.mxu0 0.0
      %3886 = vmatmul.mubr.f32.gmra.mrb[0].mxu0 %v3787
      %v3887 = vpop.f32.mrb[0].mxu0
      %v3888 = vadd.f32 0.0, %v3887
      %v3889 = vpop.f32.mrb[0].mxu0
      %3890 = vmatprep.mubr.f32.mxu0 0.0
      %3891 = vmatmul.mubr.f32.gmra.mrb[0].mxu0 %v3790
      %v3892 = vpop.f32.mrb[0].mxu0
      %v3893 = vadd.f32 0.0, %v3892
      %v3894 = vpop.f32.mrb[0].mxu0
      %3895 = vmatprep.mubr.f32.mxu0 0.0
      %3896 = vmatmul.mubr.f32.gmra.mrb[0].mxu0 %v3793
      %v3897 = vpop.f32.mrb[0].mxu0
      %v3898 = vadd.f32 0.0, %v3897
      %v3899 = vpop.f32.mrb[0].mxu0
      %3900 = vmatprep.mubr.f32.mxu0 0.0
      %3901 = vmatmul.mubr.f32.gmra.mrb[0].mxu0 %v3796
      %v3902 = vpop.f32.mrb[0].mxu0
      %v3903 = vadd.f32 0.0, %v3902
      %v3904 = vpop.f32.mrb[0].mxu0
      %3905 = vdwg.mxu0
      %3906 = vst.msk [vmem:[%s386] sm:$0xff] %vm407, %v3868
      %3907 = vst.msk [vmem:[%s386 + $0x8] sm:$0xff] %vm407, %v3873
      %3908 = vst.msk [vmem:[%s386 + $0x10] sm:$0xff] %vm407, %v3878
      %3909 = vst.msk [vmem:[%s386 + $0x18] sm:$0xff] %vm407, %v3883
      %3910 = vst.msk [vmem:[%s386 + $0x20] sm:$0xff] %vm407, %v3888
      %3911 = vst.msk [vmem:[%s386 + $0x28] sm:$0xff] %vm407, %v3893
      %3912 = vst.msk [vmem:[%s386 + $0x30] sm:$0xff] %vm407, %v3898
      %3913 = vst.msk [vmem:[%s386 + $0x38] sm:$0xff] %vm407, %v3903
      %p3914 = scmp.lt.s32.totalorder %s22, 1
      %s3915 = scalar_select %p3914, %s22, 1
      %s3916 = smul.addr %s3915, 8
      %s3917 = smul.addr %s3916, 8
      %s3918 = scalar_lea.vmem %s11, %s3917
      // Predicated region
      $region65: #{weight_upsample_forward.4} parent=63 // pred_check
        %p3919 = pneg %p276
      $region66: #{weight_upsample_forward.4} parent=63 // pred_check_branch
        %3921 = sbr.rel (%p3919) target = $region68
      $region67: #{weight_upsample_forward.4} parent=63 // pred_region
        _
      $region68: #{weight_upsample_forward.4} parent=63 // pred_fallthru
        _
    $region64: #{weight_upsample_forward.4} parent=5 // pred_fallthru
      _
    %p3922 = scmp.le.s32.totalorder 2, %s17
    // Predicated region
    $region69: #{weight_upsample_forward.4} parent=5 // pred_check
      %p3923 = pneg %p3922
    $region70: #{weight_upsample_forward.4} parent=5 // pred_check_branch
      %3925 = sbr.rel (%p3923) target = $region72
    $region71: #{weight_upsample_forward.4} parent=5 // pred_region
      %s3926 = ssub.s32 %s17, 2
      // Predicated region
      $region73: #{weight_upsample_forward.4} parent=71 // pred_check
        %p3927 = pneg %p282
      $region74: #{weight_upsample_forward.4} parent=71 // pred_check_branch
        %3929 = sbr.rel (%p3927) target = $region76
      $region75: #{weight_upsample_forward.4} parent=71 // pred_region
        %p3930 = scmp.lt.s32.totalorder %s23, 1
        %s3931 = scalar_select %p3930, %s23, 1
        %s3932 = smul.addr %s3931, 8
        %s3933 = smul.addr %s3932, 8
        %s3934 = scalar_lea.vmem %s11, %s3933
      $region76: #{weight_upsample_forward.4} parent=71 // pred_fallthru
        _
    $region72: #{weight_upsample_forward.4} parent=5 // pred_fallthru
      _
  $region6: #{weight_upsample_forward.4} parent=0 // loop_footer
    %s21 = sadd.s32 1, %s17
  $region7: #{weight_upsample_forward.4} parent=0 // loop_footer_branch
    %16 = sbr.rel target = $region3
  $region8: #{weight_upsample_forward.4} parent=0 // loop_exit
    _

</llo_original>
